<compile_context>
chip_gen: v5e
topology: v5e:2x2
jax: 0.10.0
libtpu: 0.0.40
codegen_flags: <defaults>
</compile_context>

<pallas_src>
import math
from functools import partial

import numpy as np
import jax
import jax.numpy as jnp
from jax.experimental import pallas as pl
from jax.experimental.pallas import tpu as pltpu

# --------------------------- synthetic small config -------------------------
IN_CHANNELS = 3
TEMPORAL_PATCH_SIZE = 2
PATCH_SIZE = 2
SPATIAL_MERGE_SIZE = 2
SPATIAL_MERGE_UNIT = SPATIAL_MERGE_SIZE * SPATIAL_MERGE_SIZE
WINDOW_SIZE = 8                      # vit merger window = 8 // 2 // 2 = 2
HIDDEN = 64
NUM_HEADS = 4
HEAD_DIM = HIDDEN // NUM_HEADS       # 16
INTERMEDIATE = 128
DEPTH = 2
FULLATT_BLOCK_INDEXES = (1,)
OUT_HIDDEN = 32
RMS_EPS = 1e-6
PATCH_DIM = IN_CHANNELS * TEMPORAL_PATCH_SIZE * PATCH_SIZE * PATCH_SIZE  # 24
PATCH_DIM_PAD = ((PATCH_DIM + 127) // 128) * 128   # lane-aligned contraction dim
SEQ_ALIGN = 128                                    # batched-sequence padding unit
NEG = -1e30

# Budget scoped VMEM explicitly (half of physical capacity, capped at 64 MiB) so
# the same tiling stays portable across v5e/v6e (128 MiB) and v7x (64 MiB).
try:
    _VMEM_LIMIT = min(64 * 1024 * 1024,
                      int(pltpu.get_tpu_info().vmem_capacity_bytes) // 2)
except Exception:  # pragma: no cover - defensive, keep defaults
    _VMEM_LIMIT = None


def _single_buffered():
    """pl.Buffered(1) for weights with constant index_map (no double buffering)."""
    for ctor in (lambda: pl.Buffered(buffer_count=1), lambda: pl.Buffered(1)):
        try:
            mode = ctor()
            pl.BlockSpec((8, 128), lambda *_: (0, 0), pipeline_mode=mode)
            return mode
        except Exception:
            continue
    return None


_WEIGHT_PIPELINE = _single_buffered()


def _wspec(shape):
    """BlockSpec for grid-invariant (resident) weights / biases."""
    idx = lambda *_: (0,) * len(shape)
    if _WEIGHT_PIPELINE is not None:
        return pl.BlockSpec(shape, idx, pipeline_mode=_WEIGHT_PIPELINE)
    return pl.BlockSpec(shape, idx)


def _compiler_params(sems):
    kwargs = {"dimension_semantics": sems}
    if _VMEM_LIMIT is not None:
        kwargs["vmem_limit_bytes"] = _VMEM_LIMIT
    return pltpu.CompilerParams(**kwargs)


def _ce(flops, bytes_accessed, transcendentals=0):
    return pl.CostEstimate(flops=int(flops),
                           transcendentals=int(transcendentals),
                           bytes_accessed=int(bytes_accessed))


def _seq_tile(s, target=512):
    """Row tile for row-wise kernels: biggest divisor <= target (mem-bound roofline)."""
    if s <= target:
        return s
    for t in (target, 256, 128, 64, 32, 16, 8):
        if s % t == 0:
            return t
    return s


def _attn_q_tile(s, target=256):
    """Query tile: prefer >=2 tiles so the 'parallel' axis can shard across TCs."""
    for t in (target, 128, 64, 32, 16, 8):
        if 2 * t <= s and s % t == 0:
            return t
    return s


def _attn_kv_tile(s, target=256):
    """KV tile: lane-dense segment-id blocks require multiples of 128 when tiled."""
    if s <= target:
        return s
    for t in (target, 128):
        if s % t == 0:
            return t
    return s


# ------------------------------- Pallas kernels ------------------------------
def _linear_kernel(x_ref, w_ref, b_ref, o_ref):
    o_ref[...] = (jnp.dot(x_ref[...].astype(jnp.bfloat16), w_ref[...],
                          preferred_element_type=jnp.float32) + b_ref[...])


def pallas_linear(x, w, b):
    s, din = x.shape
    dout = w.shape[1]
    ts = _seq_tile(s)
    return pl.pallas_call(
        _linear_kernel,
        out_shape=jax.ShapeDtypeStruct((s, dout), jnp.float32),
        grid=(s // ts,),
        in_specs=[pl.BlockSpec((ts, din), lambda i: (i, 0)),
                  _wspec((din, dout)),
                  _wspec((1, dout))],
        out_specs=pl.BlockSpec((ts, dout), lambda i: (i, 0)),
        compiler_params=_compiler_params(("parallel",)),
        cost_estimate=_ce(2 * s * din * dout,
                          4 * s * din + 2 * din * dout + 4 * s * dout),
    )(x, w, b)


def _rmsnorm_kernel(x_ref, g_ref, o_ref):
    x = x_ref[...]
    var = jnp.mean(x * x, axis=-1, keepdims=True)
    o_ref[...] = x * jax.lax.rsqrt(var + RMS_EPS) * g_ref[...]


def pallas_rmsnorm(x, g):
    s, d = x.shape
    ts = _seq_tile(s)
    row = pl.BlockSpec((ts, d), lambda i: (i, 0))
    return pl.pallas_call(
        _rmsnorm_kernel,
        out_shape=jax.ShapeDtypeStruct((s, d), jnp.float32),
        grid=(s // ts,),
        in_specs=[row, _wspec((1, d))],
        out_specs=row,
        compiler_params=_compiler_params(("parallel",)),
    )(x, g)


def _qkv_kernel(x_ref, g_ref, w_ref, b_ref, cos_ref, sin_ref, rot_ref,
                q_ref, k_ref, v_ref):
    # fused RMSNorm -> ONE wide QKV matmul -> RoPE (rotate_half via +/-1 matmul).
    x = x_ref[...]
    var = jnp.mean(x * x, axis=-1, keepdims=True)
    xn = (x * jax.lax.rsqrt(var + RMS_EPS) * g_ref[...]).astype(jnp.bfloat16)
    qkv = jnp.dot(xn, w_ref[...], preferred_element_type=jnp.float32) + b_ref[...]
    q = qkv[:, :HIDDEN]
    k = qkv[:, HIDDEN:2 * HIDDEN]
    v = qkv[:, 2 * HIDDEN:]
    cos = cos_ref[...]                     # bf16, per-head tiled
    sin = sin_ref[...]
    rot = rot_ref[...]
    q_ref[...] = (q * cos + jnp.dot(q.astype(jnp.bfloat16), rot,
                                    preferred_element_type=jnp.float32) * sin
                  ).astype(q_ref.dtype)
    k_ref[...] = (k * cos + jnp.dot(k.astype(jnp.bfloat16), rot,
                                    preferred_element_type=jnp.float32) * sin
                  ).astype(k_ref.dtype)
    v_ref[...] = v.astype(v_ref.dtype)


def pallas_qkv(x, g, w_qkv, b_qkv, cos, sin, rot):
    s, d = x.shape
    d3 = w_qkv.shape[1]
    ts = _seq_tile(s)
    row = pl.BlockSpec((ts, d), lambda i: (i, 0))
    out_struct = jax.ShapeDtypeStruct((s, d), jnp.bfloat16)   # lane-dense bf16
    return pl.pallas_call(
        _qkv_kernel,
        out_shape=(out_struct, out_struct, out_struct),
        grid=(s // ts,),
        in_specs=[row, _wspec((1, d)), _wspec((d, d3)), _wspec((1, d3)),
                  row, row, _wspec((d, d))],
        out_specs=(row, row, row),
        compiler_params=_compiler_params(("parallel",)),
        cost_estimate=_ce(2 * s * d * d3 + 4 * s * d * d,
                          4 * s * d + 2 * d * d3 + 4 * s * d + 2 * d * d
                          + 3 * 2 * s * d),
    )(x, g, w_qkv, b_qkv, cos, sin, rot)


def _flash_attn_kernel(segq_ref, segk_ref, q_ref, k_ref, v_ref, o_ref,
                       m_ref, l_ref, acc_ref):
    # q/k/v arrive lane-dense [T, H*Dh] bf16; heads are split in-kernel with
    # static lane slices (H small, statically unrolled 2-D matmuls).
    ki = pl.program_id(1)
    scale = 1.0 / math.sqrt(HEAD_DIM)

    @pl.when(ki == 0)
    def _():
        m_ref[...] = jnp.full(m_ref.shape, -jnp.inf, jnp.float32)
        l_ref[...] = jnp.zeros(l_ref.shape, jnp.float32)
        acc_ref[...] = jnp.zeros(acc_ref.shape, jnp.float32)

    mask = segq_ref[...] == segk_ref[...]                 # [TQ, TK] bool
    q = q_ref[...]                                        # [TQ, HIDDEN] bf16
    k = k_ref[...]                                        # [TK, HIDDEN] bf16
    v = v_ref[...]                                        # [TK, HIDDEN] bf16

    for h in range(NUM_HEADS):                            # static unroll
        lo = h * HEAD_DIM
        qh = q[:, lo:lo + HEAD_DIM]
        kh = k[:, lo:lo + HEAD_DIM]
        vh = v[:, lo:lo + HEAD_DIM]
        sc = jax.lax.dot_general(qh, kh, (((1,), (1,)), ((), ())),
                                 preferred_element_type=jnp.float32) * scale
        sc = jnp.where(mask, sc, NEG)                     # select mask, no add
        m_prev = m_ref[h]                                 # [TQ, 1]
        m_new = jnp.maximum(m_prev, jnp.max(sc, axis=-1, keepdims=True))
        alpha = jnp.exp(m_prev - m_new)
        p = jnp.exp(sc - m_new)
        l_ref[h] = alpha * l_ref[h] + jnp.sum(p, axis=-1, keepdims=True)
        acc_ref[h] = alpha * acc_ref[h] + jnp.dot(
            p.astype(jnp.bfloat16), vh, preferred_element_type=jnp.float32)
        m_ref[h] = m_new

    @pl.when(ki == pl.num_programs(1) - 1)
    def _():
        for h in range(NUM_HEADS):
            lo = h * HEAD_DIM
            o_ref[:, lo:lo + HEAD_DIM] = (
                acc_ref[h] * pl.reciprocal(l_ref[h], approx=True)
            ).astype(o_ref.dtype)


def pallas_flash_attn(q, k, v, seg_r, seg_c):
    s, d = q.shape
    tq = _attn_q_tile(s)
    tk = _attn_kv_tile(s)
    grid = (s // tq, s // tk)
    return pl.pallas_call(
        _flash_attn_kernel,
        out_shape=jax.ShapeDtypeStruct((s, d), jnp.bfloat16),   # lane-dense bf16
        grid=grid,
        in_specs=[
            pl.BlockSpec((tq, 1), lambda qi, ki: (qi, 0)),
            pl.BlockSpec((1, tk), lambda qi, ki: (0, ki)),
            pl.BlockSpec((tq, d), lambda qi, ki: (qi, 0)),
            pl.BlockSpec((tk, d), lambda qi, ki: (ki, 0)),
            pl.BlockSpec((tk, d), lambda qi, ki: (ki, 0)),
        ],
        out_specs=pl.BlockSpec((tq, d), lambda qi, ki: (qi, 0)),
        scratch_shapes=[
            pltpu.VMEM((NUM_HEADS, tq, 1), jnp.float32),
            pltpu.VMEM((NUM_HEADS, tq, 1), jnp.float32),
            pltpu.VMEM((NUM_HEADS, tq, HEAD_DIM), jnp.float32),
        ],
        compiler_params=_compiler_params(("parallel", "arbitrary")),
        cost_estimate=_ce(4 * s * s * d,
                          3 * 2 * s * d + 2 * s * d + 8 * s,
                          transcendentals=NUM_HEADS * s * s),
    )(seg_r, seg_c, q, k, v)


def _proj_mlp_kernel(x_ref, a_ref, wo_ref, bo_ref, g2_ref, wgu_ref, bgu_ref,
                     wd_ref, bd_ref, o_ref):
    # fused: attn-out proj + residual, RMSNorm, fused gate/up + SiLU, down + residual.
    h1 = (x_ref[...]
          + jnp.dot(a_ref[...], wo_ref[...], preferred_element_type=jnp.float32)
          + bo_ref[...])
    var = jnp.mean(h1 * h1, axis=-1, keepdims=True)
    xn = (h1 * jax.lax.rsqrt(var + RMS_EPS) * g2_ref[...]).astype(jnp.bfloat16)
    gu = jnp.dot(xn, wgu_ref[...], preferred_element_type=jnp.float32) + bgu_ref[...]
    di = gu.shape[-1] // 2
    g = gu[:, :di]
    u = gu[:, di:]
    silu = g * pl.reciprocal(1.0 + jnp.exp(-g), approx=True)
    hmid = (silu * u).astype(jnp.bfloat16)
    o_ref[...] = (h1
                  + jnp.dot(hmid, wd_ref[...], preferred_element_type=jnp.float32)
                  + bd_ref[...])


def pallas_proj_mlp(x, a, bp):
    s, d = x.shape
    d2i = bp["w_gu"].shape[1]
    ts = _seq_tile(s)
    row = pl.BlockSpec((ts, d), lambda i: (i, 0))
    return pl.pallas_call(
        _proj_mlp_kernel,
        out_shape=jax.ShapeDtypeStruct((s, d), jnp.float32),
        grid=(s // ts,),
        in_specs=[row, row,
                  _wspec((d, d)), _wspec((1, d)), _wspec((1, d)),
                  _wspec((d, d2i)), _wspec((1, d2i)),
                  _wspec((d2i // 2, d)), _wspec((1, d))],
        out_specs=row,
        input_output_aliases={0: 0},                     # in-place residual update
        compiler_params=_compiler_params(("parallel",)),
        cost_estimate=_ce(2 * s * d * (d + d2i + d2i // 2),
                          8 * s * d + 2 * d * (d + d2i + d2i // 2) + 4 * s * d,
                          transcendentals=s * d2i // 2),
    )(x, a, bp["wo"], bp["bo"], bp["norm2_w"], bp["w_gu"], bp["b_gu"],
      bp["wd"], bp["bd"])


def _gelu_tanh(h):
    # TODO(synk): torch.nn.GELU() is exact (erf-based); tanh approximation used here.
    c = math.sqrt(2.0 / math.pi)
    return 0.5 * h * (1.0 + jnp.tanh(c * (h + 0.044715 * h * h * h)))


def _merger_kernel(x_ref, w1_ref, b1_ref, w2_ref, b2_ref, o_ref):
    h = jnp.dot(x_ref[...].astype(jnp.bfloat16), w1_ref[...],
                preferred_element_type=jnp.float32) + b1_ref[...]
    h = _gelu_tanh(h)
    o_ref[...] = jnp.dot(h.astype(jnp.bfloat16), w2_ref[...],
                         preferred_element_type=jnp.float32) + b2_ref[...]


def pallas_merger(x, w1, b1, w2, b2):
    s, d = x.shape
    dh = w1.shape[1]
    do = w2.shape[1]
    ts = _seq_tile(s)
    return pl.pallas_call(
        _merger_kernel,
        out_shape=jax.ShapeDtypeStruct((s, do), jnp.float32),
        grid=(s // ts,),
        in_specs=[pl.BlockSpec((ts, d), lambda i: (i, 0)),
                  _wspec((d, dh)), _wspec((1, dh)),
                  _wspec((dh, do)), _wspec((1, do))],
        out_specs=pl.BlockSpec((ts, do), lambda i: (i, 0)),
        compiler_params=_compiler_params(("parallel",)),
        cost_estimate=_ce(2 * s * (d * dh + dh * do),
                          4 * s * d + 2 * (d * dh + dh * do) + 4 * s * do,
                          transcendentals=s * dh),
    )(x, w1, b1, w2, b2)


# ------------------------------ shared helpers --------------------------------
def _mm(x, w):
    """bf16-operand matmul with f32 accumulation (mirrors in-kernel casts)."""
    return jnp.dot(x.astype(jnp.bfloat16), w, preferred_element_type=jnp.float32)


def _rmsnorm_ref(x, g):
    var = jnp.mean(x * x, axis=-1, keepdims=True)
    return x * jax.lax.rsqrt(var + RMS_EPS) * g


def _to_heads(t):
    s = t.shape[0]
    return jnp.transpose(t.reshape(s, NUM_HEADS, HEAD_DIM), (1, 0, 2))


def _from_heads(o):
    s = o.shape[1]
    return jnp.transpose(o, (1, 0, 2)).reshape(s, HIDDEN)


def _rot_mat_full():
    """Block-diagonal matrix T with x @ T == rotate_half(x) per head."""
    d2 = HEAD_DIM // 2
    t = np.zeros((HEAD_DIM, HEAD_DIM), np.float32)
    for i in range(d2):
        t[i, d2 + i] = 1.0
        t[d2 + i, i] = -1.0
    full = np.kron(np.eye(NUM_HEADS, dtype=np.float32), t)
    return jnp.asarray(full, jnp.bfloat16)


# ------------------------------- model forward --------------------------------
def vision_block(x, bp, cos, sin, rot, seg_r, seg_c, use_pallas):
    if use_pallas:
        q, k, v = pallas_qkv(x, bp["norm1_w"], bp["w_qkv"], bp["b_qkv"],
                             cos, sin, rot)
        a = pallas_flash_attn(q, k, v, seg_r, seg_c)        # [S, HIDDEN] bf16
        return pallas_proj_mlp(x, a, bp)

    # ---- pure-JAX reference of identical math ----
    xn = _rmsnorm_ref(x, bp["norm1_w"])
    qkv = _mm(xn, bp["w_qkv"]) + bp["b_qkv"]
    q = qkv[:, :HIDDEN]
    k = qkv[:, HIDDEN:2 * HIDDEN]
    v = qkv[:, 2 * HIDDEN:]
    qe = (q * cos + _mm(q, rot) * sin).astype(jnp.bfloat16)
    ke = (k * cos + _mm(k, rot) * sin).astype(jnp.bfloat16)
    vb = v.astype(jnp.bfloat16)
    qh, kh, vh = _to_heads(qe), _to_heads(ke), _to_heads(vb)
    scale = 1.0 / math.sqrt(HEAD_DIM)
    scores = jnp.einsum("hqd,hkd->hqk", qh, kh,
                        preferred_element_type=jnp.float32) * scale
    scores = jnp.where((seg_r == seg_c)[None], scores, NEG)
    p = jax.nn.softmax(scores, axis=-1)
    o = jnp.einsum("hqk,hkd->hqd", p.astype(jnp.bfloat16), vh,
                   preferred_element_type=jnp.float32)
    a = _from_heads(o).astype(jnp.bfloat16)
    h1 = x + _mm(a, bp["wo"]) + bp["bo"]
    xn2 = _rmsnorm_ref(h1, bp["norm2_w"])
    gu = _mm(xn2, bp["w_gu"]) + bp["b_gu"]
    g = gu[:, :INTERMEDIATE]
    u = gu[:, INTERMEDIATE:]
    return h1 + _mm(jax.nn.silu(g) * u, bp["wd"]) + bp["bd"]


@partial(jax.jit, static_argnames=("use_pallas",))
def core_forward(pv, cos, sin, seg_full, seg_win, params, use_pallas):
    s = pv.shape[0]
    segf_r = seg_full.reshape(s, 1)
    segf_c = seg_full.reshape(1, s)
    segw_r = seg_win.reshape(s, 1)
    segw_c = seg_win.reshape(1, s)

    # patch embed (Conv3d with stride == kernel  ==>  per-patch linear)
    if use_pallas:
        hidden = pallas_linear(pv, params["patch_embed_w"], params["patch_embed_b"])
    else:
        hidden = _mm(pv, params["patch_embed_w"]) + params["patch_embed_b"]

    rot = params["rot_mat"]
    for i, bp in enumerate(params["blocks"]):
        if i in FULLATT_BLOCK_INDEXES:
            seg_r, seg_c = segf_r, segf_c
        else:
            seg_r, seg_c = segw_r, segw_c
        hidden = vision_block(hidden, bp, cos, sin, rot, seg_r, seg_c, use_pallas)

    # patch merger: RMSNorm -> view(-1, hidden*merge_unit) -> MLP(GELU)
    if use_pallas:
        x = pallas_rmsnorm(hidden, params["ln_q_w"])
    else:
        x = _rmsnorm_ref(hidden, params["ln_q_w"])
    x = x.reshape(s // SPATIAL_MERGE_UNIT, SPATIAL_MERGE_UNIT * HIDDEN)
    if use_pallas:
        return pallas_merger(x, params["merger_w1"], params["merger_b1"],
                             params["merger_w2"], params["merger_b2"])
    h = _mm(x, params["merger_w1"]) + params["merger_b1"]
    h = _gelu_tanh(h)
    return _mm(h, params["merger_w2"]) + params["merger_b2"]


# ------------------------------ host-side preprocess -------------------------
def preprocess(grid_thw):
    """rot-pos-emb frequencies, window index, cu_seqlens, cu_window_seqlens."""
    sm = SPATIAL_MERGE_SIZE
    smu = SPATIAL_MERGE_UNIT
    vit_ws = WINDOW_SIZE // sm // PATCH_SIZE

    pos_ids = []
    for t, h, w in grid_thw:
        t, h, w = int(t), int(h), int(w)
        hpos = np.broadcast_to(np.arange(h)[:, None], (h, w))
        hpos = hpos.reshape(h // sm, sm, w // sm, sm).transpose(0, 2, 1, 3).reshape(-1)
        wpos = np.broadcast_to(np.arange(w)[None, :], (h, w))
        wpos = wpos.reshape(h // sm, sm, w // sm, sm).transpose(0, 2, 1, 3).reshape(-1)
        pid = np.stack([hpos, wpos], axis=-1)
        pos_ids.append(np.tile(pid, (t, 1)))
    pos_ids = np.concatenate(pos_ids, axis=0)

    max_grid = int(grid_thw[:, 1:].max())
    dim = HEAD_DIM // 2
    inv_freq = 1.0 / (10000.0 ** (np.arange(0, dim, 2, dtype=np.float64) / dim))
    freqs = np.outer(np.arange(max_grid, dtype=np.float64), inv_freq)
    rpe = freqs[pos_ids].reshape(pos_ids.shape[0], -1)  # [seq, head_dim//2]

    window_index = []
    cu_window_seqlens = [0]
    wid_offset = 0
    for t, h, w in grid_thw:
        t, h, w = int(t), int(h), int(w)
        lgh, lgw = h // sm, w // sm
        index = np.arange(t * lgh * lgw).reshape(t, lgh, lgw)
        pad_h = (-lgh) % vit_ws
        pad_w = (-lgw) % vit_ws
        nwh = (lgh + pad_h) // vit_ws
        nww = (lgw + pad_w) // vit_ws
        idx_p = np.full((t, lgh + pad_h, lgw + pad_w), -100, dtype=np.int64)
        idx_p[:, :lgh, :lgw] = index
        idx_p = idx_p.reshape(t, nwh, vit_ws, nww, vit_ws)
        idx_p = idx_p.transpose(0, 1, 3, 2, 4).reshape(t, nwh * nww, vit_ws, vit_ws)
        seqlens = (idx_p != -100).sum(axis=(2, 3)).reshape(-1)
        flat = idx_p.reshape(-1)
        window_index.append(flat[flat != -100] + wid_offset)
        cu_tmp = np.cumsum(seqlens) * smu + cu_window_seqlens[-1]
        cu_window_seqlens.extend(cu_tmp.tolist())
        wid_offset += t * lgh * lgw
    window_index = np.concatenate(window_index)
    cu_window_seqlens = np.array(cu_window_seqlens, dtype=np.int64)
    keep = np.ones(cu_window_seqlens.shape[0], dtype=bool)
    keep[1:] = cu_window_seqlens[1:] != cu_window_seqlens[:-1]
    cu_window_seqlens = cu_window_seqlens[keep]

    cu_seqlens = np.repeat(grid_thw[:, 1] * grid_thw[:, 2], grid_thw[:, 0]).cumsum()
    cu_seqlens = np.concatenate([[0], cu_seqlens]).astype(np.int64)
    return cu_seqlens, cu_window_seqlens, rpe, window_index


def _segments(cu, seq):
    """Per-token segment ids (O(S) replacement for the O(S^2) additive mask)."""
    seg = np.zeros(seq, dtype=np.int32)
    for i in range(1, len(cu)):
        seg[int(cu[i - 1]):int(cu[i])] = i
    return seg


def drop_in_vision_transformer(pixel_values, grid_thw, params, use_pallas=True):
    """All images are window-gathered, concatenated into ONE padded sequence
    (segment ids isolate images / windows, padding tokens get segment 0), run
    through a single jitted core_forward, then split + un-permuted per image."""
    grids = np.asarray(grid_thw, dtype=np.int64)
    pixel_np = np.asarray(pixel_values)
    smu = SPATIAL_MERGE_UNIT

    pv_l, cos_l, sin_l, segf_l, segw_l, rev_l, seq_l = [], [], [], [], [], [], []
    full_off = win_off = px_off = 0
    for row in grids:
        seq = int(np.prod(row))
        cu_seq, cu_win, rpe, widx = preprocess(row.reshape(1, 3))

        # window-index gather applied to the *pixel* rows (commutes with the
        # per-row patch embed) so hidden states are never re-gathered.
        pv = pixel_np[px_off:px_off + seq]
        px_off += seq
        pv = pv.reshape(seq // smu, smu, -1)[widx].reshape(seq, -1)
        rpe = rpe.reshape(seq // smu, smu, -1)[widx].reshape(seq, -1)
        emb = np.concatenate([rpe, rpe], axis=-1)
        cos_l.append(np.tile(np.cos(emb), (1, NUM_HEADS)).astype(np.float32))
        sin_l.append(np.tile(np.sin(emb), (1, NUM_HEADS)).astype(np.float32))
        pv_l.append(pv.astype(np.float32))

        segf = _segments(cu_seq, seq) + full_off
        segw = _segments(cu_win, seq) + win_off
        full_off = int(segf.max())
        win_off = int(segw.max())
        segf_l.append(segf)
        segw_l.append(segw)
        rev_l.append(np.argsort(widx))
        seq_l.append(seq)

    pv = np.concatenate(pv_l, axis=0)
    cos = np.concatenate(cos_l, axis=0)
    sin = np.concatenate(sin_l, axis=0)
    segf = np.concatenate(segf_l, axis=0).astype(np.int32)
    segw = np.concatenate(segw_l, axis=0).astype(np.int32)

    total = pv.shape[0]
    s_pad = ((total + SEQ_ALIGN - 1) // SEQ_ALIGN) * SEQ_ALIGN
    pad = s_pad - total
    if pad:
        pv = np.pad(pv, ((0, pad), (0, 0)))
        cos = np.pad(cos, ((0, pad), (0, 0)), constant_values=1.0)
        sin = np.pad(sin, ((0, pad), (0, 0)))
        segf = np.pad(segf, (0, pad))          # segment 0 == padding-only segment
        segw = np.pad(segw, (0, pad))
    # lane-align the patch-embed contraction dim (24 -> 128 here, 1176 -> 1280 real)
    pv = np.pad(pv, ((0, 0), (0, PATCH_DIM_PAD - pv.shape[1])))

    merged = core_forward(jnp.asarray(pv),
                          jnp.asarray(cos).astype(jnp.bfloat16),
                          jnp.asarray(sin).astype(jnp.bfloat16),
                          jnp.asarray(segf), jnp.asarray(segw),
                          params, use_pallas=use_pallas)
    merged = np.asarray(jax.block_until_ready(merged))

    outs, off = [], 0
    for seq, rev in zip(seq_l, rev_l):
        rows = merged[off // smu:(off + seq) // smu]
        outs.append(rows[rev])                 # inverse window permutation
        off += seq
    return jnp.asarray(np.concatenate(outs, axis=0))


# ------------------------------- parameter init ------------------------------
def init_params(key):
    keys = jax.random.split(key, 8 + DEPTH)

    def w(k, shape):
        fan_in = shape[0]
        return (jax.random.normal(k, shape, dtype=jnp.float32)
                / np.sqrt(fan_in)).astype(jnp.bfloat16)

    def b(k, shape):
        return jax.random.normal(k, shape, dtype=jnp.float32) * 0.02

    pe_w = w(keys[0], (PATCH_DIM, HIDDEN))
    pe_w = jnp.concatenate(
        [pe_w, jnp.zeros((PATCH_DIM_PAD - PATCH_DIM, HIDDEN), pe_w.dtype)], axis=0)

    params = {
        "patch_embed_w": pe_w,
        "patch_embed_b": jnp.zeros((1, HIDDEN), jnp.float32),
        "ln_q_w": jnp.ones((1, HIDDEN), jnp.float32),
        "merger_w1": w(keys[1], (HIDDEN * SPATIAL_MERGE_UNIT, HIDDEN * SPATIAL_MERGE_UNIT)),
        "merger_b1": b(keys[2], (1, HIDDEN * SPATIAL_MERGE_UNIT)),
        "merger_w2": w(keys[3], (HIDDEN * SPATIAL_MERGE_UNIT, OUT_HIDDEN)),
        "merger_b2": b(keys[4], (1, OUT_HIDDEN)),
        "rot_mat": _rot_mat_full(),
        "blocks": [],
    }
    for i in range(DEPTH):
        bk = jax.random.split(keys[8 + i], 12)
        wq = w(bk[0], (HIDDEN, HIDDEN)); bq = b(bk[1], (1, HIDDEN))
        wk_ = w(bk[2], (HIDDEN, HIDDEN)); bk_ = b(bk[3], (1, HIDDEN))
        wv = w(bk[4], (HIDDEN, HIDDEN)); bv = b(bk[5], (1, HIDDEN))
        wg = w(bk[8], (HIDDEN, INTERMEDIATE)); bg = b(bk[9], (1, INTERMEDIATE))
        wu = w(bk[10], (HIDDEN, INTERMEDIATE)); bu = b(bk[11], (1, INTERMEDIATE))
        params["blocks"].append({
            "norm1_w": jnp.ones((1, HIDDEN), jnp.float32),
            "norm2_w": jnp.ones((1, HIDDEN), jnp.float32),
            # fused QKV / gate+up weights: one wide MXU pass instead of 3 / 2.
            "w_qkv": jnp.concatenate([wq, wk_, wv], axis=1),
            "b_qkv": jnp.concatenate([bq, bk_, bv], axis=1),
            "wo": w(bk[6], (HIDDEN, HIDDEN)),
            "bo": b(bk[7], (1, HIDDEN)),
            "w_gu": jnp.concatenate([wg, wu], axis=1),
            "b_gu": jnp.concatenate([bg, bu], axis=1),
            "wd": w(jax.random.fold_in(bk[0], 7), (INTERMEDIATE, HIDDEN)),
            "bd": b(jax.random.fold_in(bk[1], 7), (1, HIDDEN)),
        })
    return params


# ------------------------------------ main ------------------------------------
if __name__ == "__main__":
    key = jax.random.PRNGKey(0)
    params = init_params(key)

    # two images: 8x8 grid (64 patches) and 4x8 grid (32 patches)
    grid_thw = np.array([[1, 8, 8], [1, 4, 8]], dtype=np.int64)
    num_patches = int(np.prod(grid_thw, axis=1).sum())
    pixel_values = jax.random.normal(
        jax.random.fold_in(key, 12345), (num_patches, PATCH_DIM), dtype=jnp.float32
    )

    out = drop_in_vision_transformer(pixel_values, grid_thw, params, use_pallas=True)
    out = jax.block_until_ready(out)

    # pure-JAX reference of the same math for a sanity check
    ref = drop_in_vision_transformer(pixel_values, grid_thw, params, use_pallas=False)
    ref = jax.block_until_ready(ref)

    assert out.shape == (num_patches // SPATIAL_MERGE_UNIT, OUT_HIDDEN)
    np.testing.assert_allclose(np.asarray(out), np.asarray(ref), rtol=2e-2, atol=2e-2)
    print("KERNEL_OK")
</pallas_src>

<mosaic_0001>
module attributes {stable_mosaic.version = 11 : i64} {
  func.func @_qkv_kernel(%arg0: i32, %arg1: memref<128x64xf32, #tpu.memory_space<vmem>>, %arg2: memref<1x64xf32, #tpu.memory_space<vmem>>, %arg3: memref<64x192xbf16, #tpu.memory_space<vmem>>, %arg4: memref<1x192xf32, #tpu.memory_space<vmem>>, %arg5: memref<128x64xbf16, #tpu.memory_space<vmem>>, %arg6: memref<128x64xbf16, #tpu.memory_space<vmem>>, %arg7: memref<64x64xbf16, #tpu.memory_space<vmem>>, %arg8: memref<128x64xbf16, #tpu.memory_space<vmem>>, %arg9: memref<128x64xbf16, #tpu.memory_space<vmem>>, %arg10: memref<128x64xbf16, #tpu.memory_space<vmem>>) attributes {dimension_semantics = [#tpu.dimension_semantics<parallel>], iteration_bounds = array<i64: 1>, scalar_prefetch = 0 : i64, scratch_operands = 0 : i64, tpu.core_type = #tpu.core_type<tc>, window_params = [{transform_indices = @transform_0, window_bounds = array<i64: 128, 64>}, {pipeline_mode = #tpu.pipeline_mode<synchronous>, transform_indices = @transform_1, window_bounds = array<i64: 1, 64>}, {pipeline_mode = #tpu.pipeline_mode<synchronous>, transform_indices = @transform_2, window_bounds = array<i64: 64, 192>}, {pipeline_mode = #tpu.pipeline_mode<synchronous>, transform_indices = @transform_3, window_bounds = array<i64: 1, 192>}, {transform_indices = @transform_4, window_bounds = array<i64: 128, 64>}, {transform_indices = @transform_5, window_bounds = array<i64: 128, 64>}, {pipeline_mode = #tpu.pipeline_mode<synchronous>, transform_indices = @transform_6, window_bounds = array<i64: 64, 64>}, {transform_indices = @transform_7, window_bounds = array<i64: 128, 64>}, {transform_indices = @transform_8, window_bounds = array<i64: 128, 64>}, {transform_indices = @transform_9, window_bounds = array<i64: 128, 64>}]} {
    %c0 = arith.constant 0 : index
    %c0_0 = arith.constant 0 : index
    %0 = vector.load %arg1[%c0, %c0_0] : memref<128x64xf32, #tpu.memory_space<vmem>>, vector<128x64xf32>
    %1 = arith.mulf %0, %0 : vector<128x64xf32>
    %cst = arith.constant dense<0.000000e+00> : vector<128xf32>
    %2 = vector.multi_reduction <add>, %1, %cst [1] : vector<128x64xf32> to vector<128xf32>
    %3 = vector.shape_cast %2 : vector<128xf32> to vector<128x1xf32>
    %cst_1 = arith.constant 6.400000e+01 : f32
    %4 = vector.broadcast %cst_1 : f32 to vector<128x1xf32>
    %5 = arith.divf %3, %4 : vector<128x1xf32>
    %cst_2 = arith.constant 9.99999997E-7 : f32
    %6 = vector.broadcast %cst_2 : f32 to vector<128x1xf32>
    %7 = arith.addf %5, %6 : vector<128x1xf32>
    %8 = math.rsqrt %7 : vector<128x1xf32>
    %9 = vector.broadcast %8 : vector<128x1xf32> to vector<128x64xf32>
    %10 = arith.mulf %0, %9 : vector<128x64xf32>
    %c0_3 = arith.constant 0 : index
    %c0_4 = arith.constant 0 : index
    %11 = vector.load %arg2[%c0_3, %c0_4] : memref<1x64xf32, #tpu.memory_space<vmem>>, vector<1x64xf32>
    %12 = vector.broadcast %11 : vector<1x64xf32> to vector<128x64xf32>
    %13 = arith.mulf %10, %12 : vector<128x64xf32>
    %14 = arith.truncf %13 : vector<128x64xf32> to vector<128x64xbf16>
    %c0_5 = arith.constant 0 : index
    %c0_6 = arith.constant 0 : index
    %15 = vector.load %arg3[%c0_5, %c0_6] : memref<64x192xbf16, #tpu.memory_space<vmem>>, vector<64x192xbf16>
    %cst_7 = arith.constant dense<0.000000e+00> : vector<128x192xf32>
    %16 = tpu.matmul %14, %15, %cst_7 {dimension_numbers = #tpu.dot_dimension_numbers<[1], [0], [0], [1], [0, 0, 1, 1], [], []>} : vector<128x64xbf16>, vector<64x192xbf16>, vector<128x192xf32> -> vector<128x192xf32>
    %c0_8 = arith.constant 0 : index
    %c0_9 = arith.constant 0 : index
    %17 = vector.load %arg4[%c0_8, %c0_9] : memref<1x192xf32, #tpu.memory_space<vmem>>, vector<1x192xf32>
    %18 = vector.broadcast %17 : vector<1x192xf32> to vector<128x192xf32>
    %19 = arith.addf %16, %18 : vector<128x192xf32>
    %20 = vector.extract_strided_slice %19 {offsets = [0, 0], sizes = [128, 64], strides = [1, 1]} : vector<128x192xf32> to vector<128x64xf32>
    %21 = vector.extract_strided_slice %19 {offsets = [0, 64], sizes = [128, 64], strides = [1, 1]} : vector<128x192xf32> to vector<128x64xf32>
    %22 = vector.extract_strided_slice %19 {offsets = [0, 128], sizes = [128, 64], strides = [1, 1]} : vector<128x192xf32> to vector<128x64xf32>
    %c0_10 = arith.constant 0 : index
    %c0_11 = arith.constant 0 : index
    %23 = vector.load %arg5[%c0_10, %c0_11] : memref<128x64xbf16, #tpu.memory_space<vmem>>, vector<128x64xbf16>
    %c0_12 = arith.constant 0 : index
    %c0_13 = arith.constant 0 : index
    %24 = vector.load %arg6[%c0_12, %c0_13] : memref<128x64xbf16, #tpu.memory_space<vmem>>, vector<128x64xbf16>
    %c0_14 = arith.constant 0 : index
    %c0_15 = arith.constant 0 : index
    %25 = vector.load %arg7[%c0_14, %c0_15] : memref<64x64xbf16, #tpu.memory_space<vmem>>, vector<64x64xbf16>
    %26 = arith.extf %23 : vector<128x64xbf16> to vector<128x64xf32>
    %27 = arith.mulf %20, %26 : vector<128x64xf32>
    %28 = arith.truncf %20 : vector<128x64xf32> to vector<128x64xbf16>
    %cst_16 = arith.constant dense<0.000000e+00> : vector<128x64xf32>
    %29 = tpu.matmul %28, %25, %cst_16 {dimension_numbers = #tpu.dot_dimension_numbers<[1], [0], [0], [1], [0, 0, 1, 1], [], []>} : vector<128x64xbf16>, vector<64x64xbf16>, vector<128x64xf32> -> vector<128x64xf32>
    %30 = arith.extf %24 : vector<128x64xbf16> to vector<128x64xf32>
    %31 = arith.mulf %29, %30 : vector<128x64xf32>
    %32 = arith.addf %27, %31 : vector<128x64xf32>
    %33 = arith.truncf %32 : vector<128x64xf32> to vector<128x64xbf16>
    %c0_17 = arith.constant 0 : index
    %c0_18 = arith.constant 0 : index
    %34 = vector.load %arg8[%c0_17, %c0_18] : memref<128x64xbf16, #tpu.memory_space<vmem>>, vector<128x64xbf16>
    tpu.vector_store %arg8[%c0_17, %c0_18], %33 {strides = array<i32>} : memref<128x64xbf16, #tpu.memory_space<vmem>>, vector<128x64xbf16>,
    %35 = arith.extf %23 : vector<128x64xbf16> to vector<128x64xf32>
    %36 = arith.mulf %21, %35 : vector<128x64xf32>
    %37 = arith.truncf %21 : vector<128x64xf32> to vector<128x64xbf16>
    %cst_19 = arith.constant dense<0.000000e+00> : vector<128x64xf32>
    %38 = tpu.matmul %37, %25, %cst_19 {dimension_numbers = #tpu.dot_dimension_numbers<[1], [0], [0], [1], [0, 0, 1, 1], [], []>} : vector<128x64xbf16>, vector<64x64xbf16>, vector<128x64xf32> -> vector<128x64xf32>
    %39 = arith.extf %24 : vector<128x64xbf16> to vector<128x64xf32>
    %40 = arith.mulf %38, %39 : vector<128x64xf32>
    %41 = arith.addf %36, %40 : vector<128x64xf32>
    %42 = arith.truncf %41 : vector<128x64xf32> to vector<128x64xbf16>
    %c0_20 = arith.constant 0 : index
    %c0_21 = arith.constant 0 : index
    %43 = vector.load %arg9[%c0_20, %c0_21] : memref<128x64xbf16, #tpu.memory_space<vmem>>, vector<128x64xbf16>
    tpu.vector_store %arg9[%c0_20, %c0_21], %42 {strides = array<i32>} : memref<128x64xbf16, #tpu.memory_space<vmem>>, vector<128x64xbf16>,
    %44 = arith.truncf %22 : vector<128x64xf32> to vector<128x64xbf16>
    %c0_22 = arith.constant 0 : index
    %c0_23 = arith.constant 0 : index
    %45 = vector.load %arg10[%c0_22, %c0_23] : memref<128x64xbf16, #tpu.memory_space<vmem>>, vector<128x64xbf16>
    tpu.vector_store %arg10[%c0_22, %c0_23], %44 {strides = array<i32>} : memref<128x64xbf16, #tpu.memory_space<vmem>>, vector<128x64xbf16>,
    return
  }
  func.func @transform_0(%arg0: i32) -> (i32, i32) {
    %c0_i32 = arith.constant 0 : i32
    %c0_i32_0 = arith.constant 0 : i32
    return %arg0, %c0_i32 : i32, i32
  }
  func.func @transform_1(%arg0: i32) -> (i32, i32) {
    %c0_i32 = arith.constant 0 : i32
    %c0_i32_0 = arith.constant 0 : i32
    %c0_i32_1 = arith.constant 0 : i32
    return %c0_i32, %c0_i32_0 : i32, i32
  }
  func.func @transform_2(%arg0: i32) -> (i32, i32) {
    %c0_i32 = arith.constant 0 : i32
    %c0_i32_0 = arith.constant 0 : i32
    %c0_i32_1 = arith.constant 0 : i32
    return %c0_i32, %c0_i32_0 : i32, i32
  }
  func.func @transform_3(%arg0: i32) -> (i32, i32) {
    %c0_i32 = arith.constant 0 : i32
    %c0_i32_0 = arith.constant 0 : i32
    %c0_i32_1 = arith.constant 0 : i32
    return %c0_i32, %c0_i32_0 : i32, i32
  }
  func.func @transform_4(%arg0: i32) -> (i32, i32) {
    %c0_i32 = arith.constant 0 : i32
    %c0_i32_0 = arith.constant 0 : i32
    return %arg0, %c0_i32 : i32, i32
  }
  func.func @transform_5(%arg0: i32) -> (i32, i32) {
    %c0_i32 = arith.constant 0 : i32
    %c0_i32_0 = arith.constant 0 : i32
    return %arg0, %c0_i32 : i32, i32
  }
  func.func @transform_6(%arg0: i32) -> (i32, i32) {
    %c0_i32 = arith.constant 0 : i32
    %c0_i32_0 = arith.constant 0 : i32
    %c0_i32_1 = arith.constant 0 : i32
    return %c0_i32, %c0_i32_0 : i32, i32
  }
  func.func @transform_7(%arg0: i32) -> (i32, i32) {
    %c0_i32 = arith.constant 0 : i32
    %c0_i32_0 = arith.constant 0 : i32
    return %arg0, %c0_i32 : i32, i32
  }
  func.func @transform_8(%arg0: i32) -> (i32, i32) {
    %c0_i32 = arith.constant 0 : i32
    %c0_i32_0 = arith.constant 0 : i32
    return %arg0, %c0_i32 : i32, i32
  }
  func.func @transform_9(%arg0: i32) -> (i32, i32) {
    %c0_i32 = arith.constant 0 : i32
    %c0_i32_0 = arith.constant 0 : i32
    return %arg0, %c0_i32 : i32, i32
  }
}

module attributes {stable_mosaic.version = 11 : i64} {
  func.func @_linear_kernel(%arg0: i32, %arg1: memref<128x128xf32, #tpu.memory_space<vmem>>, %arg2: memref<128x64xbf16, #tpu.memory_space<vmem>>, %arg3: memref<1x64xf32, #tpu.memory_space<vmem>>, %arg4: memref<128x64xf32, #tpu.memory_space<vmem>>) attributes {dimension_semantics = [#tpu.dimension_semantics<parallel>], iteration_bounds = array<i64: 1>, scalar_prefetch = 0 : i64, scratch_operands = 0 : i64, tpu.core_type = #tpu.core_type<tc>, window_params = [{transform_indices = @transform_0, window_bounds = array<i64: 128, 128>}, {pipeline_mode = #tpu.pipeline_mode<synchronous>, transform_indices = @transform_1, window_bounds = array<i64: 128, 64>}, {pipeline_mode = #tpu.pipeline_mode<synchronous>, transform_indices = @transform_2, window_bounds = array<i64: 1, 64>}, {transform_indices = @transform_3, window_bounds = array<i64: 128, 64>}]} {
    %c0 = arith.constant 0 : index
    %c0_0 = arith.constant 0 : index
    %0 = vector.load %arg1[%c0, %c0_0] : memref<128x128xf32, #tpu.memory_space<vmem>>, vector<128x128xf32>
    %1 = arith.truncf %0 : vector<128x128xf32> to vector<128x128xbf16>
    %c0_1 = arith.constant 0 : index
    %c0_2 = arith.constant 0 : index
    %2 = vector.load %arg2[%c0_1, %c0_2] : memref<128x64xbf16, #tpu.memory_space<vmem>>, vector<128x64xbf16>
    %cst = arith.constant dense<0.000000e+00> : vector<128x64xf32>
    %3 = tpu.matmul %1, %2, %cst {dimension_numbers = #tpu.dot_dimension_numbers<[1], [0], [0], [1], [0, 0, 1, 1], [], []>} : vector<128x128xbf16>, vector<128x64xbf16>, vector<128x64xf32> -> vector<128x64xf32>
    %c0_3 = arith.constant 0 : index
    %c0_4 = arith.constant 0 : index
    %4 = vector.load %arg3[%c0_3, %c0_4] : memref<1x64xf32, #tpu.memory_space<vmem>>, vector<1x64xf32>
    %5 = vector.broadcast %4 : vector<1x64xf32> to vector<128x64xf32>
    %6 = arith.addf %3, %5 : vector<128x64xf32>
    %c0_5 = arith.constant 0 : index
    %c0_6 = arith.constant 0 : index
    %7 = vector.load %arg4[%c0_5, %c0_6] : memref<128x64xf32, #tpu.memory_space<vmem>>, vector<128x64xf32>
    tpu.vector_store %arg4[%c0_5, %c0_6], %6 {strides = array<i32>} : memref<128x64xf32, #tpu.memory_space<vmem>>, vector<128x64xf32>,
    return
  }
  func.func @transform_0(%arg0: i32) -> (i32, i32) {
    %c0_i32 = arith.constant 0 : i32
    %c0_i32_0 = arith.constant 0 : i32
    return %arg0, %c0_i32 : i32, i32
  }
  func.func @transform_1(%arg0: i32) -> (i32, i32) {
    %c0_i32 = arith.constant 0 : i32
    %c0_i32_0 = arith.constant 0 : i32
    %c0_i32_1 = arith.constant 0 : i32
    return %c0_i32, %c0_i32_0 : i32, i32
  }
  func.func @transform_2(%arg0: i32) -> (i32, i32) {
    %c0_i32 = arith.constant 0 : i32
    %c0_i32_0 = arith.constant 0 : i32
    %c0_i32_1 = arith.constant 0 : i32
    return %c0_i32, %c0_i32_0 : i32, i32
  }
  func.func @transform_3(%arg0: i32) -> (i32, i32) {
    %c0_i32 = arith.constant 0 : i32
    %c0_i32_0 = arith.constant 0 : i32
    return %arg0, %c0_i32 : i32, i32
  }
}

module attributes {stable_mosaic.version = 11 : i64} {
  func.func @_proj_mlp_kernel(%arg0: i32, %arg1: memref<128x64xf32, #tpu.memory_space<vmem>>, %arg2: memref<128x64xbf16, #tpu.memory_space<vmem>>, %arg3: memref<64x64xbf16, #tpu.memory_space<vmem>>, %arg4: memref<1x64xf32, #tpu.memory_space<vmem>>, %arg5: memref<1x64xf32, #tpu.memory_space<vmem>>, %arg6: memref<64x256xbf16, #tpu.memory_space<vmem>>, %arg7: memref<1x256xf32, #tpu.memory_space<vmem>>, %arg8: memref<128x64xbf16, #tpu.memory_space<vmem>>, %arg9: memref<1x64xf32, #tpu.memory_space<vmem>>, %arg10: memref<128x64xf32, #tpu.memory_space<vmem>>) attributes {dimension_semantics = [#tpu.dimension_semantics<parallel>], iteration_bounds = array<i64: 1>, scalar_prefetch = 0 : i64, scratch_operands = 0 : i64, tpu.core_type = #tpu.core_type<tc>, window_params = [{transform_indices = @transform_0, window_bounds = array<i64: 128, 64>}, {transform_indices = @transform_1, window_bounds = array<i64: 128, 64>}, {pipeline_mode = #tpu.pipeline_mode<synchronous>, transform_indices = @transform_2, window_bounds = array<i64: 64, 64>}, {pipeline_mode = #tpu.pipeline_mode<synchronous>, transform_indices = @transform_3, window_bounds = array<i64: 1, 64>}, {pipeline_mode = #tpu.pipeline_mode<synchronous>, transform_indices = @transform_4, window_bounds = array<i64: 1, 64>}, {pipeline_mode = #tpu.pipeline_mode<synchronous>, transform_indices = @transform_5, window_bounds = array<i64: 64, 256>}, {pipeline_mode = #tpu.pipeline_mode<synchronous>, transform_indices = @transform_6, window_bounds = array<i64: 1, 256>}, {pipeline_mode = #tpu.pipeline_mode<synchronous>, transform_indices = @transform_7, window_bounds = array<i64: 128, 64>}, {pipeline_mode = #tpu.pipeline_mode<synchronous>, transform_indices = @transform_8, window_bounds = array<i64: 1, 64>}, {transform_indices = @transform_9, window_bounds = array<i64: 128, 64>}]} {
    %c0 = arith.constant 0 : index
    %c0_0 = arith.constant 0 : index
    %0 = vector.load %arg1[%c0, %c0_0] : memref<128x64xf32, #tpu.memory_space<vmem>>, vector<128x64xf32>
    %c0_1 = arith.constant 0 : index
    %c0_2 = arith.constant 0 : index
    %1 = vector.load %arg2[%c0_1, %c0_2] : memref<128x64xbf16, #tpu.memory_space<vmem>>, vector<128x64xbf16>
    %c0_3 = arith.constant 0 : index
    %c0_4 = arith.constant 0 : index
    %2 = vector.load %arg3[%c0_3, %c0_4] : memref<64x64xbf16, #tpu.memory_space<vmem>>, vector<64x64xbf16>
    %cst = arith.constant dense<0.000000e+00> : vector<128x64xf32>
    %3 = tpu.matmul %1, %2, %cst {dimension_numbers = #tpu.dot_dimension_numbers<[1], [0], [0], [1], [0, 0, 1, 1], [], []>} : vector<128x64xbf16>, vector<64x64xbf16>, vector<128x64xf32> -> vector<128x64xf32>
    %4 = arith.addf %0, %3 : vector<128x64xf32>
    %c0_5 = arith.constant 0 : index
    %c0_6 = arith.constant 0 : index
    %5 = vector.load %arg4[%c0_5, %c0_6] : memref<1x64xf32, #tpu.memory_space<vmem>>, vector<1x64xf32>
    %6 = vector.broadcast %5 : vector<1x64xf32> to vector<128x64xf32>
    %7 = arith.addf %4, %6 : vector<128x64xf32>
    %8 = arith.mulf %7, %7 : vector<128x64xf32>
    %cst_7 = arith.constant dense<0.000000e+00> : vector<128xf32>
    %9 = vector.multi_reduction <add>, %8, %cst_7 [1] : vector<128x64xf32> to vector<128xf32>
    %10 = vector.shape_cast %9 : vector<128xf32> to vector<128x1xf32>
    %cst_8 = arith.constant 6.400000e+01 : f32
    %11 = vector.broadcast %cst_8 : f32 to vector<128x1xf32>
    %12 = arith.divf %10, %11 : vector<128x1xf32>
    %cst_9 = arith.constant 9.99999997E-7 : f32
    %13 = vector.broadcast %cst_9 : f32 to vector<128x1xf32>
    %14 = arith.addf %12, %13 : vector<128x1xf32>
    %15 = math.rsqrt %14 : vector<128x1xf32>
    %16 = vector.broadcast %15 : vector<128x1xf32> to vector<128x64xf32>
    %17 = arith.mulf %7, %16 : vector<128x64xf32>
    %c0_10 = arith.constant 0 : index
    %c0_11 = arith.constant 0 : index
    %18 = vector.load %arg5[%c0_10, %c0_11] : memref<1x64xf32, #tpu.memory_space<vmem>>, vector<1x64xf32>
    %19 = vector.broadcast %18 : vector<1x64xf32> to vector<128x64xf32>
    %20 = arith.mulf %17, %19 : vector<128x64xf32>
    %21 = arith.truncf %20 : vector<128x64xf32> to vector<128x64xbf16>
    %c0_12 = arith.constant 0 : index
    %c0_13 = arith.constant 0 : index
    %22 = vector.load %arg6[%c0_12, %c0_13] : memref<64x256xbf16, #tpu.memory_space<vmem>>, vector<64x256xbf16>
    %cst_14 = arith.constant dense<0.000000e+00> : vector<128x256xf32>
    %23 = tpu.matmul %21, %22, %cst_14 {dimension_numbers = #tpu.dot_dimension_numbers<[1], [0], [0], [1], [0, 0, 1, 1], [], []>} : vector<128x64xbf16>, vector<64x256xbf16>, vector<128x256xf32> -> vector<128x256xf32>
    %c0_15 = arith.constant 0 : index
    %c0_16 = arith.constant 0 : index
    %24 = vector.load %arg7[%c0_15, %c0_16] : memref<1x256xf32, #tpu.memory_space<vmem>>, vector<1x256xf32>
    %25 = vector.broadcast %24 : vector<1x256xf32> to vector<128x256xf32>
    %26 = arith.addf %23, %25 : vector<128x256xf32>
    %27 = vector.extract_strided_slice %26 {offsets = [0, 0], sizes = [128, 128], strides = [1, 1]} : vector<128x256xf32> to vector<128x128xf32>
    %28 = vector.extract_strided_slice %26 {offsets = [0, 128], sizes = [128, 128], strides = [1, 1]} : vector<128x256xf32> to vector<128x128xf32>
    %cst_17 = arith.constant 0.000000e+00 : f32
    %29 = vector.broadcast %cst_17 : f32 to vector<128x128xf32>
    %30 = arith.subf %29, %27 : vector<128x128xf32>
    %31 = math.exp %30 : vector<128x128xf32>
    %cst_18 = arith.constant 1.000000e+00 : f32
    %32 = vector.broadcast %cst_18 : f32 to vector<128x128xf32>
    %33 = arith.addf %32, %31 : vector<128x128xf32>
    %34 = tpu.reciprocal %33 {approx = true} : vector<128x128xf32> -> vector<128x128xf32>
    %35 = arith.mulf %27, %34 : vector<128x128xf32>
    %36 = arith.mulf %35, %28 : vector<128x128xf32>
    %37 = arith.truncf %36 : vector<128x128xf32> to vector<128x128xbf16>
    %c0_19 = arith.constant 0 : index
    %c0_20 = arith.constant 0 : index
    %38 = vector.load %arg8[%c0_19, %c0_20] : memref<128x64xbf16, #tpu.memory_space<vmem>>, vector<128x64xbf16>
    %cst_21 = arith.constant dense<0.000000e+00> : vector<128x64xf32>
    %39 = tpu.matmul %37, %38, %cst_21 {dimension_numbers = #tpu.dot_dimension_numbers<[1], [0], [0], [1], [0, 0, 1, 1], [], []>} : vector<128x128xbf16>, vector<128x64xbf16>, vector<128x64xf32> -> vector<128x64xf32>
    %40 = arith.addf %7, %39 : vector<128x64xf32>
    %c0_22 = arith.constant 0 : index
    %c0_23 = arith.constant 0 : index
    %41 = vector.load %arg9[%c0_22, %c0_23] : memref<1x64xf32, #tpu.memory_space<vmem>>, vector<1x64xf32>
    %42 = vector.broadcast %41 : vector<1x64xf32> to vector<128x64xf32>
    %43 = arith.addf %40, %42 : vector<128x64xf32>
    %c0_24 = arith.constant 0 : index
    %c0_25 = arith.constant 0 : index
    %44 = vector.load %arg10[%c0_24, %c0_25] : memref<128x64xf32, #tpu.memory_space<vmem>>, vector<128x64xf32>
    tpu.vector_store %arg10[%c0_24, %c0_25], %43 {strides = array<i32>} : memref<128x64xf32, #tpu.memory_space<vmem>>, vector<128x64xf32>,
    return
  }
  func.func @transform_0(%arg0: i32) -> (i32, i32) {
    %c0_i32 = arith.constant 0 : i32
    %c0_i32_0 = arith.constant 0 : i32
    return %arg0, %c0_i32 : i32, i32
  }
  func.func @transform_1(%arg0: i32) -> (i32, i32) {
    %c0_i32 = arith.constant 0 : i32
    %c0_i32_0 = arith.constant 0 : i32
    return %arg0, %c0_i32 : i32, i32
  }
  func.func @transform_2(%arg0: i32) -> (i32, i32) {
    %c0_i32 = arith.constant 0 : i32
    %c0_i32_0 = arith.constant 0 : i32
    %c0_i32_1 = arith.constant 0 : i32
    return %c0_i32, %c0_i32_0 : i32, i32
  }
  func.func @transform_3(%arg0: i32) -> (i32, i32) {
    %c0_i32 = arith.constant 0 : i32
    %c0_i32_0 = arith.constant 0 : i32
    %c0_i32_1 = arith.constant 0 : i32
    return %c0_i32, %c0_i32_0 : i32, i32
  }
  func.func @transform_4(%arg0: i32) -> (i32, i32) {
    %c0_i32 = arith.constant 0 : i32
    %c0_i32_0 = arith.constant 0 : i32
    %c0_i32_1 = arith.constant 0 : i32
    return %c0_i32, %c0_i32_0 : i32, i32
  }
  func.func @transform_5(%arg0: i32) -> (i32, i32) {
    %c0_i32 = arith.constant 0 : i32
    %c0_i32_0 = arith.constant 0 : i32
    %c0_i32_1 = arith.constant 0 : i32
    return %c0_i32, %c0_i32_0 : i32, i32
  }
  func.func @transform_6(%arg0: i32) -> (i32, i32) {
    %c0_i32 = arith.constant 0 : i32
    %c0_i32_0 = arith.constant 0 : i32
    %c0_i32_1 = arith.constant 0 : i32
    return %c0_i32, %c0_i32_0 : i32, i32
  }
  func.func @transform_7(%arg0: i32) -> (i32, i32) {
    %c0_i32 = arith.constant 0 : i32
    %c0_i32_0 = arith.constant 0 : i32
    %c0_i32_1 = arith.constant 0 : i32
    return %c0_i32, %c0_i32_0 : i32, i32
  }
  func.func @transform_8(%arg0: i32) -> (i32, i32) {
    %c0_i32 = arith.constant 0 : i32
    %c0_i32_0 = arith.constant 0 : i32
    %c0_i32_1 = arith.constant 0 : i32
    return %c0_i32, %c0_i32_0 : i32, i32
  }
  func.func @transform_9(%arg0: i32) -> (i32, i32) {
    %c0_i32 = arith.constant 0 : i32
    %c0_i32_0 = arith.constant 0 : i32
    return %arg0, %c0_i32 : i32, i32
  }
}

module attributes {stable_mosaic.version = 11 : i64} {
  func.func @_flash_attn_kernel(%arg0: i32, %arg1: i32, %arg2: memref<64x1xi32, #tpu.memory_space<vmem>>, %arg3: memref<1x128xi32, #tpu.memory_space<vmem>>, %arg4: memref<64x64xbf16, #tpu.memory_space<vmem>>, %arg5: memref<128x64xbf16, #tpu.memory_space<vmem>>, %arg6: memref<128x64xbf16, #tpu.memory_space<vmem>>, %arg7: memref<64x64xbf16, #tpu.memory_space<vmem>>, %arg8: memref<4x64x1xf32, #tpu.memory_space<vmem>>, %arg9: memref<4x64x1xf32, #tpu.memory_space<vmem>>, %arg10: memref<4x64x16xf32, #tpu.memory_space<vmem>>) attributes {dimension_semantics = [#tpu.dimension_semantics<parallel>, #tpu.dimension_semantics<arbitrary>], iteration_bounds = array<i64: 2, 1>, scalar_prefetch = 0 : i64, scratch_operands = 3 : i64, tpu.core_type = #tpu.core_type<tc>, window_params = [{transform_indices = @transform_0, window_bounds = array<i64: 64, 1>}, {transform_indices = @transform_1, window_bounds = array<i64: 1, 128>}, {transform_indices = @transform_2, window_bounds = array<i64: 64, 64>}, {transform_indices = @transform_3, window_bounds = array<i64: 128, 64>}, {transform_indices = @transform_4, window_bounds = array<i64: 128, 64>}, {transform_indices = @transform_5, window_bounds = array<i64: 64, 64>}]} {
    %c0_i32 = arith.constant 0 : i32
    %0 = arith.cmpi eq, %arg1, %c0_i32 : i32
    %1 = arith.extui %0 : i1 to i32
    %c0_i32_0 = arith.constant 0 : i32
    %2 = arith.cmpi ne, %1, %c0_i32_0 : i32
    scf.if %2 {
      %cst_104 = arith.constant 0xFF800000 : f32
      %174 = vector.broadcast %cst_104 : f32 to vector<4x64x1xf32>
      %c0_105 = arith.constant 0 : index
      %c0_106 = arith.constant 0 : index
      %c0_107 = arith.constant 0 : index
      %175 = vector.load %arg8[%c0_105, %c0_106, %c0_107] : memref<4x64x1xf32, #tpu.memory_space<vmem>>, vector<4x64x1xf32>
      tpu.vector_store %arg8[%c0_105, %c0_106, %c0_107], %174 {strides = array<i32>} : memref<4x64x1xf32, #tpu.memory_space<vmem>>, vector<4x64x1xf32>,
      %cst_108 = arith.constant 0.000000e+00 : f32
      %176 = vector.broadcast %cst_108 : f32 to vector<4x64x1xf32>
      %c0_109 = arith.constant 0 : index
      %c0_110 = arith.constant 0 : index
      %c0_111 = arith.constant 0 : index
      %177 = vector.load %arg9[%c0_109, %c0_110, %c0_111] : memref<4x64x1xf32, #tpu.memory_space<vmem>>, vector<4x64x1xf32>
      tpu.vector_store %arg9[%c0_109, %c0_110, %c0_111], %176 {strides = array<i32>} : memref<4x64x1xf32, #tpu.memory_space<vmem>>, vector<4x64x1xf32>,
      %cst_112 = arith.constant 0.000000e+00 : f32
      %178 = vector.broadcast %cst_112 : f32 to vector<4x64x16xf32>
      %c0_113 = arith.constant 0 : index
      %c0_114 = arith.constant 0 : index
      %c0_115 = arith.constant 0 : index
      %179 = vector.load %arg10[%c0_113, %c0_114, %c0_115] : memref<4x64x16xf32, #tpu.memory_space<vmem>>, vector<4x64x16xf32>
      tpu.vector_store %arg10[%c0_113, %c0_114, %c0_115], %178 {strides = array<i32>} : memref<4x64x16xf32, #tpu.memory_space<vmem>>, vector<4x64x16xf32>,
    } else {
    }
    %c0 = arith.constant 0 : index
    %c0_1 = arith.constant 0 : index
    %3 = vector.load %arg2[%c0, %c0_1] : memref<64x1xi32, #tpu.memory_space<vmem>>, vector<64x1xi32>
    %c0_2 = arith.constant 0 : index
    %c0_3 = arith.constant 0 : index
    %4 = vector.load %arg3[%c0_2, %c0_3] : memref<1x128xi32, #tpu.memory_space<vmem>>, vector<1x128xi32>
    %5 = vector.broadcast %3 : vector<64x1xi32> to vector<64x128xi32>
    %6 = vector.broadcast %4 : vector<1x128xi32> to vector<64x128xi32>
    %7 = arith.cmpi eq, %5, %6 : vector<64x128xi32>
    %c0_4 = arith.constant 0 : index
    %c0_5 = arith.constant 0 : index
    %8 = vector.load %arg4[%c0_4, %c0_5] : memref<64x64xbf16, #tpu.memory_space<vmem>>, vector<64x64xbf16>
    %c0_6 = arith.constant 0 : index
    %c0_7 = arith.constant 0 : index
    %9 = vector.load %arg5[%c0_6, %c0_7] : memref<128x64xbf16, #tpu.memory_space<vmem>>, vector<128x64xbf16>
    %c0_8 = arith.constant 0 : index
    %c0_9 = arith.constant 0 : index
    %10 = vector.load %arg6[%c0_8, %c0_9] : memref<128x64xbf16, #tpu.memory_space<vmem>>, vector<128x64xbf16>
    %11 = vector.extract_strided_slice %8 {offsets = [0, 0], sizes = [64, 16], strides = [1, 1]} : vector<64x64xbf16> to vector<64x16xbf16>
    %12 = vector.extract_strided_slice %9 {offsets = [0, 0], sizes = [128, 16], strides = [1, 1]} : vector<128x64xbf16> to vector<128x16xbf16>
    %13 = vector.extract_strided_slice %10 {offsets = [0, 0], sizes = [128, 16], strides = [1, 1]} : vector<128x64xbf16> to vector<128x16xbf16>
    %cst = arith.constant dense<0.000000e+00> : vector<64x128xf32>
    %14 = tpu.matmul %11, %12, %cst {dimension_numbers = #tpu.dot_dimension_numbers<[1], [1], [0], [0], [0, 0, 1, 0], [], []>} : vector<64x16xbf16>, vector<128x16xbf16>, vector<64x128xf32> -> vector<64x128xf32>
    %cst_10 = arith.constant 2.500000e-01 : f32
    %15 = vector.broadcast %cst_10 : f32 to vector<64x128xf32>
    %16 = arith.mulf %14, %15 : vector<64x128xf32>
    %cst_11 = arith.constant -1.000000e+30 : f32
    %17 = vector.broadcast %cst_11 : f32 to vector<64x128xf32>
    %18 = arith.select %7, %16, %17 : vector<64x128xi1>, vector<64x128xf32>
    %c0_12 = arith.constant 0 : index
    %c0_13 = arith.constant 0 : index
    %c0_14 = arith.constant 0 : index
    %19 = vector.load %arg8[%c0_12, %c0_13, %c0_14] : memref<4x64x1xf32, #tpu.memory_space<vmem>>, vector<1x64x1xf32>
    %20 = vector.shape_cast %19 : vector<1x64x1xf32> to vector<64x1xf32>
    %cst_15 = arith.constant dense<0xFF800000> : vector<64xf32>
    %21 = vector.multi_reduction <maximumf>, %18, %cst_15 [1] : vector<64x128xf32> to vector<64xf32>
    %22 = vector.shape_cast %21 : vector<64xf32> to vector<64x1xf32>
    %23 = arith.maximumf %20, %22 : vector<64x1xf32>
    %24 = arith.subf %20, %23 : vector<64x1xf32>
    %25 = math.exp %24 : vector<64x1xf32>
    %26 = vector.broadcast %23 : vector<64x1xf32> to vector<64x128xf32>
    %27 = arith.subf %18, %26 : vector<64x128xf32>
    %28 = math.exp %27 : vector<64x128xf32>
    %c0_16 = arith.constant 0 : index
    %c0_17 = arith.constant 0 : index
    %c0_18 = arith.constant 0 : index
    %29 = vector.load %arg9[%c0_16, %c0_17, %c0_18] : memref<4x64x1xf32, #tpu.memory_space<vmem>>, vector<1x64x1xf32>
    %30 = vector.shape_cast %29 : vector<1x64x1xf32> to vector<64x1xf32>
    %31 = arith.mulf %25, %30 : vector<64x1xf32>
    %cst_19 = arith.constant dense<0.000000e+00> : vector<64xf32>
    %32 = vector.multi_reduction <add>, %28, %cst_19 [1] : vector<64x128xf32> to vector<64xf32>
    %33 = vector.shape_cast %32 : vector<64xf32> to vector<64x1xf32>
    %34 = arith.addf %31, %33 : vector<64x1xf32>
    %c0_20 = arith.constant 0 : index
    %c0_21 = arith.constant 0 : index
    %c0_22 = arith.constant 0 : index
    %35 = vector.load %arg9[%c0_20, %c0_21, %c0_22] : memref<4x64x1xf32, #tpu.memory_space<vmem>>, vector<1x64x1xf32>
    %36 = vector.shape_cast %35 : vector<1x64x1xf32> to vector<64x1xf32>
    %37 = vector.shape_cast %34 : vector<64x1xf32> to vector<1x64x1xf32>
    tpu.vector_store %arg9[%c0_20, %c0_21, %c0_22], %37 {strides = array<i32>} : memref<4x64x1xf32, #tpu.memory_space<vmem>>, vector<1x64x1xf32>,
    %c0_23 = arith.constant 0 : index
    %c0_24 = arith.constant 0 : index
    %c0_25 = arith.constant 0 : index
    %38 = vector.load %arg10[%c0_23, %c0_24, %c0_25] : memref<4x64x16xf32, #tpu.memory_space<vmem>>, vector<1x64x16xf32>
    %39 = vector.shape_cast %38 : vector<1x64x16xf32> to vector<64x16xf32>
    %40 = vector.broadcast %25 : vector<64x1xf32> to vector<64x16xf32>
    %41 = arith.mulf %40, %39 : vector<64x16xf32>
    %42 = arith.truncf %28 : vector<64x128xf32> to vector<64x128xbf16>
    %cst_26 = arith.constant dense<0.000000e+00> : vector<64x16xf32>
    %43 = tpu.matmul %42, %13, %cst_26 {dimension_numbers = #tpu.dot_dimension_numbers<[1], [0], [0], [1], [0, 0, 1, 1], [], []>} : vector<64x128xbf16>, vector<128x16xbf16>, vector<64x16xf32> -> vector<64x16xf32>
    %44 = arith.addf %41, %43 : vector<64x16xf32>
    %c0_27 = arith.constant 0 : index
    %c0_28 = arith.constant 0 : index
    %c0_29 = arith.constant 0 : index
    %45 = vector.load %arg10[%c0_27, %c0_28, %c0_29] : memref<4x64x16xf32, #tpu.memory_space<vmem>>, vector<1x64x16xf32>
    %46 = vector.shape_cast %45 : vector<1x64x16xf32> to vector<64x16xf32>
    %47 = vector.shape_cast %44 : vector<64x16xf32> to vector<1x64x16xf32>
    tpu.vector_store %arg10[%c0_27, %c0_28, %c0_29], %47 {strides = array<i32>} : memref<4x64x16xf32, #tpu.memory_space<vmem>>, vector<1x64x16xf32>,
    %c0_30 = arith.constant 0 : index
    %c0_31 = arith.constant 0 : index
    %c0_32 = arith.constant 0 : index
    %48 = vector.load %arg8[%c0_30, %c0_31, %c0_32] : memref<4x64x1xf32, #tpu.memory_space<vmem>>, vector<1x64x1xf32>
    %49 = vector.shape_cast %48 : vector<1x64x1xf32> to vector<64x1xf32>
    %50 = vector.shape_cast %23 : vector<64x1xf32> to vector<1x64x1xf32>
    tpu.vector_store %arg8[%c0_30, %c0_31, %c0_32], %50 {strides = array<i32>} : memref<4x64x1xf32, #tpu.memory_space<vmem>>, vector<1x64x1xf32>,
    %51 = vector.extract_strided_slice %8 {offsets = [0, 16], sizes = [64, 16], strides = [1, 1]} : vector<64x64xbf16> to vector<64x16xbf16>
    %52 = vector.extract_strided_slice %9 {offsets = [0, 16], sizes = [128, 16], strides = [1, 1]} : vector<128x64xbf16> to vector<128x16xbf16>
    %53 = vector.extract_strided_slice %10 {offsets = [0, 16], sizes = [128, 16], strides = [1, 1]} : vector<128x64xbf16> to vector<128x16xbf16>
    %cst_33 = arith.constant dense<0.000000e+00> : vector<64x128xf32>
    %54 = tpu.matmul %51, %52, %cst_33 {dimension_numbers = #tpu.dot_dimension_numbers<[1], [1], [0], [0], [0, 0, 1, 0], [], []>} : vector<64x16xbf16>, vector<128x16xbf16>, vector<64x128xf32> -> vector<64x128xf32>
    %cst_34 = arith.constant 2.500000e-01 : f32
    %55 = vector.broadcast %cst_34 : f32 to vector<64x128xf32>
    %56 = arith.mulf %54, %55 : vector<64x128xf32>
    %cst_35 = arith.constant -1.000000e+30 : f32
    %57 = vector.broadcast %cst_35 : f32 to vector<64x128xf32>
    %58 = arith.select %7, %56, %57 : vector<64x128xi1>, vector<64x128xf32>
    %c1 = arith.constant 1 : index
    %c0_36 = arith.constant 0 : index
    %c0_37 = arith.constant 0 : index
    %59 = vector.load %arg8[%c1, %c0_36, %c0_37] : memref<4x64x1xf32, #tpu.memory_space<vmem>>, vector<1x64x1xf32>
    %60 = vector.shape_cast %59 : vector<1x64x1xf32> to vector<64x1xf32>
    %cst_38 = arith.constant dense<0xFF800000> : vector<64xf32>
    %61 = vector.multi_reduction <maximumf>, %58, %cst_38 [1] : vector<64x128xf32> to vector<64xf32>
    %62 = vector.shape_cast %61 : vector<64xf32> to vector<64x1xf32>
    %63 = arith.maximumf %60, %62 : vector<64x1xf32>
    %64 = arith.subf %60, %63 : vector<64x1xf32>
    %65 = math.exp %64 : vector<64x1xf32>
    %66 = vector.broadcast %63 : vector<64x1xf32> to vector<64x128xf32>
    %67 = arith.subf %58, %66 : vector<64x128xf32>
    %68 = math.exp %67 : vector<64x128xf32>
    %c1_39 = arith.constant 1 : index
    %c0_40 = arith.constant 0 : index
    %c0_41 = arith.constant 0 : index
    %69 = vector.load %arg9[%c1_39, %c0_40, %c0_41] : memref<4x64x1xf32, #tpu.memory_space<vmem>>, vector<1x64x1xf32>
    %70 = vector.shape_cast %69 : vector<1x64x1xf32> to vector<64x1xf32>
    %71 = arith.mulf %65, %70 : vector<64x1xf32>
    %cst_42 = arith.constant dense<0.000000e+00> : vector<64xf32>
    %72 = vector.multi_reduction <add>, %68, %cst_42 [1] : vector<64x128xf32> to vector<64xf32>
    %73 = vector.shape_cast %72 : vector<64xf32> to vector<64x1xf32>
    %74 = arith.addf %71, %73 : vector<64x1xf32>
    %c1_43 = arith.constant 1 : index
    %c0_44 = arith.constant 0 : index
    %c0_45 = arith.constant 0 : index
    %75 = vector.load %arg9[%c1_43, %c0_44, %c0_45] : memref<4x64x1xf32, #tpu.memory_space<vmem>>, vector<1x64x1xf32>
    %76 = vector.shape_cast %75 : vector<1x64x1xf32> to vector<64x1xf32>
    %77 = vector.shape_cast %74 : vector<64x1xf32> to vector<1x64x1xf32>
    tpu.vector_store %arg9[%c1_43, %c0_44, %c0_45], %77 {strides = array<i32>} : memref<4x64x1xf32, #tpu.memory_space<vmem>>, vector<1x64x1xf32>,
    %c1_46 = arith.constant 1 : index
    %c0_47 = arith.constant 0 : index
    %c0_48 = arith.constant 0 : index
    %78 = vector.load %arg10[%c1_46, %c0_47, %c0_48] : memref<4x64x16xf32, #tpu.memory_space<vmem>>, vector<1x64x16xf32>
    %79 = vector.shape_cast %78 : vector<1x64x16xf32> to vector<64x16xf32>
    %80 = vector.broadcast %65 : vector<64x1xf32> to vector<64x16xf32>
    %81 = arith.mulf %80, %79 : vector<64x16xf32>
    %82 = arith.truncf %68 : vector<64x128xf32> to vector<64x128xbf16>
    %cst_49 = arith.constant dense<0.000000e+00> : vector<64x16xf32>
    %83 = tpu.matmul %82, %53, %cst_49 {dimension_numbers = #tpu.dot_dimension_numbers<[1], [0], [0], [1], [0, 0, 1, 1], [], []>} : vector<64x128xbf16>, vector<128x16xbf16>, vector<64x16xf32> -> vector<64x16xf32>
    %84 = arith.addf %81, %83 : vector<64x16xf32>
    %c1_50 = arith.constant 1 : index
    %c0_51 = arith.constant 0 : index
    %c0_52 = arith.constant 0 : index
    %85 = vector.load %arg10[%c1_50, %c0_51, %c0_52] : memref<4x64x16xf32, #tpu.memory_space<vmem>>, vector<1x64x16xf32>
    %86 = vector.shape_cast %85 : vector<1x64x16xf32> to vector<64x16xf32>
    %87 = vector.shape_cast %84 : vector<64x16xf32> to vector<1x64x16xf32>
    tpu.vector_store %arg10[%c1_50, %c0_51, %c0_52], %87 {strides = array<i32>} : memref<4x64x16xf32, #tpu.memory_space<vmem>>, vector<1x64x16xf32>,
    %c1_53 = arith.constant 1 : index
    %c0_54 = arith.constant 0 : index
    %c0_55 = arith.constant 0 : index
    %88 = vector.load %arg8[%c1_53, %c0_54, %c0_55] : memref<4x64x1xf32, #tpu.memory_space<vmem>>, vector<1x64x1xf32>
    %89 = vector.shape_cast %88 : vector<1x64x1xf32> to vector<64x1xf32>
    %90 = vector.shape_cast %63 : vector<64x1xf32> to vector<1x64x1xf32>
    tpu.vector_store %arg8[%c1_53, %c0_54, %c0_55], %90 {strides = array<i32>} : memref<4x64x1xf32, #tpu.memory_space<vmem>>, vector<1x64x1xf32>,
    %91 = vector.extract_strided_slice %8 {offsets = [0, 32], sizes = [64, 16], strides = [1, 1]} : vector<64x64xbf16> to vector<64x16xbf16>
    %92 = vector.extract_strided_slice %9 {offsets = [0, 32], sizes = [128, 16], strides = [1, 1]} : vector<128x64xbf16> to vector<128x16xbf16>
    %93 = vector.extract_strided_slice %10 {offsets = [0, 32], sizes = [128, 16], strides = [1, 1]} : vector<128x64xbf16> to vector<128x16xbf16>
    %cst_56 = arith.constant dense<0.000000e+00> : vector<64x128xf32>
    %94 = tpu.matmul %91, %92, %cst_56 {dimension_numbers = #tpu.dot_dimension_numbers<[1], [1], [0], [0], [0, 0, 1, 0], [], []>} : vector<64x16xbf16>, vector<128x16xbf16>, vector<64x128xf32> -> vector<64x128xf32>
    %cst_57 = arith.constant 2.500000e-01 : f32
    %95 = vector.broadcast %cst_57 : f32 to vector<64x128xf32>
    %96 = arith.mulf %94, %95 : vector<64x128xf32>
    %cst_58 = arith.constant -1.000000e+30 : f32
    %97 = vector.broadcast %cst_58 : f32 to vector<64x128xf32>
    %98 = arith.select %7, %96, %97 : vector<64x128xi1>, vector<64x128xf32>
    %c2 = arith.constant 2 : index
    %c0_59 = arith.constant 0 : index
    %c0_60 = arith.constant 0 : index
    %99 = vector.load %arg8[%c2, %c0_59, %c0_60] : memref<4x64x1xf32, #tpu.memory_space<vmem>>, vector<1x64x1xf32>
    %100 = vector.shape_cast %99 : vector<1x64x1xf32> to vector<64x1xf32>
    %cst_61 = arith.constant dense<0xFF800000> : vector<64xf32>
    %101 = vector.multi_reduction <maximumf>, %98, %cst_61 [1] : vector<64x128xf32> to vector<64xf32>
    %102 = vector.shape_cast %101 : vector<64xf32> to vector<64x1xf32>
    %103 = arith.maximumf %100, %102 : vector<64x1xf32>
    %104 = arith.subf %100, %103 : vector<64x1xf32>
    %105 = math.exp %104 : vector<64x1xf32>
    %106 = vector.broadcast %103 : vector<64x1xf32> to vector<64x128xf32>
    %107 = arith.subf %98, %106 : vector<64x128xf32>
    %108 = math.exp %107 : vector<64x128xf32>
    %c2_62 = arith.constant 2 : index
    %c0_63 = arith.constant 0 : index
    %c0_64 = arith.constant 0 : index
    %109 = vector.load %arg9[%c2_62, %c0_63, %c0_64] : memref<4x64x1xf32, #tpu.memory_space<vmem>>, vector<1x64x1xf32>
    %110 = vector.shape_cast %109 : vector<1x64x1xf32> to vector<64x1xf32>
    %111 = arith.mulf %105, %110 : vector<64x1xf32>
    %cst_65 = arith.constant dense<0.000000e+00> : vector<64xf32>
    %112 = vector.multi_reduction <add>, %108, %cst_65 [1] : vector<64x128xf32> to vector<64xf32>
    %113 = vector.shape_cast %112 : vector<64xf32> to vector<64x1xf32>
    %114 = arith.addf %111, %113 : vector<64x1xf32>
    %c2_66 = arith.constant 2 : index
    %c0_67 = arith.constant 0 : index
    %c0_68 = arith.constant 0 : index
    %115 = vector.load %arg9[%c2_66, %c0_67, %c0_68] : memref<4x64x1xf32, #tpu.memory_space<vmem>>, vector<1x64x1xf32>
    %116 = vector.shape_cast %115 : vector<1x64x1xf32> to vector<64x1xf32>
    %117 = vector.shape_cast %114 : vector<64x1xf32> to vector<1x64x1xf32>
    tpu.vector_store %arg9[%c2_66, %c0_67, %c0_68], %117 {strides = array<i32>} : memref<4x64x1xf32, #tpu.memory_space<vmem>>, vector<1x64x1xf32>,
    %c2_69 = arith.constant 2 : index
    %c0_70 = arith.constant 0 : index
    %c0_71 = arith.constant 0 : index
    %118 = vector.load %arg10[%c2_69, %c0_70, %c0_71] : memref<4x64x16xf32, #tpu.memory_space<vmem>>, vector<1x64x16xf32>
    %119 = vector.shape_cast %118 : vector<1x64x16xf32> to vector<64x16xf32>
    %120 = vector.broadcast %105 : vector<64x1xf32> to vector<64x16xf32>
    %121 = arith.mulf %120, %119 : vector<64x16xf32>
    %122 = arith.truncf %108 : vector<64x128xf32> to vector<64x128xbf16>
    %cst_72 = arith.constant dense<0.000000e+00> : vector<64x16xf32>
    %123 = tpu.matmul %122, %93, %cst_72 {dimension_numbers = #tpu.dot_dimension_numbers<[1], [0], [0], [1], [0, 0, 1, 1], [], []>} : vector<64x128xbf16>, vector<128x16xbf16>, vector<64x16xf32> -> vector<64x16xf32>
    %124 = arith.addf %121, %123 : vector<64x16xf32>
    %c2_73 = arith.constant 2 : index
    %c0_74 = arith.constant 0 : index
    %c0_75 = arith.constant 0 : index
    %125 = vector.load %arg10[%c2_73, %c0_74, %c0_75] : memref<4x64x16xf32, #tpu.memory_space<vmem>>, vector<1x64x16xf32>
    %126 = vector.shape_cast %125 : vector<1x64x16xf32> to vector<64x16xf32>
    %127 = vector.shape_cast %124 : vector<64x16xf32> to vector<1x64x16xf32>
    tpu.vector_store %arg10[%c2_73, %c0_74, %c0_75], %127 {strides = array<i32>} : memref<4x64x16xf32, #tpu.memory_space<vmem>>, vector<1x64x16xf32>,
    %c2_76 = arith.constant 2 : index
    %c0_77 = arith.constant 0 : index
    %c0_78 = arith.constant 0 : index
    %128 = vector.load %arg8[%c2_76, %c0_77, %c0_78] : memref<4x64x1xf32, #tpu.memory_space<vmem>>, vector<1x64x1xf32>
    %129 = vector.shape_cast %128 : vector<1x64x1xf32> to vector<64x1xf32>
    %130 = vector.shape_cast %103 : vector<64x1xf32> to vector<1x64x1xf32>
    tpu.vector_store %arg8[%c2_76, %c0_77, %c0_78], %130 {strides = array<i32>} : memref<4x64x1xf32, #tpu.memory_space<vmem>>, vector<1x64x1xf32>,
    %131 = vector.extract_strided_slice %8 {offsets = [0, 48], sizes = [64, 16], strides = [1, 1]} : vector<64x64xbf16> to vector<64x16xbf16>
    %132 = vector.extract_strided_slice %9 {offsets = [0, 48], sizes = [128, 16], strides = [1, 1]} : vector<128x64xbf16> to vector<128x16xbf16>
    %133 = vector.extract_strided_slice %10 {offsets = [0, 48], sizes = [128, 16], strides = [1, 1]} : vector<128x64xbf16> to vector<128x16xbf16>
    %cst_79 = arith.constant dense<0.000000e+00> : vector<64x128xf32>
    %134 = tpu.matmul %131, %132, %cst_79 {dimension_numbers = #tpu.dot_dimension_numbers<[1], [1], [0], [0], [0, 0, 1, 0], [], []>} : vector<64x16xbf16>, vector<128x16xbf16>, vector<64x128xf32> -> vector<64x128xf32>
    %cst_80 = arith.constant 2.500000e-01 : f32
    %135 = vector.broadcast %cst_80 : f32 to vector<64x128xf32>
    %136 = arith.mulf %134, %135 : vector<64x128xf32>
    %cst_81 = arith.constant -1.000000e+30 : f32
    %137 = vector.broadcast %cst_81 : f32 to vector<64x128xf32>
    %138 = arith.select %7, %136, %137 : vector<64x128xi1>, vector<64x128xf32>
    %c3 = arith.constant 3 : index
    %c0_82 = arith.constant 0 : index
    %c0_83 = arith.constant 0 : index
    %139 = vector.load %arg8[%c3, %c0_82, %c0_83] : memref<4x64x1xf32, #tpu.memory_space<vmem>>, vector<1x64x1xf32>
    %140 = vector.shape_cast %139 : vector<1x64x1xf32> to vector<64x1xf32>
    %cst_84 = arith.constant dense<0xFF800000> : vector<64xf32>
    %141 = vector.multi_reduction <maximumf>, %138, %cst_84 [1] : vector<64x128xf32> to vector<64xf32>
    %142 = vector.shape_cast %141 : vector<64xf32> to vector<64x1xf32>
    %143 = arith.maximumf %140, %142 : vector<64x1xf32>
    %144 = arith.subf %140, %143 : vector<64x1xf32>
    %145 = math.exp %144 : vector<64x1xf32>
    %146 = vector.broadcast %143 : vector<64x1xf32> to vector<64x128xf32>
    %147 = arith.subf %138, %146 : vector<64x128xf32>
    %148 = math.exp %147 : vector<64x128xf32>
    %c3_85 = arith.constant 3 : index
    %c0_86 = arith.constant 0 : index
    %c0_87 = arith.constant 0 : index
    %149 = vector.load %arg9[%c3_85, %c0_86, %c0_87] : memref<4x64x1xf32, #tpu.memory_space<vmem>>, vector<1x64x1xf32>
    %150 = vector.shape_cast %149 : vector<1x64x1xf32> to vector<64x1xf32>
    %151 = arith.mulf %145, %150 : vector<64x1xf32>
    %cst_88 = arith.constant dense<0.000000e+00> : vector<64xf32>
    %152 = vector.multi_reduction <add>, %148, %cst_88 [1] : vector<64x128xf32> to vector<64xf32>
    %153 = vector.shape_cast %152 : vector<64xf32> to vector<64x1xf32>
    %154 = arith.addf %151, %153 : vector<64x1xf32>
    %c3_89 = arith.constant 3 : index
    %c0_90 = arith.constant 0 : index
    %c0_91 = arith.constant 0 : index
    %155 = vector.load %arg9[%c3_89, %c0_90, %c0_91] : memref<4x64x1xf32, #tpu.memory_space<vmem>>, vector<1x64x1xf32>
    %156 = vector.shape_cast %155 : vector<1x64x1xf32> to vector<64x1xf32>
    %157 = vector.shape_cast %154 : vector<64x1xf32> to vector<1x64x1xf32>
    tpu.vector_store %arg9[%c3_89, %c0_90, %c0_91], %157 {strides = array<i32>} : memref<4x64x1xf32, #tpu.memory_space<vmem>>, vector<1x64x1xf32>,
    %c3_92 = arith.constant 3 : index
    %c0_93 = arith.constant 0 : index
    %c0_94 = arith.constant 0 : index
    %158 = vector.load %arg10[%c3_92, %c0_93, %c0_94] : memref<4x64x16xf32, #tpu.memory_space<vmem>>, vector<1x64x16xf32>
    %159 = vector.shape_cast %158 : vector<1x64x16xf32> to vector<64x16xf32>
    %160 = vector.broadcast %145 : vector<64x1xf32> to vector<64x16xf32>
    %161 = arith.mulf %160, %159 : vector<64x16xf32>
    %162 = arith.truncf %148 : vector<64x128xf32> to vector<64x128xbf16>
    %cst_95 = arith.constant dense<0.000000e+00> : vector<64x16xf32>
    %163 = tpu.matmul %162, %133, %cst_95 {dimension_numbers = #tpu.dot_dimension_numbers<[1], [0], [0], [1], [0, 0, 1, 1], [], []>} : vector<64x128xbf16>, vector<128x16xbf16>, vector<64x16xf32> -> vector<64x16xf32>
    %164 = arith.addf %161, %163 : vector<64x16xf32>
    %c3_96 = arith.constant 3 : index
    %c0_97 = arith.constant 0 : index
    %c0_98 = arith.constant 0 : index
    %165 = vector.load %arg10[%c3_96, %c0_97, %c0_98] : memref<4x64x16xf32, #tpu.memory_space<vmem>>, vector<1x64x16xf32>
    %166 = vector.shape_cast %165 : vector<1x64x16xf32> to vector<64x16xf32>
    %167 = vector.shape_cast %164 : vector<64x16xf32> to vector<1x64x16xf32>
    tpu.vector_store %arg10[%c3_96, %c0_97, %c0_98], %167 {strides = array<i32>} : memref<4x64x16xf32, #tpu.memory_space<vmem>>, vector<1x64x16xf32>,
    %c3_99 = arith.constant 3 : index
    %c0_100 = arith.constant 0 : index
    %c0_101 = arith.constant 0 : index
    %168 = vector.load %arg8[%c3_99, %c0_100, %c0_101] : memref<4x64x1xf32, #tpu.memory_space<vmem>>, vector<1x64x1xf32>
    %169 = vector.shape_cast %168 : vector<1x64x1xf32> to vector<64x1xf32>
    %170 = vector.shape_cast %143 : vector<64x1xf32> to vector<1x64x1xf32>
    tpu.vector_store %arg8[%c3_99, %c0_100, %c0_101], %170 {strides = array<i32>} : memref<4x64x1xf32, #tpu.memory_space<vmem>>, vector<1x64x1xf32>,
    %c0_i32_102 = arith.constant 0 : i32
    %171 = arith.cmpi eq, %arg1, %c0_i32_102 : i32
    %172 = arith.extui %171 : i1 to i32
    %c0_i32_103 = arith.constant 0 : i32
    %173 = arith.cmpi ne, %172, %c0_i32_103 : i32
    scf.if %173 {
      %c0_104 = arith.constant 0 : index
      %c0_105 = arith.constant 0 : index
      %c0_106 = arith.constant 0 : index
      %174 = vector.load %arg10[%c0_104, %c0_105, %c0_106] : memref<4x64x16xf32, #tpu.memory_space<vmem>>, vector<1x64x16xf32>
      %175 = vector.shape_cast %174 : vector<1x64x16xf32> to vector<64x16xf32>
      %c0_107 = arith.constant 0 : index
      %c0_108 = arith.constant 0 : index
      %c0_109 = arith.constant 0 : index
      %176 = vector.load %arg9[%c0_107, %c0_108, %c0_109] : memref<4x64x1xf32, #tpu.memory_space<vmem>>, vector<1x64x1xf32>
      %177 = vector.shape_cast %176 : vector<1x64x1xf32> to vector<64x1xf32>
      %178 = tpu.reciprocal %177 {approx = true} : vector<64x1xf32> -> vector<64x1xf32>
      %179 = vector.broadcast %178 : vector<64x1xf32> to vector<64x16xf32>
      %180 = arith.mulf %175, %179 : vector<64x16xf32>
      %181 = arith.truncf %180 : vector<64x16xf32> to vector<64x16xbf16>
      %c0_110 = arith.constant 0 : index
      %c0_111 = arith.constant 0 : index
      %182 = vector.load %arg7[%c0_110, %c0_111] : memref<64x64xbf16, #tpu.memory_space<vmem>>, vector<64x16xbf16>
      tpu.vector_store %arg7[%c0_110, %c0_111], %181 {strides = array<i32>} : memref<64x64xbf16, #tpu.memory_space<vmem>>, vector<64x16xbf16>,
      %c1_112 = arith.constant 1 : index
      %c0_113 = arith.constant 0 : index
      %c0_114 = arith.constant 0 : index
      %183 = vector.load %arg10[%c1_112, %c0_113, %c0_114] : memref<4x64x16xf32, #tpu.memory_space<vmem>>, vector<1x64x16xf32>
      %184 = vector.shape_cast %183 : vector<1x64x16xf32> to vector<64x16xf32>
      %c1_115 = arith.constant 1 : index
      %c0_116 = arith.constant 0 : index
      %c0_117 = arith.constant 0 : index
      %185 = vector.load %arg9[%c1_115, %c0_116, %c0_117] : memref<4x64x1xf32, #tpu.memory_space<vmem>>, vector<1x64x1xf32>
      %186 = vector.shape_cast %185 : vector<1x64x1xf32> to vector<64x1xf32>
      %187 = tpu.reciprocal %186 {approx = true} : vector<64x1xf32> -> vector<64x1xf32>
      %188 = vector.broadcast %187 : vector<64x1xf32> to vector<64x16xf32>
      %189 = arith.mulf %184, %188 : vector<64x16xf32>
      %190 = arith.truncf %189 : vector<64x16xf32> to vector<64x16xbf16>
      %c0_118 = arith.constant 0 : index
      %c16 = arith.constant 16 : index
      %191 = vector.load %arg7[%c0_118, %c16] : memref<64x64xbf16, #tpu.memory_space<vmem>>, vector<64x16xbf16>
      tpu.vector_store %arg7[%c0_118, %c16], %190 {strides = array<i32>} : memref<64x64xbf16, #tpu.memory_space<vmem>>, vector<64x16xbf16>,
      %c2_119 = arith.constant 2 : index
      %c0_120 = arith.constant 0 : index
      %c0_121 = arith.constant 0 : index
      %192 = vector.load %arg10[%c2_119, %c0_120, %c0_121] : memref<4x64x16xf32, #tpu.memory_space<vmem>>, vector<1x64x16xf32>
      %193 = vector.shape_cast %192 : vector<1x64x16xf32> to vector<64x16xf32>
      %c2_122 = arith.constant 2 : index
      %c0_123 = arith.constant 0 : index
      %c0_124 = arith.constant 0 : index
      %194 = vector.load %arg9[%c2_122, %c0_123, %c0_124] : memref<4x64x1xf32, #tpu.memory_space<vmem>>, vector<1x64x1xf32>
      %195 = vector.shape_cast %194 : vector<1x64x1xf32> to vector<64x1xf32>
      %196 = tpu.reciprocal %195 {approx = true} : vector<64x1xf32> -> vector<64x1xf32>
      %197 = vector.broadcast %196 : vector<64x1xf32> to vector<64x16xf32>
      %198 = arith.mulf %193, %197 : vector<64x16xf32>
      %199 = arith.truncf %198 : vector<64x16xf32> to vector<64x16xbf16>
      %c0_125 = arith.constant 0 : index
      %c32 = arith.constant 32 : index
      %200 = vector.load %arg7[%c0_125, %c32] : memref<64x64xbf16, #tpu.memory_space<vmem>>, vector<64x16xbf16>
      tpu.vector_store %arg7[%c0_125, %c32], %199 {strides = array<i32>} : memref<64x64xbf16, #tpu.memory_space<vmem>>, vector<64x16xbf16>,
      %c3_126 = arith.constant 3 : index
      %c0_127 = arith.constant 0 : index
      %c0_128 = arith.constant 0 : index
      %201 = vector.load %arg10[%c3_126, %c0_127, %c0_128] : memref<4x64x16xf32, #tpu.memory_space<vmem>>, vector<1x64x16xf32>
      %202 = vector.shape_cast %201 : vector<1x64x16xf32> to vector<64x16xf32>
      %c3_129 = arith.constant 3 : index
      %c0_130 = arith.constant 0 : index
      %c0_131 = arith.constant 0 : index
      %203 = vector.load %arg9[%c3_129, %c0_130, %c0_131] : memref<4x64x1xf32, #tpu.memory_space<vmem>>, vector<1x64x1xf32>
      %204 = vector.shape_cast %203 : vector<1x64x1xf32> to vector<64x1xf32>
      %205 = tpu.reciprocal %204 {approx = true} : vector<64x1xf32> -> vector<64x1xf32>
      %206 = vector.broadcast %205 : vector<64x1xf32> to vector<64x16xf32>
      %207 = arith.mulf %202, %206 : vector<64x16xf32>
      %208 = arith.truncf %207 : vector<64x16xf32> to vector<64x16xbf16>
      %c0_132 = arith.constant 0 : index
      %c48 = arith.constant 48 : index
      %209 = vector.load %arg7[%c0_132, %c48] : memref<64x64xbf16, #tpu.memory_space<vmem>>, vector<64x16xbf16>
      tpu.vector_store %arg7[%c0_132, %c48], %208 {strides = array<i32>} : memref<64x64xbf16, #tpu.memory_space<vmem>>, vector<64x16xbf16>,
    } else {
    }
    return
  }
  func.func @transform_0(%arg0: i32, %arg1: i32) -> (i32, i32) {
    %c0_i32 = arith.constant 0 : i32
    %c0_i32_0 = arith.constant 0 : i32
    return %arg0, %c0_i32 : i32, i32
  }
  func.func @transform_1(%arg0: i32, %arg1: i32) -> (i32, i32) {
    %c0_i32 = arith.constant 0 : i32
    %c0_i32_0 = arith.constant 0 : i32
    return %c0_i32, %arg1 : i32, i32
  }
  func.func @transform_2(%arg0: i32, %arg1: i32) -> (i32, i32) {
    %c0_i32 = arith.constant 0 : i32
    %c0_i32_0 = arith.constant 0 : i32
    return %arg0, %c0_i32 : i32, i32
  }
  func.func @transform_3(%arg0: i32, %arg1: i32) -> (i32, i32) {
    %c0_i32 = arith.constant 0 : i32
    %c0_i32_0 = arith.constant 0 : i32
    return %arg1, %c0_i32 : i32, i32
  }
  func.func @transform_4(%arg0: i32, %arg1: i32) -> (i32, i32) {
    %c0_i32 = arith.constant 0 : i32
    %c0_i32_0 = arith.constant 0 : i32
    return %arg1, %c0_i32 : i32, i32
  }
  func.func @transform_5(%arg0: i32, %arg1: i32) -> (i32, i32) {
    %c0_i32 = arith.constant 0 : i32
    %c0_i32_0 = arith.constant 0 : i32
    return %arg0, %c0_i32 : i32, i32
  }
}

module attributes {stable_mosaic.version = 11 : i64} {
  func.func @_rmsnorm_kernel(%arg0: i32, %arg1: memref<128x64xf32, #tpu.memory_space<vmem>>, %arg2: memref<1x64xf32, #tpu.memory_space<vmem>>, %arg3: memref<128x64xf32, #tpu.memory_space<vmem>>) attributes {dimension_semantics = [#tpu.dimension_semantics<parallel>], iteration_bounds = array<i64: 1>, scalar_prefetch = 0 : i64, scratch_operands = 0 : i64, tpu.core_type = #tpu.core_type<tc>, window_params = [{transform_indices = @transform_0, window_bounds = array<i64: 128, 64>}, {pipeline_mode = #tpu.pipeline_mode<synchronous>, transform_indices = @transform_1, window_bounds = array<i64: 1, 64>}, {transform_indices = @transform_2, window_bounds = array<i64: 128, 64>}]} {
    %c0 = arith.constant 0 : index
    %c0_0 = arith.constant 0 : index
    %0 = vector.load %arg1[%c0, %c0_0] : memref<128x64xf32, #tpu.memory_space<vmem>>, vector<128x64xf32>
    %1 = arith.mulf %0, %0 : vector<128x64xf32>
    %cst = arith.constant dense<0.000000e+00> : vector<128xf32>
    %2 = vector.multi_reduction <add>, %1, %cst [1] : vector<128x64xf32> to vector<128xf32>
    %3 = vector.shape_cast %2 : vector<128xf32> to vector<128x1xf32>
    %cst_1 = arith.constant 6.400000e+01 : f32
    %4 = vector.broadcast %cst_1 : f32 to vector<128x1xf32>
    %5 = arith.divf %3, %4 : vector<128x1xf32>
    %cst_2 = arith.constant 9.99999997E-7 : f32
    %6 = vector.broadcast %cst_2 : f32 to vector<128x1xf32>
    %7 = arith.addf %5, %6 : vector<128x1xf32>
    %8 = math.rsqrt %7 : vector<128x1xf32>
    %9 = vector.broadcast %8 : vector<128x1xf32> to vector<128x64xf32>
    %10 = arith.mulf %0, %9 : vector<128x64xf32>
    %c0_3 = arith.constant 0 : index
    %c0_4 = arith.constant 0 : index
    %11 = vector.load %arg2[%c0_3, %c0_4] : memref<1x64xf32, #tpu.memory_space<vmem>>, vector<1x64xf32>
    %12 = vector.broadcast %11 : vector<1x64xf32> to vector<128x64xf32>
    %13 = arith.mulf %10, %12 : vector<128x64xf32>
    %c0_5 = arith.constant 0 : index
    %c0_6 = arith.constant 0 : index
    %14 = vector.load %arg3[%c0_5, %c0_6] : memref<128x64xf32, #tpu.memory_space<vmem>>, vector<128x64xf32>
    tpu.vector_store %arg3[%c0_5, %c0_6], %13 {strides = array<i32>} : memref<128x64xf32, #tpu.memory_space<vmem>>, vector<128x64xf32>,
    return
  }
  func.func @transform_0(%arg0: i32) -> (i32, i32) {
    %c0_i32 = arith.constant 0 : i32
    %c0_i32_0 = arith.constant 0 : i32
    return %arg0, %c0_i32 : i32, i32
  }
  func.func @transform_1(%arg0: i32) -> (i32, i32) {
    %c0_i32 = arith.constant 0 : i32
    %c0_i32_0 = arith.constant 0 : i32
    %c0_i32_1 = arith.constant 0 : i32
    return %c0_i32, %c0_i32_0 : i32, i32
  }
  func.func @transform_2(%arg0: i32) -> (i32, i32) {
    %c0_i32 = arith.constant 0 : i32
    %c0_i32_0 = arith.constant 0 : i32
    return %arg0, %c0_i32 : i32, i32
  }
}

module attributes {stable_mosaic.version = 11 : i64} {
  func.func @_merger_kernel(%arg0: i32, %arg1: memref<32x256xf32, #tpu.memory_space<vmem>>, %arg2: memref<256x256xbf16, #tpu.memory_space<vmem>>, %arg3: memref<1x256xf32, #tpu.memory_space<vmem>>, %arg4: memref<256x32xbf16, #tpu.memory_space<vmem>>, %arg5: memref<1x32xf32, #tpu.memory_space<vmem>>, %arg6: memref<32x32xf32, #tpu.memory_space<vmem>>) attributes {dimension_semantics = [#tpu.dimension_semantics<parallel>], iteration_bounds = array<i64: 1>, scalar_prefetch = 0 : i64, scratch_operands = 0 : i64, tpu.core_type = #tpu.core_type<tc>, window_params = [{transform_indices = @transform_0, window_bounds = array<i64: 32, 256>}, {pipeline_mode = #tpu.pipeline_mode<synchronous>, transform_indices = @transform_1, window_bounds = array<i64: 256, 256>}, {pipeline_mode = #tpu.pipeline_mode<synchronous>, transform_indices = @transform_2, window_bounds = array<i64: 1, 256>}, {pipeline_mode = #tpu.pipeline_mode<synchronous>, transform_indices = @transform_3, window_bounds = array<i64: 256, 32>}, {pipeline_mode = #tpu.pipeline_mode<synchronous>, transform_indices = @transform_4, window_bounds = array<i64: 1, 32>}, {transform_indices = @transform_5, window_bounds = array<i64: 32, 32>}]} {
    %c0 = arith.constant 0 : index
    %c0_0 = arith.constant 0 : index
    %0 = vector.load %arg1[%c0, %c0_0] : memref<32x256xf32, #tpu.memory_space<vmem>>, vector<32x256xf32>
    %1 = arith.truncf %0 : vector<32x256xf32> to vector<32x256xbf16>
    %c0_1 = arith.constant 0 : index
    %c0_2 = arith.constant 0 : index
    %2 = vector.load %arg2[%c0_1, %c0_2] : memref<256x256xbf16, #tpu.memory_space<vmem>>, vector<256x256xbf16>
    %cst = arith.constant dense<0.000000e+00> : vector<32x256xf32>
    %3 = tpu.matmul %1, %2, %cst {dimension_numbers = #tpu.dot_dimension_numbers<[1], [0], [0], [1], [0, 0, 1, 1], [], []>} : vector<32x256xbf16>, vector<256x256xbf16>, vector<32x256xf32> -> vector<32x256xf32>
    %c0_3 = arith.constant 0 : index
    %c0_4 = arith.constant 0 : index
    %4 = vector.load %arg3[%c0_3, %c0_4] : memref<1x256xf32, #tpu.memory_space<vmem>>, vector<1x256xf32>
    %5 = vector.broadcast %4 : vector<1x256xf32> to vector<32x256xf32>
    %6 = arith.addf %3, %5 : vector<32x256xf32>
    %cst_5 = arith.constant 5.000000e-01 : f32
    %7 = vector.broadcast %cst_5 : f32 to vector<32x256xf32>
    %8 = arith.mulf %7, %6 : vector<32x256xf32>
    %cst_6 = arith.constant 4.471500e-02 : f32
    %9 = vector.broadcast %cst_6 : f32 to vector<32x256xf32>
    %10 = arith.mulf %9, %6 : vector<32x256xf32>
    %11 = arith.mulf %10, %6 : vector<32x256xf32>
    %12 = arith.mulf %11, %6 : vector<32x256xf32>
    %13 = arith.addf %6, %12 : vector<32x256xf32>
    %cst_7 = arith.constant 0.797884583 : f32
    %14 = vector.broadcast %cst_7 : f32 to vector<32x256xf32>
    %15 = arith.mulf %14, %13 : vector<32x256xf32>
    %16 = math.tanh %15 : vector<32x256xf32>
    %cst_8 = arith.constant 1.000000e+00 : f32
    %17 = vector.broadcast %cst_8 : f32 to vector<32x256xf32>
    %18 = arith.addf %17, %16 : vector<32x256xf32>
    %19 = arith.mulf %8, %18 : vector<32x256xf32>
    %20 = arith.truncf %19 : vector<32x256xf32> to vector<32x256xbf16>
    %c0_9 = arith.constant 0 : index
    %c0_10 = arith.constant 0 : index
    %21 = vector.load %arg4[%c0_9, %c0_10] : memref<256x32xbf16, #tpu.memory_space<vmem>>, vector<256x32xbf16>
    %cst_11 = arith.constant dense<0.000000e+00> : vector<32x32xf32>
    %22 = tpu.matmul %20, %21, %cst_11 {dimension_numbers = #tpu.dot_dimension_numbers<[1], [0], [0], [1], [0, 0, 1, 1], [], []>} : vector<32x256xbf16>, vector<256x32xbf16>, vector<32x32xf32> -> vector<32x32xf32>
    %c0_12 = arith.constant 0 : index
    %c0_13 = arith.constant 0 : index
    %23 = vector.load %arg5[%c0_12, %c0_13] : memref<1x32xf32, #tpu.memory_space<vmem>>, vector<1x32xf32>
    %24 = vector.broadcast %23 : vector<1x32xf32> to vector<32x32xf32>
    %25 = arith.addf %22, %24 : vector<32x32xf32>
    %c0_14 = arith.constant 0 : index
    %c0_15 = arith.constant 0 : index
    %26 = vector.load %arg6[%c0_14, %c0_15] : memref<32x32xf32, #tpu.memory_space<vmem>>, vector<32x32xf32>
    tpu.vector_store %arg6[%c0_14, %c0_15], %25 {strides = array<i32>} : memref<32x32xf32, #tpu.memory_space<vmem>>, vector<32x32xf32>,
    return
  }
  func.func @transform_0(%arg0: i32) -> (i32, i32) {
    %c0_i32 = arith.constant 0 : i32
    %c0_i32_0 = arith.constant 0 : i32
    return %arg0, %c0_i32 : i32, i32
  }
  func.func @transform_1(%arg0: i32) -> (i32, i32) {
    %c0_i32 = arith.constant 0 : i32
    %c0_i32_0 = arith.constant 0 : i32
    %c0_i32_1 = arith.constant 0 : i32
    return %c0_i32, %c0_i32_0 : i32, i32
  }
  func.func @transform_2(%arg0: i32) -> (i32, i32) {
    %c0_i32 = arith.constant 0 : i32
    %c0_i32_0 = arith.constant 0 : i32
    %c0_i32_1 = arith.constant 0 : i32
    return %c0_i32, %c0_i32_0 : i32, i32
  }
  func.func @transform_3(%arg0: i32) -> (i32, i32) {
    %c0_i32 = arith.constant 0 : i32
    %c0_i32_0 = arith.constant 0 : i32
    %c0_i32_1 = arith.constant 0 : i32
    return %c0_i32, %c0_i32_0 : i32, i32
  }
  func.func @transform_4(%arg0: i32) -> (i32, i32) {
    %c0_i32 = arith.constant 0 : i32
    %c0_i32_0 = arith.constant 0 : i32
    %c0_i32_1 = arith.constant 0 : i32
    return %c0_i32, %c0_i32_0 : i32, i32
  }
  func.func @transform_5(%arg0: i32) -> (i32, i32) {
    %c0_i32 = arith.constant 0 : i32
    %c0_i32_0 = arith.constant 0 : i32
    return %arg0, %c0_i32 : i32, i32
  }
}

</mosaic_0001>

<llo_original>
// kernel: core_forward.9
$region0: #{core_forward.9}
  #allocation0 [shape = 'u32[]', space=smem, size = 0x4, offset = 0x4, fixed_abs, tag = 'smem constant byte address 0x4 - core index']
  #allocation1 [shape = 'u32[72,128]{1,0:T(1,128)}', space=vmem, size = 0x9000, scoped, tag = 'internal scratch']
  %s0 = inlined_call_operand.hbm [shape: f32[128,128], index: 0, kind: input, shape index: {}]
  %s1 = inlined_call_operand.vmem [shape: bf16[128,64], index: 1, kind: input, shape index: {}]
  %s2 = inlined_call_operand.vmem [shape: f32[1,64], index: 2, kind: input, shape index: {}]
  %s3 = inlined_call_operand.vmem [shape: f32[128,64], index: 3, kind: output, shape index: {}]
  %s4 = sld [smem:[#allocation0]]
  $region26: #{core_forward.9} parent=0
    _
  %s6 = ssub.s32 1, %s4
  %s7 = scalar_select 0, %s6, %s4
  $region1: #{core_forward.9} parent=0
    #allocation2 [shape = 'u8[65536]{0}', space=vmem, size = 0x10000, scoped, tag = 'input window, operand 0, single buffered']
    #allocation3 [shape = 's32[1]{0}', space=sflag, size = 0x4, scoped, tag = 'scoped memory for core_forward.9']
    %8 = vsyncpa [#allocation3], 0
    // Predicated region
    $region2: #{core_forward.9} parent=1 // pred_check
      _
    $region3: #{core_forward.9} parent=1 // pred_check_branch
      %10 = sbr.rel (0) target = $region5
    $region4: #{core_forward.9} parent=1 // pred_region
      %12 = vsyncadd [#allocation3], 0
      %s13 = sshll.u32 %s0, 4
      %s14 = int_to_ptr.hbm [resolvable:$true] %s13
      %s15 = sshll.u32 [#allocation2], 4
      %s16 = int_to_ptr.vmem [resolvable:$true] %s15
      %21 = dma.hbm_to_vmem [thread:$0]  %s14, 2048, %s16, [#allocation3], 128, 128, 8
    $region5: #{core_forward.9} parent=1 // pred_fallthru
      _
    // Predicated region
    $region6: #{core_forward.9} parent=1 // pred_check
      _
    $region7: #{core_forward.9} parent=1 // pred_check_branch
      %23 = sbr.rel (0) target = $region9
    $region8: #{core_forward.9} parent=1 // pred_region
      _
    $region9: #{core_forward.9} parent=1 // pred_fallthru
      _
    // Predicated region
    $region10: #{core_forward.9} parent=1 // pred_check
      _
    $region11: #{core_forward.9} parent=1 // pred_check_branch
      %25 = sbr.rel (0) target = $region13
    $region12: #{core_forward.9} parent=1 // pred_region
      _
    $region13: #{core_forward.9} parent=1 // pred_fallthru
      _
    // Predicated region
    $region14: #{core_forward.9} parent=1 // pred_check
      _
    $region15: #{core_forward.9} parent=1 // pred_check_branch
      %27 = sbr.rel (0) target = $region17
    $region16: #{core_forward.9} parent=1 // pred_region
      %29 = dma.done [#allocation3], 2048
    $region17: #{core_forward.9} parent=1 // pred_fallthru
      _
    %v30 = vld [vmem:[#allocation2] sm:$0xff]
    %v31 = vld [vmem:[#allocation2 + $0x8] sm:$0xff]
    %v32 = vld [vmem:[#allocation2 + $0x10] sm:$0xff]
    %v33 = vld [vmem:[#allocation2 + $0x18] sm:$0xff]
    %v34 = vld [vmem:[#allocation2 + $0x20] sm:$0xff]
    %v35 = vld [vmem:[#allocation2 + $0x28] sm:$0xff]
    %v36 = vld [vmem:[#allocation2 + $0x30] sm:$0xff]
    %v37 = vld [vmem:[#allocation2 + $0x38] sm:$0xff]
    %v38 = vld [vmem:[#allocation2 + $0x40] sm:$0xff]
    %v39 = vld [vmem:[#allocation2 + $0x48] sm:$0xff]
    %v40 = vld [vmem:[#allocation2 + $0x50] sm:$0xff]
    %v41 = vld [vmem:[#allocation2 + $0x58] sm:$0xff]
    %v42 = vld [vmem:[#allocation2 + $0x60] sm:$0xff]
    %v43 = vld [vmem:[#allocation2 + $0x68] sm:$0xff]
    %v44 = vld [vmem:[#allocation2 + $0x70] sm:$0xff]
    %v45 = vld [vmem:[#allocation2 + $0x78] sm:$0xff]
    %v46 = vpack.c.bf16 %v31, %v30
    %v47 = vpack.c.bf16 %v33, %v32
    %v48 = vpack.c.bf16 %v35, %v34
    %v49 = vpack.c.bf16 %v37, %v36
    %v50 = vpack.c.bf16 %v39, %v38
    %v51 = vpack.c.bf16 %v41, %v40
    %v52 = vpack.c.bf16 %v43, %v42
    %v53 = vpack.c.bf16 %v45, %v44
    %v54 = vld [vmem:[%s1] sm:$0xf]
    %v55 = vld [vmem:[%s1 + $0x4] sm:$0xf]
    %v56 = vld [vmem:[%s1 + $0x8] sm:$0xf]
    %v57 = vld [vmem:[%s1 + $0xc] sm:$0xf]
    %v58 = vld [vmem:[%s1 + $0x10] sm:$0xf]
    %v59 = vld [vmem:[%s1 + $0x14] sm:$0xf]
    %v60 = vld [vmem:[%s1 + $0x18] sm:$0xf]
    %v61 = vld [vmem:[%s1 + $0x1c] sm:$0xf]
    %v62 = vld [vmem:[%s1 + $0x20] sm:$0xf]
    %v63 = vld [vmem:[%s1 + $0x24] sm:$0xf]
    %v64 = vld [vmem:[%s1 + $0x28] sm:$0xf]
    %v65 = vld [vmem:[%s1 + $0x2c] sm:$0xf]
    %v66 = vld [vmem:[%s1 + $0x30] sm:$0xf]
    %v67 = vld [vmem:[%s1 + $0x34] sm:$0xf]
    %v68 = vld [vmem:[%s1 + $0x38] sm:$0xf]
    %v69 = vld [vmem:[%s1 + $0x3c] sm:$0xf]
    %v70 = vld [vmem:[%s2] sm:$0x1]
    %v72 = vperm.slane %v70, 0
    %v90 = vunpack.c.l.b16 %v54
    %v91 = vunpack.c.l.b16 %v55
    %v92 = vunpack.c.l.b16 %v56
    %v93 = vunpack.c.l.b16 %v57
    %v94 = vunpack.c.l.b16 %v58
    %v95 = vunpack.c.l.b16 %v59
    %v96 = vunpack.c.l.b16 %v60
    %v97 = vunpack.c.l.b16 %v61
    %v98 = vunpack.c.l.b16 %v62
    %v99 = vunpack.c.l.b16 %v63
    %v100 = vunpack.c.l.b16 %v64
    %v101 = vunpack.c.l.b16 %v65
    %v102 = vunpack.c.l.b16 %v66
    %v103 = vunpack.c.l.b16 %v67
    %v104 = vunpack.c.l.b16 %v68
    %v105 = vunpack.c.l.b16 %v69
    %v106 = vpack.c.b16 %v91, %v90
    %v107 = vpack.c.b16 %v93, %v92
    %v108 = vpack.c.b16 %v95, %v94
    %v109 = vpack.c.b16 %v97, %v96
    %v110 = vpack.c.b16 %v99, %v98
    %v111 = vpack.c.b16 %v101, %v100
    %v112 = vpack.c.b16 %v103, %v102
    %v113 = vpack.c.b16 %v105, %v104
    %122 = vmatpush.bf16.msra.mxu0 %v113
    %123 = vmatpush.bf16.msra.mxu0 %v112
    %124 = vmatpush.bf16.msra.mxu0 %v111
    %125 = vmatpush.bf16.msra.mxu0 %v110
    %126 = vmatpush.bf16.msra.mxu0 %v109
    %127 = vmatpush.bf16.msra.mxu0 %v108
    %128 = vmatpush.bf16.msra.mxu0 %v107
    %129 = vmatpush.bf16.msra.mxu0 %v106
    %130 = vmatmul.bf16.gmra.mxu0 %v46
    %v131 = vpop.f32.mrf.mxu0
    %v132 = vadd.f32 %v72, %v131
    %v133 = vpop.f32.mrf.mxu0
    %v134 = vadd.f32 %v72, %v133
    %135 = vmatmul.bf16.gmra.mxu0 %v47
    %v136 = vpop.f32.mrf.mxu0
    %v137 = vadd.f32 %v72, %v136
    %v138 = vpop.f32.mrf.mxu0
    %v139 = vadd.f32 %v72, %v138
    %140 = vmatmul.bf16.gmra.mxu0 %v48
    %v141 = vpop.f32.mrf.mxu0
    %v142 = vadd.f32 %v72, %v141
    %v143 = vpop.f32.mrf.mxu0
    %v144 = vadd.f32 %v72, %v143
    %145 = vmatmul.bf16.gmra.mxu0 %v49
    %v146 = vpop.f32.mrf.mxu0
    %v147 = vadd.f32 %v72, %v146
    %v148 = vpop.f32.mrf.mxu0
    %v149 = vadd.f32 %v72, %v148
    %150 = vmatmul.bf16.gmra.mxu0 %v50
    %v151 = vpop.f32.mrf.mxu0
    %v152 = vadd.f32 %v72, %v151
    %v153 = vpop.f32.mrf.mxu0
    %v154 = vadd.f32 %v72, %v153
    %155 = vmatmul.bf16.gmra.mxu0 %v51
    %v156 = vpop.f32.mrf.mxu0
    %v157 = vadd.f32 %v72, %v156
    %v158 = vpop.f32.mrf.mxu0
    %v159 = vadd.f32 %v72, %v158
    %160 = vmatmul.bf16.gmra.mxu0 %v52
    %v161 = vpop.f32.mrf.mxu0
    %v162 = vadd.f32 %v72, %v161
    %v163 = vpop.f32.mrf.mxu0
    %v164 = vadd.f32 %v72, %v163
    %165 = vmatmul.bf16.gmra.mxu0 %v53
    %v166 = vpop.f32.mrf.mxu0
    %v167 = vadd.f32 %v72, %v166
    %v168 = vpop.f32.mrf.mxu0
    %v169 = vadd.f32 %v72, %v168
    %170 = vdwg.mxu0
    %vm171 = vcmask 523264
    %172 = vst.msk [vmem:[%s3] sm:$0xff] %vm171, %v132
    %173 = vst.msk [vmem:[%s3 + $0x8] sm:$0xff] %vm171, %v134
    %174 = vst.msk [vmem:[%s3 + $0x10] sm:$0xff] %vm171, %v137
    %175 = vst.msk [vmem:[%s3 + $0x18] sm:$0xff] %vm171, %v139
    %176 = vst.msk [vmem:[%s3 + $0x20] sm:$0xff] %vm171, %v142
    %177 = vst.msk [vmem:[%s3 + $0x28] sm:$0xff] %vm171, %v144
    %178 = vst.msk [vmem:[%s3 + $0x30] sm:$0xff] %vm171, %v147
    %179 = vst.msk [vmem:[%s3 + $0x38] sm:$0xff] %vm171, %v149
    %180 = vst.msk [vmem:[%s3 + $0x40] sm:$0xff] %vm171, %v152
    %181 = vst.msk [vmem:[%s3 + $0x48] sm:$0xff] %vm171, %v154
    %182 = vst.msk [vmem:[%s3 + $0x50] sm:$0xff] %vm171, %v157
    %183 = vst.msk [vmem:[%s3 + $0x58] sm:$0xff] %vm171, %v159
    %184 = vst.msk [vmem:[%s3 + $0x60] sm:$0xff] %vm171, %v162
    %185 = vst.msk [vmem:[%s3 + $0x68] sm:$0xff] %vm171, %v164
    %186 = vst.msk [vmem:[%s3 + $0x70] sm:$0xff] %vm171, %v167
    %187 = vst.msk [vmem:[%s3 + $0x78] sm:$0xff] %vm171, %v169
    // Predicated region
    $region18: #{core_forward.9} parent=1 // pred_check
      _
    $region19: #{core_forward.9} parent=1 // pred_check_branch
      %189 = sbr.rel (0) target = $region21
    $region20: #{core_forward.9} parent=1 // pred_region
      _
    $region21: #{core_forward.9} parent=1 // pred_fallthru
      _
    // Predicated region
    $region22: #{core_forward.9} parent=1 // pred_check
      _
    $region23: #{core_forward.9} parent=1 // pred_check_branch
      %191 = sbr.rel (0) target = $region25
    $region24: #{core_forward.9} parent=1 // pred_region
      _
    $region25: #{core_forward.9} parent=1 // pred_fallthru
      _
    %192 = vsyncpa [#allocation3], 1

// kernel: core_forward.10
$region0: #{core_forward.10}
  #allocation0 [shape = 'u32[]', space=smem, size = 0x4, offset = 0x4, fixed_abs, tag = 'smem constant byte address 0x4 - core index']
  #allocation1 [shape = 'u32[72,128]{1,0:T(1,128)}', space=vmem, size = 0x9000, scoped, tag = 'internal scratch']
  %s0 = inlined_call_operand.vmem [shape: f32[128,64], index: 0, kind: input, shape index: {}]
  %s1 = inlined_call_operand.vmem [shape: f32[1,64], index: 1, kind: input, shape index: {}]
  %s2 = inlined_call_operand.vmem [shape: bf16[64,192], index: 2, kind: input, shape index: {}]
  %s3 = inlined_call_operand.vmem [shape: f32[1,192], index: 3, kind: input, shape index: {}]
  %s4 = inlined_call_operand.vmem [shape: bf16[128,64], index: 4, kind: input, shape index: {}]
  %s5 = inlined_call_operand.vmem [shape: bf16[128,64], index: 5, kind: input, shape index: {}]
  %s6 = inlined_call_operand.vmem [shape: bf16[64,64], index: 6, kind: input, shape index: {}]
  %s7 = inlined_call_operand.vmem [shape: bf16[128,64], index: 7, kind: output, shape index: {0}]
  %s8 = inlined_call_operand.vmem [shape: bf16[128,64], index: 8, kind: output, shape index: {1}]
  %s9 = inlined_call_operand.vmem [shape: bf16[128,64], index: 9, kind: output, shape index: {2}]
  %10 = xla_tuple %s7, %s8, %s9
  %s11 = sld [smem:[#allocation0]]
  $region54: #{core_forward.10} parent=0
    _
  %s13 = ssub.s32 1, %s11
  %s14 = scalar_select 0, %s13, %s11
  // Predicated region
  $region2: #{core_forward.10} parent=0 // pred_check
    _
  $region3: #{core_forward.10} parent=0 // pred_check_branch
    %16 = sbr.rel (0) target = $region5
  $region4: #{core_forward.10} parent=0 // pred_region
    _
  $region5: #{core_forward.10} parent=0 // pred_fallthru
    _
  // Predicated region
  $region6: #{core_forward.10} parent=0 // pred_check
    _
  $region7: #{core_forward.10} parent=0 // pred_check_branch
    %18 = sbr.rel (0) target = $region9
  $region8: #{core_forward.10} parent=0 // pred_region
    _
  $region9: #{core_forward.10} parent=0 // pred_fallthru
    _
  // Predicated region
  $region10: #{core_forward.10} parent=0 // pred_check
    _
  $region11: #{core_forward.10} parent=0 // pred_check_branch
    %20 = sbr.rel (0) target = $region13
  $region12: #{core_forward.10} parent=0 // pred_region
    _
  $region13: #{core_forward.10} parent=0 // pred_fallthru
    _
  // Predicated region
  $region14: #{core_forward.10} parent=0 // pred_check
    _
  $region15: #{core_forward.10} parent=0 // pred_check_branch
    %22 = sbr.rel (0) target = $region17
  $region16: #{core_forward.10} parent=0 // pred_region
    _
  $region17: #{core_forward.10} parent=0 // pred_fallthru
    _
  // Predicated region
  $region18: #{core_forward.10} parent=0 // pred_check
    _
  $region19: #{core_forward.10} parent=0 // pred_check_branch
    %24 = sbr.rel (0) target = $region21
  $region20: #{core_forward.10} parent=0 // pred_region
    _
  $region21: #{core_forward.10} parent=0 // pred_fallthru
    _
  // Predicated region
  $region22: #{core_forward.10} parent=0 // pred_check
    _
  $region23: #{core_forward.10} parent=0 // pred_check_branch
    %26 = sbr.rel (0) target = $region25
  $region24: #{core_forward.10} parent=0 // pred_region
    _
  $region25: #{core_forward.10} parent=0 // pred_fallthru
    _
  // Predicated region
  $region26: #{core_forward.10} parent=0 // pred_check
    _
  $region27: #{core_forward.10} parent=0 // pred_check_branch
    %28 = sbr.rel (0) target = $region29
  $region28: #{core_forward.10} parent=0 // pred_region
    _
  $region29: #{core_forward.10} parent=0 // pred_fallthru
    _
  %v30 = vld [vmem:[%s0] sm:$0xff]
  %v31 = vld [vmem:[%s0 + $0x8] sm:$0xff]
  %v32 = vld [vmem:[%s0 + $0x10] sm:$0xff]
  %v33 = vld [vmem:[%s0 + $0x18] sm:$0xff]
  %v34 = vld [vmem:[%s0 + $0x20] sm:$0xff]
  %v35 = vld [vmem:[%s0 + $0x28] sm:$0xff]
  %v36 = vld [vmem:[%s0 + $0x30] sm:$0xff]
  %v37 = vld [vmem:[%s0 + $0x38] sm:$0xff]
  %v38 = vld [vmem:[%s0 + $0x40] sm:$0xff]
  %v39 = vld [vmem:[%s0 + $0x48] sm:$0xff]
  %v40 = vld [vmem:[%s0 + $0x50] sm:$0xff]
  %v41 = vld [vmem:[%s0 + $0x58] sm:$0xff]
  %v42 = vld [vmem:[%s0 + $0x60] sm:$0xff]
  %v43 = vld [vmem:[%s0 + $0x68] sm:$0xff]
  %v44 = vld [vmem:[%s0 + $0x70] sm:$0xff]
  %v45 = vld [vmem:[%s0 + $0x78] sm:$0xff]
  %v46 = vmul.f32 %v30, %v30
  %v47 = vmul.f32 %v31, %v31
  %v48 = vmul.f32 %v32, %v32
  %v49 = vmul.f32 %v33, %v33
  %v50 = vmul.f32 %v34, %v34
  %v51 = vmul.f32 %v35, %v35
  %v52 = vmul.f32 %v36, %v36
  %v53 = vmul.f32 %v37, %v37
  %v54 = vmul.f32 %v38, %v38
  %v55 = vmul.f32 %v39, %v39
  %v56 = vmul.f32 %v40, %v40
  %v57 = vmul.f32 %v41, %v41
  %v58 = vmul.f32 %v42, %v42
  %v59 = vmul.f32 %v43, %v43
  %v60 = vmul.f32 %v44, %v44
  %v61 = vmul.f32 %v45, %v45
  %vm62 = vcmask 523264
  %v63 = vsel %vm62, %v46, 0.0
  %64 = vadd.xlane.f32.xlu0 %v63
  %v65 = vpop.xlane.xlu0 %64
  %v66 = vsel %vm62, %v47, 0.0
  %67 = vadd.xlane.f32.xlu0 %v66
  %v68 = vpop.xlane.xlu0 %67
  %v69 = vsel %vm62, %v48, 0.0
  %70 = vadd.xlane.f32.xlu0 %v69
  %v71 = vpop.xlane.xlu0 %70
  %v72 = vsel %vm62, %v49, 0.0
  %73 = vadd.xlane.f32.xlu0 %v72
  %v74 = vpop.xlane.xlu0 %73
  %v75 = vsel %vm62, %v50, 0.0
  %76 = vadd.xlane.f32.xlu0 %v75
  %v77 = vpop.xlane.xlu0 %76
  %v78 = vsel %vm62, %v51, 0.0
  %79 = vadd.xlane.f32.xlu0 %v78
  %v80 = vpop.xlane.xlu0 %79
  %v81 = vsel %vm62, %v52, 0.0
  %82 = vadd.xlane.f32.xlu0 %v81
  %v83 = vpop.xlane.xlu0 %82
  %v84 = vsel %vm62, %v53, 0.0
  %85 = vadd.xlane.f32.xlu0 %v84
  %v86 = vpop.xlane.xlu0 %85
  %v87 = vsel %vm62, %v54, 0.0
  %88 = vadd.xlane.f32.xlu0 %v87
  %v89 = vpop.xlane.xlu0 %88
  %v90 = vsel %vm62, %v55, 0.0
  %91 = vadd.xlane.f32.xlu0 %v90
  %v92 = vpop.xlane.xlu0 %91
  %v93 = vsel %vm62, %v56, 0.0
  %94 = vadd.xlane.f32.xlu0 %v93
  %v95 = vpop.xlane.xlu0 %94
  %v96 = vsel %vm62, %v57, 0.0
  %97 = vadd.xlane.f32.xlu0 %v96
  %v98 = vpop.xlane.xlu0 %97
  %v99 = vsel %vm62, %v58, 0.0
  %100 = vadd.xlane.f32.xlu0 %v99
  %v101 = vpop.xlane.xlu0 %100
  %v102 = vsel %vm62, %v59, 0.0
  %103 = vadd.xlane.f32.xlu0 %v102
  %v104 = vpop.xlane.xlu0 %103
  %v105 = vsel %vm62, %v60, 0.0
  %106 = vadd.xlane.f32.xlu0 %v105
  %v107 = vpop.xlane.xlu0 %106
  %v108 = vsel %vm62, %v61, 0.0
  %109 = vadd.xlane.f32.xlu0 %v108
  %v110 = vpop.xlane.xlu0 %109
  %v111 = vrcp.pop 64.0
  %v112 = vmul.f32 64.0, %v111
  %v113 = vsub.f32 1.0, %v112
  %v114 = vmul.f32 %v111, %v113
  %v115 = vadd.f32 %v111, %v114
  %vm116 = vweird.f32 %v111
  %v117 = vsel %vm116, %v111, %v115
  %v118 = vmul.f32 %v65, %v117
  %v119 = vmul.f32 %v68, %v117
  %v120 = vmul.f32 %v71, %v117
  %v121 = vmul.f32 %v74, %v117
  %v122 = vmul.f32 %v77, %v117
  %v123 = vmul.f32 %v80, %v117
  %v124 = vmul.f32 %v83, %v117
  %v125 = vmul.f32 %v86, %v117
  %v126 = vmul.f32 %v89, %v117
  %v127 = vmul.f32 %v92, %v117
  %v128 = vmul.f32 %v95, %v117
  %v129 = vmul.f32 %v98, %v117
  %v130 = vmul.f32 %v101, %v117
  %v131 = vmul.f32 %v104, %v117
  %v132 = vmul.f32 %v107, %v117
  %v133 = vmul.f32 %v110, %v117
  %v134 = vadd.f32 %v118, 1e-06
  %v135 = vadd.f32 %v119, 1e-06
  %v136 = vadd.f32 %v120, 1e-06
  %v137 = vadd.f32 %v121, 1e-06
  %v138 = vadd.f32 %v122, 1e-06
  %v139 = vadd.f32 %v123, 1e-06
  %v140 = vadd.f32 %v124, 1e-06
  %v141 = vadd.f32 %v125, 1e-06
  %v142 = vadd.f32 %v126, 1e-06
  %v143 = vadd.f32 %v127, 1e-06
  %v144 = vadd.f32 %v128, 1e-06
  %v145 = vadd.f32 %v129, 1e-06
  %v146 = vadd.f32 %v130, 1e-06
  %v147 = vadd.f32 %v131, 1e-06
  %v148 = vadd.f32 %v132, 1e-06
  %v149 = vadd.f32 %v133, 1e-06
  %v150 = vrsqrt.pop %v134
  %v151 = vmul.f32 %v150, %v134
  %v152 = vmul.f32 %v151, %v150
  %v153 = vmul.f32 0.5, %v152
  %v154 = vsub.f32 1.5, %v153
  %v155 = vmul.f32 %v150, %v154
  %vm156 = vweird.f32 %v134
  %vm157 = vweird.f32 %v150
  %vm158 = vmor %vm156, %vm157
  %v159 = vsel %vm158, %v150, %v155
  %v160 = vrsqrt.pop %v135
  %v161 = vmul.f32 %v160, %v135
  %v162 = vmul.f32 %v161, %v160
  %v163 = vmul.f32 0.5, %v162
  %v164 = vsub.f32 1.5, %v163
  %v165 = vmul.f32 %v160, %v164
  %vm166 = vweird.f32 %v135
  %vm167 = vweird.f32 %v160
  %vm168 = vmor %vm166, %vm167
  %v169 = vsel %vm168, %v160, %v165
  %v170 = vrsqrt.pop %v136
  %v171 = vmul.f32 %v170, %v136
  %v172 = vmul.f32 %v171, %v170
  %v173 = vmul.f32 0.5, %v172
  %v174 = vsub.f32 1.5, %v173
  %v175 = vmul.f32 %v170, %v174
  %vm176 = vweird.f32 %v136
  %vm177 = vweird.f32 %v170
  %vm178 = vmor %vm176, %vm177
  %v179 = vsel %vm178, %v170, %v175
  %v180 = vrsqrt.pop %v137
  %v181 = vmul.f32 %v180, %v137
  %v182 = vmul.f32 %v181, %v180
  %v183 = vmul.f32 0.5, %v182
  %v184 = vsub.f32 1.5, %v183
  %v185 = vmul.f32 %v180, %v184
  %vm186 = vweird.f32 %v137
  %vm187 = vweird.f32 %v180
  %vm188 = vmor %vm186, %vm187
  %v189 = vsel %vm188, %v180, %v185
  %v190 = vrsqrt.pop %v138
  %v191 = vmul.f32 %v190, %v138
  %v192 = vmul.f32 %v191, %v190
  %v193 = vmul.f32 0.5, %v192
  %v194 = vsub.f32 1.5, %v193
  %v195 = vmul.f32 %v190, %v194
  %vm196 = vweird.f32 %v138
  %vm197 = vweird.f32 %v190
  %vm198 = vmor %vm196, %vm197
  %v199 = vsel %vm198, %v190, %v195
  %v200 = vrsqrt.pop %v139
  %v201 = vmul.f32 %v200, %v139
  %v202 = vmul.f32 %v201, %v200
  %v203 = vmul.f32 0.5, %v202
  %v204 = vsub.f32 1.5, %v203
  %v205 = vmul.f32 %v200, %v204
  %vm206 = vweird.f32 %v139
  %vm207 = vweird.f32 %v200
  %vm208 = vmor %vm206, %vm207
  %v209 = vsel %vm208, %v200, %v205
  %v210 = vrsqrt.pop %v140
  %v211 = vmul.f32 %v210, %v140
  %v212 = vmul.f32 %v211, %v210
  %v213 = vmul.f32 0.5, %v212
  %v214 = vsub.f32 1.5, %v213
  %v215 = vmul.f32 %v210, %v214
  %vm216 = vweird.f32 %v140
  %vm217 = vweird.f32 %v210
  %vm218 = vmor %vm216, %vm217
  %v219 = vsel %vm218, %v210, %v215
  %v220 = vrsqrt.pop %v141
  %v221 = vmul.f32 %v220, %v141
  %v222 = vmul.f32 %v221, %v220
  %v223 = vmul.f32 0.5, %v222
  %v224 = vsub.f32 1.5, %v223
  %v225 = vmul.f32 %v220, %v224
  %vm226 = vweird.f32 %v141
  %vm227 = vweird.f32 %v220
  %vm228 = vmor %vm226, %vm227
  %v229 = vsel %vm228, %v220, %v225
  %v230 = vrsqrt.pop %v142
  %v231 = vmul.f32 %v230, %v142
  %v232 = vmul.f32 %v231, %v230
  %v233 = vmul.f32 0.5, %v232
  %v234 = vsub.f32 1.5, %v233
  %v235 = vmul.f32 %v230, %v234
  %vm236 = vweird.f32 %v142
  %vm237 = vweird.f32 %v230
  %vm238 = vmor %vm236, %vm237
  %v239 = vsel %vm238, %v230, %v235
  %v240 = vrsqrt.pop %v143
  %v241 = vmul.f32 %v240, %v143
  %v242 = vmul.f32 %v241, %v240
  %v243 = vmul.f32 0.5, %v242
  %v244 = vsub.f32 1.5, %v243
  %v245 = vmul.f32 %v240, %v244
  %vm246 = vweird.f32 %v143
  %vm247 = vweird.f32 %v240
  %vm248 = vmor %vm246, %vm247
  %v249 = vsel %vm248, %v240, %v245
  %v250 = vrsqrt.pop %v144
  %v251 = vmul.f32 %v250, %v144
  %v252 = vmul.f32 %v251, %v250
  %v253 = vmul.f32 0.5, %v252
  %v254 = vsub.f32 1.5, %v253
  %v255 = vmul.f32 %v250, %v254
  %vm256 = vweird.f32 %v144
  %vm257 = vweird.f32 %v250
  %vm258 = vmor %vm256, %vm257
  %v259 = vsel %vm258, %v250, %v255
  %v260 = vrsqrt.pop %v145
  %v261 = vmul.f32 %v260, %v145
  %v262 = vmul.f32 %v261, %v260
  %v263 = vmul.f32 0.5, %v262
  %v264 = vsub.f32 1.5, %v263
  %v265 = vmul.f32 %v260, %v264
  %vm266 = vweird.f32 %v145
  %vm267 = vweird.f32 %v260
  %vm268 = vmor %vm266, %vm267
  %v269 = vsel %vm268, %v260, %v265
  %v270 = vrsqrt.pop %v146
  %v271 = vmul.f32 %v270, %v146
  %v272 = vmul.f32 %v271, %v270
  %v273 = vmul.f32 0.5, %v272
  %v274 = vsub.f32 1.5, %v273
  %v275 = vmul.f32 %v270, %v274
  %vm276 = vweird.f32 %v146
  %vm277 = vweird.f32 %v270
  %vm278 = vmor %vm276, %vm277
  %v279 = vsel %vm278, %v270, %v275
  %v280 = vrsqrt.pop %v147
  %v281 = vmul.f32 %v280, %v147
  %v282 = vmul.f32 %v281, %v280
  %v283 = vmul.f32 0.5, %v282
  %v284 = vsub.f32 1.5, %v283
  %v285 = vmul.f32 %v280, %v284
  %vm286 = vweird.f32 %v147
  %vm287 = vweird.f32 %v280
  %vm288 = vmor %vm286, %vm287
  %v289 = vsel %vm288, %v280, %v285
  %v290 = vrsqrt.pop %v148
  %v291 = vmul.f32 %v290, %v148
  %v292 = vmul.f32 %v291, %v290
  %v293 = vmul.f32 0.5, %v292
  %v294 = vsub.f32 1.5, %v293
  %v295 = vmul.f32 %v290, %v294
  %vm296 = vweird.f32 %v148
  %vm297 = vweird.f32 %v290
  %vm298 = vmor %vm296, %vm297
  %v299 = vsel %vm298, %v290, %v295
  %v300 = vrsqrt.pop %v149
  %v301 = vmul.f32 %v300, %v149
  %v302 = vmul.f32 %v301, %v300
  %v303 = vmul.f32 0.5, %v302
  %v304 = vsub.f32 1.5, %v303
  %v305 = vmul.f32 %v300, %v304
  %vm306 = vweird.f32 %v149
  %vm307 = vweird.f32 %v300
  %vm308 = vmor %vm306, %vm307
  %v309 = vsel %vm308, %v300, %v305
  %v310 = vmul.f32 %v30, %v159
  %v311 = vmul.f32 %v31, %v169
  %v312 = vmul.f32 %v32, %v179
  %v313 = vmul.f32 %v33, %v189
  %v314 = vmul.f32 %v34, %v199
  %v315 = vmul.f32 %v35, %v209
  %v316 = vmul.f32 %v36, %v219
  %v317 = vmul.f32 %v37, %v229
  %v318 = vmul.f32 %v38, %v239
  %v319 = vmul.f32 %v39, %v249
  %v320 = vmul.f32 %v40, %v259
  %v321 = vmul.f32 %v41, %v269
  %v322 = vmul.f32 %v42, %v279
  %v323 = vmul.f32 %v43, %v289
  %v324 = vmul.f32 %v44, %v299
  %v325 = vmul.f32 %v45, %v309
  %v326 = vld [vmem:[%s1] sm:$0x1]
  %v328 = vperm.slane %v326, 0
  %v330 = vmul.f32 %v310, %v328
  %v331 = vmul.f32 %v311, %v328
  %v332 = vmul.f32 %v312, %v328
  %v333 = vmul.f32 %v313, %v328
  %v334 = vmul.f32 %v314, %v328
  %v335 = vmul.f32 %v315, %v328
  %v336 = vmul.f32 %v316, %v328
  %v337 = vmul.f32 %v317, %v328
  %v338 = vmul.f32 %v318, %v328
  %v339 = vmul.f32 %v319, %v328
  %v340 = vmul.f32 %v320, %v328
  %v341 = vmul.f32 %v321, %v328
  %v342 = vmul.f32 %v322, %v328
  %v343 = vmul.f32 %v323, %v328
  %v344 = vmul.f32 %v324, %v328
  %v345 = vmul.f32 %v325, %v328
  %v346 = vpack.c.bf16 %v331, %v330
  %v347 = vpack.c.bf16 %v333, %v332
  %v348 = vpack.c.bf16 %v335, %v334
  %v349 = vpack.c.bf16 %v337, %v336
  %v350 = vpack.c.bf16 %v339, %v338
  %v351 = vpack.c.bf16 %v341, %v340
  %v352 = vpack.c.bf16 %v343, %v342
  %v353 = vpack.c.bf16 %v345, %v344
  %v354 = vld [vmem:[%s2] sm:$0xff]
  %v355 = vld [vmem:[%s2 + $0x8] sm:$0xff]
  %v356 = vld [vmem:[%s2 + $0x10] sm:$0xff]
  %v357 = vld [vmem:[%s2 + $0x18] sm:$0xff]
  %v358 = vld [vmem:[%s2 + $0x20] sm:$0xff]
  %v359 = vld [vmem:[%s2 + $0x28] sm:$0xff]
  %v360 = vld [vmem:[%s2 + $0x30] sm:$0xff]
  %v361 = vld [vmem:[%s2 + $0x38] sm:$0xff]
  %v362 = vld [vmem:[%s3] sm:$0x3]
  %v364 = vperm.slane %v362, 0
  %v365 = vperm.slane %v362, 1
  %v376 = vunpack.c.l.b16 %v354
  %v377 = vunpack.c.h.b16 %v354
  %v378 = vunpack.c.l.b16 %v355
  %v379 = vunpack.c.h.b16 %v355
  %v380 = vunpack.c.l.b16 %v356
  %v381 = vunpack.c.h.b16 %v356
  %v382 = vunpack.c.l.b16 %v357
  %v383 = vunpack.c.h.b16 %v357
  %v384 = vunpack.c.l.b16 %v358
  %v385 = vunpack.c.h.b16 %v358
  %v386 = vunpack.c.l.b16 %v359
  %v387 = vunpack.c.h.b16 %v359
  %v388 = vunpack.c.l.b16 %v360
  %v389 = vunpack.c.h.b16 %v360
  %v390 = vunpack.c.l.b16 %v361
  %v391 = vunpack.c.h.b16 %v361
  %v392 = vpack.c.b16 %v378, %v376
  %v393 = vpack.c.b16 %v379, %v377
  %v394 = vpack.c.b16 %v382, %v380
  %v395 = vpack.c.b16 %v383, %v381
  %v396 = vpack.c.b16 %v386, %v384
  %v397 = vpack.c.b16 %v387, %v385
  %v398 = vpack.c.b16 %v390, %v388
  %v399 = vpack.c.b16 %v391, %v389
  %v409 = vsel %vm62, %v346, 0
  %v412 = vsel %vm62, %v347, 0
  %v415 = vsel %vm62, %v348, 0
  %v418 = vsel %vm62, %v349, 0
  %v421 = vsel %vm62, %v350, 0
  %v424 = vsel %vm62, %v351, 0
  %v427 = vsel %vm62, %v352, 0
  %v430 = vsel %vm62, %v353, 0
  %432 = vmatpush.bf16.msra.mxu0 0
  %433 = vmatpush.bf16.msra.mxu0 0
  %434 = vmatpush.bf16.msra.mxu0 0
  %435 = vmatpush.bf16.msra.mxu0 0
  %436 = vmatpush.bf16.msra.mxu0 %v398
  %437 = vmatpush.bf16.msra.mxu0 %v396
  %438 = vmatpush.bf16.msra.mxu0 %v394
  %439 = vmatpush.bf16.msra.mxu0 %v392
  %440 = vmatmul.bf16.gmra.mxu0 %v409
  %v441 = vpop.f32.mrf.mxu0
  %v442 = vadd.f32 %v364, %v441
  %v443 = vpop.f32.mrf.mxu0
  %v444 = vadd.f32 %v364, %v443
  %445 = vmatmul.bf16.gmra.mxu0 %v412
  %v446 = vpop.f32.mrf.mxu0
  %v447 = vadd.f32 %v364, %v446
  %v448 = vpop.f32.mrf.mxu0
  %v449 = vadd.f32 %v364, %v448
  %450 = vmatmul.bf16.gmra.mxu0 %v415
  %v451 = vpop.f32.mrf.mxu0
  %v452 = vadd.f32 %v364, %v451
  %v453 = vpop.f32.mrf.mxu0
  %v454 = vadd.f32 %v364, %v453
  %455 = vmatmul.bf16.gmra.mxu0 %v418
  %v456 = vpop.f32.mrf.mxu0
  %v457 = vadd.f32 %v364, %v456
  %v458 = vpop.f32.mrf.mxu0
  %v459 = vadd.f32 %v364, %v458
  %460 = vmatmul.bf16.gmra.mxu0 %v421
  %v461 = vpop.f32.mrf.mxu0
  %v462 = vadd.f32 %v364, %v461
  %v463 = vpop.f32.mrf.mxu0
  %v464 = vadd.f32 %v364, %v463
  %465 = vmatmul.bf16.gmra.mxu0 %v424
  %v466 = vpop.f32.mrf.mxu0
  %v467 = vadd.f32 %v364, %v466
  %v468 = vpop.f32.mrf.mxu0
  %v469 = vadd.f32 %v364, %v468
  %470 = vmatmul.bf16.gmra.mxu0 %v427
  %v471 = vpop.f32.mrf.mxu0
  %v472 = vadd.f32 %v364, %v471
  %v473 = vpop.f32.mrf.mxu0
  %v474 = vadd.f32 %v364, %v473
  %475 = vmatmul.bf16.gmra.mxu0 %v430
  %v476 = vpop.f32.mrf.mxu0
  %v477 = vadd.f32 %v364, %v476
  %v478 = vpop.f32.mrf.mxu0
  %v479 = vadd.f32 %v364, %v478
  %480 = vdwg.mxu0
  %481 = vmatpush.bf16.msra.mxu0 0
  %482 = vmatpush.bf16.msra.mxu0 0
  %483 = vmatpush.bf16.msra.mxu0 0
  %484 = vmatpush.bf16.msra.mxu0 0
  %485 = vmatpush.bf16.msra.mxu0 %v399
  %486 = vmatpush.bf16.msra.mxu0 %v397
  %487 = vmatpush.bf16.msra.mxu0 %v395
  %488 = vmatpush.bf16.msra.mxu0 %v393
  %489 = vmatmul.bf16.gmra.mxu0 %v409
  %v490 = vpop.f32.mrf.mxu0
  %v491 = vadd.f32 %v365, %v490
  %v492 = vpop.f32.mrf.mxu0
  %v493 = vadd.f32 %v365, %v492
  %494 = vmatmul.bf16.gmra.mxu0 %v412
  %v495 = vpop.f32.mrf.mxu0
  %v496 = vadd.f32 %v365, %v495
  %v497 = vpop.f32.mrf.mxu0
  %v498 = vadd.f32 %v365, %v497
  %499 = vmatmul.bf16.gmra.mxu0 %v415
  %v500 = vpop.f32.mrf.mxu0
  %v501 = vadd.f32 %v365, %v500
  %v502 = vpop.f32.mrf.mxu0
  %v503 = vadd.f32 %v365, %v502
  %504 = vmatmul.bf16.gmra.mxu0 %v418
  %v505 = vpop.f32.mrf.mxu0
  %v506 = vadd.f32 %v365, %v505
  %v507 = vpop.f32.mrf.mxu0
  %v508 = vadd.f32 %v365, %v507
  %509 = vmatmul.bf16.gmra.mxu0 %v421
  %v510 = vpop.f32.mrf.mxu0
  %v511 = vadd.f32 %v365, %v510
  %v512 = vpop.f32.mrf.mxu0
  %v513 = vadd.f32 %v365, %v512
  %514 = vmatmul.bf16.gmra.mxu0 %v424
  %v515 = vpop.f32.mrf.mxu0
  %v516 = vadd.f32 %v365, %v515
  %v517 = vpop.f32.mrf.mxu0
  %v518 = vadd.f32 %v365, %v517
  %519 = vmatmul.bf16.gmra.mxu0 %v427
  %v520 = vpop.f32.mrf.mxu0
  %v521 = vadd.f32 %v365, %v520
  %v522 = vpop.f32.mrf.mxu0
  %v523 = vadd.f32 %v365, %v522
  %524 = vmatmul.bf16.gmra.mxu0 %v430
  %v525 = vpop.f32.mrf.mxu0
  %v526 = vadd.f32 %v365, %v525
  %v527 = vpop.f32.mrf.mxu0
  %v528 = vadd.f32 %v365, %v527
  %529 = vdwg.mxu0
  %v530 = vld [vmem:[%s4] sm:$0xf]
  %v531 = vld [vmem:[%s4 + $0x4] sm:$0xf]
  %v532 = vld [vmem:[%s4 + $0x8] sm:$0xf]
  %v533 = vld [vmem:[%s4 + $0xc] sm:$0xf]
  %v534 = vld [vmem:[%s4 + $0x10] sm:$0xf]
  %v535 = vld [vmem:[%s4 + $0x14] sm:$0xf]
  %v536 = vld [vmem:[%s4 + $0x18] sm:$0xf]
  %v537 = vld [vmem:[%s4 + $0x1c] sm:$0xf]
  %v538 = vld [vmem:[%s4 + $0x20] sm:$0xf]
  %v539 = vld [vmem:[%s4 + $0x24] sm:$0xf]
  %v540 = vld [vmem:[%s4 + $0x28] sm:$0xf]
  %v541 = vld [vmem:[%s4 + $0x2c] sm:$0xf]
  %v542 = vld [vmem:[%s4 + $0x30] sm:$0xf]
  %v543 = vld [vmem:[%s4 + $0x34] sm:$0xf]
  %v544 = vld [vmem:[%s4 + $0x38] sm:$0xf]
  %v545 = vld [vmem:[%s4 + $0x3c] sm:$0xf]
  %v546 = vld [vmem:[%s5] sm:$0xf]
  %v547 = vld [vmem:[%s5 + $0x4] sm:$0xf]
  %v548 = vld [vmem:[%s5 + $0x8] sm:$0xf]
  %v549 = vld [vmem:[%s5 + $0xc] sm:$0xf]
  %v550 = vld [vmem:[%s5 + $0x10] sm:$0xf]
  %v551 = vld [vmem:[%s5 + $0x14] sm:$0xf]
  %v552 = vld [vmem:[%s5 + $0x18] sm:$0xf]
  %v553 = vld [vmem:[%s5 + $0x1c] sm:$0xf]
  %v554 = vld [vmem:[%s5 + $0x20] sm:$0xf]
  %v555 = vld [vmem:[%s5 + $0x24] sm:$0xf]
  %v556 = vld [vmem:[%s5 + $0x28] sm:$0xf]
  %v557 = vld [vmem:[%s5 + $0x2c] sm:$0xf]
  %v558 = vld [vmem:[%s5 + $0x30] sm:$0xf]
  %v559 = vld [vmem:[%s5 + $0x34] sm:$0xf]
  %v560 = vld [vmem:[%s5 + $0x38] sm:$0xf]
  %v561 = vld [vmem:[%s5 + $0x3c] sm:$0xf]
  %v562 = vld [vmem:[%s6] sm:$0xf]
  %v563 = vld [vmem:[%s6 + $0x4] sm:$0xf]
  %v564 = vld [vmem:[%s6 + $0x8] sm:$0xf]
  %v565 = vld [vmem:[%s6 + $0xc] sm:$0xf]
  %v566 = vld [vmem:[%s6 + $0x10] sm:$0xf]
  %v567 = vld [vmem:[%s6 + $0x14] sm:$0xf]
  %v568 = vld [vmem:[%s6 + $0x18] sm:$0xf]
  %v569 = vld [vmem:[%s6 + $0x1c] sm:$0xf]
  %v570 = vunpack.c.l.bf16 %v530
  %v571 = vunpack.c.l.bf16 %v531
  %v572 = vunpack.c.l.bf16 %v532
  %v573 = vunpack.c.l.bf16 %v533
  %v574 = vunpack.c.l.bf16 %v534
  %v575 = vunpack.c.l.bf16 %v535
  %v576 = vunpack.c.l.bf16 %v536
  %v577 = vunpack.c.l.bf16 %v537
  %v578 = vunpack.c.l.bf16 %v538
  %v579 = vunpack.c.l.bf16 %v539
  %v580 = vunpack.c.l.bf16 %v540
  %v581 = vunpack.c.l.bf16 %v541
  %v582 = vunpack.c.l.bf16 %v542
  %v583 = vunpack.c.l.bf16 %v543
  %v584 = vunpack.c.l.bf16 %v544
  %v585 = vunpack.c.l.bf16 %v545
  %v586 = vmul.f32 %v442, %v570
  %v587 = vmul.f32 %v444, %v571
  %v588 = vmul.f32 %v447, %v572
  %v589 = vmul.f32 %v449, %v573
  %v590 = vmul.f32 %v452, %v574
  %v591 = vmul.f32 %v454, %v575
  %v592 = vmul.f32 %v457, %v576
  %v593 = vmul.f32 %v459, %v577
  %v594 = vmul.f32 %v462, %v578
  %v595 = vmul.f32 %v464, %v579
  %v596 = vmul.f32 %v467, %v580
  %v597 = vmul.f32 %v469, %v581
  %v598 = vmul.f32 %v472, %v582
  %v599 = vmul.f32 %v474, %v583
  %v600 = vmul.f32 %v477, %v584
  %v601 = vmul.f32 %v479, %v585
  %v602 = vpack.c.bf16 %v444, %v442
  %v603 = vpack.c.bf16 %v449, %v447
  %v604 = vpack.c.bf16 %v454, %v452
  %v605 = vpack.c.bf16 %v459, %v457
  %v606 = vpack.c.bf16 %v464, %v462
  %v607 = vpack.c.bf16 %v469, %v467
  %v608 = vpack.c.bf16 %v474, %v472
  %v609 = vpack.c.bf16 %v479, %v477
  %v618 = vunpack.c.l.b16 %v562
  %v619 = vunpack.c.l.b16 %v563
  %v620 = vunpack.c.l.b16 %v564
  %v621 = vunpack.c.l.b16 %v565
  %v622 = vunpack.c.l.b16 %v566
  %v623 = vunpack.c.l.b16 %v567
  %v624 = vunpack.c.l.b16 %v568
  %v625 = vunpack.c.l.b16 %v569
  %v626 = vpack.c.b16 %v619, %v618
  %v627 = vpack.c.b16 %v621, %v620
  %v628 = vpack.c.b16 %v623, %v622
  %v629 = vpack.c.b16 %v625, %v624
  %v635 = vsel %vm62, %v602, 0
  %v638 = vsel %vm62, %v603, 0
  %v641 = vsel %vm62, %v604, 0
  %v644 = vsel %vm62, %v605, 0
  %v647 = vsel %vm62, %v606, 0
  %v650 = vsel %vm62, %v607, 0
  %v653 = vsel %vm62, %v608, 0
  %v656 = vsel %vm62, %v609, 0
  %658 = vmatpush.bf16.msra.mxu0 0
  %659 = vmatpush.bf16.msra.mxu0 0
  %660 = vmatpush.bf16.msra.mxu0 0
  %661 = vmatpush.bf16.msra.mxu0 0
  %662 = vmatpush.bf16.msra.mxu0 %v629
  %663 = vmatpush.bf16.msra.mxu0 %v628
  %664 = vmatpush.bf16.msra.mxu0 %v627
  %665 = vmatpush.bf16.msra.mxu0 %v626
  %666 = vmatmul.bf16.gmra.mxu0 %v635
  %v667 = vpop.f32.mrf.mxu0
  %v668 = vadd.f32 0.0, %v667
  %v669 = vpop.f32.mrf.mxu0
  %v670 = vadd.f32 0.0, %v669
  %671 = vmatmul.bf16.gmra.mxu0 %v638
  %v672 = vpop.f32.mrf.mxu0
  %v673 = vadd.f32 0.0, %v672
  %v674 = vpop.f32.mrf.mxu0
  %v675 = vadd.f32 0.0, %v674
  %676 = vmatmul.bf16.gmra.mxu0 %v641
  %v677 = vpop.f32.mrf.mxu0
  %v678 = vadd.f32 0.0, %v677
  %v679 = vpop.f32.mrf.mxu0
  %v680 = vadd.f32 0.0, %v679
  %681 = vmatmul.bf16.gmra.mxu0 %v644
  %v682 = vpop.f32.mrf.mxu0
  %v683 = vadd.f32 0.0, %v682
  %v684 = vpop.f32.mrf.mxu0
  %v685 = vadd.f32 0.0, %v684
  %686 = vmatmul.bf16.gmra.mxu0 %v647
  %v687 = vpop.f32.mrf.mxu0
  %v688 = vadd.f32 0.0, %v687
  %v689 = vpop.f32.mrf.mxu0
  %v690 = vadd.f32 0.0, %v689
  %691 = vmatmul.bf16.gmra.mxu0 %v650
  %v692 = vpop.f32.mrf.mxu0
  %v693 = vadd.f32 0.0, %v692
  %v694 = vpop.f32.mrf.mxu0
  %v695 = vadd.f32 0.0, %v694
  %696 = vmatmul.bf16.gmra.mxu0 %v653
  %v697 = vpop.f32.mrf.mxu0
  %v698 = vadd.f32 0.0, %v697
  %v699 = vpop.f32.mrf.mxu0
  %v700 = vadd.f32 0.0, %v699
  %701 = vmatmul.bf16.gmra.mxu0 %v656
  %v702 = vpop.f32.mrf.mxu0
  %v703 = vadd.f32 0.0, %v702
  %v704 = vpop.f32.mrf.mxu0
  %v705 = vadd.f32 0.0, %v704
  %706 = vdwg.mxu0
  %v707 = vunpack.c.l.bf16 %v546
  %v708 = vunpack.c.l.bf16 %v547
  %v709 = vunpack.c.l.bf16 %v548
  %v710 = vunpack.c.l.bf16 %v549
  %v711 = vunpack.c.l.bf16 %v550
  %v712 = vunpack.c.l.bf16 %v551
  %v713 = vunpack.c.l.bf16 %v552
  %v714 = vunpack.c.l.bf16 %v553
  %v715 = vunpack.c.l.bf16 %v554
  %v716 = vunpack.c.l.bf16 %v555
  %v717 = vunpack.c.l.bf16 %v556
  %v718 = vunpack.c.l.bf16 %v557
  %v719 = vunpack.c.l.bf16 %v558
  %v720 = vunpack.c.l.bf16 %v559
  %v721 = vunpack.c.l.bf16 %v560
  %v722 = vunpack.c.l.bf16 %v561
  %v723 = vmul.f32 %v668, %v707
  %v724 = vmul.f32 %v670, %v708
  %v725 = vmul.f32 %v673, %v709
  %v726 = vmul.f32 %v675, %v710
  %v727 = vmul.f32 %v678, %v711
  %v728 = vmul.f32 %v680, %v712
  %v729 = vmul.f32 %v683, %v713
  %v730 = vmul.f32 %v685, %v714
  %v731 = vmul.f32 %v688, %v715
  %v732 = vmul.f32 %v690, %v716
  %v733 = vmul.f32 %v693, %v717
  %v734 = vmul.f32 %v695, %v718
  %v735 = vmul.f32 %v698, %v719
  %v736 = vmul.f32 %v700, %v720
  %v737 = vmul.f32 %v703, %v721
  %v738 = vmul.f32 %v705, %v722
  %v739 = vadd.f32 %v586, %v723
  %v740 = vadd.f32 %v587, %v724
  %v741 = vadd.f32 %v588, %v725
  %v742 = vadd.f32 %v589, %v726
  %v743 = vadd.f32 %v590, %v727
  %v744 = vadd.f32 %v591, %v728
  %v745 = vadd.f32 %v592, %v729
  %v746 = vadd.f32 %v593, %v730
  %v747 = vadd.f32 %v594, %v731
  %v748 = vadd.f32 %v595, %v732
  %v749 = vadd.f32 %v596, %v733
  %v750 = vadd.f32 %v597, %v734
  %v751 = vadd.f32 %v598, %v735
  %v752 = vadd.f32 %v599, %v736
  %v753 = vadd.f32 %v600, %v737
  %v754 = vadd.f32 %v601, %v738
  %v755 = vpack.c.bf16 %v739, %v739
  %v756 = vpack.c.bf16 %v740, %v740
  %v757 = vpack.c.bf16 %v741, %v741
  %v758 = vpack.c.bf16 %v742, %v742
  %v759 = vpack.c.bf16 %v743, %v743
  %v760 = vpack.c.bf16 %v744, %v744
  %v761 = vpack.c.bf16 %v745, %v745
  %v762 = vpack.c.bf16 %v746, %v746
  %v763 = vpack.c.bf16 %v747, %v747
  %v764 = vpack.c.bf16 %v748, %v748
  %v765 = vpack.c.bf16 %v749, %v749
  %v766 = vpack.c.bf16 %v750, %v750
  %v767 = vpack.c.bf16 %v751, %v751
  %v768 = vpack.c.bf16 %v752, %v752
  %v769 = vpack.c.bf16 %v753, %v753
  %v770 = vpack.c.bf16 %v754, %v754
  %vm771 = vcmask 519168
  %772 = vst.msk [vmem:[%s7] sm:$0xf] %vm771, %v755
  %773 = vst.msk [vmem:[%s7 + $0x4] sm:$0xf] %vm771, %v756
  %774 = vst.msk [vmem:[%s7 + $0x8] sm:$0xf] %vm771, %v757
  %775 = vst.msk [vmem:[%s7 + $0xc] sm:$0xf] %vm771, %v758
  %776 = vst.msk [vmem:[%s7 + $0x10] sm:$0xf] %vm771, %v759
  %777 = vst.msk [vmem:[%s7 + $0x14] sm:$0xf] %vm771, %v760
  %778 = vst.msk [vmem:[%s7 + $0x18] sm:$0xf] %vm771, %v761
  %779 = vst.msk [vmem:[%s7 + $0x1c] sm:$0xf] %vm771, %v762
  %780 = vst.msk [vmem:[%s7 + $0x20] sm:$0xf] %vm771, %v763
  %781 = vst.msk [vmem:[%s7 + $0x24] sm:$0xf] %vm771, %v764
  %782 = vst.msk [vmem:[%s7 + $0x28] sm:$0xf] %vm771, %v765
  %783 = vst.msk [vmem:[%s7 + $0x2c] sm:$0xf] %vm771, %v766
  %784 = vst.msk [vmem:[%s7 + $0x30] sm:$0xf] %vm771, %v767
  %785 = vst.msk [vmem:[%s7 + $0x34] sm:$0xf] %vm771, %v768
  %786 = vst.msk [vmem:[%s7 + $0x38] sm:$0xf] %vm771, %v769
  %787 = vst.msk [vmem:[%s7 + $0x3c] sm:$0xf] %vm771, %v770
  %804 = vrot.lane.b32.xlu0 %v570, 64
  %v805 = vpop.permute.xlu0 %804
  %806 = vrot.lane.b32.xlu0 %v571, 64
  %v807 = vpop.permute.xlu0 %806
  %808 = vrot.lane.b32.xlu0 %v572, 64
  %v809 = vpop.permute.xlu0 %808
  %810 = vrot.lane.b32.xlu0 %v573, 64
  %v811 = vpop.permute.xlu0 %810
  %812 = vrot.lane.b32.xlu0 %v574, 64
  %v813 = vpop.permute.xlu0 %812
  %814 = vrot.lane.b32.xlu0 %v575, 64
  %v815 = vpop.permute.xlu0 %814
  %816 = vrot.lane.b32.xlu0 %v576, 64
  %v817 = vpop.permute.xlu0 %816
  %818 = vrot.lane.b32.xlu0 %v577, 64
  %v819 = vpop.permute.xlu0 %818
  %820 = vrot.lane.b32.xlu0 %v578, 64
  %v821 = vpop.permute.xlu0 %820
  %822 = vrot.lane.b32.xlu0 %v579, 64
  %v823 = vpop.permute.xlu0 %822
  %824 = vrot.lane.b32.xlu0 %v580, 64
  %v825 = vpop.permute.xlu0 %824
  %826 = vrot.lane.b32.xlu0 %v581, 64
  %v827 = vpop.permute.xlu0 %826
  %828 = vrot.lane.b32.xlu0 %v582, 64
  %v829 = vpop.permute.xlu0 %828
  %830 = vrot.lane.b32.xlu0 %v583, 64
  %v831 = vpop.permute.xlu0 %830
  %832 = vrot.lane.b32.xlu0 %v584, 64
  %v833 = vpop.permute.xlu0 %832
  %834 = vrot.lane.b32.xlu0 %v585, 64
  %v835 = vpop.permute.xlu0 %834
  %v852 = vmul.f32 %v442, %v805
  %v853 = vmul.f32 %v444, %v807
  %v854 = vmul.f32 %v447, %v809
  %v855 = vmul.f32 %v449, %v811
  %v856 = vmul.f32 %v452, %v813
  %v857 = vmul.f32 %v454, %v815
  %v858 = vmul.f32 %v457, %v817
  %v859 = vmul.f32 %v459, %v819
  %v860 = vmul.f32 %v462, %v821
  %v861 = vmul.f32 %v464, %v823
  %v862 = vmul.f32 %v467, %v825
  %v863 = vmul.f32 %v469, %v827
  %v864 = vmul.f32 %v472, %v829
  %v865 = vmul.f32 %v474, %v831
  %v866 = vmul.f32 %v477, %v833
  %v867 = vmul.f32 %v479, %v835
  %876 = vrot.lane.b32.xlu0 %v602, 64
  %v877 = vpop.permute.xlu0 %876
  %878 = vrot.lane.b32.xlu0 %v603, 64
  %v879 = vpop.permute.xlu0 %878
  %880 = vrot.lane.b32.xlu0 %v604, 64
  %v881 = vpop.permute.xlu0 %880
  %882 = vrot.lane.b32.xlu0 %v605, 64
  %v883 = vpop.permute.xlu0 %882
  %884 = vrot.lane.b32.xlu0 %v606, 64
  %v885 = vpop.permute.xlu0 %884
  %886 = vrot.lane.b32.xlu0 %v607, 64
  %v887 = vpop.permute.xlu0 %886
  %888 = vrot.lane.b32.xlu0 %v608, 64
  %v889 = vpop.permute.xlu0 %888
  %890 = vrot.lane.b32.xlu0 %v609, 64
  %v891 = vpop.permute.xlu0 %890
  %v893 = vsel %vm62, %v877, 0
  %v896 = vsel %vm62, %v879, 0
  %v899 = vsel %vm62, %v881, 0
  %v902 = vsel %vm62, %v883, 0
  %v905 = vsel %vm62, %v885, 0
  %v908 = vsel %vm62, %v887, 0
  %v911 = vsel %vm62, %v889, 0
  %v914 = vsel %vm62, %v891, 0
  %916 = vmatpush.bf16.msra.mxu0 0
  %917 = vmatpush.bf16.msra.mxu0 0
  %918 = vmatpush.bf16.msra.mxu0 0
  %919 = vmatpush.bf16.msra.mxu0 0
  %920 = vmatpush.bf16.msra.mxu0 %v629
  %921 = vmatpush.bf16.msra.mxu0 %v628
  %922 = vmatpush.bf16.msra.mxu0 %v627
  %923 = vmatpush.bf16.msra.mxu0 %v626
  %924 = vmatmul.bf16.gmra.mxu0 %v893
  %v925 = vpop.f32.mrf.mxu0
  %v926 = vadd.f32 0.0, %v925
  %v927 = vpop.f32.mrf.mxu0
  %v928 = vadd.f32 0.0, %v927
  %929 = vmatmul.bf16.gmra.mxu0 %v896
  %v930 = vpop.f32.mrf.mxu0
  %v931 = vadd.f32 0.0, %v930
  %v932 = vpop.f32.mrf.mxu0
  %v933 = vadd.f32 0.0, %v932
  %934 = vmatmul.bf16.gmra.mxu0 %v899
  %v935 = vpop.f32.mrf.mxu0
  %v936 = vadd.f32 0.0, %v935
  %v937 = vpop.f32.mrf.mxu0
  %v938 = vadd.f32 0.0, %v937
  %939 = vmatmul.bf16.gmra.mxu0 %v902
  %v940 = vpop.f32.mrf.mxu0
  %v941 = vadd.f32 0.0, %v940
  %v942 = vpop.f32.mrf.mxu0
  %v943 = vadd.f32 0.0, %v942
  %944 = vmatmul.bf16.gmra.mxu0 %v905
  %v945 = vpop.f32.mrf.mxu0
  %v946 = vadd.f32 0.0, %v945
  %v947 = vpop.f32.mrf.mxu0
  %v948 = vadd.f32 0.0, %v947
  %949 = vmatmul.bf16.gmra.mxu0 %v908
  %v950 = vpop.f32.mrf.mxu0
  %v951 = vadd.f32 0.0, %v950
  %v952 = vpop.f32.mrf.mxu0
  %v953 = vadd.f32 0.0, %v952
  %954 = vmatmul.bf16.gmra.mxu0 %v911
  %v955 = vpop.f32.mrf.mxu0
  %v956 = vadd.f32 0.0, %v955
  %v957 = vpop.f32.mrf.mxu0
  %v958 = vadd.f32 0.0, %v957
  %959 = vmatmul.bf16.gmra.mxu0 %v914
  %v960 = vpop.f32.mrf.mxu0
  %v961 = vadd.f32 0.0, %v960
  %v962 = vpop.f32.mrf.mxu0
  %v963 = vadd.f32 0.0, %v962
  %964 = vdwg.mxu0
  %v965 = vmul.f32 %v926, %v707
  %v966 = vmul.f32 %v928, %v708
  %v967 = vmul.f32 %v931, %v709
  %v968 = vmul.f32 %v933, %v710
  %v969 = vmul.f32 %v936, %v711
  %v970 = vmul.f32 %v938, %v712
  %v971 = vmul.f32 %v941, %v713
  %v972 = vmul.f32 %v943, %v714
  %v973 = vmul.f32 %v946, %v715
  %v974 = vmul.f32 %v948, %v716
  %v975 = vmul.f32 %v951, %v717
  %v976 = vmul.f32 %v953, %v718
  %v977 = vmul.f32 %v956, %v719
  %v978 = vmul.f32 %v958, %v720
  %v979 = vmul.f32 %v961, %v721
  %v980 = vmul.f32 %v963, %v722
  %997 = vrot.lane.b32.xlu0 %v965, 64
  %v998 = vpop.permute.xlu0 %997
  %999 = vrot.lane.b32.xlu0 %v966, 64
  %v1000 = vpop.permute.xlu0 %999
  %1001 = vrot.lane.b32.xlu0 %v967, 64
  %v1002 = vpop.permute.xlu0 %1001
  %1003 = vrot.lane.b32.xlu0 %v968, 64
  %v1004 = vpop.permute.xlu0 %1003
  %1005 = vrot.lane.b32.xlu0 %v969, 64
  %v1006 = vpop.permute.xlu0 %1005
  %1007 = vrot.lane.b32.xlu0 %v970, 64
  %v1008 = vpop.permute.xlu0 %1007
  %1009 = vrot.lane.b32.xlu0 %v971, 64
  %v1010 = vpop.permute.xlu0 %1009
  %1011 = vrot.lane.b32.xlu0 %v972, 64
  %v1012 = vpop.permute.xlu0 %1011
  %1013 = vrot.lane.b32.xlu0 %v973, 64
  %v1014 = vpop.permute.xlu0 %1013
  %1015 = vrot.lane.b32.xlu0 %v974, 64
  %v1016 = vpop.permute.xlu0 %1015
  %1017 = vrot.lane.b32.xlu0 %v975, 64
  %v1018 = vpop.permute.xlu0 %1017
  %1019 = vrot.lane.b32.xlu0 %v976, 64
  %v1020 = vpop.permute.xlu0 %1019
  %1021 = vrot.lane.b32.xlu0 %v977, 64
  %v1022 = vpop.permute.xlu0 %1021
  %1023 = vrot.lane.b32.xlu0 %v978, 64
  %v1024 = vpop.permute.xlu0 %1023
  %1025 = vrot.lane.b32.xlu0 %v979, 64
  %v1026 = vpop.permute.xlu0 %1025
  %1027 = vrot.lane.b32.xlu0 %v980, 64
  %v1028 = vpop.permute.xlu0 %1027
  %v1045 = vadd.f32 %v852, %v998
  %v1046 = vadd.f32 %v853, %v1000
  %v1047 = vadd.f32 %v854, %v1002
  %v1048 = vadd.f32 %v855, %v1004
  %v1049 = vadd.f32 %v856, %v1006
  %v1050 = vadd.f32 %v857, %v1008
  %v1051 = vadd.f32 %v858, %v1010
  %v1052 = vadd.f32 %v859, %v1012
  %v1053 = vadd.f32 %v860, %v1014
  %v1054 = vadd.f32 %v861, %v1016
  %v1055 = vadd.f32 %v862, %v1018
  %v1056 = vadd.f32 %v863, %v1020
  %v1057 = vadd.f32 %v864, %v1022
  %v1058 = vadd.f32 %v865, %v1024
  %v1059 = vadd.f32 %v866, %v1026
  %v1060 = vadd.f32 %v867, %v1028
  %v1061 = vpack.c.bf16 %v1045, %v1045
  %v1062 = vpack.c.bf16 %v1046, %v1046
  %v1063 = vpack.c.bf16 %v1047, %v1047
  %v1064 = vpack.c.bf16 %v1048, %v1048
  %v1065 = vpack.c.bf16 %v1049, %v1049
  %v1066 = vpack.c.bf16 %v1050, %v1050
  %v1067 = vpack.c.bf16 %v1051, %v1051
  %v1068 = vpack.c.bf16 %v1052, %v1052
  %v1069 = vpack.c.bf16 %v1053, %v1053
  %v1070 = vpack.c.bf16 %v1054, %v1054
  %v1071 = vpack.c.bf16 %v1055, %v1055
  %v1072 = vpack.c.bf16 %v1056, %v1056
  %v1073 = vpack.c.bf16 %v1057, %v1057
  %v1074 = vpack.c.bf16 %v1058, %v1058
  %v1075 = vpack.c.bf16 %v1059, %v1059
  %v1076 = vpack.c.bf16 %v1060, %v1060
  %1093 = vrot.lane.b32.xlu0 %v1061, 64
  %v1094 = vpop.permute.xlu0 %1093
  %1095 = vrot.lane.b32.xlu0 %v1062, 64
  %v1096 = vpop.permute.xlu0 %1095
  %1097 = vrot.lane.b32.xlu0 %v1063, 64
  %v1098 = vpop.permute.xlu0 %1097
  %1099 = vrot.lane.b32.xlu0 %v1064, 64
  %v1100 = vpop.permute.xlu0 %1099
  %1101 = vrot.lane.b32.xlu0 %v1065, 64
  %v1102 = vpop.permute.xlu0 %1101
  %1103 = vrot.lane.b32.xlu0 %v1066, 64
  %v1104 = vpop.permute.xlu0 %1103
  %1105 = vrot.lane.b32.xlu0 %v1067, 64
  %v1106 = vpop.permute.xlu0 %1105
  %1107 = vrot.lane.b32.xlu0 %v1068, 64
  %v1108 = vpop.permute.xlu0 %1107
  %1109 = vrot.lane.b32.xlu0 %v1069, 64
  %v1110 = vpop.permute.xlu0 %1109
  %1111 = vrot.lane.b32.xlu0 %v1070, 64
  %v1112 = vpop.permute.xlu0 %1111
  %1113 = vrot.lane.b32.xlu0 %v1071, 64
  %v1114 = vpop.permute.xlu0 %1113
  %1115 = vrot.lane.b32.xlu0 %v1072, 64
  %v1116 = vpop.permute.xlu0 %1115
  %1117 = vrot.lane.b32.xlu0 %v1073, 64
  %v1118 = vpop.permute.xlu0 %1117
  %1119 = vrot.lane.b32.xlu0 %v1074, 64
  %v1120 = vpop.permute.xlu0 %1119
  %1121 = vrot.lane.b32.xlu0 %v1075, 64
  %v1122 = vpop.permute.xlu0 %1121
  %1123 = vrot.lane.b32.xlu0 %v1076, 64
  %v1124 = vpop.permute.xlu0 %1123
  %1141 = vst.msk [vmem:[%s8] sm:$0xf] %vm771, %v1094
  %1142 = vst.msk [vmem:[%s8 + $0x4] sm:$0xf] %vm771, %v1096
  %1143 = vst.msk [vmem:[%s8 + $0x8] sm:$0xf] %vm771, %v1098
  %1144 = vst.msk [vmem:[%s8 + $0xc] sm:$0xf] %vm771, %v1100
  %1145 = vst.msk [vmem:[%s8 + $0x10] sm:$0xf] %vm771, %v1102
  %1146 = vst.msk [vmem:[%s8 + $0x14] sm:$0xf] %vm771, %v1104
  %1147 = vst.msk [vmem:[%s8 + $0x18] sm:$0xf] %vm771, %v1106
  %1148 = vst.msk [vmem:[%s8 + $0x1c] sm:$0xf] %vm771, %v1108
  %1149 = vst.msk [vmem:[%s8 + $0x20] sm:$0xf] %vm771, %v1110
  %1150 = vst.msk [vmem:[%s8 + $0x24] sm:$0xf] %vm771, %v1112
  %1151 = vst.msk [vmem:[%s8 + $0x28] sm:$0xf] %vm771, %v1114
  %1152 = vst.msk [vmem:[%s8 + $0x2c] sm:$0xf] %vm771, %v1116
  %1153 = vst.msk [vmem:[%s8 + $0x30] sm:$0xf] %vm771, %v1118
  %1154 = vst.msk [vmem:[%s8 + $0x34] sm:$0xf] %vm771, %v1120
  %1155 = vst.msk [vmem:[%s8 + $0x38] sm:$0xf] %vm771, %v1122
  %1156 = vst.msk [vmem:[%s8 + $0x3c] sm:$0xf] %vm771, %v1124
  %v1157 = vpack.c.bf16 %v491, %v491
  %v1158 = vpack.c.bf16 %v493, %v493
  %v1159 = vpack.c.bf16 %v496, %v496
  %v1160 = vpack.c.bf16 %v498, %v498
  %v1161 = vpack.c.bf16 %v501, %v501
  %v1162 = vpack.c.bf16 %v503, %v503
  %v1163 = vpack.c.bf16 %v506, %v506
  %v1164 = vpack.c.bf16 %v508, %v508
  %v1165 = vpack.c.bf16 %v511, %v511
  %v1166 = vpack.c.bf16 %v513, %v513
  %v1167 = vpack.c.bf16 %v516, %v516
  %v1168 = vpack.c.bf16 %v518, %v518
  %v1169 = vpack.c.bf16 %v521, %v521
  %v1170 = vpack.c.bf16 %v523, %v523
  %v1171 = vpack.c.bf16 %v526, %v526
  %v1172 = vpack.c.bf16 %v528, %v528
  %1173 = vst.msk [vmem:[%s9] sm:$0xf] %vm771, %v1157
  %1174 = vst.msk [vmem:[%s9 + $0x4] sm:$0xf] %vm771, %v1158
  %1175 = vst.msk [vmem:[%s9 + $0x8] sm:$0xf] %vm771, %v1159
  %1176 = vst.msk [vmem:[%s9 + $0xc] sm:$0xf] %vm771, %v1160
  %1177 = vst.msk [vmem:[%s9 + $0x10] sm:$0xf] %vm771, %v1161
  %1178 = vst.msk [vmem:[%s9 + $0x14] sm:$0xf] %vm771, %v1162
  %1179 = vst.msk [vmem:[%s9 + $0x18] sm:$0xf] %vm771, %v1163
  %1180 = vst.msk [vmem:[%s9 + $0x1c] sm:$0xf] %vm771, %v1164
  %1181 = vst.msk [vmem:[%s9 + $0x20] sm:$0xf] %vm771, %v1165
  %1182 = vst.msk [vmem:[%s9 + $0x24] sm:$0xf] %vm771, %v1166
  %1183 = vst.msk [vmem:[%s9 + $0x28] sm:$0xf] %vm771, %v1167
  %1184 = vst.msk [vmem:[%s9 + $0x2c] sm:$0xf] %vm771, %v1168
  %1185 = vst.msk [vmem:[%s9 + $0x30] sm:$0xf] %vm771, %v1169
  %1186 = vst.msk [vmem:[%s9 + $0x34] sm:$0xf] %vm771, %v1170
  %1187 = vst.msk [vmem:[%s9 + $0x38] sm:$0xf] %vm771, %v1171
  %1188 = vst.msk [vmem:[%s9 + $0x3c] sm:$0xf] %vm771, %v1172
  // Predicated region
  $region30: #{core_forward.10} parent=0 // pred_check
    _
  $region31: #{core_forward.10} parent=0 // pred_check_branch
    %1190 = sbr.rel (0) target = $region33
  $region32: #{core_forward.10} parent=0 // pred_region
    _
  $region33: #{core_forward.10} parent=0 // pred_fallthru
    _
  // Predicated region
  $region34: #{core_forward.10} parent=0 // pred_check
    _
  $region35: #{core_forward.10} parent=0 // pred_check_branch
    %1192 = sbr.rel (0) target = $region37
  $region36: #{core_forward.10} parent=0 // pred_region
    _
  $region37: #{core_forward.10} parent=0 // pred_fallthru
    _
  // Predicated region
  $region38: #{core_forward.10} parent=0 // pred_check
    _
  $region39: #{core_forward.10} parent=0 // pred_check_branch
    %1194 = sbr.rel (0) target = $region41
  $region40: #{core_forward.10} parent=0 // pred_region
    _
  $region41: #{core_forward.10} parent=0 // pred_fallthru
    _
  // Predicated region
  $region42: #{core_forward.10} parent=0 // pred_check
    _
  $region43: #{core_forward.10} parent=0 // pred_check_branch
    %1196 = sbr.rel (0) target = $region45
  $region44: #{core_forward.10} parent=0 // pred_region
    _
  $region45: #{core_forward.10} parent=0 // pred_fallthru
    _
  // Predicated region
  $region46: #{core_forward.10} parent=0 // pred_check
    _
  $region47: #{core_forward.10} parent=0 // pred_check_branch
    %1198 = sbr.rel (0) target = $region49
  $region48: #{core_forward.10} parent=0 // pred_region
    _
  $region49: #{core_forward.10} parent=0 // pred_fallthru
    _
  // Predicated region
  $region50: #{core_forward.10} parent=0 // pred_check
    _
  $region51: #{core_forward.10} parent=0 // pred_check_branch
    %1200 = sbr.rel (0) target = $region53
  $region52: #{core_forward.10} parent=0 // pred_region
    _
  $region53: #{core_forward.10} parent=0 // pred_fallthru
    _

// kernel: core_forward.16
$region0: #{core_forward.16}
  #allocation0 [shape = 'u32[]', space=smem, size = 0x4, offset = 0x4, fixed_abs, tag = 'smem constant byte address 0x4 - core index']
  #allocation1 [shape = 'u32[72,128]{1,0:T(1,128)}', space=vmem, size = 0x9000, scoped, tag = 'internal scratch']
  %s0 = inlined_call_operand.vmem [shape: f32[128,64], index: 0, kind: input, shape index: {}]
  %s1 = inlined_call_operand.vmem [shape: f32[1,64], index: 1, kind: input, shape index: {}]
  %s2 = inlined_call_operand.vmem [shape: f32[128,64], index: 2, kind: output, shape index: {}]
  %s3 = sld [smem:[#allocation0]]
  $region18: #{core_forward.16} parent=0
    _
  %s5 = ssub.s32 1, %s3
  %s6 = scalar_select 0, %s5, %s3
  // Predicated region
  $region2: #{core_forward.16} parent=0 // pred_check
    _
  $region3: #{core_forward.16} parent=0 // pred_check_branch
    %8 = sbr.rel (0) target = $region5
  $region4: #{core_forward.16} parent=0 // pred_region
    _
  $region5: #{core_forward.16} parent=0 // pred_fallthru
    _
  // Predicated region
  $region6: #{core_forward.16} parent=0 // pred_check
    _
  $region7: #{core_forward.16} parent=0 // pred_check_branch
    %10 = sbr.rel (0) target = $region9
  $region8: #{core_forward.16} parent=0 // pred_region
    _
  $region9: #{core_forward.16} parent=0 // pred_fallthru
    _
  %v11 = vld [vmem:[%s0] sm:$0xff]
  %v12 = vld [vmem:[%s0 + $0x8] sm:$0xff]
  %v13 = vld [vmem:[%s0 + $0x10] sm:$0xff]
  %v14 = vld [vmem:[%s0 + $0x18] sm:$0xff]
  %v15 = vld [vmem:[%s0 + $0x20] sm:$0xff]
  %v16 = vld [vmem:[%s0 + $0x28] sm:$0xff]
  %v17 = vld [vmem:[%s0 + $0x30] sm:$0xff]
  %v18 = vld [vmem:[%s0 + $0x38] sm:$0xff]
  %v19 = vld [vmem:[%s0 + $0x40] sm:$0xff]
  %v20 = vld [vmem:[%s0 + $0x48] sm:$0xff]
  %v21 = vld [vmem:[%s0 + $0x50] sm:$0xff]
  %v22 = vld [vmem:[%s0 + $0x58] sm:$0xff]
  %v23 = vld [vmem:[%s0 + $0x60] sm:$0xff]
  %v24 = vld [vmem:[%s0 + $0x68] sm:$0xff]
  %v25 = vld [vmem:[%s0 + $0x70] sm:$0xff]
  %v26 = vld [vmem:[%s0 + $0x78] sm:$0xff]
  %v27 = vmul.f32 %v11, %v11
  %v28 = vmul.f32 %v12, %v12
  %v29 = vmul.f32 %v13, %v13
  %v30 = vmul.f32 %v14, %v14
  %v31 = vmul.f32 %v15, %v15
  %v32 = vmul.f32 %v16, %v16
  %v33 = vmul.f32 %v17, %v17
  %v34 = vmul.f32 %v18, %v18
  %v35 = vmul.f32 %v19, %v19
  %v36 = vmul.f32 %v20, %v20
  %v37 = vmul.f32 %v21, %v21
  %v38 = vmul.f32 %v22, %v22
  %v39 = vmul.f32 %v23, %v23
  %v40 = vmul.f32 %v24, %v24
  %v41 = vmul.f32 %v25, %v25
  %v42 = vmul.f32 %v26, %v26
  %vm43 = vcmask 523264
  %v44 = vsel %vm43, %v27, 0.0
  %45 = vadd.xlane.f32.xlu0 %v44
  %v46 = vpop.xlane.xlu0 %45
  %v47 = vsel %vm43, %v28, 0.0
  %48 = vadd.xlane.f32.xlu0 %v47
  %v49 = vpop.xlane.xlu0 %48
  %v50 = vsel %vm43, %v29, 0.0
  %51 = vadd.xlane.f32.xlu0 %v50
  %v52 = vpop.xlane.xlu0 %51
  %v53 = vsel %vm43, %v30, 0.0
  %54 = vadd.xlane.f32.xlu0 %v53
  %v55 = vpop.xlane.xlu0 %54
  %v56 = vsel %vm43, %v31, 0.0
  %57 = vadd.xlane.f32.xlu0 %v56
  %v58 = vpop.xlane.xlu0 %57
  %v59 = vsel %vm43, %v32, 0.0
  %60 = vadd.xlane.f32.xlu0 %v59
  %v61 = vpop.xlane.xlu0 %60
  %v62 = vsel %vm43, %v33, 0.0
  %63 = vadd.xlane.f32.xlu0 %v62
  %v64 = vpop.xlane.xlu0 %63
  %v65 = vsel %vm43, %v34, 0.0
  %66 = vadd.xlane.f32.xlu0 %v65
  %v67 = vpop.xlane.xlu0 %66
  %v68 = vsel %vm43, %v35, 0.0
  %69 = vadd.xlane.f32.xlu0 %v68
  %v70 = vpop.xlane.xlu0 %69
  %v71 = vsel %vm43, %v36, 0.0
  %72 = vadd.xlane.f32.xlu0 %v71
  %v73 = vpop.xlane.xlu0 %72
  %v74 = vsel %vm43, %v37, 0.0
  %75 = vadd.xlane.f32.xlu0 %v74
  %v76 = vpop.xlane.xlu0 %75
  %v77 = vsel %vm43, %v38, 0.0
  %78 = vadd.xlane.f32.xlu0 %v77
  %v79 = vpop.xlane.xlu0 %78
  %v80 = vsel %vm43, %v39, 0.0
  %81 = vadd.xlane.f32.xlu0 %v80
  %v82 = vpop.xlane.xlu0 %81
  %v83 = vsel %vm43, %v40, 0.0
  %84 = vadd.xlane.f32.xlu0 %v83
  %v85 = vpop.xlane.xlu0 %84
  %v86 = vsel %vm43, %v41, 0.0
  %87 = vadd.xlane.f32.xlu0 %v86
  %v88 = vpop.xlane.xlu0 %87
  %v89 = vsel %vm43, %v42, 0.0
  %90 = vadd.xlane.f32.xlu0 %v89
  %v91 = vpop.xlane.xlu0 %90
  %v92 = vrcp.pop 64.0
  %v93 = vmul.f32 64.0, %v92
  %v94 = vsub.f32 1.0, %v93
  %v95 = vmul.f32 %v92, %v94
  %v96 = vadd.f32 %v92, %v95
  %vm97 = vweird.f32 %v92
  %v98 = vsel %vm97, %v92, %v96
  %v99 = vmul.f32 %v46, %v98
  %v100 = vmul.f32 %v49, %v98
  %v101 = vmul.f32 %v52, %v98
  %v102 = vmul.f32 %v55, %v98
  %v103 = vmul.f32 %v58, %v98
  %v104 = vmul.f32 %v61, %v98
  %v105 = vmul.f32 %v64, %v98
  %v106 = vmul.f32 %v67, %v98
  %v107 = vmul.f32 %v70, %v98
  %v108 = vmul.f32 %v73, %v98
  %v109 = vmul.f32 %v76, %v98
  %v110 = vmul.f32 %v79, %v98
  %v111 = vmul.f32 %v82, %v98
  %v112 = vmul.f32 %v85, %v98
  %v113 = vmul.f32 %v88, %v98
  %v114 = vmul.f32 %v91, %v98
  %v115 = vadd.f32 %v99, 1e-06
  %v116 = vadd.f32 %v100, 1e-06
  %v117 = vadd.f32 %v101, 1e-06
  %v118 = vadd.f32 %v102, 1e-06
  %v119 = vadd.f32 %v103, 1e-06
  %v120 = vadd.f32 %v104, 1e-06
  %v121 = vadd.f32 %v105, 1e-06
  %v122 = vadd.f32 %v106, 1e-06
  %v123 = vadd.f32 %v107, 1e-06
  %v124 = vadd.f32 %v108, 1e-06
  %v125 = vadd.f32 %v109, 1e-06
  %v126 = vadd.f32 %v110, 1e-06
  %v127 = vadd.f32 %v111, 1e-06
  %v128 = vadd.f32 %v112, 1e-06
  %v129 = vadd.f32 %v113, 1e-06
  %v130 = vadd.f32 %v114, 1e-06
  %v131 = vrsqrt.pop %v115
  %v132 = vmul.f32 %v131, %v115
  %v133 = vmul.f32 %v132, %v131
  %v134 = vmul.f32 0.5, %v133
  %v135 = vsub.f32 1.5, %v134
  %v136 = vmul.f32 %v131, %v135
  %vm137 = vweird.f32 %v115
  %vm138 = vweird.f32 %v131
  %vm139 = vmor %vm137, %vm138
  %v140 = vsel %vm139, %v131, %v136
  %v141 = vrsqrt.pop %v116
  %v142 = vmul.f32 %v141, %v116
  %v143 = vmul.f32 %v142, %v141
  %v144 = vmul.f32 0.5, %v143
  %v145 = vsub.f32 1.5, %v144
  %v146 = vmul.f32 %v141, %v145
  %vm147 = vweird.f32 %v116
  %vm148 = vweird.f32 %v141
  %vm149 = vmor %vm147, %vm148
  %v150 = vsel %vm149, %v141, %v146
  %v151 = vrsqrt.pop %v117
  %v152 = vmul.f32 %v151, %v117
  %v153 = vmul.f32 %v152, %v151
  %v154 = vmul.f32 0.5, %v153
  %v155 = vsub.f32 1.5, %v154
  %v156 = vmul.f32 %v151, %v155
  %vm157 = vweird.f32 %v117
  %vm158 = vweird.f32 %v151
  %vm159 = vmor %vm157, %vm158
  %v160 = vsel %vm159, %v151, %v156
  %v161 = vrsqrt.pop %v118
  %v162 = vmul.f32 %v161, %v118
  %v163 = vmul.f32 %v162, %v161
  %v164 = vmul.f32 0.5, %v163
  %v165 = vsub.f32 1.5, %v164
  %v166 = vmul.f32 %v161, %v165
  %vm167 = vweird.f32 %v118
  %vm168 = vweird.f32 %v161
  %vm169 = vmor %vm167, %vm168
  %v170 = vsel %vm169, %v161, %v166
  %v171 = vrsqrt.pop %v119
  %v172 = vmul.f32 %v171, %v119
  %v173 = vmul.f32 %v172, %v171
  %v174 = vmul.f32 0.5, %v173
  %v175 = vsub.f32 1.5, %v174
  %v176 = vmul.f32 %v171, %v175
  %vm177 = vweird.f32 %v119
  %vm178 = vweird.f32 %v171
  %vm179 = vmor %vm177, %vm178
  %v180 = vsel %vm179, %v171, %v176
  %v181 = vrsqrt.pop %v120
  %v182 = vmul.f32 %v181, %v120
  %v183 = vmul.f32 %v182, %v181
  %v184 = vmul.f32 0.5, %v183
  %v185 = vsub.f32 1.5, %v184
  %v186 = vmul.f32 %v181, %v185
  %vm187 = vweird.f32 %v120
  %vm188 = vweird.f32 %v181
  %vm189 = vmor %vm187, %vm188
  %v190 = vsel %vm189, %v181, %v186
  %v191 = vrsqrt.pop %v121
  %v192 = vmul.f32 %v191, %v121
  %v193 = vmul.f32 %v192, %v191
  %v194 = vmul.f32 0.5, %v193
  %v195 = vsub.f32 1.5, %v194
  %v196 = vmul.f32 %v191, %v195
  %vm197 = vweird.f32 %v121
  %vm198 = vweird.f32 %v191
  %vm199 = vmor %vm197, %vm198
  %v200 = vsel %vm199, %v191, %v196
  %v201 = vrsqrt.pop %v122
  %v202 = vmul.f32 %v201, %v122
  %v203 = vmul.f32 %v202, %v201
  %v204 = vmul.f32 0.5, %v203
  %v205 = vsub.f32 1.5, %v204
  %v206 = vmul.f32 %v201, %v205
  %vm207 = vweird.f32 %v122
  %vm208 = vweird.f32 %v201
  %vm209 = vmor %vm207, %vm208
  %v210 = vsel %vm209, %v201, %v206
  %v211 = vrsqrt.pop %v123
  %v212 = vmul.f32 %v211, %v123
  %v213 = vmul.f32 %v212, %v211
  %v214 = vmul.f32 0.5, %v213
  %v215 = vsub.f32 1.5, %v214
  %v216 = vmul.f32 %v211, %v215
  %vm217 = vweird.f32 %v123
  %vm218 = vweird.f32 %v211
  %vm219 = vmor %vm217, %vm218
  %v220 = vsel %vm219, %v211, %v216
  %v221 = vrsqrt.pop %v124
  %v222 = vmul.f32 %v221, %v124
  %v223 = vmul.f32 %v222, %v221
  %v224 = vmul.f32 0.5, %v223
  %v225 = vsub.f32 1.5, %v224
  %v226 = vmul.f32 %v221, %v225
  %vm227 = vweird.f32 %v124
  %vm228 = vweird.f32 %v221
  %vm229 = vmor %vm227, %vm228
  %v230 = vsel %vm229, %v221, %v226
  %v231 = vrsqrt.pop %v125
  %v232 = vmul.f32 %v231, %v125
  %v233 = vmul.f32 %v232, %v231
  %v234 = vmul.f32 0.5, %v233
  %v235 = vsub.f32 1.5, %v234
  %v236 = vmul.f32 %v231, %v235
  %vm237 = vweird.f32 %v125
  %vm238 = vweird.f32 %v231
  %vm239 = vmor %vm237, %vm238
  %v240 = vsel %vm239, %v231, %v236
  %v241 = vrsqrt.pop %v126
  %v242 = vmul.f32 %v241, %v126
  %v243 = vmul.f32 %v242, %v241
  %v244 = vmul.f32 0.5, %v243
  %v245 = vsub.f32 1.5, %v244
  %v246 = vmul.f32 %v241, %v245
  %vm247 = vweird.f32 %v126
  %vm248 = vweird.f32 %v241
  %vm249 = vmor %vm247, %vm248
  %v250 = vsel %vm249, %v241, %v246
  %v251 = vrsqrt.pop %v127
  %v252 = vmul.f32 %v251, %v127
  %v253 = vmul.f32 %v252, %v251
  %v254 = vmul.f32 0.5, %v253
  %v255 = vsub.f32 1.5, %v254
  %v256 = vmul.f32 %v251, %v255
  %vm257 = vweird.f32 %v127
  %vm258 = vweird.f32 %v251
  %vm259 = vmor %vm257, %vm258
  %v260 = vsel %vm259, %v251, %v256
  %v261 = vrsqrt.pop %v128
  %v262 = vmul.f32 %v261, %v128
  %v263 = vmul.f32 %v262, %v261
  %v264 = vmul.f32 0.5, %v263
  %v265 = vsub.f32 1.5, %v264
  %v266 = vmul.f32 %v261, %v265
  %vm267 = vweird.f32 %v128
  %vm268 = vweird.f32 %v261
  %vm269 = vmor %vm267, %vm268
  %v270 = vsel %vm269, %v261, %v266
  %v271 = vrsqrt.pop %v129
  %v272 = vmul.f32 %v271, %v129
  %v273 = vmul.f32 %v272, %v271
  %v274 = vmul.f32 0.5, %v273
  %v275 = vsub.f32 1.5, %v274
  %v276 = vmul.f32 %v271, %v275
  %vm277 = vweird.f32 %v129
  %vm278 = vweird.f32 %v271
  %vm279 = vmor %vm277, %vm278
  %v280 = vsel %vm279, %v271, %v276
  %v281 = vrsqrt.pop %v130
  %v282 = vmul.f32 %v281, %v130
  %v283 = vmul.f32 %v282, %v281
  %v284 = vmul.f32 0.5, %v283
  %v285 = vsub.f32 1.5, %v284
  %v286 = vmul.f32 %v281, %v285
  %vm287 = vweird.f32 %v130
  %vm288 = vweird.f32 %v281
  %vm289 = vmor %vm287, %vm288
  %v290 = vsel %vm289, %v281, %v286
  %v291 = vmul.f32 %v11, %v140
  %v292 = vmul.f32 %v12, %v150
  %v293 = vmul.f32 %v13, %v160
  %v294 = vmul.f32 %v14, %v170
  %v295 = vmul.f32 %v15, %v180
  %v296 = vmul.f32 %v16, %v190
  %v297 = vmul.f32 %v17, %v200
  %v298 = vmul.f32 %v18, %v210
  %v299 = vmul.f32 %v19, %v220
  %v300 = vmul.f32 %v20, %v230
  %v301 = vmul.f32 %v21, %v240
  %v302 = vmul.f32 %v22, %v250
  %v303 = vmul.f32 %v23, %v260
  %v304 = vmul.f32 %v24, %v270
  %v305 = vmul.f32 %v25, %v280
  %v306 = vmul.f32 %v26, %v290
  %v307 = vld [vmem:[%s1] sm:$0x1]
  %v309 = vperm.slane %v307, 0
  %v311 = vmul.f32 %v291, %v309
  %v312 = vmul.f32 %v292, %v309
  %v313 = vmul.f32 %v293, %v309
  %v314 = vmul.f32 %v294, %v309
  %v315 = vmul.f32 %v295, %v309
  %v316 = vmul.f32 %v296, %v309
  %v317 = vmul.f32 %v297, %v309
  %v318 = vmul.f32 %v298, %v309
  %v319 = vmul.f32 %v299, %v309
  %v320 = vmul.f32 %v300, %v309
  %v321 = vmul.f32 %v301, %v309
  %v322 = vmul.f32 %v302, %v309
  %v323 = vmul.f32 %v303, %v309
  %v324 = vmul.f32 %v304, %v309
  %v325 = vmul.f32 %v305, %v309
  %v326 = vmul.f32 %v306, %v309
  %327 = vst.msk [vmem:[%s2] sm:$0xff] %vm43, %v311
  %328 = vst.msk [vmem:[%s2 + $0x8] sm:$0xff] %vm43, %v312
  %329 = vst.msk [vmem:[%s2 + $0x10] sm:$0xff] %vm43, %v313
  %330 = vst.msk [vmem:[%s2 + $0x18] sm:$0xff] %vm43, %v314
  %331 = vst.msk [vmem:[%s2 + $0x20] sm:$0xff] %vm43, %v315
  %332 = vst.msk [vmem:[%s2 + $0x28] sm:$0xff] %vm43, %v316
  %333 = vst.msk [vmem:[%s2 + $0x30] sm:$0xff] %vm43, %v317
  %334 = vst.msk [vmem:[%s2 + $0x38] sm:$0xff] %vm43, %v318
  %335 = vst.msk [vmem:[%s2 + $0x40] sm:$0xff] %vm43, %v319
  %336 = vst.msk [vmem:[%s2 + $0x48] sm:$0xff] %vm43, %v320
  %337 = vst.msk [vmem:[%s2 + $0x50] sm:$0xff] %vm43, %v321
  %338 = vst.msk [vmem:[%s2 + $0x58] sm:$0xff] %vm43, %v322
  %339 = vst.msk [vmem:[%s2 + $0x60] sm:$0xff] %vm43, %v323
  %340 = vst.msk [vmem:[%s2 + $0x68] sm:$0xff] %vm43, %v324
  %341 = vst.msk [vmem:[%s2 + $0x70] sm:$0xff] %vm43, %v325
  %342 = vst.msk [vmem:[%s2 + $0x78] sm:$0xff] %vm43, %v326
  // Predicated region
  $region10: #{core_forward.16} parent=0 // pred_check
    _
  $region11: #{core_forward.16} parent=0 // pred_check_branch
    %344 = sbr.rel (0) target = $region13
  $region12: #{core_forward.16} parent=0 // pred_region
    _
  $region13: #{core_forward.16} parent=0 // pred_fallthru
    _
  // Predicated region
  $region14: #{core_forward.16} parent=0 // pred_check
    _
  $region15: #{core_forward.16} parent=0 // pred_check_branch
    %346 = sbr.rel (0) target = $region17
  $region16: #{core_forward.16} parent=0 // pred_region
    _
  $region17: #{core_forward.16} parent=0 // pred_fallthru
    _

// kernel: core_forward.12
$region0: #{core_forward.12}
  #allocation0 [shape = 'u32[]', space=smem, size = 0x4, offset = 0x4, fixed_abs, tag = 'smem constant byte address 0x4 - core index']
  #allocation1 [shape = 'u32[72,128]{1,0:T(1,128)}', space=vmem, size = 0x9000, scoped, tag = 'internal scratch']
  %s0 = inlined_call_operand.vmem [shape: f32[128,64], index: 0, kind: input, shape index: {}, may-alias: {0,9}]
  %s1 = inlined_call_operand.vmem [shape: bf16[128,64], index: 1, kind: input, shape index: {}]
  %s2 = inlined_call_operand.vmem [shape: bf16[64,64], index: 2, kind: input, shape index: {}]
  %s3 = inlined_call_operand.vmem [shape: f32[1,64], index: 3, kind: input, shape index: {}]
  %s4 = inlined_call_operand.vmem [shape: f32[1,64], index: 4, kind: input, shape index: {}]
  %s5 = inlined_call_operand.vmem [shape: bf16[64,256], index: 5, kind: input, shape index: {}]
  %s6 = inlined_call_operand.vmem [shape: f32[1,256], index: 6, kind: input, shape index: {}]
  %s7 = inlined_call_operand.vmem [shape: bf16[128,64], index: 7, kind: input, shape index: {}]
  %s8 = inlined_call_operand.vmem [shape: f32[1,64], index: 8, kind: input, shape index: {}]
  %s9 = inlined_call_operand.vmem [shape: f32[128,64], index: 9, kind: output, shape index: {}, may-alias: {0,9}]
  %s10 = sld [smem:[#allocation0]]
  $region46: #{core_forward.12} parent=0
    _
  %s12 = ssub.s32 1, %s10
  %s13 = scalar_select 0, %s12, %s10
  // Predicated region
  $region2: #{core_forward.12} parent=0 // pred_check
    _
  $region3: #{core_forward.12} parent=0 // pred_check_branch
    %15 = sbr.rel (0) target = $region5
  $region4: #{core_forward.12} parent=0 // pred_region
    _
  $region5: #{core_forward.12} parent=0 // pred_fallthru
    _
  // Predicated region
  $region6: #{core_forward.12} parent=0 // pred_check
    _
  $region7: #{core_forward.12} parent=0 // pred_check_branch
    %17 = sbr.rel (0) target = $region9
  $region8: #{core_forward.12} parent=0 // pred_region
    _
  $region9: #{core_forward.12} parent=0 // pred_fallthru
    _
  // Predicated region
  $region10: #{core_forward.12} parent=0 // pred_check
    _
  $region11: #{core_forward.12} parent=0 // pred_check_branch
    %19 = sbr.rel (0) target = $region13
  $region12: #{core_forward.12} parent=0 // pred_region
    _
  $region13: #{core_forward.12} parent=0 // pred_fallthru
    _
  // Predicated region
  $region14: #{core_forward.12} parent=0 // pred_check
    _
  $region15: #{core_forward.12} parent=0 // pred_check_branch
    %21 = sbr.rel (0) target = $region17
  $region16: #{core_forward.12} parent=0 // pred_region
    _
  $region17: #{core_forward.12} parent=0 // pred_fallthru
    _
  // Predicated region
  $region18: #{core_forward.12} parent=0 // pred_check
    _
  $region19: #{core_forward.12} parent=0 // pred_check_branch
    %23 = sbr.rel (0) target = $region21
  $region20: #{core_forward.12} parent=0 // pred_region
    _
  $region21: #{core_forward.12} parent=0 // pred_fallthru
    _
  // Predicated region
  $region22: #{core_forward.12} parent=0 // pred_check
    _
  $region23: #{core_forward.12} parent=0 // pred_check_branch
    %25 = sbr.rel (0) target = $region25
  $region24: #{core_forward.12} parent=0 // pred_region
    _
  $region25: #{core_forward.12} parent=0 // pred_fallthru
    _
  // Predicated region
  $region26: #{core_forward.12} parent=0 // pred_check
    _
  $region27: #{core_forward.12} parent=0 // pred_check_branch
    %27 = sbr.rel (0) target = $region29
  $region28: #{core_forward.12} parent=0 // pred_region
    _
  $region29: #{core_forward.12} parent=0 // pred_fallthru
    _
  // Predicated region
  $region30: #{core_forward.12} parent=0 // pred_check
    _
  $region31: #{core_forward.12} parent=0 // pred_check_branch
    %29 = sbr.rel (0) target = $region33
  $region32: #{core_forward.12} parent=0 // pred_region
    _
  $region33: #{core_forward.12} parent=0 // pred_fallthru
    _
  // Predicated region
  $region34: #{core_forward.12} parent=0 // pred_check
    _
  $region35: #{core_forward.12} parent=0 // pred_check_branch
    %31 = sbr.rel (0) target = $region37
  $region36: #{core_forward.12} parent=0 // pred_region
    _
  $region37: #{core_forward.12} parent=0 // pred_fallthru
    _
  %v33 = vld [vmem:[%s0] sm:$0xff]
  %v34 = vld [vmem:[%s0 + $0x8] sm:$0xff]
  %v35 = vld [vmem:[%s0 + $0x10] sm:$0xff]
  %v36 = vld [vmem:[%s0 + $0x18] sm:$0xff]
  %v37 = vld [vmem:[%s0 + $0x20] sm:$0xff]
  %v38 = vld [vmem:[%s0 + $0x28] sm:$0xff]
  %v39 = vld [vmem:[%s0 + $0x30] sm:$0xff]
  %v40 = vld [vmem:[%s0 + $0x38] sm:$0xff]
  %v41 = vld [vmem:[%s0 + $0x40] sm:$0xff]
  %v42 = vld [vmem:[%s0 + $0x48] sm:$0xff]
  %v43 = vld [vmem:[%s0 + $0x50] sm:$0xff]
  %v44 = vld [vmem:[%s0 + $0x58] sm:$0xff]
  %v45 = vld [vmem:[%s0 + $0x60] sm:$0xff]
  %v46 = vld [vmem:[%s0 + $0x68] sm:$0xff]
  %v47 = vld [vmem:[%s0 + $0x70] sm:$0xff]
  %v48 = vld [vmem:[%s0 + $0x78] sm:$0xff]
  %v49 = vld [vmem:[%s1] sm:$0xf]
  %v50 = vld [vmem:[%s1 + $0x4] sm:$0xf]
  %v51 = vld [vmem:[%s1 + $0x8] sm:$0xf]
  %v52 = vld [vmem:[%s1 + $0xc] sm:$0xf]
  %v53 = vld [vmem:[%s1 + $0x10] sm:$0xf]
  %v54 = vld [vmem:[%s1 + $0x14] sm:$0xf]
  %v55 = vld [vmem:[%s1 + $0x18] sm:$0xf]
  %v56 = vld [vmem:[%s1 + $0x1c] sm:$0xf]
  %v57 = vld [vmem:[%s1 + $0x20] sm:$0xf]
  %v58 = vld [vmem:[%s1 + $0x24] sm:$0xf]
  %v59 = vld [vmem:[%s1 + $0x28] sm:$0xf]
  %v60 = vld [vmem:[%s1 + $0x2c] sm:$0xf]
  %v61 = vld [vmem:[%s1 + $0x30] sm:$0xf]
  %v62 = vld [vmem:[%s1 + $0x34] sm:$0xf]
  %v63 = vld [vmem:[%s1 + $0x38] sm:$0xf]
  %v64 = vld [vmem:[%s1 + $0x3c] sm:$0xf]
  %v65 = vld [vmem:[%s2] sm:$0xf]
  %v66 = vld [vmem:[%s2 + $0x4] sm:$0xf]
  %v67 = vld [vmem:[%s2 + $0x8] sm:$0xf]
  %v68 = vld [vmem:[%s2 + $0xc] sm:$0xf]
  %v69 = vld [vmem:[%s2 + $0x10] sm:$0xf]
  %v70 = vld [vmem:[%s2 + $0x14] sm:$0xf]
  %v71 = vld [vmem:[%s2 + $0x18] sm:$0xf]
  %v72 = vld [vmem:[%s2 + $0x1c] sm:$0xf]
  %v89 = vunpack.c.l.b16 %v49
  %v90 = vunpack.c.l.b16 %v50
  %v91 = vunpack.c.l.b16 %v51
  %v92 = vunpack.c.l.b16 %v52
  %v93 = vunpack.c.l.b16 %v53
  %v94 = vunpack.c.l.b16 %v54
  %v95 = vunpack.c.l.b16 %v55
  %v96 = vunpack.c.l.b16 %v56
  %v97 = vunpack.c.l.b16 %v57
  %v98 = vunpack.c.l.b16 %v58
  %v99 = vunpack.c.l.b16 %v59
  %v100 = vunpack.c.l.b16 %v60
  %v101 = vunpack.c.l.b16 %v61
  %v102 = vunpack.c.l.b16 %v62
  %v103 = vunpack.c.l.b16 %v63
  %v104 = vunpack.c.l.b16 %v64
  %v105 = vpack.c.b16 %v90, %v89
  %v106 = vpack.c.b16 %v92, %v91
  %v107 = vpack.c.b16 %v94, %v93
  %v108 = vpack.c.b16 %v96, %v95
  %v109 = vpack.c.b16 %v98, %v97
  %v110 = vpack.c.b16 %v100, %v99
  %v111 = vpack.c.b16 %v102, %v101
  %v112 = vpack.c.b16 %v104, %v103
  %v121 = vunpack.c.l.b16 %v65
  %v122 = vunpack.c.l.b16 %v66
  %v123 = vunpack.c.l.b16 %v67
  %v124 = vunpack.c.l.b16 %v68
  %v125 = vunpack.c.l.b16 %v69
  %v126 = vunpack.c.l.b16 %v70
  %v127 = vunpack.c.l.b16 %v71
  %v128 = vunpack.c.l.b16 %v72
  %v129 = vpack.c.b16 %v122, %v121
  %v130 = vpack.c.b16 %v124, %v123
  %v131 = vpack.c.b16 %v126, %v125
  %v132 = vpack.c.b16 %v128, %v127
  %vm137 = vcmask 523264
  %v139 = vsel %vm137, %v105, 0
  %v142 = vsel %vm137, %v106, 0
  %v145 = vsel %vm137, %v107, 0
  %v148 = vsel %vm137, %v108, 0
  %v151 = vsel %vm137, %v109, 0
  %v154 = vsel %vm137, %v110, 0
  %v157 = vsel %vm137, %v111, 0
  %v160 = vsel %vm137, %v112, 0
  %162 = vmatpush.bf16.msra.mxu0 0
  %163 = vmatpush.bf16.msra.mxu0 0
  %164 = vmatpush.bf16.msra.mxu0 0
  %165 = vmatpush.bf16.msra.mxu0 0
  %166 = vmatpush.bf16.msra.mxu0 %v132
  %167 = vmatpush.bf16.msra.mxu0 %v131
  %168 = vmatpush.bf16.msra.mxu0 %v130
  %169 = vmatpush.bf16.msra.mxu0 %v129
  %170 = vmatmul.bf16.gmra.mxu0 %v139
  %v171 = vpop.f32.mrf.mxu0
  %v172 = vadd.f32 0.0, %v171
  %v173 = vpop.f32.mrf.mxu0
  %v174 = vadd.f32 0.0, %v173
  %175 = vmatmul.bf16.gmra.mxu0 %v142
  %v176 = vpop.f32.mrf.mxu0
  %v177 = vadd.f32 0.0, %v176
  %v178 = vpop.f32.mrf.mxu0
  %v179 = vadd.f32 0.0, %v178
  %180 = vmatmul.bf16.gmra.mxu0 %v145
  %v181 = vpop.f32.mrf.mxu0
  %v182 = vadd.f32 0.0, %v181
  %v183 = vpop.f32.mrf.mxu0
  %v184 = vadd.f32 0.0, %v183
  %185 = vmatmul.bf16.gmra.mxu0 %v148
  %v186 = vpop.f32.mrf.mxu0
  %v187 = vadd.f32 0.0, %v186
  %v188 = vpop.f32.mrf.mxu0
  %v189 = vadd.f32 0.0, %v188
  %190 = vmatmul.bf16.gmra.mxu0 %v151
  %v191 = vpop.f32.mrf.mxu0
  %v192 = vadd.f32 0.0, %v191
  %v193 = vpop.f32.mrf.mxu0
  %v194 = vadd.f32 0.0, %v193
  %195 = vmatmul.bf16.gmra.mxu0 %v154
  %v196 = vpop.f32.mrf.mxu0
  %v197 = vadd.f32 0.0, %v196
  %v198 = vpop.f32.mrf.mxu0
  %v199 = vadd.f32 0.0, %v198
  %200 = vmatmul.bf16.gmra.mxu0 %v157
  %v201 = vpop.f32.mrf.mxu0
  %v202 = vadd.f32 0.0, %v201
  %v203 = vpop.f32.mrf.mxu0
  %v204 = vadd.f32 0.0, %v203
  %205 = vmatmul.bf16.gmra.mxu0 %v160
  %v206 = vpop.f32.mrf.mxu0
  %v207 = vadd.f32 0.0, %v206
  %v208 = vpop.f32.mrf.mxu0
  %v209 = vadd.f32 0.0, %v208
  %210 = vdwg.mxu0
  %v211 = vadd.f32 %v33, %v172
  %v212 = vadd.f32 %v34, %v174
  %v213 = vadd.f32 %v35, %v177
  %v214 = vadd.f32 %v36, %v179
  %v215 = vadd.f32 %v37, %v182
  %v216 = vadd.f32 %v38, %v184
  %v217 = vadd.f32 %v39, %v187
  %v218 = vadd.f32 %v40, %v189
  %v219 = vadd.f32 %v41, %v192
  %v220 = vadd.f32 %v42, %v194
  %v221 = vadd.f32 %v43, %v197
  %v222 = vadd.f32 %v44, %v199
  %v223 = vadd.f32 %v45, %v202
  %v224 = vadd.f32 %v46, %v204
  %v225 = vadd.f32 %v47, %v207
  %v226 = vadd.f32 %v48, %v209
  %v227 = vld [vmem:[%s3] sm:$0x1]
  %v229 = vperm.slane %v227, 0
  %v231 = vadd.f32 %v211, %v229
  %v232 = vadd.f32 %v212, %v229
  %v233 = vadd.f32 %v213, %v229
  %v234 = vadd.f32 %v214, %v229
  %v235 = vadd.f32 %v215, %v229
  %v236 = vadd.f32 %v216, %v229
  %v237 = vadd.f32 %v217, %v229
  %v238 = vadd.f32 %v218, %v229
  %v239 = vadd.f32 %v219, %v229
  %v240 = vadd.f32 %v220, %v229
  %v241 = vadd.f32 %v221, %v229
  %v242 = vadd.f32 %v222, %v229
  %v243 = vadd.f32 %v223, %v229
  %v244 = vadd.f32 %v224, %v229
  %v245 = vadd.f32 %v225, %v229
  %v246 = vadd.f32 %v226, %v229
  %v247 = vmul.f32 %v231, %v231
  %v248 = vmul.f32 %v232, %v232
  %v249 = vmul.f32 %v233, %v233
  %v250 = vmul.f32 %v234, %v234
  %v251 = vmul.f32 %v235, %v235
  %v252 = vmul.f32 %v236, %v236
  %v253 = vmul.f32 %v237, %v237
  %v254 = vmul.f32 %v238, %v238
  %v255 = vmul.f32 %v239, %v239
  %v256 = vmul.f32 %v240, %v240
  %v257 = vmul.f32 %v241, %v241
  %v258 = vmul.f32 %v242, %v242
  %v259 = vmul.f32 %v243, %v243
  %v260 = vmul.f32 %v244, %v244
  %v261 = vmul.f32 %v245, %v245
  %v262 = vmul.f32 %v246, %v246
  %v263 = vsel %vm137, %v247, 0.0
  %264 = vadd.xlane.f32.xlu0 %v263
  %v265 = vpop.xlane.xlu0 %264
  %v266 = vsel %vm137, %v248, 0.0
  %267 = vadd.xlane.f32.xlu0 %v266
  %v268 = vpop.xlane.xlu0 %267
  %v269 = vsel %vm137, %v249, 0.0
  %270 = vadd.xlane.f32.xlu0 %v269
  %v271 = vpop.xlane.xlu0 %270
  %v272 = vsel %vm137, %v250, 0.0
  %273 = vadd.xlane.f32.xlu0 %v272
  %v274 = vpop.xlane.xlu0 %273
  %v275 = vsel %vm137, %v251, 0.0
  %276 = vadd.xlane.f32.xlu0 %v275
  %v277 = vpop.xlane.xlu0 %276
  %v278 = vsel %vm137, %v252, 0.0
  %279 = vadd.xlane.f32.xlu0 %v278
  %v280 = vpop.xlane.xlu0 %279
  %v281 = vsel %vm137, %v253, 0.0
  %282 = vadd.xlane.f32.xlu0 %v281
  %v283 = vpop.xlane.xlu0 %282
  %v284 = vsel %vm137, %v254, 0.0
  %285 = vadd.xlane.f32.xlu0 %v284
  %v286 = vpop.xlane.xlu0 %285
  %v287 = vsel %vm137, %v255, 0.0
  %288 = vadd.xlane.f32.xlu0 %v287
  %v289 = vpop.xlane.xlu0 %288
  %v290 = vsel %vm137, %v256, 0.0
  %291 = vadd.xlane.f32.xlu0 %v290
  %v292 = vpop.xlane.xlu0 %291
  %v293 = vsel %vm137, %v257, 0.0
  %294 = vadd.xlane.f32.xlu0 %v293
  %v295 = vpop.xlane.xlu0 %294
  %v296 = vsel %vm137, %v258, 0.0
  %297 = vadd.xlane.f32.xlu0 %v296
  %v298 = vpop.xlane.xlu0 %297
  %v299 = vsel %vm137, %v259, 0.0
  %300 = vadd.xlane.f32.xlu0 %v299
  %v301 = vpop.xlane.xlu0 %300
  %v302 = vsel %vm137, %v260, 0.0
  %303 = vadd.xlane.f32.xlu0 %v302
  %v304 = vpop.xlane.xlu0 %303
  %v305 = vsel %vm137, %v261, 0.0
  %306 = vadd.xlane.f32.xlu0 %v305
  %v307 = vpop.xlane.xlu0 %306
  %v308 = vsel %vm137, %v262, 0.0
  %309 = vadd.xlane.f32.xlu0 %v308
  %v310 = vpop.xlane.xlu0 %309
  %v311 = vrcp.pop 64.0
  %v312 = vmul.f32 64.0, %v311
  %v313 = vsub.f32 1.0, %v312
  %v314 = vmul.f32 %v311, %v313
  %v315 = vadd.f32 %v311, %v314
  %vm316 = vweird.f32 %v311
  %v317 = vsel %vm316, %v311, %v315
  %v318 = vmul.f32 %v265, %v317
  %v319 = vmul.f32 %v268, %v317
  %v320 = vmul.f32 %v271, %v317
  %v321 = vmul.f32 %v274, %v317
  %v322 = vmul.f32 %v277, %v317
  %v323 = vmul.f32 %v280, %v317
  %v324 = vmul.f32 %v283, %v317
  %v325 = vmul.f32 %v286, %v317
  %v326 = vmul.f32 %v289, %v317
  %v327 = vmul.f32 %v292, %v317
  %v328 = vmul.f32 %v295, %v317
  %v329 = vmul.f32 %v298, %v317
  %v330 = vmul.f32 %v301, %v317
  %v331 = vmul.f32 %v304, %v317
  %v332 = vmul.f32 %v307, %v317
  %v333 = vmul.f32 %v310, %v317
  %v334 = vadd.f32 %v318, 1e-06
  %v335 = vadd.f32 %v319, 1e-06
  %v336 = vadd.f32 %v320, 1e-06
  %v337 = vadd.f32 %v321, 1e-06
  %v338 = vadd.f32 %v322, 1e-06
  %v339 = vadd.f32 %v323, 1e-06
  %v340 = vadd.f32 %v324, 1e-06
  %v341 = vadd.f32 %v325, 1e-06
  %v342 = vadd.f32 %v326, 1e-06
  %v343 = vadd.f32 %v327, 1e-06
  %v344 = vadd.f32 %v328, 1e-06
  %v345 = vadd.f32 %v329, 1e-06
  %v346 = vadd.f32 %v330, 1e-06
  %v347 = vadd.f32 %v331, 1e-06
  %v348 = vadd.f32 %v332, 1e-06
  %v349 = vadd.f32 %v333, 1e-06
  %v350 = vrsqrt.pop %v334
  %v351 = vmul.f32 %v350, %v334
  %v352 = vmul.f32 %v351, %v350
  %v353 = vmul.f32 0.5, %v352
  %v354 = vsub.f32 1.5, %v353
  %v355 = vmul.f32 %v350, %v354
  %vm356 = vweird.f32 %v334
  %vm357 = vweird.f32 %v350
  %vm358 = vmor %vm356, %vm357
  %v359 = vsel %vm358, %v350, %v355
  %v360 = vrsqrt.pop %v335
  %v361 = vmul.f32 %v360, %v335
  %v362 = vmul.f32 %v361, %v360
  %v363 = vmul.f32 0.5, %v362
  %v364 = vsub.f32 1.5, %v363
  %v365 = vmul.f32 %v360, %v364
  %vm366 = vweird.f32 %v335
  %vm367 = vweird.f32 %v360
  %vm368 = vmor %vm366, %vm367
  %v369 = vsel %vm368, %v360, %v365
  %v370 = vrsqrt.pop %v336
  %v371 = vmul.f32 %v370, %v336
  %v372 = vmul.f32 %v371, %v370
  %v373 = vmul.f32 0.5, %v372
  %v374 = vsub.f32 1.5, %v373
  %v375 = vmul.f32 %v370, %v374
  %vm376 = vweird.f32 %v336
  %vm377 = vweird.f32 %v370
  %vm378 = vmor %vm376, %vm377
  %v379 = vsel %vm378, %v370, %v375
  %v380 = vrsqrt.pop %v337
  %v381 = vmul.f32 %v380, %v337
  %v382 = vmul.f32 %v381, %v380
  %v383 = vmul.f32 0.5, %v382
  %v384 = vsub.f32 1.5, %v383
  %v385 = vmul.f32 %v380, %v384
  %vm386 = vweird.f32 %v337
  %vm387 = vweird.f32 %v380
  %vm388 = vmor %vm386, %vm387
  %v389 = vsel %vm388, %v380, %v385
  %v390 = vrsqrt.pop %v338
  %v391 = vmul.f32 %v390, %v338
  %v392 = vmul.f32 %v391, %v390
  %v393 = vmul.f32 0.5, %v392
  %v394 = vsub.f32 1.5, %v393
  %v395 = vmul.f32 %v390, %v394
  %vm396 = vweird.f32 %v338
  %vm397 = vweird.f32 %v390
  %vm398 = vmor %vm396, %vm397
  %v399 = vsel %vm398, %v390, %v395
  %v400 = vrsqrt.pop %v339
  %v401 = vmul.f32 %v400, %v339
  %v402 = vmul.f32 %v401, %v400
  %v403 = vmul.f32 0.5, %v402
  %v404 = vsub.f32 1.5, %v403
  %v405 = vmul.f32 %v400, %v404
  %vm406 = vweird.f32 %v339
  %vm407 = vweird.f32 %v400
  %vm408 = vmor %vm406, %vm407
  %v409 = vsel %vm408, %v400, %v405
  %v410 = vrsqrt.pop %v340
  %v411 = vmul.f32 %v410, %v340
  %v412 = vmul.f32 %v411, %v410
  %v413 = vmul.f32 0.5, %v412
  %v414 = vsub.f32 1.5, %v413
  %v415 = vmul.f32 %v410, %v414
  %vm416 = vweird.f32 %v340
  %vm417 = vweird.f32 %v410
  %vm418 = vmor %vm416, %vm417
  %v419 = vsel %vm418, %v410, %v415
  %v420 = vrsqrt.pop %v341
  %v421 = vmul.f32 %v420, %v341
  %v422 = vmul.f32 %v421, %v420
  %v423 = vmul.f32 0.5, %v422
  %v424 = vsub.f32 1.5, %v423
  %v425 = vmul.f32 %v420, %v424
  %vm426 = vweird.f32 %v341
  %vm427 = vweird.f32 %v420
  %vm428 = vmor %vm426, %vm427
  %v429 = vsel %vm428, %v420, %v425
  %v430 = vrsqrt.pop %v342
  %v431 = vmul.f32 %v430, %v342
  %v432 = vmul.f32 %v431, %v430
  %v433 = vmul.f32 0.5, %v432
  %v434 = vsub.f32 1.5, %v433
  %v435 = vmul.f32 %v430, %v434
  %vm436 = vweird.f32 %v342
  %vm437 = vweird.f32 %v430
  %vm438 = vmor %vm436, %vm437
  %v439 = vsel %vm438, %v430, %v435
  %v440 = vrsqrt.pop %v343
  %v441 = vmul.f32 %v440, %v343
  %v442 = vmul.f32 %v441, %v440
  %v443 = vmul.f32 0.5, %v442
  %v444 = vsub.f32 1.5, %v443
  %v445 = vmul.f32 %v440, %v444
  %vm446 = vweird.f32 %v343
  %vm447 = vweird.f32 %v440
  %vm448 = vmor %vm446, %vm447
  %v449 = vsel %vm448, %v440, %v445
  %v450 = vrsqrt.pop %v344
  %v451 = vmul.f32 %v450, %v344
  %v452 = vmul.f32 %v451, %v450
  %v453 = vmul.f32 0.5, %v452
  %v454 = vsub.f32 1.5, %v453
  %v455 = vmul.f32 %v450, %v454
  %vm456 = vweird.f32 %v344
  %vm457 = vweird.f32 %v450
  %vm458 = vmor %vm456, %vm457
  %v459 = vsel %vm458, %v450, %v455
  %v460 = vrsqrt.pop %v345
  %v461 = vmul.f32 %v460, %v345
  %v462 = vmul.f32 %v461, %v460
  %v463 = vmul.f32 0.5, %v462
  %v464 = vsub.f32 1.5, %v463
  %v465 = vmul.f32 %v460, %v464
  %vm466 = vweird.f32 %v345
  %vm467 = vweird.f32 %v460
  %vm468 = vmor %vm466, %vm467
  %v469 = vsel %vm468, %v460, %v465
  %v470 = vrsqrt.pop %v346
  %v471 = vmul.f32 %v470, %v346
  %v472 = vmul.f32 %v471, %v470
  %v473 = vmul.f32 0.5, %v472
  %v474 = vsub.f32 1.5, %v473
  %v475 = vmul.f32 %v470, %v474
  %vm476 = vweird.f32 %v346
  %vm477 = vweird.f32 %v470
  %vm478 = vmor %vm476, %vm477
  %v479 = vsel %vm478, %v470, %v475
  %v480 = vrsqrt.pop %v347
  %v481 = vmul.f32 %v480, %v347
  %v482 = vmul.f32 %v481, %v480
  %v483 = vmul.f32 0.5, %v482
  %v484 = vsub.f32 1.5, %v483
  %v485 = vmul.f32 %v480, %v484
  %vm486 = vweird.f32 %v347
  %vm487 = vweird.f32 %v480
  %vm488 = vmor %vm486, %vm487
  %v489 = vsel %vm488, %v480, %v485
  %v490 = vrsqrt.pop %v348
  %v491 = vmul.f32 %v490, %v348
  %v492 = vmul.f32 %v491, %v490
  %v493 = vmul.f32 0.5, %v492
  %v494 = vsub.f32 1.5, %v493
  %v495 = vmul.f32 %v490, %v494
  %vm496 = vweird.f32 %v348
  %vm497 = vweird.f32 %v490
  %vm498 = vmor %vm496, %vm497
  %v499 = vsel %vm498, %v490, %v495
  %v500 = vrsqrt.pop %v349
  %v501 = vmul.f32 %v500, %v349
  %v502 = vmul.f32 %v501, %v500
  %v503 = vmul.f32 0.5, %v502
  %v504 = vsub.f32 1.5, %v503
  %v505 = vmul.f32 %v500, %v504
  %vm506 = vweird.f32 %v349
  %vm507 = vweird.f32 %v500
  %vm508 = vmor %vm506, %vm507
  %v509 = vsel %vm508, %v500, %v505
  %v510 = vmul.f32 %v231, %v359
  %v511 = vmul.f32 %v232, %v369
  %v512 = vmul.f32 %v233, %v379
  %v513 = vmul.f32 %v234, %v389
  %v514 = vmul.f32 %v235, %v399
  %v515 = vmul.f32 %v236, %v409
  %v516 = vmul.f32 %v237, %v419
  %v517 = vmul.f32 %v238, %v429
  %v518 = vmul.f32 %v239, %v439
  %v519 = vmul.f32 %v240, %v449
  %v520 = vmul.f32 %v241, %v459
  %v521 = vmul.f32 %v242, %v469
  %v522 = vmul.f32 %v243, %v479
  %v523 = vmul.f32 %v244, %v489
  %v524 = vmul.f32 %v245, %v499
  %v525 = vmul.f32 %v246, %v509
  %v526 = vld [vmem:[%s4] sm:$0x1]
  %v528 = vperm.slane %v526, 0
  %v530 = vmul.f32 %v510, %v528
  %v531 = vmul.f32 %v511, %v528
  %v532 = vmul.f32 %v512, %v528
  %v533 = vmul.f32 %v513, %v528
  %v534 = vmul.f32 %v514, %v528
  %v535 = vmul.f32 %v515, %v528
  %v536 = vmul.f32 %v516, %v528
  %v537 = vmul.f32 %v517, %v528
  %v538 = vmul.f32 %v518, %v528
  %v539 = vmul.f32 %v519, %v528
  %v540 = vmul.f32 %v520, %v528
  %v541 = vmul.f32 %v521, %v528
  %v542 = vmul.f32 %v522, %v528
  %v543 = vmul.f32 %v523, %v528
  %v544 = vmul.f32 %v524, %v528
  %v545 = vmul.f32 %v525, %v528
  %v546 = vpack.c.bf16 %v531, %v530
  %v547 = vpack.c.bf16 %v533, %v532
  %v548 = vpack.c.bf16 %v535, %v534
  %v549 = vpack.c.bf16 %v537, %v536
  %v550 = vpack.c.bf16 %v539, %v538
  %v551 = vpack.c.bf16 %v541, %v540
  %v552 = vpack.c.bf16 %v543, %v542
  %v553 = vpack.c.bf16 %v545, %v544
  %v554 = vld [vmem:[%s5] sm:$0xff]
  %v555 = vld [vmem:[%s5 + $0x8] sm:$0xff]
  %v556 = vld [vmem:[%s5 + $0x10] sm:$0xff]
  %v557 = vld [vmem:[%s5 + $0x18] sm:$0xff]
  %v558 = vld [vmem:[%s5 + $0x20] sm:$0xff]
  %v559 = vld [vmem:[%s5 + $0x28] sm:$0xff]
  %v560 = vld [vmem:[%s5 + $0x30] sm:$0xff]
  %v561 = vld [vmem:[%s5 + $0x38] sm:$0xff]
  %v562 = vld [vmem:[%s6] sm:$0x3]
  %v564 = vperm.slane %v562, 0
  %v565 = vperm.slane %v562, 1
  %v576 = vunpack.c.l.b16 %v554
  %v577 = vunpack.c.h.b16 %v554
  %v578 = vunpack.c.l.b16 %v555
  %v579 = vunpack.c.h.b16 %v555
  %v580 = vunpack.c.l.b16 %v556
  %v581 = vunpack.c.h.b16 %v556
  %v582 = vunpack.c.l.b16 %v557
  %v583 = vunpack.c.h.b16 %v557
  %v584 = vunpack.c.l.b16 %v558
  %v585 = vunpack.c.h.b16 %v558
  %v586 = vunpack.c.l.b16 %v559
  %v587 = vunpack.c.h.b16 %v559
  %v588 = vunpack.c.l.b16 %v560
  %v589 = vunpack.c.h.b16 %v560
  %v590 = vunpack.c.l.b16 %v561
  %v591 = vunpack.c.h.b16 %v561
  %v592 = vpack.c.b16 %v578, %v576
  %v593 = vpack.c.b16 %v579, %v577
  %v594 = vpack.c.b16 %v582, %v580
  %v595 = vpack.c.b16 %v583, %v581
  %v596 = vpack.c.b16 %v586, %v584
  %v597 = vpack.c.b16 %v587, %v585
  %v598 = vpack.c.b16 %v590, %v588
  %v599 = vpack.c.b16 %v591, %v589
  %v609 = vsel %vm137, %v546, 0
  %v612 = vsel %vm137, %v547, 0
  %v615 = vsel %vm137, %v548, 0
  %v618 = vsel %vm137, %v549, 0
  %v621 = vsel %vm137, %v550, 0
  %v624 = vsel %vm137, %v551, 0
  %v627 = vsel %vm137, %v552, 0
  %v630 = vsel %vm137, %v553, 0
  %632 = vmatpush.bf16.msra.mxu0 0
  %633 = vmatpush.bf16.msra.mxu0 0
  %634 = vmatpush.bf16.msra.mxu0 0
  %635 = vmatpush.bf16.msra.mxu0 0
  %636 = vmatpush.bf16.msra.mxu0 %v598
  %637 = vmatpush.bf16.msra.mxu0 %v596
  %638 = vmatpush.bf16.msra.mxu0 %v594
  %639 = vmatpush.bf16.msra.mxu0 %v592
  %640 = vmatmul.bf16.gmra.mxu0 %v609
  %v641 = vpop.f32.mrf.mxu0
  %v642 = vadd.f32 %v564, %v641
  %v643 = vpop.f32.mrf.mxu0
  %v644 = vadd.f32 %v564, %v643
  %645 = vmatmul.bf16.gmra.mxu0 %v612
  %v646 = vpop.f32.mrf.mxu0
  %v647 = vadd.f32 %v564, %v646
  %v648 = vpop.f32.mrf.mxu0
  %v649 = vadd.f32 %v564, %v648
  %650 = vmatmul.bf16.gmra.mxu0 %v615
  %v651 = vpop.f32.mrf.mxu0
  %v652 = vadd.f32 %v564, %v651
  %v653 = vpop.f32.mrf.mxu0
  %v654 = vadd.f32 %v564, %v653
  %655 = vmatmul.bf16.gmra.mxu0 %v618
  %v656 = vpop.f32.mrf.mxu0
  %v657 = vadd.f32 %v564, %v656
  %v658 = vpop.f32.mrf.mxu0
  %v659 = vadd.f32 %v564, %v658
  %660 = vmatmul.bf16.gmra.mxu0 %v621
  %v661 = vpop.f32.mrf.mxu0
  %v662 = vadd.f32 %v564, %v661
  %v663 = vpop.f32.mrf.mxu0
  %v664 = vadd.f32 %v564, %v663
  %665 = vmatmul.bf16.gmra.mxu0 %v624
  %v666 = vpop.f32.mrf.mxu0
  %v667 = vadd.f32 %v564, %v666
  %v668 = vpop.f32.mrf.mxu0
  %v669 = vadd.f32 %v564, %v668
  %670 = vmatmul.bf16.gmra.mxu0 %v627
  %v671 = vpop.f32.mrf.mxu0
  %v672 = vadd.f32 %v564, %v671
  %v673 = vpop.f32.mrf.mxu0
  %v674 = vadd.f32 %v564, %v673
  %675 = vmatmul.bf16.gmra.mxu0 %v630
  %v676 = vpop.f32.mrf.mxu0
  %v677 = vadd.f32 %v564, %v676
  %v678 = vpop.f32.mrf.mxu0
  %v679 = vadd.f32 %v564, %v678
  %680 = vdwg.mxu0
  %681 = vmatpush.bf16.msra.mxu0 0
  %682 = vmatpush.bf16.msra.mxu0 0
  %683 = vmatpush.bf16.msra.mxu0 0
  %684 = vmatpush.bf16.msra.mxu0 0
  %685 = vmatpush.bf16.msra.mxu0 %v599
  %686 = vmatpush.bf16.msra.mxu0 %v597
  %687 = vmatpush.bf16.msra.mxu0 %v595
  %688 = vmatpush.bf16.msra.mxu0 %v593
  %689 = vmatmul.bf16.gmra.mxu0 %v609
  %v690 = vpop.f32.mrf.mxu0
  %v691 = vadd.f32 %v565, %v690
  %v692 = vpop.f32.mrf.mxu0
  %v693 = vadd.f32 %v565, %v692
  %694 = vmatmul.bf16.gmra.mxu0 %v612
  %v695 = vpop.f32.mrf.mxu0
  %v696 = vadd.f32 %v565, %v695
  %v697 = vpop.f32.mrf.mxu0
  %v698 = vadd.f32 %v565, %v697
  %699 = vmatmul.bf16.gmra.mxu0 %v615
  %v700 = vpop.f32.mrf.mxu0
  %v701 = vadd.f32 %v565, %v700
  %v702 = vpop.f32.mrf.mxu0
  %v703 = vadd.f32 %v565, %v702
  %704 = vmatmul.bf16.gmra.mxu0 %v618
  %v705 = vpop.f32.mrf.mxu0
  %v706 = vadd.f32 %v565, %v705
  %v707 = vpop.f32.mrf.mxu0
  %v708 = vadd.f32 %v565, %v707
  %709 = vmatmul.bf16.gmra.mxu0 %v621
  %v710 = vpop.f32.mrf.mxu0
  %v711 = vadd.f32 %v565, %v710
  %v712 = vpop.f32.mrf.mxu0
  %v713 = vadd.f32 %v565, %v712
  %714 = vmatmul.bf16.gmra.mxu0 %v624
  %v715 = vpop.f32.mrf.mxu0
  %v716 = vadd.f32 %v565, %v715
  %v717 = vpop.f32.mrf.mxu0
  %v718 = vadd.f32 %v565, %v717
  %719 = vmatmul.bf16.gmra.mxu0 %v627
  %v720 = vpop.f32.mrf.mxu0
  %v721 = vadd.f32 %v565, %v720
  %v722 = vpop.f32.mrf.mxu0
  %v723 = vadd.f32 %v565, %v722
  %724 = vmatmul.bf16.gmra.mxu0 %v630
  %v725 = vpop.f32.mrf.mxu0
  %v726 = vadd.f32 %v565, %v725
  %v727 = vpop.f32.mrf.mxu0
  %v728 = vadd.f32 %v565, %v727
  %729 = vdwg.mxu0
  %v730 = vsub.f32 0.0, %v642
  %v731 = vsub.f32 0.0, %v644
  %v732 = vsub.f32 0.0, %v647
  %v733 = vsub.f32 0.0, %v649
  %v734 = vsub.f32 0.0, %v652
  %v735 = vsub.f32 0.0, %v654
  %v736 = vsub.f32 0.0, %v657
  %v737 = vsub.f32 0.0, %v659
  %v738 = vsub.f32 0.0, %v662
  %v739 = vsub.f32 0.0, %v664
  %v740 = vsub.f32 0.0, %v667
  %v741 = vsub.f32 0.0, %v669
  %v742 = vsub.f32 0.0, %v672
  %v743 = vsub.f32 0.0, %v674
  %v744 = vsub.f32 0.0, %v677
  %v745 = vsub.f32 0.0, %v679
  %v746 = vmul.f32 %v730, 1.442695
  %v747 = vpow.pop %v746
  %v748 = vmul.f32 %v731, 1.442695
  %v749 = vpow.pop %v748
  %v750 = vmul.f32 %v732, 1.442695
  %v751 = vpow.pop %v750
  %v752 = vmul.f32 %v733, 1.442695
  %v753 = vpow.pop %v752
  %v754 = vmul.f32 %v734, 1.442695
  %v755 = vpow.pop %v754
  %v756 = vmul.f32 %v735, 1.442695
  %v757 = vpow.pop %v756
  %v758 = vmul.f32 %v736, 1.442695
  %v759 = vpow.pop %v758
  %v760 = vmul.f32 %v737, 1.442695
  %v761 = vpow.pop %v760
  %v762 = vmul.f32 %v738, 1.442695
  %v763 = vpow.pop %v762
  %v764 = vmul.f32 %v739, 1.442695
  %v765 = vpow.pop %v764
  %v766 = vmul.f32 %v740, 1.442695
  %v767 = vpow.pop %v766
  %v768 = vmul.f32 %v741, 1.442695
  %v769 = vpow.pop %v768
  %v770 = vmul.f32 %v742, 1.442695
  %v771 = vpow.pop %v770
  %v772 = vmul.f32 %v743, 1.442695
  %v773 = vpow.pop %v772
  %v774 = vmul.f32 %v744, 1.442695
  %v775 = vpow.pop %v774
  %v776 = vmul.f32 %v745, 1.442695
  %v777 = vpow.pop %v776
  %v778 = vadd.f32 %v747, 1.0
  %v779 = vadd.f32 %v749, 1.0
  %v780 = vadd.f32 %v751, 1.0
  %v781 = vadd.f32 %v753, 1.0
  %v782 = vadd.f32 %v755, 1.0
  %v783 = vadd.f32 %v757, 1.0
  %v784 = vadd.f32 %v759, 1.0
  %v785 = vadd.f32 %v761, 1.0
  %v786 = vadd.f32 %v763, 1.0
  %v787 = vadd.f32 %v765, 1.0
  %v788 = vadd.f32 %v767, 1.0
  %v789 = vadd.f32 %v769, 1.0
  %v790 = vadd.f32 %v771, 1.0
  %v791 = vadd.f32 %v773, 1.0
  %v792 = vadd.f32 %v775, 1.0
  %v793 = vadd.f32 %v777, 1.0
  %v794 = vrcp.pop %v778
  %v795 = vrcp.pop %v779
  %v796 = vrcp.pop %v780
  %v797 = vrcp.pop %v781
  %v798 = vrcp.pop %v782
  %v799 = vrcp.pop %v783
  %v800 = vrcp.pop %v784
  %v801 = vrcp.pop %v785
  %v802 = vrcp.pop %v786
  %v803 = vrcp.pop %v787
  %v804 = vrcp.pop %v788
  %v805 = vrcp.pop %v789
  %v806 = vrcp.pop %v790
  %v807 = vrcp.pop %v791
  %v808 = vrcp.pop %v792
  %v809 = vrcp.pop %v793
  %v810 = vmul.f32 %v642, %v794
  %v811 = vmul.f32 %v644, %v795
  %v812 = vmul.f32 %v647, %v796
  %v813 = vmul.f32 %v649, %v797
  %v814 = vmul.f32 %v652, %v798
  %v815 = vmul.f32 %v654, %v799
  %v816 = vmul.f32 %v657, %v800
  %v817 = vmul.f32 %v659, %v801
  %v818 = vmul.f32 %v662, %v802
  %v819 = vmul.f32 %v664, %v803
  %v820 = vmul.f32 %v667, %v804
  %v821 = vmul.f32 %v669, %v805
  %v822 = vmul.f32 %v672, %v806
  %v823 = vmul.f32 %v674, %v807
  %v824 = vmul.f32 %v677, %v808
  %v825 = vmul.f32 %v679, %v809
  %v826 = vmul.f32 %v810, %v691
  %v827 = vmul.f32 %v811, %v693
  %v828 = vmul.f32 %v812, %v696
  %v829 = vmul.f32 %v813, %v698
  %v830 = vmul.f32 %v814, %v701
  %v831 = vmul.f32 %v815, %v703
  %v832 = vmul.f32 %v816, %v706
  %v833 = vmul.f32 %v817, %v708
  %v834 = vmul.f32 %v818, %v711
  %v835 = vmul.f32 %v819, %v713
  %v836 = vmul.f32 %v820, %v716
  %v837 = vmul.f32 %v821, %v718
  %v838 = vmul.f32 %v822, %v721
  %v839 = vmul.f32 %v823, %v723
  %v840 = vmul.f32 %v824, %v726
  %v841 = vmul.f32 %v825, %v728
  %v842 = vpack.c.bf16 %v827, %v826
  %v843 = vpack.c.bf16 %v829, %v828
  %v844 = vpack.c.bf16 %v831, %v830
  %v845 = vpack.c.bf16 %v833, %v832
  %v846 = vpack.c.bf16 %v835, %v834
  %v847 = vpack.c.bf16 %v837, %v836
  %v848 = vpack.c.bf16 %v839, %v838
  %v849 = vpack.c.bf16 %v841, %v840
  %v850 = vld [vmem:[%s7] sm:$0xf]
  %v851 = vld [vmem:[%s7 + $0x4] sm:$0xf]
  %v852 = vld [vmem:[%s7 + $0x8] sm:$0xf]
  %v853 = vld [vmem:[%s7 + $0xc] sm:$0xf]
  %v854 = vld [vmem:[%s7 + $0x10] sm:$0xf]
  %v855 = vld [vmem:[%s7 + $0x14] sm:$0xf]
  %v856 = vld [vmem:[%s7 + $0x18] sm:$0xf]
  %v857 = vld [vmem:[%s7 + $0x1c] sm:$0xf]
  %v858 = vld [vmem:[%s7 + $0x20] sm:$0xf]
  %v859 = vld [vmem:[%s7 + $0x24] sm:$0xf]
  %v860 = vld [vmem:[%s7 + $0x28] sm:$0xf]
  %v861 = vld [vmem:[%s7 + $0x2c] sm:$0xf]
  %v862 = vld [vmem:[%s7 + $0x30] sm:$0xf]
  %v863 = vld [vmem:[%s7 + $0x34] sm:$0xf]
  %v864 = vld [vmem:[%s7 + $0x38] sm:$0xf]
  %v865 = vld [vmem:[%s7 + $0x3c] sm:$0xf]
  %v882 = vunpack.c.l.b16 %v850
  %v883 = vunpack.c.l.b16 %v851
  %v884 = vunpack.c.l.b16 %v852
  %v885 = vunpack.c.l.b16 %v853
  %v886 = vunpack.c.l.b16 %v854
  %v887 = vunpack.c.l.b16 %v855
  %v888 = vunpack.c.l.b16 %v856
  %v889 = vunpack.c.l.b16 %v857
  %v890 = vunpack.c.l.b16 %v858
  %v891 = vunpack.c.l.b16 %v859
  %v892 = vunpack.c.l.b16 %v860
  %v893 = vunpack.c.l.b16 %v861
  %v894 = vunpack.c.l.b16 %v862
  %v895 = vunpack.c.l.b16 %v863
  %v896 = vunpack.c.l.b16 %v864
  %v897 = vunpack.c.l.b16 %v865
  %v898 = vpack.c.b16 %v883, %v882
  %v899 = vpack.c.b16 %v885, %v884
  %v900 = vpack.c.b16 %v887, %v886
  %v901 = vpack.c.b16 %v889, %v888
  %v902 = vpack.c.b16 %v891, %v890
  %v903 = vpack.c.b16 %v893, %v892
  %v904 = vpack.c.b16 %v895, %v894
  %v905 = vpack.c.b16 %v897, %v896
  %914 = vmatpush.bf16.msra.mxu0 %v905
  %915 = vmatpush.bf16.msra.mxu0 %v904
  %916 = vmatpush.bf16.msra.mxu0 %v903
  %917 = vmatpush.bf16.msra.mxu0 %v902
  %918 = vmatpush.bf16.msra.mxu0 %v901
  %919 = vmatpush.bf16.msra.mxu0 %v900
  %920 = vmatpush.bf16.msra.mxu0 %v899
  %921 = vmatpush.bf16.msra.mxu0 %v898
  %922 = vmatmul.bf16.gmra.mxu0 %v842
  %v923 = vpop.f32.mrf.mxu0
  %v924 = vadd.f32 0.0, %v923
  %v925 = vpop.f32.mrf.mxu0
  %v926 = vadd.f32 0.0, %v925
  %927 = vmatmul.bf16.gmra.mxu0 %v843
  %v928 = vpop.f32.mrf.mxu0
  %v929 = vadd.f32 0.0, %v928
  %v930 = vpop.f32.mrf.mxu0
  %v931 = vadd.f32 0.0, %v930
  %932 = vmatmul.bf16.gmra.mxu0 %v844
  %v933 = vpop.f32.mrf.mxu0
  %v934 = vadd.f32 0.0, %v933
  %v935 = vpop.f32.mrf.mxu0
  %v936 = vadd.f32 0.0, %v935
  %937 = vmatmul.bf16.gmra.mxu0 %v845
  %v938 = vpop.f32.mrf.mxu0
  %v939 = vadd.f32 0.0, %v938
  %v940 = vpop.f32.mrf.mxu0
  %v941 = vadd.f32 0.0, %v940
  %942 = vmatmul.bf16.gmra.mxu0 %v846
  %v943 = vpop.f32.mrf.mxu0
  %v944 = vadd.f32 0.0, %v943
  %v945 = vpop.f32.mrf.mxu0
  %v946 = vadd.f32 0.0, %v945
  %947 = vmatmul.bf16.gmra.mxu0 %v847
  %v948 = vpop.f32.mrf.mxu0
  %v949 = vadd.f32 0.0, %v948
  %v950 = vpop.f32.mrf.mxu0
  %v951 = vadd.f32 0.0, %v950
  %952 = vmatmul.bf16.gmra.mxu0 %v848
  %v953 = vpop.f32.mrf.mxu0
  %v954 = vadd.f32 0.0, %v953
  %v955 = vpop.f32.mrf.mxu0
  %v956 = vadd.f32 0.0, %v955
  %957 = vmatmul.bf16.gmra.mxu0 %v849
  %v958 = vpop.f32.mrf.mxu0
  %v959 = vadd.f32 0.0, %v958
  %v960 = vpop.f32.mrf.mxu0
  %v961 = vadd.f32 0.0, %v960
  %962 = vdwg.mxu0
  %v963 = vadd.f32 %v231, %v924
  %v964 = vadd.f32 %v232, %v926
  %v965 = vadd.f32 %v233, %v929
  %v966 = vadd.f32 %v234, %v931
  %v967 = vadd.f32 %v235, %v934
  %v968 = vadd.f32 %v236, %v936
  %v969 = vadd.f32 %v237, %v939
  %v970 = vadd.f32 %v238, %v941
  %v971 = vadd.f32 %v239, %v944
  %v972 = vadd.f32 %v240, %v946
  %v973 = vadd.f32 %v241, %v949
  %v974 = vadd.f32 %v242, %v951
  %v975 = vadd.f32 %v243, %v954
  %v976 = vadd.f32 %v244, %v956
  %v977 = vadd.f32 %v245, %v959
  %v978 = vadd.f32 %v246, %v961
  %v979 = vld [vmem:[%s8] sm:$0x1]
  %v981 = vperm.slane %v979, 0
  %v983 = vadd.f32 %v963, %v981
  %v984 = vadd.f32 %v964, %v981
  %v985 = vadd.f32 %v965, %v981
  %v986 = vadd.f32 %v966, %v981
  %v987 = vadd.f32 %v967, %v981
  %v988 = vadd.f32 %v968, %v981
  %v989 = vadd.f32 %v969, %v981
  %v990 = vadd.f32 %v970, %v981
  %v991 = vadd.f32 %v971, %v981
  %v992 = vadd.f32 %v972, %v981
  %v993 = vadd.f32 %v973, %v981
  %v994 = vadd.f32 %v974, %v981
  %v995 = vadd.f32 %v975, %v981
  %v996 = vadd.f32 %v976, %v981
  %v997 = vadd.f32 %v977, %v981
  %v998 = vadd.f32 %v978, %v981
  %999 = vst.msk [vmem:[%s9] sm:$0xff] %vm137, %v983
  %1000 = vst.msk [vmem:[%s9 + $0x8] sm:$0xff] %vm137, %v984
  %1001 = vst.msk [vmem:[%s9 + $0x10] sm:$0xff] %vm137, %v985
  %1002 = vst.msk [vmem:[%s9 + $0x18] sm:$0xff] %vm137, %v986
  %1003 = vst.msk [vmem:[%s9 + $0x20] sm:$0xff] %vm137, %v987
  %1004 = vst.msk [vmem:[%s9 + $0x28] sm:$0xff] %vm137, %v988
  %1005 = vst.msk [vmem:[%s9 + $0x30] sm:$0xff] %vm137, %v989
  %1006 = vst.msk [vmem:[%s9 + $0x38] sm:$0xff] %vm137, %v990
  %1007 = vst.msk [vmem:[%s9 + $0x40] sm:$0xff] %vm137, %v991
  %1008 = vst.msk [vmem:[%s9 + $0x48] sm:$0xff] %vm137, %v992
  %1009 = vst.msk [vmem:[%s9 + $0x50] sm:$0xff] %vm137, %v993
  %1010 = vst.msk [vmem:[%s9 + $0x58] sm:$0xff] %vm137, %v994
  %1011 = vst.msk [vmem:[%s9 + $0x60] sm:$0xff] %vm137, %v995
  %1012 = vst.msk [vmem:[%s9 + $0x68] sm:$0xff] %vm137, %v996
  %1013 = vst.msk [vmem:[%s9 + $0x70] sm:$0xff] %vm137, %v997
  %1014 = vst.msk [vmem:[%s9 + $0x78] sm:$0xff] %vm137, %v998
  // Predicated region
  $region38: #{core_forward.12} parent=0 // pred_check
    _
  $region39: #{core_forward.12} parent=0 // pred_check_branch
    %1016 = sbr.rel (0) target = $region41
  $region40: #{core_forward.12} parent=0 // pred_region
    _
  $region41: #{core_forward.12} parent=0 // pred_fallthru
    _
  // Predicated region
  $region42: #{core_forward.12} parent=0 // pred_check
    _
  $region43: #{core_forward.12} parent=0 // pred_check_branch
    %1018 = sbr.rel (0) target = $region45
  $region44: #{core_forward.12} parent=0 // pred_region
    _
  $region45: #{core_forward.12} parent=0 // pred_fallthru
    _

// kernel: core_forward.17
$region0: #{core_forward.17}
  #allocation0 [shape = 'u32[]', space=smem, size = 0x4, offset = 0x4, fixed_abs, tag = 'smem constant byte address 0x4 - core index']
  #allocation1 [shape = 'u32[72,128]{1,0:T(1,128)}', space=vmem, size = 0x9000, scoped, tag = 'internal scratch']
  %s0 = inlined_call_operand.vmem [shape: f32[32,256], index: 0, kind: input, shape index: {}]
  %s1 = inlined_call_operand.vmem [shape: bf16[256,256], index: 1, kind: input, shape index: {}]
  %s2 = inlined_call_operand.vmem [shape: f32[1,256], index: 2, kind: input, shape index: {}]
  %s3 = inlined_call_operand.vmem [shape: bf16[256,32], index: 3, kind: input, shape index: {}]
  %s4 = inlined_call_operand.vmem [shape: f32[1,32], index: 4, kind: input, shape index: {}]
  %s5 = inlined_call_operand.hbm [shape: f32[32,32], index: 5, kind: output, shape index: {}]
  %s6 = sld [smem:[#allocation0]]
  $region30: #{core_forward.17} parent=0
    _
  %s8 = ssub.s32 1, %s6
  %s9 = scalar_select 0, %s8, %s6
  $region1: #{core_forward.17} parent=0
    #allocation2 [shape = 'u8[16384]{0}', space=vmem, size = 0x4000, scoped, tag = 'output window, operand 0, single buffered']
    #allocation3 [shape = 's32[1]{0}', space=sflag, size = 0x4, scoped, tag = 'scoped memory for core_forward.17']
    %10 = vsyncpa [#allocation3], 0
    // Predicated region
    $region2: #{core_forward.17} parent=1 // pred_check
      _
    $region3: #{core_forward.17} parent=1 // pred_check_branch
      %12 = sbr.rel (0) target = $region5
    $region4: #{core_forward.17} parent=1 // pred_region
      _
    $region5: #{core_forward.17} parent=1 // pred_fallthru
      _
    // Predicated region
    $region6: #{core_forward.17} parent=1 // pred_check
      _
    $region7: #{core_forward.17} parent=1 // pred_check_branch
      %14 = sbr.rel (0) target = $region9
    $region8: #{core_forward.17} parent=1 // pred_region
      _
    $region9: #{core_forward.17} parent=1 // pred_fallthru
      _
    // Predicated region
    $region10: #{core_forward.17} parent=1 // pred_check
      _
    $region11: #{core_forward.17} parent=1 // pred_check_branch
      %16 = sbr.rel (0) target = $region13
    $region12: #{core_forward.17} parent=1 // pred_region
      _
    $region13: #{core_forward.17} parent=1 // pred_fallthru
      _
    // Predicated region
    $region14: #{core_forward.17} parent=1 // pred_check
      _
    $region15: #{core_forward.17} parent=1 // pred_check_branch
      %18 = sbr.rel (0) target = $region17
    $region16: #{core_forward.17} parent=1 // pred_region
      _
    $region17: #{core_forward.17} parent=1 // pred_fallthru
      _
    // Predicated region
    $region18: #{core_forward.17} parent=1 // pred_check
      _
    $region19: #{core_forward.17} parent=1 // pred_check_branch
      %20 = sbr.rel (0) target = $region21
    $region20: #{core_forward.17} parent=1 // pred_region
      _
    $region21: #{core_forward.17} parent=1 // pred_fallthru
      _
    %v21 = vld [vmem:[%s0] sm:$0xff]
    %v22 = vld [vmem:[%s0 + $0x8] sm:$0xff]
    %v23 = vld [vmem:[%s0 + $0x10] sm:$0xff]
    %v24 = vld [vmem:[%s0 + $0x18] sm:$0xff]
    %v25 = vld [vmem:[%s0 + $0x20] sm:$0xff]
    %v26 = vld [vmem:[%s0 + $0x28] sm:$0xff]
    %v27 = vld [vmem:[%s0 + $0x30] sm:$0xff]
    %v28 = vld [vmem:[%s0 + $0x38] sm:$0xff]
    %v29 = vpack.c.bf16 %v23, %v21
    %v30 = vpack.c.bf16 %v24, %v22
    %v31 = vpack.c.bf16 %v27, %v25
    %v32 = vpack.c.bf16 %v28, %v26
    %v33 = vld [vmem:[%s1] sm:$0xff]
    %v34 = vld [vmem:[%s1 + $0x8] sm:$0xff]
    %v35 = vld [vmem:[%s1 + $0x10] sm:$0xff]
    %v36 = vld [vmem:[%s1 + $0x18] sm:$0xff]
    %v37 = vld [vmem:[%s1 + $0x20] sm:$0xff]
    %v38 = vld [vmem:[%s1 + $0x28] sm:$0xff]
    %v39 = vld [vmem:[%s1 + $0x30] sm:$0xff]
    %v40 = vld [vmem:[%s1 + $0x38] sm:$0xff]
    %v41 = vld [vmem:[%s1 + $0x40] sm:$0xff]
    %v42 = vld [vmem:[%s1 + $0x48] sm:$0xff]
    %v43 = vld [vmem:[%s1 + $0x50] sm:$0xff]
    %v44 = vld [vmem:[%s1 + $0x58] sm:$0xff]
    %v45 = vld [vmem:[%s1 + $0x60] sm:$0xff]
    %v46 = vld [vmem:[%s1 + $0x68] sm:$0xff]
    %v47 = vld [vmem:[%s1 + $0x70] sm:$0xff]
    %v48 = vld [vmem:[%s1 + $0x78] sm:$0xff]
    %v49 = vld [vmem:[%s1 + $0x80] sm:$0xff]
    %v50 = vld [vmem:[%s1 + $0x88] sm:$0xff]
    %v51 = vld [vmem:[%s1 + $0x90] sm:$0xff]
    %v52 = vld [vmem:[%s1 + $0x98] sm:$0xff]
    %v53 = vld [vmem:[%s1 + $0xa0] sm:$0xff]
    %v54 = vld [vmem:[%s1 + $0xa8] sm:$0xff]
    %v55 = vld [vmem:[%s1 + $0xb0] sm:$0xff]
    %v56 = vld [vmem:[%s1 + $0xb8] sm:$0xff]
    %v57 = vld [vmem:[%s1 + $0xc0] sm:$0xff]
    %v58 = vld [vmem:[%s1 + $0xc8] sm:$0xff]
    %v59 = vld [vmem:[%s1 + $0xd0] sm:$0xff]
    %v60 = vld [vmem:[%s1 + $0xd8] sm:$0xff]
    %v61 = vld [vmem:[%s1 + $0xe0] sm:$0xff]
    %v62 = vld [vmem:[%s1 + $0xe8] sm:$0xff]
    %v63 = vld [vmem:[%s1 + $0xf0] sm:$0xff]
    %v64 = vld [vmem:[%s1 + $0xf8] sm:$0xff]
    %v65 = vld [vmem:[%s2] sm:$0x3]
    %v67 = vperm.slane %v65, 0
    %v68 = vperm.slane %v65, 1
    %v103 = vunpack.c.l.b16 %v33
    %v104 = vunpack.c.h.b16 %v33
    %v105 = vunpack.c.l.b16 %v34
    %v106 = vunpack.c.h.b16 %v34
    %v107 = vunpack.c.l.b16 %v35
    %v108 = vunpack.c.h.b16 %v35
    %v109 = vunpack.c.l.b16 %v36
    %v110 = vunpack.c.h.b16 %v36
    %v111 = vunpack.c.l.b16 %v37
    %v112 = vunpack.c.h.b16 %v37
    %v113 = vunpack.c.l.b16 %v38
    %v114 = vunpack.c.h.b16 %v38
    %v115 = vunpack.c.l.b16 %v39
    %v116 = vunpack.c.h.b16 %v39
    %v117 = vunpack.c.l.b16 %v40
    %v118 = vunpack.c.h.b16 %v40
    %v119 = vunpack.c.l.b16 %v41
    %v120 = vunpack.c.h.b16 %v41
    %v121 = vunpack.c.l.b16 %v42
    %v122 = vunpack.c.h.b16 %v42
    %v123 = vunpack.c.l.b16 %v43
    %v124 = vunpack.c.h.b16 %v43
    %v125 = vunpack.c.l.b16 %v44
    %v126 = vunpack.c.h.b16 %v44
    %v127 = vunpack.c.l.b16 %v45
    %v128 = vunpack.c.h.b16 %v45
    %v129 = vunpack.c.l.b16 %v46
    %v130 = vunpack.c.h.b16 %v46
    %v131 = vunpack.c.l.b16 %v47
    %v132 = vunpack.c.h.b16 %v47
    %v133 = vunpack.c.l.b16 %v48
    %v134 = vunpack.c.h.b16 %v48
    %v135 = vunpack.c.l.b16 %v49
    %v136 = vunpack.c.h.b16 %v49
    %v137 = vunpack.c.l.b16 %v50
    %v138 = vunpack.c.h.b16 %v50
    %v139 = vunpack.c.l.b16 %v51
    %v140 = vunpack.c.h.b16 %v51
    %v141 = vunpack.c.l.b16 %v52
    %v142 = vunpack.c.h.b16 %v52
    %v143 = vunpack.c.l.b16 %v53
    %v144 = vunpack.c.h.b16 %v53
    %v145 = vunpack.c.l.b16 %v54
    %v146 = vunpack.c.h.b16 %v54
    %v147 = vunpack.c.l.b16 %v55
    %v148 = vunpack.c.h.b16 %v55
    %v149 = vunpack.c.l.b16 %v56
    %v150 = vunpack.c.h.b16 %v56
    %v151 = vunpack.c.l.b16 %v57
    %v152 = vunpack.c.h.b16 %v57
    %v153 = vunpack.c.l.b16 %v58
    %v154 = vunpack.c.h.b16 %v58
    %v155 = vunpack.c.l.b16 %v59
    %v156 = vunpack.c.h.b16 %v59
    %v157 = vunpack.c.l.b16 %v60
    %v158 = vunpack.c.h.b16 %v60
    %v159 = vunpack.c.l.b16 %v61
    %v160 = vunpack.c.h.b16 %v61
    %v161 = vunpack.c.l.b16 %v62
    %v162 = vunpack.c.h.b16 %v62
    %v163 = vunpack.c.l.b16 %v63
    %v164 = vunpack.c.h.b16 %v63
    %v165 = vunpack.c.l.b16 %v64
    %v166 = vunpack.c.h.b16 %v64
    %v167 = vpack.c.b16 %v105, %v103
    %v168 = vpack.c.b16 %v106, %v104
    %v169 = vpack.c.b16 %v109, %v107
    %v170 = vpack.c.b16 %v110, %v108
    %v171 = vpack.c.b16 %v113, %v111
    %v172 = vpack.c.b16 %v114, %v112
    %v173 = vpack.c.b16 %v117, %v115
    %v174 = vpack.c.b16 %v118, %v116
    %v175 = vpack.c.b16 %v121, %v119
    %v176 = vpack.c.b16 %v122, %v120
    %v177 = vpack.c.b16 %v125, %v123
    %v178 = vpack.c.b16 %v126, %v124
    %v179 = vpack.c.b16 %v129, %v127
    %v180 = vpack.c.b16 %v130, %v128
    %v181 = vpack.c.b16 %v133, %v131
    %v182 = vpack.c.b16 %v134, %v132
    %v183 = vpack.c.b16 %v137, %v135
    %v184 = vpack.c.b16 %v138, %v136
    %v185 = vpack.c.b16 %v141, %v139
    %v186 = vpack.c.b16 %v142, %v140
    %v187 = vpack.c.b16 %v145, %v143
    %v188 = vpack.c.b16 %v146, %v144
    %v189 = vpack.c.b16 %v149, %v147
    %v190 = vpack.c.b16 %v150, %v148
    %v191 = vpack.c.b16 %v153, %v151
    %v192 = vpack.c.b16 %v154, %v152
    %v193 = vpack.c.b16 %v157, %v155
    %v194 = vpack.c.b16 %v158, %v156
    %v195 = vpack.c.b16 %v161, %v159
    %v196 = vpack.c.b16 %v162, %v160
    %v197 = vpack.c.b16 %v165, %v163
    %v198 = vpack.c.b16 %v166, %v164
    %231 = vmatpush.bf16.msra.mxu0 %v181
    %232 = vmatpush.bf16.msra.mxu0 %v179
    %233 = vmatpush.bf16.msra.mxu0 %v177
    %234 = vmatpush.bf16.msra.mxu0 %v175
    %235 = vmatpush.bf16.msra.mxu0 %v173
    %236 = vmatpush.bf16.msra.mxu0 %v171
    %237 = vmatpush.bf16.msra.mxu0 %v169
    %238 = vmatpush.bf16.msra.mxu0 %v167
    %239 = vmatmul.bf16.gmra.mxu0 %v29
    %v240 = vpop.f32.mrf.mxu0
    %v241 = vadd.f32 %v67, %v240
    %v242 = vpop.f32.mrf.mxu0
    %v243 = vadd.f32 %v67, %v242
    %244 = vmatmul.bf16.gmra.mxu0 %v31
    %v245 = vpop.f32.mrf.mxu0
    %v246 = vadd.f32 %v67, %v245
    %v247 = vpop.f32.mrf.mxu0
    %v248 = vadd.f32 %v67, %v247
    %249 = vdwg.mxu0
    %250 = vmatpush.bf16.msra.mxu0 %v197
    %251 = vmatpush.bf16.msra.mxu0 %v195
    %252 = vmatpush.bf16.msra.mxu0 %v193
    %253 = vmatpush.bf16.msra.mxu0 %v191
    %254 = vmatpush.bf16.msra.mxu0 %v189
    %255 = vmatpush.bf16.msra.mxu0 %v187
    %256 = vmatpush.bf16.msra.mxu0 %v185
    %257 = vmatpush.bf16.msra.mxu0 %v183
    %258 = vmatmul.bf16.gmra.mxu0 %v30
    %v259 = vpop.f32.mrf.mxu0
    %v260 = vadd.f32 %v241, %v259
    %v261 = vpop.f32.mrf.mxu0
    %v262 = vadd.f32 %v243, %v261
    %263 = vmatmul.bf16.gmra.mxu0 %v32
    %v264 = vpop.f32.mrf.mxu0
    %v265 = vadd.f32 %v246, %v264
    %v266 = vpop.f32.mrf.mxu0
    %v267 = vadd.f32 %v248, %v266
    %268 = vdwg.mxu0
    %269 = vmatpush.bf16.msra.mxu0 %v182
    %270 = vmatpush.bf16.msra.mxu0 %v180
    %271 = vmatpush.bf16.msra.mxu0 %v178
    %272 = vmatpush.bf16.msra.mxu0 %v176
    %273 = vmatpush.bf16.msra.mxu0 %v174
    %274 = vmatpush.bf16.msra.mxu0 %v172
    %275 = vmatpush.bf16.msra.mxu0 %v170
    %276 = vmatpush.bf16.msra.mxu0 %v168
    %277 = vmatmul.bf16.gmra.mxu0 %v29
    %v278 = vpop.f32.mrf.mxu0
    %v279 = vadd.f32 %v68, %v278
    %v280 = vpop.f32.mrf.mxu0
    %v281 = vadd.f32 %v68, %v280
    %282 = vmatmul.bf16.gmra.mxu0 %v31
    %v283 = vpop.f32.mrf.mxu0
    %v284 = vadd.f32 %v68, %v283
    %v285 = vpop.f32.mrf.mxu0
    %v286 = vadd.f32 %v68, %v285
    %287 = vdwg.mxu0
    %288 = vmatpush.bf16.msra.mxu0 %v198
    %289 = vmatpush.bf16.msra.mxu0 %v196
    %290 = vmatpush.bf16.msra.mxu0 %v194
    %291 = vmatpush.bf16.msra.mxu0 %v192
    %292 = vmatpush.bf16.msra.mxu0 %v190
    %293 = vmatpush.bf16.msra.mxu0 %v188
    %294 = vmatpush.bf16.msra.mxu0 %v186
    %295 = vmatpush.bf16.msra.mxu0 %v184
    %296 = vmatmul.bf16.gmra.mxu0 %v30
    %v297 = vpop.f32.mrf.mxu0
    %v298 = vadd.f32 %v279, %v297
    %v299 = vpop.f32.mrf.mxu0
    %v300 = vadd.f32 %v281, %v299
    %301 = vmatmul.bf16.gmra.mxu0 %v32
    %v302 = vpop.f32.mrf.mxu0
    %v303 = vadd.f32 %v284, %v302
    %v304 = vpop.f32.mrf.mxu0
    %v305 = vadd.f32 %v286, %v304
    %306 = vdwg.mxu0
    %v307 = vmul.f32 %v260, 0.5
    %v308 = vmul.f32 %v298, 0.5
    %v309 = vmul.f32 %v262, 0.5
    %v310 = vmul.f32 %v300, 0.5
    %v311 = vmul.f32 %v265, 0.5
    %v312 = vmul.f32 %v303, 0.5
    %v313 = vmul.f32 %v267, 0.5
    %v314 = vmul.f32 %v305, 0.5
    %v315 = vmul.f32 %v260, 0.044715
    %v316 = vmul.f32 %v298, 0.044715
    %v317 = vmul.f32 %v262, 0.044715
    %v318 = vmul.f32 %v300, 0.044715
    %v319 = vmul.f32 %v265, 0.044715
    %v320 = vmul.f32 %v303, 0.044715
    %v321 = vmul.f32 %v267, 0.044715
    %v322 = vmul.f32 %v305, 0.044715
    %v323 = vmul.f32 %v315, %v260
    %v324 = vmul.f32 %v316, %v298
    %v325 = vmul.f32 %v317, %v262
    %v326 = vmul.f32 %v318, %v300
    %v327 = vmul.f32 %v319, %v265
    %v328 = vmul.f32 %v320, %v303
    %v329 = vmul.f32 %v321, %v267
    %v330 = vmul.f32 %v322, %v305
    %v331 = vmul.f32 %v323, %v260
    %v332 = vmul.f32 %v324, %v298
    %v333 = vmul.f32 %v325, %v262
    %v334 = vmul.f32 %v326, %v300
    %v335 = vmul.f32 %v327, %v265
    %v336 = vmul.f32 %v328, %v303
    %v337 = vmul.f32 %v329, %v267
    %v338 = vmul.f32 %v330, %v305
    %v339 = vadd.f32 %v260, %v331
    %v340 = vadd.f32 %v298, %v332
    %v341 = vadd.f32 %v262, %v333
    %v342 = vadd.f32 %v300, %v334
    %v343 = vadd.f32 %v265, %v335
    %v344 = vadd.f32 %v303, %v336
    %v345 = vadd.f32 %v267, %v337
    %v346 = vadd.f32 %v305, %v338
    %v347 = vmul.f32 %v339, 0.7978846
    %v348 = vmul.f32 %v340, 0.7978846
    %v349 = vmul.f32 %v341, 0.7978846
    %v350 = vmul.f32 %v342, 0.7978846
    %v351 = vmul.f32 %v343, 0.7978846
    %v352 = vmul.f32 %v344, 0.7978846
    %v353 = vmul.f32 %v345, 0.7978846
    %v354 = vmul.f32 %v346, 0.7978846
    %v355 = vtanh.pop %v347
    %v356 = vtanh.pop %v348
    %v357 = vtanh.pop %v349
    %v358 = vtanh.pop %v350
    %v359 = vtanh.pop %v351
    %v360 = vtanh.pop %v352
    %v361 = vtanh.pop %v353
    %v362 = vtanh.pop %v354
    %v363 = vadd.f32 %v355, 1.0
    %v364 = vadd.f32 %v356, 1.0
    %v365 = vadd.f32 %v357, 1.0
    %v366 = vadd.f32 %v358, 1.0
    %v367 = vadd.f32 %v359, 1.0
    %v368 = vadd.f32 %v360, 1.0
    %v369 = vadd.f32 %v361, 1.0
    %v370 = vadd.f32 %v362, 1.0
    %v371 = vmul.f32 %v307, %v363
    %v372 = vmul.f32 %v308, %v364
    %v373 = vmul.f32 %v309, %v365
    %v374 = vmul.f32 %v310, %v366
    %v375 = vmul.f32 %v311, %v367
    %v376 = vmul.f32 %v312, %v368
    %v377 = vmul.f32 %v313, %v369
    %v378 = vmul.f32 %v314, %v370
    %v379 = vpack.c.bf16 %v373, %v371
    %v380 = vpack.c.bf16 %v374, %v372
    %v381 = vpack.c.bf16 %v377, %v375
    %v382 = vpack.c.bf16 %v378, %v376
    %v383 = vld [vmem:[%s3] sm:$0xf]
    %v384 = vld [vmem:[%s3 + $0x4] sm:$0xf]
    %v385 = vld [vmem:[%s3 + $0x8] sm:$0xf]
    %v386 = vld [vmem:[%s3 + $0xc] sm:$0xf]
    %v387 = vld [vmem:[%s3 + $0x10] sm:$0xf]
    %v388 = vld [vmem:[%s3 + $0x14] sm:$0xf]
    %v389 = vld [vmem:[%s3 + $0x18] sm:$0xf]
    %v390 = vld [vmem:[%s3 + $0x1c] sm:$0xf]
    %v391 = vld [vmem:[%s3 + $0x20] sm:$0xf]
    %v392 = vld [vmem:[%s3 + $0x24] sm:$0xf]
    %v393 = vld [vmem:[%s3 + $0x28] sm:$0xf]
    %v394 = vld [vmem:[%s3 + $0x2c] sm:$0xf]
    %v395 = vld [vmem:[%s3 + $0x30] sm:$0xf]
    %v396 = vld [vmem:[%s3 + $0x34] sm:$0xf]
    %v397 = vld [vmem:[%s3 + $0x38] sm:$0xf]
    %v398 = vld [vmem:[%s3 + $0x3c] sm:$0xf]
    %v399 = vld [vmem:[%s3 + $0x40] sm:$0xf]
    %v400 = vld [vmem:[%s3 + $0x44] sm:$0xf]
    %v401 = vld [vmem:[%s3 + $0x48] sm:$0xf]
    %v402 = vld [vmem:[%s3 + $0x4c] sm:$0xf]
    %v403 = vld [vmem:[%s3 + $0x50] sm:$0xf]
    %v404 = vld [vmem:[%s3 + $0x54] sm:$0xf]
    %v405 = vld [vmem:[%s3 + $0x58] sm:$0xf]
    %v406 = vld [vmem:[%s3 + $0x5c] sm:$0xf]
    %v407 = vld [vmem:[%s3 + $0x60] sm:$0xf]
    %v408 = vld [vmem:[%s3 + $0x64] sm:$0xf]
    %v409 = vld [vmem:[%s3 + $0x68] sm:$0xf]
    %v410 = vld [vmem:[%s3 + $0x6c] sm:$0xf]
    %v411 = vld [vmem:[%s3 + $0x70] sm:$0xf]
    %v412 = vld [vmem:[%s3 + $0x74] sm:$0xf]
    %v413 = vld [vmem:[%s3 + $0x78] sm:$0xf]
    %v414 = vld [vmem:[%s3 + $0x7c] sm:$0xf]
    %v415 = vld [vmem:[%s4] sm:$0x1]
    %v417 = vperm.slane %v415, 0
    %v451 = vunpack.c.l.b16 %v383
    %v452 = vunpack.c.l.b16 %v384
    %v453 = vunpack.c.l.b16 %v385
    %v454 = vunpack.c.l.b16 %v386
    %v455 = vunpack.c.l.b16 %v387
    %v456 = vunpack.c.l.b16 %v388
    %v457 = vunpack.c.l.b16 %v389
    %v458 = vunpack.c.l.b16 %v390
    %v459 = vunpack.c.l.b16 %v391
    %v460 = vunpack.c.l.b16 %v392
    %v461 = vunpack.c.l.b16 %v393
    %v462 = vunpack.c.l.b16 %v394
    %v463 = vunpack.c.l.b16 %v395
    %v464 = vunpack.c.l.b16 %v396
    %v465 = vunpack.c.l.b16 %v397
    %v466 = vunpack.c.l.b16 %v398
    %v467 = vunpack.c.l.b16 %v399
    %v468 = vunpack.c.l.b16 %v400
    %v469 = vunpack.c.l.b16 %v401
    %v470 = vunpack.c.l.b16 %v402
    %v471 = vunpack.c.l.b16 %v403
    %v472 = vunpack.c.l.b16 %v404
    %v473 = vunpack.c.l.b16 %v405
    %v474 = vunpack.c.l.b16 %v406
    %v475 = vunpack.c.l.b16 %v407
    %v476 = vunpack.c.l.b16 %v408
    %v477 = vunpack.c.l.b16 %v409
    %v478 = vunpack.c.l.b16 %v410
    %v479 = vunpack.c.l.b16 %v411
    %v480 = vunpack.c.l.b16 %v412
    %v481 = vunpack.c.l.b16 %v413
    %v482 = vunpack.c.l.b16 %v414
    %v483 = vpack.c.b16 %v452, %v451
    %v484 = vpack.c.b16 %v454, %v453
    %v485 = vpack.c.b16 %v456, %v455
    %v486 = vpack.c.b16 %v458, %v457
    %v487 = vpack.c.b16 %v460, %v459
    %v488 = vpack.c.b16 %v462, %v461
    %v489 = vpack.c.b16 %v464, %v463
    %v490 = vpack.c.b16 %v466, %v465
    %v491 = vpack.c.b16 %v468, %v467
    %v492 = vpack.c.b16 %v470, %v469
    %v493 = vpack.c.b16 %v472, %v471
    %v494 = vpack.c.b16 %v474, %v473
    %v495 = vpack.c.b16 %v476, %v475
    %v496 = vpack.c.b16 %v478, %v477
    %v497 = vpack.c.b16 %v480, %v479
    %v498 = vpack.c.b16 %v482, %v481
    %515 = vmatpush.bf16.msra.mxu0 %v490
    %516 = vmatpush.bf16.msra.mxu0 %v489
    %517 = vmatpush.bf16.msra.mxu0 %v488
    %518 = vmatpush.bf16.msra.mxu0 %v487
    %519 = vmatpush.bf16.msra.mxu0 %v486
    %520 = vmatpush.bf16.msra.mxu0 %v485
    %521 = vmatpush.bf16.msra.mxu0 %v484
    %522 = vmatpush.bf16.msra.mxu0 %v483
    %523 = vmatmul.bf16.gmra.mxu0 %v379
    %v524 = vpop.f32.mrf.mxu0
    %v525 = vadd.f32 %v417, %v524
    %v526 = vpop.f32.mrf.mxu0
    %v527 = vadd.f32 %v417, %v526
    %528 = vmatmul.bf16.gmra.mxu0 %v381
    %v529 = vpop.f32.mrf.mxu0
    %v530 = vadd.f32 %v417, %v529
    %v531 = vpop.f32.mrf.mxu0
    %v532 = vadd.f32 %v417, %v531
    %533 = vdwg.mxu0
    %534 = vmatpush.bf16.msra.mxu0 %v498
    %535 = vmatpush.bf16.msra.mxu0 %v497
    %536 = vmatpush.bf16.msra.mxu0 %v496
    %537 = vmatpush.bf16.msra.mxu0 %v495
    %538 = vmatpush.bf16.msra.mxu0 %v494
    %539 = vmatpush.bf16.msra.mxu0 %v493
    %540 = vmatpush.bf16.msra.mxu0 %v492
    %541 = vmatpush.bf16.msra.mxu0 %v491
    %542 = vmatmul.bf16.gmra.mxu0 %v380
    %v543 = vpop.f32.mrf.mxu0
    %v544 = vadd.f32 %v525, %v543
    %v545 = vpop.f32.mrf.mxu0
    %v546 = vadd.f32 %v527, %v545
    %547 = vmatmul.bf16.gmra.mxu0 %v382
    %v548 = vpop.f32.mrf.mxu0
    %v549 = vadd.f32 %v530, %v548
    %v550 = vpop.f32.mrf.mxu0
    %v551 = vadd.f32 %v532, %v550
    %552 = vdwg.mxu0
    %vm553 = vcmask 261120
    %554 = vst.msk [vmem:[#allocation2] sm:$0xff] %vm553, %v544
    %555 = vst.msk [vmem:[#allocation2 + $0x8] sm:$0xff] %vm553, %v546
    %556 = vst.msk [vmem:[#allocation2 + $0x10] sm:$0xff] %vm553, %v549
    %557 = vst.msk [vmem:[#allocation2 + $0x18] sm:$0xff] %vm553, %v551
    // Predicated region
    $region22: #{core_forward.17} parent=1 // pred_check
      _
    $region23: #{core_forward.17} parent=1 // pred_check_branch
      %559 = sbr.rel (0) target = $region25
    $region24: #{core_forward.17} parent=1 // pred_region
      %561 = vsyncadd [#allocation3], 0
      %s562 = sshll.u32 [#allocation2], 4
      %s563 = int_to_ptr.vmem [resolvable:$true] %s562
      %s564 = sshll.u32 %s5, 4
      %s565 = int_to_ptr.hbm [resolvable:$true] %s564
      %570 = dma.vmem_to_hbm [thread:$0]  %s563, 512, %s565, [#allocation3], 128, 128, 8
    $region25: #{core_forward.17} parent=1 // pred_fallthru
      _
    // Predicated region
    $region26: #{core_forward.17} parent=1 // pred_check
      _
    $region27: #{core_forward.17} parent=1 // pred_check_branch
      %572 = sbr.rel (0) target = $region29
    $region28: #{core_forward.17} parent=1 // pred_region
      %574 = dma.done [#allocation3], 512
    $region29: #{core_forward.17} parent=1 // pred_fallthru
      _
    %575 = vsyncpa [#allocation3], 1

// kernel: core_forward.11
$region0: #{core_forward.11}
  #allocation0 [shape = 'u32[]', space=smem, size = 0x4, offset = 0x4, fixed_abs, tag = 'smem constant byte address 0x4 - core index']
  #allocation1 [shape = 'u32[72,128]{1,0:T(1,128)}', space=vmem, size = 0x9000, scoped, tag = 'internal scratch']
  #allocation2 [shape = 'f32[4,64,1]{2,1,0:T(8,128)}', space=vmem, size = 0x20000, scoped, tag = 'scratch operand']
  #allocation3 [shape = 'f32[4,64,1]{2,1,0:T(8,128)}', space=vmem, size = 0x20000, scoped, tag = 'scratch operand']
  #allocation4 [shape = 'f32[4,64,16]{2,1,0:T(8,128)}', space=vmem, size = 0x20000, scoped, tag = 'scratch operand']
  %s0 = inlined_call_operand.vmem [shape: s32[128,1], index: 0, kind: input, shape index: {}]
  %s1 = inlined_call_operand.vmem [shape: s32[1,128], index: 1, kind: input, shape index: {}]
  %s2 = inlined_call_operand.vmem [shape: bf16[128,64], index: 2, kind: input, shape index: {}]
  %s3 = inlined_call_operand.vmem [shape: bf16[128,64], index: 3, kind: input, shape index: {}]
  %s4 = inlined_call_operand.vmem [shape: bf16[128,64], index: 4, kind: input, shape index: {}]
  %s5 = inlined_call_operand.vmem [shape: bf16[128,64], index: 5, kind: output, shape index: {}]
  %s6 = sld [smem:[#allocation0]]
  $region61: #{core_forward.11} parent=0
    _
  %s8 = ssub.s32 1, %s6
  %s9 = scalar_select 0, %s8, %s6
  loop: start=0, step=1, limit=4
  $region2: #{core_forward.11} parent=0 // loop_pre_header
    _
  $region3: #{core_forward.11} parent=0 // loop_header
    %s11 = sphi 0, %s15
    %p12 = scmp.ge.s32.totalorder %s11, 4
    %s18 = sphi 0, %s30
    %s19 = sphi 0, %s26
    %s20 = sphi 0, %s18
    %s21 = sphi 0, %s19
    %s22 = sphi 0, %s20
    %s23 = sphi 0, %s21
    %s33 = sphi 0, %s35
    %s36 = sphi 0, %s33
    %s37 = sphi 0, %s36
    %s53 = sphi 0, %s37
    %s59 = sphi 0, %s61
    %s62 = sphi 0, %s59
    %s63 = sphi 0, %s62
    %s79 = sphi 0, %s63
    %s85 = sphi 0, %s87
    %s88 = sphi 0, %s85
    %s89 = sphi 0, %s88
    %s105 = sphi 0, %s89
    %s111 = sphi 0, %s113
    %s114 = sphi 0, %s111
    %s115 = sphi 0, %s114
    %s131 = sphi 0, %s115
    %s137 = sphi 0, %s139
    %s140 = sphi 0, %s137
    %s141 = sphi 0, %s140
    %s157 = sphi 0, %s141
    %s163 = sphi 0, %s165
    %s166 = sphi 0, %s163
    %s167 = sphi 0, %s166
    %s183 = sphi 0, %s167
  $region4: #{core_forward.11} parent=0 // loop_header_branch
    %14 = sbr.rel (%p12) target = $region8
  $region5: #{core_forward.11} parent=0 // loop_body
    %s16 = ssub.s32 %s11, 1
    %s17 = ssub.s32 %s11, 2
    %s24 = sadd.s32 1, %s19
    %p25 = scmp.ge.s32.totalorder %s24, 1
    %s26 = scalar_select %p25, 0, %s24
    %s27 = sadd.s32 1, %s18
    %s28 = scalar_select %p25, %s27, %s18
    %p29 = scmp.ge.s32.totalorder %s28, 2
    %s30 = scalar_select %p29, 0, %s28
    %s31 = ssub.s32 %s18, %s30
    %p32 = scmp.eq.s32.totalorder %s31, 0
    %s34 = sadd.s32 %s33, 1
    %s35 = scalar_select %p32, %s33, %s34
    %p38 = pneg %p32
    %p39 = scmp.eq.s32.totalorder %s11, 1
    %p40 = por %p38, %p39
    %p41 = scmp.ne.s32.totalorder %s33, %s36
    %p42 = scmp.eq.s32.totalorder %s11, 0
    %p43 = por %p41, %p42
    %p44 = scmp.ne.s32.totalorder %s33, %s36
    %p45 = scmp.eq.s32.totalorder %s16, 1
    %p46 = por %p44, %p45
    %p47 = scmp.ne.s32.totalorder %s36, %s37
    %p48 = scmp.eq.s32.totalorder %s16, 0
    %p49 = por %p47, %p48
    %p50 = scmp.ne.s32.totalorder %s36, %s37
    %p51 = scmp.eq.s32.totalorder %s17, 1
    %p52 = por %p50, %p51
    %p54 = scmp.ne.s32.totalorder %s37, %s53
    %p55 = scmp.eq.s32.totalorder %s17, 0
    %p56 = por %p54, %p55
    %s57 = ssub.s32 %s19, %s26
    %p58 = scmp.eq.s32.totalorder %s57, 0
    %s60 = sadd.s32 %s59, 1
    %s61 = scalar_select %p58, %s59, %s60
    %p64 = pneg %p58
    %p65 = scmp.eq.s32.totalorder %s11, 1
    %p66 = por %p64, %p65
    %p67 = scmp.ne.s32.totalorder %s59, %s62
    %p68 = scmp.eq.s32.totalorder %s11, 0
    %p69 = por %p67, %p68
    %p70 = scmp.ne.s32.totalorder %s59, %s62
    %p71 = scmp.eq.s32.totalorder %s16, 1
    %p72 = por %p70, %p71
    %p73 = scmp.ne.s32.totalorder %s62, %s63
    %p74 = scmp.eq.s32.totalorder %s16, 0
    %p75 = por %p73, %p74
    %p76 = scmp.ne.s32.totalorder %s62, %s63
    %p77 = scmp.eq.s32.totalorder %s17, 1
    %p78 = por %p76, %p77
    %p80 = scmp.ne.s32.totalorder %s63, %s79
    %p81 = scmp.eq.s32.totalorder %s17, 0
    %p82 = por %p80, %p81
    %s83 = ssub.s32 %s18, %s30
    %p84 = scmp.eq.s32.totalorder %s83, 0
    %s86 = sadd.s32 %s85, 1
    %s87 = scalar_select %p84, %s85, %s86
    %p90 = pneg %p84
    %p91 = scmp.eq.s32.totalorder %s11, 1
    %p92 = por %p90, %p91
    %p93 = scmp.ne.s32.totalorder %s85, %s88
    %p94 = scmp.eq.s32.totalorder %s11, 0
    %p95 = por %p93, %p94
    %p96 = scmp.ne.s32.totalorder %s85, %s88
    %p97 = scmp.eq.s32.totalorder %s16, 1
    %p98 = por %p96, %p97
    %p99 = scmp.ne.s32.totalorder %s88, %s89
    %p100 = scmp.eq.s32.totalorder %s16, 0
    %p101 = por %p99, %p100
    %p102 = scmp.ne.s32.totalorder %s88, %s89
    %p103 = scmp.eq.s32.totalorder %s17, 1
    %p104 = por %p102, %p103
    %p106 = scmp.ne.s32.totalorder %s89, %s105
    %p107 = scmp.eq.s32.totalorder %s17, 0
    %p108 = por %p106, %p107
    %s109 = ssub.s32 %s19, %s26
    %p110 = scmp.eq.s32.totalorder %s109, 0
    %s112 = sadd.s32 %s111, 1
    %s113 = scalar_select %p110, %s111, %s112
    %p116 = pneg %p110
    %p117 = scmp.eq.s32.totalorder %s11, 1
    %p118 = por %p116, %p117
    %p119 = scmp.ne.s32.totalorder %s111, %s114
    %p120 = scmp.eq.s32.totalorder %s11, 0
    %p121 = por %p119, %p120
    %p122 = scmp.ne.s32.totalorder %s111, %s114
    %p123 = scmp.eq.s32.totalorder %s16, 1
    %p124 = por %p122, %p123
    %p125 = scmp.ne.s32.totalorder %s114, %s115
    %p126 = scmp.eq.s32.totalorder %s16, 0
    %p127 = por %p125, %p126
    %p128 = scmp.ne.s32.totalorder %s114, %s115
    %p129 = scmp.eq.s32.totalorder %s17, 1
    %p130 = por %p128, %p129
    %p132 = scmp.ne.s32.totalorder %s115, %s131
    %p133 = scmp.eq.s32.totalorder %s17, 0
    %p134 = por %p132, %p133
    %s135 = ssub.s32 %s19, %s26
    %p136 = scmp.eq.s32.totalorder %s135, 0
    %s138 = sadd.s32 %s137, 1
    %s139 = scalar_select %p136, %s137, %s138
    %p142 = pneg %p136
    %p143 = scmp.eq.s32.totalorder %s11, 1
    %p144 = por %p142, %p143
    %p145 = scmp.ne.s32.totalorder %s137, %s140
    %p146 = scmp.eq.s32.totalorder %s11, 0
    %p147 = por %p145, %p146
    %p148 = scmp.ne.s32.totalorder %s137, %s140
    %p149 = scmp.eq.s32.totalorder %s16, 1
    %p150 = por %p148, %p149
    %p151 = scmp.ne.s32.totalorder %s140, %s141
    %p152 = scmp.eq.s32.totalorder %s16, 0
    %p153 = por %p151, %p152
    %p154 = scmp.ne.s32.totalorder %s140, %s141
    %p155 = scmp.eq.s32.totalorder %s17, 1
    %p156 = por %p154, %p155
    %p158 = scmp.ne.s32.totalorder %s141, %s157
    %p159 = scmp.eq.s32.totalorder %s17, 0
    %p160 = por %p158, %p159
    %s161 = ssub.s32 %s18, %s30
    %p162 = scmp.eq.s32.totalorder %s161, 0
    %s164 = sadd.s32 %s163, 1
    %s165 = scalar_select %p162, %s163, %s164
    %p168 = pneg %p162
    %p169 = scmp.eq.s32.totalorder %s11, 1
    %p170 = por %p168, %p169
    %p171 = scmp.ne.s32.totalorder %s163, %s166
    %p172 = scmp.eq.s32.totalorder %s11, 0
    %p173 = por %p171, %p172
    %p174 = scmp.ne.s32.totalorder %s163, %s166
    %p175 = scmp.eq.s32.totalorder %s16, 1
    %p176 = por %p174, %p175
    %p177 = scmp.ne.s32.totalorder %s166, %s167
    %p178 = scmp.eq.s32.totalorder %s16, 0
    %p179 = por %p177, %p178
    %p180 = scmp.ne.s32.totalorder %s166, %s167
    %p181 = scmp.eq.s32.totalorder %s17, 1
    %p182 = por %p180, %p181
    %p184 = scmp.ne.s32.totalorder %s167, %s183
    %p185 = scmp.eq.s32.totalorder %s17, 0
    %p186 = por %p184, %p185
    %p187 = scmp.le.s32.totalorder 1, %s11
    %p188 = scmp.lt.s32.totalorder %s11, 3
    %p189 = pnand %p187, %p188
    %p190 = pneg %p189
    // Predicated region
    $region9: #{core_forward.11} parent=5 // pred_check
      _
    $region10: #{core_forward.11} parent=5 // pred_check_branch
      %192 = sbr.rel (%p189) target = $region12
    $region11: #{core_forward.11} parent=5 // pred_region
      %s193 = ssub.s32 %s11, 1
      // Predicated region
      $region13: #{core_forward.11} parent=11 // pred_check
        %p194 = pneg %p75
      $region14: #{core_forward.11} parent=11 // pred_check_branch
        %196 = sbr.rel (%p194) target = $region16
      $region15: #{core_forward.11} parent=11 // pred_region
        %p197 = scmp.lt.s32.totalorder %s21, 0
        %s198 = scalar_select %p197, %s21, 0
        %s199 = scalar_lea.vmem %s1, %s198
      $region16: #{core_forward.11} parent=11 // pred_fallthru
        _
      // Predicated region
      $region17: #{core_forward.11} parent=11 // pred_check
        %p200 = pneg %p127
      $region18: #{core_forward.11} parent=11 // pred_check_branch
        %202 = sbr.rel (%p200) target = $region20
      $region19: #{core_forward.11} parent=11 // pred_region
        %s203 = smul.u32 16, %s21
        %p204 = scmp.lt.s32.totalorder %s203, 15
        %s205 = scalar_select %p204, %s203, 15
        %s206 = smul.addr %s205, 4
        %s207 = scalar_lea.vmem %s3, %s206
        %s208 = smul.u32 16, %s21
      $region20: #{core_forward.11} parent=11 // pred_fallthru
        _
      // Predicated region
      $region21: #{core_forward.11} parent=11 // pred_check
        %p209 = pneg %p153
      $region22: #{core_forward.11} parent=11 // pred_check_branch
        %211 = sbr.rel (%p209) target = $region24
      $region23: #{core_forward.11} parent=11 // pred_region
        %s212 = smul.u32 16, %s21
        %p213 = scmp.lt.s32.totalorder %s212, 15
        %s214 = scalar_select %p213, %s212, 15
        %s215 = smul.addr %s214, 4
        %s216 = scalar_lea.vmem %s4, %s215
        %s217 = smul.u32 16, %s21
      $region24: #{core_forward.11} parent=11 // pred_fallthru
        _
    $region12: #{core_forward.11} parent=5 // pred_fallthru
      _
    %p218 = scmp.lt.s32.totalorder %s11, 2
    // Predicated region
    $region25: #{core_forward.11} parent=5 // pred_check
      %p219 = pneg %p218
    $region26: #{core_forward.11} parent=5 // pred_check_branch
      %221 = sbr.rel (%p219) target = $region28
    $region27: #{core_forward.11} parent=5 // pred_region
      // Predicated region
      $region29: #{core_forward.11} parent=27 // pred_check
        %p222 = pneg %p43
      $region30: #{core_forward.11} parent=27 // pred_check_branch
        %224 = sbr.rel (%p222) target = $region32
      $region31: #{core_forward.11} parent=27 // pred_region
        %s225 = smul.u32 8, %s18
        %p226 = scmp.lt.s32.totalorder %s225, 15
        %s227 = scalar_select %p226, %s225, 15
        %s228 = smul.addr %s227, 8
        %s229 = scalar_lea.vmem %s0, %s228
        %s230 = smul.u32 8, %s18
      $region32: #{core_forward.11} parent=27 // pred_fallthru
        _
      // Predicated region
      $region33: #{core_forward.11} parent=27 // pred_check
        %p231 = pneg %p95
      $region34: #{core_forward.11} parent=27 // pred_check_branch
        %233 = sbr.rel (%p231) target = $region36
      $region35: #{core_forward.11} parent=27 // pred_region
        %s234 = smul.u32 8, %s18
        %p235 = scmp.lt.s32.totalorder %s234, 15
        %s236 = scalar_select %p235, %s234, 15
        %s237 = smul.addr %s236, 4
        %s238 = scalar_lea.vmem %s2, %s237
        %s239 = smul.u32 8, %s18
      $region36: #{core_forward.11} parent=27 // pred_fallthru
        _
    $region28: #{core_forward.11} parent=5 // pred_fallthru
      _
    %p240 = scmp.le.s32.totalorder 1, %s11
    %p241 = scmp.lt.s32.totalorder %s11, 3
    %p242 = pnand %p240, %p241
    %p243 = pneg %p242
    // Predicated region
    $region37: #{core_forward.11} parent=5 // pred_check
      _
    $region38: #{core_forward.11} parent=5 // pred_check_branch
      %245 = sbr.rel (%p242) target = $region40
    $region39: #{core_forward.11} parent=5 // pred_region
      %s246 = ssub.s32 %s11, 1
      %s247 = smul.u32 8, %s20
      %p248 = scmp.lt.s32.totalorder %s247, 15
      %s249 = scalar_select %p248, %s247, 15
      %s250 = smul.addr %s249, 8
      %s251 = scalar_lea.vmem %s0, %s250
      %p252 = pneg %p49
      %p253 = pneg %p46
      %p254 = scmp.lt.s32.totalorder %s21, 0
      %s255 = scalar_select %p254, %s21, 0
      %s256 = scalar_lea.vmem %s1, %s255
      %p257 = pneg %p75
      %p258 = pneg %p72
      %s259 = smul.u32 8, %s20
      %p260 = scmp.lt.s32.totalorder %s259, 15
      %s261 = scalar_select %p260, %s259, 15
      %s262 = smul.addr %s261, 4
      %s263 = scalar_lea.vmem %s2, %s262
      %p264 = pneg %p101
      %p265 = pneg %p98
      %s266 = smul.u32 16, %s21
      %p267 = scmp.lt.s32.totalorder %s266, 15
      %s268 = scalar_select %p267, %s266, 15
      %s269 = smul.addr %s268, 4
      %s270 = scalar_lea.vmem %s3, %s269
      %p271 = pneg %p127
      %p272 = pneg %p124
      %s273 = smul.u32 16, %s21
      %p274 = scmp.lt.s32.totalorder %s273, 15
      %s275 = scalar_select %p274, %s273, 15
      %s276 = smul.addr %s275, 4
      %s277 = scalar_lea.vmem %s4, %s276
      %p278 = pneg %p153
      %p279 = pneg %p150
      %p280 = pneg %p179
      %p281 = pneg %p176
      %s282 = smul.u32 8, %s20
      %p283 = scmp.lt.s32.totalorder %s282, 15
      %s284 = scalar_select %p283, %s282, 15
      %s285 = smul.addr %s284, 4
      %s286 = scalar_lea.vmem %s5, %s285
      %s287 = smul.u32 8, %s20
      %p288 = scmp.lt.s32.totalorder %s287, 15
      %s289 = scalar_select %p288, %s287, 15
      %s290 = smul.addr %s289, 8
      %s291 = scalar_lea.vmem %s0, %s290
      %s292 = smul.u32 8, %s20
      %p293 = scmp.lt.s32.totalorder %s21, 0
      %s294 = scalar_select %p293, %s21, 0
      %s295 = scalar_lea.vmem %s1, %s294
      %s296 = smul.u32 8, %s20
      %p297 = scmp.lt.s32.totalorder %s296, 15
      %s298 = scalar_select %p297, %s296, 15
      %s299 = smul.addr %s298, 4
      %s300 = scalar_lea.vmem %s2, %s299
      %s301 = smul.u32 8, %s20
      %s302 = smul.u32 16, %s21
      %p303 = scmp.lt.s32.totalorder %s302, 15
      %s304 = scalar_select %p303, %s302, 15
      %s305 = smul.addr %s304, 4
      %s306 = scalar_lea.vmem %s3, %s305
      %s307 = smul.u32 16, %s21
      %s308 = smul.u32 16, %s21
      %p309 = scmp.lt.s32.totalorder %s308, 15
      %s310 = scalar_select %p309, %s308, 15
      %s311 = smul.addr %s310, 4
      %s312 = scalar_lea.vmem %s4, %s311
      %s313 = smul.u32 16, %s21
      %s314 = smul.u32 8, %s20
      %p315 = scmp.lt.s32.totalorder %s314, 15
      %s316 = scalar_select %p315, %s314, 15
      %s317 = smul.addr %s316, 4
      %s318 = scalar_lea.vmem %s5, %s317
      %s319 = smul.u32 8, %s20
      %p320 = scmp.eq.s32.totalorder %s21, 0
      // Predicated region
      $region41: #{core_forward.11} parent=39 // pred_check
        %p321 = pneg %p320
      $region42: #{core_forward.11} parent=39 // pred_check_branch
        %323 = sbr.rel (%p321) target = $region44
      $region43: #{core_forward.11} parent=39 // pred_region
        %vm324 = vcmask 7168
        %325 = vst.msk [vmem:[#allocation2] sm:$0xff] %vm324, -inf
        %326 = vst.msk [vmem:[#allocation2 + $0x8] sm:$0xff] %vm324, -inf
        %327 = vst.msk [vmem:[#allocation2 + $0x10] sm:$0xff] %vm324, -inf
        %328 = vst.msk [vmem:[#allocation2 + $0x18] sm:$0xff] %vm324, -inf
        %329 = vst.msk [vmem:[#allocation2 + $0x20] sm:$0xff] %vm324, -inf
        %330 = vst.msk [vmem:[#allocation2 + $0x28] sm:$0xff] %vm324, -inf
        %331 = vst.msk [vmem:[#allocation2 + $0x30] sm:$0xff] %vm324, -inf
        %332 = vst.msk [vmem:[#allocation2 + $0x38] sm:$0xff] %vm324, -inf
        %333 = vst.msk [vmem:[#allocation2 + $0x40] sm:$0xff] %vm324, -inf
        %334 = vst.msk [vmem:[#allocation2 + $0x48] sm:$0xff] %vm324, -inf
        %335 = vst.msk [vmem:[#allocation2 + $0x50] sm:$0xff] %vm324, -inf
        %336 = vst.msk [vmem:[#allocation2 + $0x58] sm:$0xff] %vm324, -inf
        %337 = vst.msk [vmem:[#allocation2 + $0x60] sm:$0xff] %vm324, -inf
        %338 = vst.msk [vmem:[#allocation2 + $0x68] sm:$0xff] %vm324, -inf
        %339 = vst.msk [vmem:[#allocation2 + $0x70] sm:$0xff] %vm324, -inf
        %340 = vst.msk [vmem:[#allocation2 + $0x78] sm:$0xff] %vm324, -inf
        %341 = vst.msk [vmem:[#allocation2 + $0x80] sm:$0xff] %vm324, -inf
        %342 = vst.msk [vmem:[#allocation2 + $0x88] sm:$0xff] %vm324, -inf
        %343 = vst.msk [vmem:[#allocation2 + $0x90] sm:$0xff] %vm324, -inf
        %344 = vst.msk [vmem:[#allocation2 + $0x98] sm:$0xff] %vm324, -inf
        %345 = vst.msk [vmem:[#allocation2 + $0xa0] sm:$0xff] %vm324, -inf
        %346 = vst.msk [vmem:[#allocation2 + $0xa8] sm:$0xff] %vm324, -inf
        %347 = vst.msk [vmem:[#allocation2 + $0xb0] sm:$0xff] %vm324, -inf
        %348 = vst.msk [vmem:[#allocation2 + $0xb8] sm:$0xff] %vm324, -inf
        %349 = vst.msk [vmem:[#allocation2 + $0xc0] sm:$0xff] %vm324, -inf
        %350 = vst.msk [vmem:[#allocation2 + $0xc8] sm:$0xff] %vm324, -inf
        %351 = vst.msk [vmem:[#allocation2 + $0xd0] sm:$0xff] %vm324, -inf
        %352 = vst.msk [vmem:[#allocation2 + $0xd8] sm:$0xff] %vm324, -inf
        %353 = vst.msk [vmem:[#allocation2 + $0xe0] sm:$0xff] %vm324, -inf
        %354 = vst.msk [vmem:[#allocation2 + $0xe8] sm:$0xff] %vm324, -inf
        %355 = vst.msk [vmem:[#allocation2 + $0xf0] sm:$0xff] %vm324, -inf
        %356 = vst.msk [vmem:[#allocation2 + $0xf8] sm:$0xff] %vm324, -inf
        %357 = vst.msk [vmem:[#allocation3] sm:$0xff] %vm324, 0.0
        %358 = vst.msk [vmem:[#allocation3 + $0x8] sm:$0xff] %vm324, 0.0
        %359 = vst.msk [vmem:[#allocation3 + $0x10] sm:$0xff] %vm324, 0.0
        %360 = vst.msk [vmem:[#allocation3 + $0x18] sm:$0xff] %vm324, 0.0
        %361 = vst.msk [vmem:[#allocation3 + $0x20] sm:$0xff] %vm324, 0.0
        %362 = vst.msk [vmem:[#allocation3 + $0x28] sm:$0xff] %vm324, 0.0
        %363 = vst.msk [vmem:[#allocation3 + $0x30] sm:$0xff] %vm324, 0.0
        %364 = vst.msk [vmem:[#allocation3 + $0x38] sm:$0xff] %vm324, 0.0
        %365 = vst.msk [vmem:[#allocation3 + $0x40] sm:$0xff] %vm324, 0.0
        %366 = vst.msk [vmem:[#allocation3 + $0x48] sm:$0xff] %vm324, 0.0
        %367 = vst.msk [vmem:[#allocation3 + $0x50] sm:$0xff] %vm324, 0.0
        %368 = vst.msk [vmem:[#allocation3 + $0x58] sm:$0xff] %vm324, 0.0
        %369 = vst.msk [vmem:[#allocation3 + $0x60] sm:$0xff] %vm324, 0.0
        %370 = vst.msk [vmem:[#allocation3 + $0x68] sm:$0xff] %vm324, 0.0
        %371 = vst.msk [vmem:[#allocation3 + $0x70] sm:$0xff] %vm324, 0.0
        %372 = vst.msk [vmem:[#allocation3 + $0x78] sm:$0xff] %vm324, 0.0
        %373 = vst.msk [vmem:[#allocation3 + $0x80] sm:$0xff] %vm324, 0.0
        %374 = vst.msk [vmem:[#allocation3 + $0x88] sm:$0xff] %vm324, 0.0
        %375 = vst.msk [vmem:[#allocation3 + $0x90] sm:$0xff] %vm324, 0.0
        %376 = vst.msk [vmem:[#allocation3 + $0x98] sm:$0xff] %vm324, 0.0
        %377 = vst.msk [vmem:[#allocation3 + $0xa0] sm:$0xff] %vm324, 0.0
        %378 = vst.msk [vmem:[#allocation3 + $0xa8] sm:$0xff] %vm324, 0.0
        %379 = vst.msk [vmem:[#allocation3 + $0xb0] sm:$0xff] %vm324, 0.0
        %380 = vst.msk [vmem:[#allocation3 + $0xb8] sm:$0xff] %vm324, 0.0
        %381 = vst.msk [vmem:[#allocation3 + $0xc0] sm:$0xff] %vm324, 0.0
        %382 = vst.msk [vmem:[#allocation3 + $0xc8] sm:$0xff] %vm324, 0.0
        %383 = vst.msk [vmem:[#allocation3 + $0xd0] sm:$0xff] %vm324, 0.0
        %384 = vst.msk [vmem:[#allocation3 + $0xd8] sm:$0xff] %vm324, 0.0
        %385 = vst.msk [vmem:[#allocation3 + $0xe0] sm:$0xff] %vm324, 0.0
        %386 = vst.msk [vmem:[#allocation3 + $0xe8] sm:$0xff] %vm324, 0.0
        %387 = vst.msk [vmem:[#allocation3 + $0xf0] sm:$0xff] %vm324, 0.0
        %388 = vst.msk [vmem:[#allocation3 + $0xf8] sm:$0xff] %vm324, 0.0
        %vm389 = vcmask 130048
        %390 = vst.msk [vmem:[#allocation4] sm:$0xff] %vm389, 0.0
        %391 = vst.msk [vmem:[#allocation4 + $0x8] sm:$0xff] %vm389, 0.0
        %392 = vst.msk [vmem:[#allocation4 + $0x10] sm:$0xff] %vm389, 0.0
        %393 = vst.msk [vmem:[#allocation4 + $0x18] sm:$0xff] %vm389, 0.0
        %394 = vst.msk [vmem:[#allocation4 + $0x20] sm:$0xff] %vm389, 0.0
        %395 = vst.msk [vmem:[#allocation4 + $0x28] sm:$0xff] %vm389, 0.0
        %396 = vst.msk [vmem:[#allocation4 + $0x30] sm:$0xff] %vm389, 0.0
        %397 = vst.msk [vmem:[#allocation4 + $0x38] sm:$0xff] %vm389, 0.0
        %398 = vst.msk [vmem:[#allocation4 + $0x40] sm:$0xff] %vm389, 0.0
        %399 = vst.msk [vmem:[#allocation4 + $0x48] sm:$0xff] %vm389, 0.0
        %400 = vst.msk [vmem:[#allocation4 + $0x50] sm:$0xff] %vm389, 0.0
        %401 = vst.msk [vmem:[#allocation4 + $0x58] sm:$0xff] %vm389, 0.0
        %402 = vst.msk [vmem:[#allocation4 + $0x60] sm:$0xff] %vm389, 0.0
        %403 = vst.msk [vmem:[#allocation4 + $0x68] sm:$0xff] %vm389, 0.0
        %404 = vst.msk [vmem:[#allocation4 + $0x70] sm:$0xff] %vm389, 0.0
        %405 = vst.msk [vmem:[#allocation4 + $0x78] sm:$0xff] %vm389, 0.0
        %406 = vst.msk [vmem:[#allocation4 + $0x80] sm:$0xff] %vm389, 0.0
        %407 = vst.msk [vmem:[#allocation4 + $0x88] sm:$0xff] %vm389, 0.0
        %408 = vst.msk [vmem:[#allocation4 + $0x90] sm:$0xff] %vm389, 0.0
        %409 = vst.msk [vmem:[#allocation4 + $0x98] sm:$0xff] %vm389, 0.0
        %410 = vst.msk [vmem:[#allocation4 + $0xa0] sm:$0xff] %vm389, 0.0
        %411 = vst.msk [vmem:[#allocation4 + $0xa8] sm:$0xff] %vm389, 0.0
        %412 = vst.msk [vmem:[#allocation4 + $0xb0] sm:$0xff] %vm389, 0.0
        %413 = vst.msk [vmem:[#allocation4 + $0xb8] sm:$0xff] %vm389, 0.0
        %414 = vst.msk [vmem:[#allocation4 + $0xc0] sm:$0xff] %vm389, 0.0
        %415 = vst.msk [vmem:[#allocation4 + $0xc8] sm:$0xff] %vm389, 0.0
        %416 = vst.msk [vmem:[#allocation4 + $0xd0] sm:$0xff] %vm389, 0.0
        %417 = vst.msk [vmem:[#allocation4 + $0xd8] sm:$0xff] %vm389, 0.0
        %418 = vst.msk [vmem:[#allocation4 + $0xe0] sm:$0xff] %vm389, 0.0
        %419 = vst.msk [vmem:[#allocation4 + $0xe8] sm:$0xff] %vm389, 0.0
        %420 = vst.msk [vmem:[#allocation4 + $0xf0] sm:$0xff] %vm389, 0.0
        %421 = vst.msk [vmem:[#allocation4 + $0xf8] sm:$0xff] %vm389, 0.0
      $region44: #{core_forward.11} parent=39 // pred_fallthru
        _
      %v422 = vld [vmem:[%s291] sm:$0xff]
      %v423 = vld [vmem:[%s291 + $0x8] sm:$0xff]
      %v424 = vld [vmem:[%s291 + $0x10] sm:$0xff]
      %v425 = vld [vmem:[%s291 + $0x18] sm:$0xff]
      %v426 = vld [vmem:[%s291 + $0x20] sm:$0xff]
      %v427 = vld [vmem:[%s291 + $0x28] sm:$0xff]
      %v428 = vld [vmem:[%s291 + $0x30] sm:$0xff]
      %v429 = vld [vmem:[%s291 + $0x38] sm:$0xff]
      %v430 = vld [vmem:[%s295] sm:$0x1]
      %431 = vset.pattern.permute.xlu0 0
      %432 = vperm.xlu0 %431, %v422
      %v433 = vpop.permute.xlu0 %432
      %434 = vset.pattern.permute.xlu0 0
      %435 = vperm.xlu0 %434, %v423
      %v436 = vpop.permute.xlu0 %435
      %437 = vset.pattern.permute.xlu0 0
      %438 = vperm.xlu0 %437, %v424
      %v439 = vpop.permute.xlu0 %438
      %440 = vset.pattern.permute.xlu0 0
      %441 = vperm.xlu0 %440, %v425
      %v442 = vpop.permute.xlu0 %441
      %443 = vset.pattern.permute.xlu0 0
      %444 = vperm.xlu0 %443, %v426
      %v445 = vpop.permute.xlu0 %444
      %446 = vset.pattern.permute.xlu0 0
      %447 = vperm.xlu0 %446, %v427
      %v448 = vpop.permute.xlu0 %447
      %449 = vset.pattern.permute.xlu0 0
      %450 = vperm.xlu0 %449, %v428
      %v451 = vpop.permute.xlu0 %450
      %452 = vset.pattern.permute.xlu0 0
      %453 = vperm.xlu0 %452, %v429
      %v454 = vpop.permute.xlu0 %453
      %v455 = vperm.slane %v430, 0
      %vm456 = vcmp.eq.s32.totalorder %v433, %v455
      %vm457 = vcmp.eq.s32.totalorder %v436, %v455
      %vm458 = vcmp.eq.s32.totalorder %v439, %v455
      %vm459 = vcmp.eq.s32.totalorder %v442, %v455
      %vm460 = vcmp.eq.s32.totalorder %v445, %v455
      %vm461 = vcmp.eq.s32.totalorder %v448, %v455
      %vm462 = vcmp.eq.s32.totalorder %v451, %v455
      %vm463 = vcmp.eq.s32.totalorder %v454, %v455
      %v464 = vld [vmem:[%s300] sm:$0xf]
      %v465 = vld [vmem:[%s300 + $0x4] sm:$0xf]
      %v466 = vld [vmem:[%s300 + $0x8] sm:$0xf]
      %v467 = vld [vmem:[%s300 + $0xc] sm:$0xf]
      %v468 = vld [vmem:[%s300 + $0x10] sm:$0xf]
      %v469 = vld [vmem:[%s300 + $0x14] sm:$0xf]
      %v470 = vld [vmem:[%s300 + $0x18] sm:$0xf]
      %v471 = vld [vmem:[%s300 + $0x1c] sm:$0xf]
      %v472 = vld [vmem:[%s306] sm:$0xf]
      %v473 = vld [vmem:[%s306 + $0x4] sm:$0xf]
      %v474 = vld [vmem:[%s306 + $0x8] sm:$0xf]
      %v475 = vld [vmem:[%s306 + $0xc] sm:$0xf]
      %v476 = vld [vmem:[%s306 + $0x10] sm:$0xf]
      %v477 = vld [vmem:[%s306 + $0x14] sm:$0xf]
      %v478 = vld [vmem:[%s306 + $0x18] sm:$0xf]
      %v479 = vld [vmem:[%s306 + $0x1c] sm:$0xf]
      %v480 = vld [vmem:[%s306 + $0x20] sm:$0xf]
      %v481 = vld [vmem:[%s306 + $0x24] sm:$0xf]
      %v482 = vld [vmem:[%s306 + $0x28] sm:$0xf]
      %v483 = vld [vmem:[%s306 + $0x2c] sm:$0xf]
      %v484 = vld [vmem:[%s306 + $0x30] sm:$0xf]
      %v485 = vld [vmem:[%s306 + $0x34] sm:$0xf]
      %v486 = vld [vmem:[%s306 + $0x38] sm:$0xf]
      %v487 = vld [vmem:[%s306 + $0x3c] sm:$0xf]
      %v488 = vld [vmem:[%s312] sm:$0xf]
      %v489 = vld [vmem:[%s312 + $0x4] sm:$0xf]
      %v490 = vld [vmem:[%s312 + $0x8] sm:$0xf]
      %v491 = vld [vmem:[%s312 + $0xc] sm:$0xf]
      %v492 = vld [vmem:[%s312 + $0x10] sm:$0xf]
      %v493 = vld [vmem:[%s312 + $0x14] sm:$0xf]
      %v494 = vld [vmem:[%s312 + $0x18] sm:$0xf]
      %v495 = vld [vmem:[%s312 + $0x1c] sm:$0xf]
      %v496 = vld [vmem:[%s312 + $0x20] sm:$0xf]
      %v497 = vld [vmem:[%s312 + $0x24] sm:$0xf]
      %v498 = vld [vmem:[%s312 + $0x28] sm:$0xf]
      %v499 = vld [vmem:[%s312 + $0x2c] sm:$0xf]
      %v500 = vld [vmem:[%s312 + $0x30] sm:$0xf]
      %v501 = vld [vmem:[%s312 + $0x34] sm:$0xf]
      %v502 = vld [vmem:[%s312 + $0x38] sm:$0xf]
      %v503 = vld [vmem:[%s312 + $0x3c] sm:$0xf]
      %v512 = vunpack.c.l.b16 %v464
      %v513 = vunpack.c.l.b16 %v465
      %v514 = vunpack.c.l.b16 %v466
      %v515 = vunpack.c.l.b16 %v467
      %v516 = vunpack.c.l.b16 %v468
      %v517 = vunpack.c.l.b16 %v469
      %v518 = vunpack.c.l.b16 %v470
      %v519 = vunpack.c.l.b16 %v471
      %v520 = vpack.c.b16 %v513, %v512
      %v521 = vpack.c.b16 %v515, %v514
      %v522 = vpack.c.b16 %v517, %v516
      %v523 = vpack.c.b16 %v519, %v518
      %v540 = vunpack.c.l.b16 %v472
      %v541 = vunpack.c.l.b16 %v473
      %v542 = vunpack.c.l.b16 %v474
      %v543 = vunpack.c.l.b16 %v475
      %v544 = vunpack.c.l.b16 %v476
      %v545 = vunpack.c.l.b16 %v477
      %v546 = vunpack.c.l.b16 %v478
      %v547 = vunpack.c.l.b16 %v479
      %v548 = vunpack.c.l.b16 %v480
      %v549 = vunpack.c.l.b16 %v481
      %v550 = vunpack.c.l.b16 %v482
      %v551 = vunpack.c.l.b16 %v483
      %v552 = vunpack.c.l.b16 %v484
      %v553 = vunpack.c.l.b16 %v485
      %v554 = vunpack.c.l.b16 %v486
      %v555 = vunpack.c.l.b16 %v487
      %v556 = vpack.c.b16 %v541, %v540
      %v557 = vpack.c.b16 %v543, %v542
      %v558 = vpack.c.b16 %v545, %v544
      %v559 = vpack.c.b16 %v547, %v546
      %v560 = vpack.c.b16 %v549, %v548
      %v561 = vpack.c.b16 %v551, %v550
      %v562 = vpack.c.b16 %v553, %v552
      %v563 = vpack.c.b16 %v555, %v554
      %vm564 = vcmask 130048
      %v566 = vsel %vm564, %v520, 0
      %v569 = vsel %vm564, %v521, 0
      %v572 = vsel %vm564, %v522, 0
      %v575 = vsel %vm564, %v523, 0
      %v578 = vsel %vm564, %v556, 0
      %v581 = vsel %vm564, %v557, 0
      %v584 = vsel %vm564, %v558, 0
      %v587 = vsel %vm564, %v559, 0
      %v590 = vsel %vm564, %v560, 0
      %v593 = vsel %vm564, %v561, 0
      %v596 = vsel %vm564, %v562, 0
      %v599 = vsel %vm564, %v563, 0
      %601 = vmatpush.bf16.xpose.msra.mxu0 %v599
      %602 = vmatpush.bf16.xpose.msra.mxu0 %v596
      %603 = vmatpush.bf16.xpose.msra.mxu0 %v593
      %604 = vmatpush.bf16.xpose.msra.mxu0 %v590
      %605 = vmatpush.bf16.xpose.msra.mxu0 %v587
      %606 = vmatpush.bf16.xpose.msra.mxu0 %v584
      %607 = vmatpush.bf16.xpose.msra.mxu0 %v581
      %608 = vmatpush.bf16.xpose.msra.mxu0 %v578
      %609 = vmatmul.bf16.gmra.mxu0 %v566
      %v610 = vpop.f32.mrf.mxu0
      %v611 = vadd.f32 0.0, %v610
      %v612 = vpop.f32.mrf.mxu0
      %v613 = vadd.f32 0.0, %v612
      %614 = vmatmul.bf16.gmra.mxu0 %v569
      %v615 = vpop.f32.mrf.mxu0
      %v616 = vadd.f32 0.0, %v615
      %v617 = vpop.f32.mrf.mxu0
      %v618 = vadd.f32 0.0, %v617
      %619 = vmatmul.bf16.gmra.mxu0 %v572
      %v620 = vpop.f32.mrf.mxu0
      %v621 = vadd.f32 0.0, %v620
      %v622 = vpop.f32.mrf.mxu0
      %v623 = vadd.f32 0.0, %v622
      %624 = vmatmul.bf16.gmra.mxu0 %v575
      %v625 = vpop.f32.mrf.mxu0
      %v626 = vadd.f32 0.0, %v625
      %v627 = vpop.f32.mrf.mxu0
      %v628 = vadd.f32 0.0, %v627
      %629 = vdwg.mxu0
      %v630 = vmul.f32 %v611, 0.25
      %v631 = vmul.f32 %v613, 0.25
      %v632 = vmul.f32 %v616, 0.25
      %v633 = vmul.f32 %v618, 0.25
      %v634 = vmul.f32 %v621, 0.25
      %v635 = vmul.f32 %v623, 0.25
      %v636 = vmul.f32 %v626, 0.25
      %v637 = vmul.f32 %v628, 0.25
      %v638 = vsel %vm456, %v630, -1e+30
      %v639 = vsel %vm457, %v631, -1e+30
      %v640 = vsel %vm458, %v632, -1e+30
      %v641 = vsel %vm459, %v633, -1e+30
      %v642 = vsel %vm460, %v634, -1e+30
      %v643 = vsel %vm461, %v635, -1e+30
      %v644 = vsel %vm462, %v636, -1e+30
      %v645 = vsel %vm463, %v637, -1e+30
      %v646 = vld [vmem:[#allocation2] sm:$0xff]
      %v647 = vld [vmem:[#allocation2 + $0x8] sm:$0xff]
      %v648 = vld [vmem:[#allocation2 + $0x10] sm:$0xff]
      %v649 = vld [vmem:[#allocation2 + $0x18] sm:$0xff]
      %v650 = vld [vmem:[#allocation2 + $0x20] sm:$0xff]
      %v651 = vld [vmem:[#allocation2 + $0x28] sm:$0xff]
      %v652 = vld [vmem:[#allocation2 + $0x30] sm:$0xff]
      %v653 = vld [vmem:[#allocation2 + $0x38] sm:$0xff]
      %654 = vmax.xlane.f32.xlu0 %v638
      %v655 = vpop.xlane.xlu0 %654
      %656 = vmax.xlane.f32.xlu0 %v639
      %v657 = vpop.xlane.xlu0 %656
      %658 = vmax.xlane.f32.xlu0 %v640
      %v659 = vpop.xlane.xlu0 %658
      %660 = vmax.xlane.f32.xlu0 %v641
      %v661 = vpop.xlane.xlu0 %660
      %662 = vmax.xlane.f32.xlu0 %v642
      %v663 = vpop.xlane.xlu0 %662
      %664 = vmax.xlane.f32.xlu0 %v643
      %v665 = vpop.xlane.xlu0 %664
      %666 = vmax.xlane.f32.xlu0 %v644
      %v667 = vpop.xlane.xlu0 %666
      %668 = vmax.xlane.f32.xlu0 %v645
      %v669 = vpop.xlane.xlu0 %668
      %v670 = vmax.f32 %v646, %v655
      %v671 = vmax.f32 %v647, %v657
      %v672 = vmax.f32 %v648, %v659
      %v673 = vmax.f32 %v649, %v661
      %v674 = vmax.f32 %v650, %v663
      %v675 = vmax.f32 %v651, %v665
      %v676 = vmax.f32 %v652, %v667
      %v677 = vmax.f32 %v653, %v669
      %v678 = vsub.f32 %v646, %v670
      %v679 = vsub.f32 %v647, %v671
      %v680 = vsub.f32 %v648, %v672
      %v681 = vsub.f32 %v649, %v673
      %v682 = vsub.f32 %v650, %v674
      %v683 = vsub.f32 %v651, %v675
      %v684 = vsub.f32 %v652, %v676
      %v685 = vsub.f32 %v653, %v677
      %v686 = vmul.f32 %v678, 1.442695
      %v687 = vpow.pop %v686
      %v688 = vmul.f32 %v679, 1.442695
      %v689 = vpow.pop %v688
      %v690 = vmul.f32 %v680, 1.442695
      %v691 = vpow.pop %v690
      %v692 = vmul.f32 %v681, 1.442695
      %v693 = vpow.pop %v692
      %v694 = vmul.f32 %v682, 1.442695
      %v695 = vpow.pop %v694
      %v696 = vmul.f32 %v683, 1.442695
      %v697 = vpow.pop %v696
      %v698 = vmul.f32 %v684, 1.442695
      %v699 = vpow.pop %v698
      %v700 = vmul.f32 %v685, 1.442695
      %v701 = vpow.pop %v700
      %703 = vset.pattern.permute.xlu0 0
      %704 = vperm.xlu0 %703, %v670
      %v705 = vpop.permute.xlu0 %704
      %708 = vset.pattern.permute.xlu0 0
      %709 = vperm.xlu0 %708, %v671
      %v710 = vpop.permute.xlu0 %709
      %713 = vset.pattern.permute.xlu0 0
      %714 = vperm.xlu0 %713, %v672
      %v715 = vpop.permute.xlu0 %714
      %718 = vset.pattern.permute.xlu0 0
      %719 = vperm.xlu0 %718, %v673
      %v720 = vpop.permute.xlu0 %719
      %723 = vset.pattern.permute.xlu0 0
      %724 = vperm.xlu0 %723, %v674
      %v725 = vpop.permute.xlu0 %724
      %728 = vset.pattern.permute.xlu0 0
      %729 = vperm.xlu0 %728, %v675
      %v730 = vpop.permute.xlu0 %729
      %733 = vset.pattern.permute.xlu0 0
      %734 = vperm.xlu0 %733, %v676
      %v735 = vpop.permute.xlu0 %734
      %738 = vset.pattern.permute.xlu0 0
      %739 = vperm.xlu0 %738, %v677
      %v740 = vpop.permute.xlu0 %739
      %v742 = vsub.f32 %v638, %v705
      %v743 = vsub.f32 %v639, %v710
      %v744 = vsub.f32 %v640, %v715
      %v745 = vsub.f32 %v641, %v720
      %v746 = vsub.f32 %v642, %v725
      %v747 = vsub.f32 %v643, %v730
      %v748 = vsub.f32 %v644, %v735
      %v749 = vsub.f32 %v645, %v740
      %v750 = vmul.f32 %v742, 1.442695
      %v751 = vpow.pop %v750
      %v752 = vmul.f32 %v743, 1.442695
      %v753 = vpow.pop %v752
      %v754 = vmul.f32 %v744, 1.442695
      %v755 = vpow.pop %v754
      %v756 = vmul.f32 %v745, 1.442695
      %v757 = vpow.pop %v756
      %v758 = vmul.f32 %v746, 1.442695
      %v759 = vpow.pop %v758
      %v760 = vmul.f32 %v747, 1.442695
      %v761 = vpow.pop %v760
      %v762 = vmul.f32 %v748, 1.442695
      %v763 = vpow.pop %v762
      %v764 = vmul.f32 %v749, 1.442695
      %v765 = vpow.pop %v764
      %v766 = vld [vmem:[#allocation3] sm:$0xff]
      %v767 = vld [vmem:[#allocation3 + $0x8] sm:$0xff]
      %v768 = vld [vmem:[#allocation3 + $0x10] sm:$0xff]
      %v769 = vld [vmem:[#allocation3 + $0x18] sm:$0xff]
      %v770 = vld [vmem:[#allocation3 + $0x20] sm:$0xff]
      %v771 = vld [vmem:[#allocation3 + $0x28] sm:$0xff]
      %v772 = vld [vmem:[#allocation3 + $0x30] sm:$0xff]
      %v773 = vld [vmem:[#allocation3 + $0x38] sm:$0xff]
      %v774 = vmul.f32 %v687, %v766
      %v775 = vmul.f32 %v689, %v767
      %v776 = vmul.f32 %v691, %v768
      %v777 = vmul.f32 %v693, %v769
      %v778 = vmul.f32 %v695, %v770
      %v779 = vmul.f32 %v697, %v771
      %v780 = vmul.f32 %v699, %v772
      %v781 = vmul.f32 %v701, %v773
      %782 = vadd.xlane.f32.xlu0 %v751
      %v783 = vpop.xlane.xlu0 %782
      %784 = vadd.xlane.f32.xlu0 %v753
      %v785 = vpop.xlane.xlu0 %784
      %786 = vadd.xlane.f32.xlu0 %v755
      %v787 = vpop.xlane.xlu0 %786
      %788 = vadd.xlane.f32.xlu0 %v757
      %v789 = vpop.xlane.xlu0 %788
      %790 = vadd.xlane.f32.xlu0 %v759
      %v791 = vpop.xlane.xlu0 %790
      %792 = vadd.xlane.f32.xlu0 %v761
      %v793 = vpop.xlane.xlu0 %792
      %794 = vadd.xlane.f32.xlu0 %v763
      %v795 = vpop.xlane.xlu0 %794
      %796 = vadd.xlane.f32.xlu0 %v765
      %v797 = vpop.xlane.xlu0 %796
      %v798 = vadd.f32 %v774, %v783
      %v799 = vadd.f32 %v775, %v785
      %v800 = vadd.f32 %v776, %v787
      %v801 = vadd.f32 %v777, %v789
      %v802 = vadd.f32 %v778, %v791
      %v803 = vadd.f32 %v779, %v793
      %v804 = vadd.f32 %v780, %v795
      %v805 = vadd.f32 %v781, %v797
      %vm806 = vcmask 7168
      %807 = vst.msk [vmem:[#allocation3] sm:$0xff] %vm806, %v798
      %808 = vst.msk [vmem:[#allocation3 + $0x8] sm:$0xff] %vm806, %v799
      %809 = vst.msk [vmem:[#allocation3 + $0x10] sm:$0xff] %vm806, %v800
      %810 = vst.msk [vmem:[#allocation3 + $0x18] sm:$0xff] %vm806, %v801
      %811 = vst.msk [vmem:[#allocation3 + $0x20] sm:$0xff] %vm806, %v802
      %812 = vst.msk [vmem:[#allocation3 + $0x28] sm:$0xff] %vm806, %v803
      %813 = vst.msk [vmem:[#allocation3 + $0x30] sm:$0xff] %vm806, %v804
      %814 = vst.msk [vmem:[#allocation3 + $0x38] sm:$0xff] %vm806, %v805
      %v815 = vld [vmem:[#allocation4] sm:$0xff]
      %v816 = vld [vmem:[#allocation4 + $0x8] sm:$0xff]
      %v817 = vld [vmem:[#allocation4 + $0x10] sm:$0xff]
      %v818 = vld [vmem:[#allocation4 + $0x18] sm:$0xff]
      %v819 = vld [vmem:[#allocation4 + $0x20] sm:$0xff]
      %v820 = vld [vmem:[#allocation4 + $0x28] sm:$0xff]
      %v821 = vld [vmem:[#allocation4 + $0x30] sm:$0xff]
      %v822 = vld [vmem:[#allocation4 + $0x38] sm:$0xff]
      %824 = vset.pattern.permute.xlu0 0
      %825 = vperm.xlu0 %824, %v687
      %v826 = vpop.permute.xlu0 %825
      %829 = vset.pattern.permute.xlu0 0
      %830 = vperm.xlu0 %829, %v689
      %v831 = vpop.permute.xlu0 %830
      %834 = vset.pattern.permute.xlu0 0
      %835 = vperm.xlu0 %834, %v691
      %v836 = vpop.permute.xlu0 %835
      %839 = vset.pattern.permute.xlu0 0
      %840 = vperm.xlu0 %839, %v693
      %v841 = vpop.permute.xlu0 %840
      %844 = vset.pattern.permute.xlu0 0
      %845 = vperm.xlu0 %844, %v695
      %v846 = vpop.permute.xlu0 %845
      %849 = vset.pattern.permute.xlu0 0
      %850 = vperm.xlu0 %849, %v697
      %v851 = vpop.permute.xlu0 %850
      %854 = vset.pattern.permute.xlu0 0
      %855 = vperm.xlu0 %854, %v699
      %v856 = vpop.permute.xlu0 %855
      %859 = vset.pattern.permute.xlu0 0
      %860 = vperm.xlu0 %859, %v701
      %v861 = vpop.permute.xlu0 %860
      %v863 = vmul.f32 %v826, %v815
      %v864 = vmul.f32 %v831, %v816
      %v865 = vmul.f32 %v836, %v817
      %v866 = vmul.f32 %v841, %v818
      %v867 = vmul.f32 %v846, %v819
      %v868 = vmul.f32 %v851, %v820
      %v869 = vmul.f32 %v856, %v821
      %v870 = vmul.f32 %v861, %v822
      %v871 = vpack.c.bf16 %v753, %v751
      %v872 = vpack.c.bf16 %v757, %v755
      %v873 = vpack.c.bf16 %v761, %v759
      %v874 = vpack.c.bf16 %v765, %v763
      %v891 = vunpack.c.l.b16 %v488
      %v892 = vunpack.c.l.b16 %v489
      %v893 = vunpack.c.l.b16 %v490
      %v894 = vunpack.c.l.b16 %v491
      %v895 = vunpack.c.l.b16 %v492
      %v896 = vunpack.c.l.b16 %v493
      %v897 = vunpack.c.l.b16 %v494
      %v898 = vunpack.c.l.b16 %v495
      %v899 = vunpack.c.l.b16 %v496
      %v900 = vunpack.c.l.b16 %v497
      %v901 = vunpack.c.l.b16 %v498
      %v902 = vunpack.c.l.b16 %v499
      %v903 = vunpack.c.l.b16 %v500
      %v904 = vunpack.c.l.b16 %v501
      %v905 = vunpack.c.l.b16 %v502
      %v906 = vunpack.c.l.b16 %v503
      %v907 = vpack.c.b16 %v892, %v891
      %v908 = vpack.c.b16 %v894, %v893
      %v909 = vpack.c.b16 %v896, %v895
      %v910 = vpack.c.b16 %v898, %v897
      %v911 = vpack.c.b16 %v900, %v899
      %v912 = vpack.c.b16 %v902, %v901
      %v913 = vpack.c.b16 %v904, %v903
      %v914 = vpack.c.b16 %v906, %v905
      %923 = vmatpush.bf16.msra.mxu0 %v914
      %924 = vmatpush.bf16.msra.mxu0 %v913
      %925 = vmatpush.bf16.msra.mxu0 %v912
      %926 = vmatpush.bf16.msra.mxu0 %v911
      %927 = vmatpush.bf16.msra.mxu0 %v910
      %928 = vmatpush.bf16.msra.mxu0 %v909
      %929 = vmatpush.bf16.msra.mxu0 %v908
      %930 = vmatpush.bf16.msra.mxu0 %v907
      %931 = vmatmul.bf16.gmra.mxu0 %v871
      %v932 = vpop.f32.mrf.mxu0
      %v933 = vadd.f32 0.0, %v932
      %v934 = vpop.f32.mrf.mxu0
      %v935 = vadd.f32 0.0, %v934
      %936 = vmatmul.bf16.gmra.mxu0 %v872
      %v937 = vpop.f32.mrf.mxu0
      %v938 = vadd.f32 0.0, %v937
      %v939 = vpop.f32.mrf.mxu0
      %v940 = vadd.f32 0.0, %v939
      %941 = vmatmul.bf16.gmra.mxu0 %v873
      %v942 = vpop.f32.mrf.mxu0
      %v943 = vadd.f32 0.0, %v942
      %v944 = vpop.f32.mrf.mxu0
      %v945 = vadd.f32 0.0, %v944
      %946 = vmatmul.bf16.gmra.mxu0 %v874
      %v947 = vpop.f32.mrf.mxu0
      %v948 = vadd.f32 0.0, %v947
      %v949 = vpop.f32.mrf.mxu0
      %v950 = vadd.f32 0.0, %v949
      %951 = vdwg.mxu0
      %v952 = vadd.f32 %v863, %v933
      %v953 = vadd.f32 %v864, %v935
      %v954 = vadd.f32 %v865, %v938
      %v955 = vadd.f32 %v866, %v940
      %v956 = vadd.f32 %v867, %v943
      %v957 = vadd.f32 %v868, %v945
      %v958 = vadd.f32 %v869, %v948
      %v959 = vadd.f32 %v870, %v950
      %960 = vst.msk [vmem:[#allocation4] sm:$0xff] %vm564, %v952
      %961 = vst.msk [vmem:[#allocation4 + $0x8] sm:$0xff] %vm564, %v953
      %962 = vst.msk [vmem:[#allocation4 + $0x10] sm:$0xff] %vm564, %v954
      %963 = vst.msk [vmem:[#allocation4 + $0x18] sm:$0xff] %vm564, %v955
      %964 = vst.msk [vmem:[#allocation4 + $0x20] sm:$0xff] %vm564, %v956
      %965 = vst.msk [vmem:[#allocation4 + $0x28] sm:$0xff] %vm564, %v957
      %966 = vst.msk [vmem:[#allocation4 + $0x30] sm:$0xff] %vm564, %v958
      %967 = vst.msk [vmem:[#allocation4 + $0x38] sm:$0xff] %vm564, %v959
      %968 = vst.msk [vmem:[#allocation2] sm:$0xff] %vm806, %v670
      %969 = vst.msk [vmem:[#allocation2 + $0x8] sm:$0xff] %vm806, %v671
      %970 = vst.msk [vmem:[#allocation2 + $0x10] sm:$0xff] %vm806, %v672
      %971 = vst.msk [vmem:[#allocation2 + $0x18] sm:$0xff] %vm806, %v673
      %972 = vst.msk [vmem:[#allocation2 + $0x20] sm:$0xff] %vm806, %v674
      %973 = vst.msk [vmem:[#allocation2 + $0x28] sm:$0xff] %vm806, %v675
      %974 = vst.msk [vmem:[#allocation2 + $0x30] sm:$0xff] %vm806, %v676
      %975 = vst.msk [vmem:[#allocation2 + $0x38] sm:$0xff] %vm806, %v677
      %976 = vrot.lane.b32.xlu0 %v520, 112
      %v977 = vpop.permute.xlu0 %976
      %978 = vrot.lane.b32.xlu0 %v521, 112
      %v979 = vpop.permute.xlu0 %978
      %980 = vrot.lane.b32.xlu0 %v522, 112
      %v981 = vpop.permute.xlu0 %980
      %982 = vrot.lane.b32.xlu0 %v523, 112
      %v983 = vpop.permute.xlu0 %982
      %984 = vrot.lane.b32.xlu0 %v556, 112
      %v985 = vpop.permute.xlu0 %984
      %986 = vrot.lane.b32.xlu0 %v557, 112
      %v987 = vpop.permute.xlu0 %986
      %988 = vrot.lane.b32.xlu0 %v558, 112
      %v989 = vpop.permute.xlu0 %988
      %990 = vrot.lane.b32.xlu0 %v559, 112
      %v991 = vpop.permute.xlu0 %990
      %992 = vrot.lane.b32.xlu0 %v560, 112
      %v993 = vpop.permute.xlu0 %992
      %994 = vrot.lane.b32.xlu0 %v561, 112
      %v995 = vpop.permute.xlu0 %994
      %996 = vrot.lane.b32.xlu0 %v562, 112
      %v997 = vpop.permute.xlu0 %996
      %998 = vrot.lane.b32.xlu0 %v563, 112
      %v999 = vpop.permute.xlu0 %998
      %v1001 = vsel %vm564, %v977, 0
      %v1004 = vsel %vm564, %v979, 0
      %v1007 = vsel %vm564, %v981, 0
      %v1010 = vsel %vm564, %v983, 0
      %v1013 = vsel %vm564, %v985, 0
      %v1016 = vsel %vm564, %v987, 0
      %v1019 = vsel %vm564, %v989, 0
      %v1022 = vsel %vm564, %v991, 0
      %v1025 = vsel %vm564, %v993, 0
      %v1028 = vsel %vm564, %v995, 0
      %v1031 = vsel %vm564, %v997, 0
      %v1034 = vsel %vm564, %v999, 0
      %1036 = vmatpush.bf16.xpose.msra.mxu0 %v1034
      %1037 = vmatpush.bf16.xpose.msra.mxu0 %v1031
      %1038 = vmatpush.bf16.xpose.msra.mxu0 %v1028
      %1039 = vmatpush.bf16.xpose.msra.mxu0 %v1025
      %1040 = vmatpush.bf16.xpose.msra.mxu0 %v1022
      %1041 = vmatpush.bf16.xpose.msra.mxu0 %v1019
      %1042 = vmatpush.bf16.xpose.msra.mxu0 %v1016
      %1043 = vmatpush.bf16.xpose.msra.mxu0 %v1013
      %1044 = vmatmul.bf16.gmra.mxu0 %v1001
      %v1045 = vpop.f32.mrf.mxu0
      %v1046 = vadd.f32 0.0, %v1045
      %v1047 = vpop.f32.mrf.mxu0
      %v1048 = vadd.f32 0.0, %v1047
      %1049 = vmatmul.bf16.gmra.mxu0 %v1004
      %v1050 = vpop.f32.mrf.mxu0
      %v1051 = vadd.f32 0.0, %v1050
      %v1052 = vpop.f32.mrf.mxu0
      %v1053 = vadd.f32 0.0, %v1052
      %1054 = vmatmul.bf16.gmra.mxu0 %v1007
      %v1055 = vpop.f32.mrf.mxu0
      %v1056 = vadd.f32 0.0, %v1055
      %v1057 = vpop.f32.mrf.mxu0
      %v1058 = vadd.f32 0.0, %v1057
      %1059 = vmatmul.bf16.gmra.mxu0 %v1010
      %v1060 = vpop.f32.mrf.mxu0
      %v1061 = vadd.f32 0.0, %v1060
      %v1062 = vpop.f32.mrf.mxu0
      %v1063 = vadd.f32 0.0, %v1062
      %1064 = vdwg.mxu0
      %v1065 = vmul.f32 %v1046, 0.25
      %v1066 = vmul.f32 %v1048, 0.25
      %v1067 = vmul.f32 %v1051, 0.25
      %v1068 = vmul.f32 %v1053, 0.25
      %v1069 = vmul.f32 %v1056, 0.25
      %v1070 = vmul.f32 %v1058, 0.25
      %v1071 = vmul.f32 %v1061, 0.25
      %v1072 = vmul.f32 %v1063, 0.25
      %v1073 = vsel %vm456, %v1065, -1e+30
      %v1074 = vsel %vm457, %v1066, -1e+30
      %v1075 = vsel %vm458, %v1067, -1e+30
      %v1076 = vsel %vm459, %v1068, -1e+30
      %v1077 = vsel %vm460, %v1069, -1e+30
      %v1078 = vsel %vm461, %v1070, -1e+30
      %v1079 = vsel %vm462, %v1071, -1e+30
      %v1080 = vsel %vm463, %v1072, -1e+30
      %s1081 = scalar_lea.vmem [#allocation2], 64
      %v1082 = vld [vmem:[%s1081] sm:$0xff]
      %v1083 = vld [vmem:[%s1081 + $0x8] sm:$0xff]
      %v1084 = vld [vmem:[%s1081 + $0x10] sm:$0xff]
      %v1085 = vld [vmem:[%s1081 + $0x18] sm:$0xff]
      %v1086 = vld [vmem:[%s1081 + $0x20] sm:$0xff]
      %v1087 = vld [vmem:[%s1081 + $0x28] sm:$0xff]
      %v1088 = vld [vmem:[%s1081 + $0x30] sm:$0xff]
      %v1089 = vld [vmem:[%s1081 + $0x38] sm:$0xff]
      %1090 = vmax.xlane.f32.xlu0 %v1073
      %v1091 = vpop.xlane.xlu0 %1090
      %1092 = vmax.xlane.f32.xlu0 %v1074
      %v1093 = vpop.xlane.xlu0 %1092
      %1094 = vmax.xlane.f32.xlu0 %v1075
      %v1095 = vpop.xlane.xlu0 %1094
      %1096 = vmax.xlane.f32.xlu0 %v1076
      %v1097 = vpop.xlane.xlu0 %1096
      %1098 = vmax.xlane.f32.xlu0 %v1077
      %v1099 = vpop.xlane.xlu0 %1098
      %1100 = vmax.xlane.f32.xlu0 %v1078
      %v1101 = vpop.xlane.xlu0 %1100
      %1102 = vmax.xlane.f32.xlu0 %v1079
      %v1103 = vpop.xlane.xlu0 %1102
      %1104 = vmax.xlane.f32.xlu0 %v1080
      %v1105 = vpop.xlane.xlu0 %1104
      %v1106 = vmax.f32 %v1082, %v1091
      %v1107 = vmax.f32 %v1083, %v1093
      %v1108 = vmax.f32 %v1084, %v1095
      %v1109 = vmax.f32 %v1085, %v1097
      %v1110 = vmax.f32 %v1086, %v1099
      %v1111 = vmax.f32 %v1087, %v1101
      %v1112 = vmax.f32 %v1088, %v1103
      %v1113 = vmax.f32 %v1089, %v1105
      %v1114 = vsub.f32 %v1082, %v1106
      %v1115 = vsub.f32 %v1083, %v1107
      %v1116 = vsub.f32 %v1084, %v1108
      %v1117 = vsub.f32 %v1085, %v1109
      %v1118 = vsub.f32 %v1086, %v1110
      %v1119 = vsub.f32 %v1087, %v1111
      %v1120 = vsub.f32 %v1088, %v1112
      %v1121 = vsub.f32 %v1089, %v1113
      %v1122 = vmul.f32 %v1114, 1.442695
      %v1123 = vpow.pop %v1122
      %v1124 = vmul.f32 %v1115, 1.442695
      %v1125 = vpow.pop %v1124
      %v1126 = vmul.f32 %v1116, 1.442695
      %v1127 = vpow.pop %v1126
      %v1128 = vmul.f32 %v1117, 1.442695
      %v1129 = vpow.pop %v1128
      %v1130 = vmul.f32 %v1118, 1.442695
      %v1131 = vpow.pop %v1130
      %v1132 = vmul.f32 %v1119, 1.442695
      %v1133 = vpow.pop %v1132
      %v1134 = vmul.f32 %v1120, 1.442695
      %v1135 = vpow.pop %v1134
      %v1136 = vmul.f32 %v1121, 1.442695
      %v1137 = vpow.pop %v1136
      %1139 = vset.pattern.permute.xlu0 0
      %1140 = vperm.xlu0 %1139, %v1106
      %v1141 = vpop.permute.xlu0 %1140
      %1144 = vset.pattern.permute.xlu0 0
      %1145 = vperm.xlu0 %1144, %v1107
      %v1146 = vpop.permute.xlu0 %1145
      %1149 = vset.pattern.permute.xlu0 0
      %1150 = vperm.xlu0 %1149, %v1108
      %v1151 = vpop.permute.xlu0 %1150
      %1154 = vset.pattern.permute.xlu0 0
      %1155 = vperm.xlu0 %1154, %v1109
      %v1156 = vpop.permute.xlu0 %1155
      %1159 = vset.pattern.permute.xlu0 0
      %1160 = vperm.xlu0 %1159, %v1110
      %v1161 = vpop.permute.xlu0 %1160
      %1164 = vset.pattern.permute.xlu0 0
      %1165 = vperm.xlu0 %1164, %v1111
      %v1166 = vpop.permute.xlu0 %1165
      %1169 = vset.pattern.permute.xlu0 0
      %1170 = vperm.xlu0 %1169, %v1112
      %v1171 = vpop.permute.xlu0 %1170
      %1174 = vset.pattern.permute.xlu0 0
      %1175 = vperm.xlu0 %1174, %v1113
      %v1176 = vpop.permute.xlu0 %1175
      %v1178 = vsub.f32 %v1073, %v1141
      %v1179 = vsub.f32 %v1074, %v1146
      %v1180 = vsub.f32 %v1075, %v1151
      %v1181 = vsub.f32 %v1076, %v1156
      %v1182 = vsub.f32 %v1077, %v1161
      %v1183 = vsub.f32 %v1078, %v1166
      %v1184 = vsub.f32 %v1079, %v1171
      %v1185 = vsub.f32 %v1080, %v1176
      %v1186 = vmul.f32 %v1178, 1.442695
      %v1187 = vpow.pop %v1186
      %v1188 = vmul.f32 %v1179, 1.442695
      %v1189 = vpow.pop %v1188
      %v1190 = vmul.f32 %v1180, 1.442695
      %v1191 = vpow.pop %v1190
      %v1192 = vmul.f32 %v1181, 1.442695
      %v1193 = vpow.pop %v1192
      %v1194 = vmul.f32 %v1182, 1.442695
      %v1195 = vpow.pop %v1194
      %v1196 = vmul.f32 %v1183, 1.442695
      %v1197 = vpow.pop %v1196
      %v1198 = vmul.f32 %v1184, 1.442695
      %v1199 = vpow.pop %v1198
      %v1200 = vmul.f32 %v1185, 1.442695
      %v1201 = vpow.pop %v1200
      %s1202 = scalar_lea.vmem [#allocation3], 64
      %v1203 = vld [vmem:[%s1202] sm:$0xff]
      %v1204 = vld [vmem:[%s1202 + $0x8] sm:$0xff]
      %v1205 = vld [vmem:[%s1202 + $0x10] sm:$0xff]
      %v1206 = vld [vmem:[%s1202 + $0x18] sm:$0xff]
      %v1207 = vld [vmem:[%s1202 + $0x20] sm:$0xff]
      %v1208 = vld [vmem:[%s1202 + $0x28] sm:$0xff]
      %v1209 = vld [vmem:[%s1202 + $0x30] sm:$0xff]
      %v1210 = vld [vmem:[%s1202 + $0x38] sm:$0xff]
      %v1211 = vmul.f32 %v1123, %v1203
      %v1212 = vmul.f32 %v1125, %v1204
      %v1213 = vmul.f32 %v1127, %v1205
      %v1214 = vmul.f32 %v1129, %v1206
      %v1215 = vmul.f32 %v1131, %v1207
      %v1216 = vmul.f32 %v1133, %v1208
      %v1217 = vmul.f32 %v1135, %v1209
      %v1218 = vmul.f32 %v1137, %v1210
      %1219 = vadd.xlane.f32.xlu0 %v1187
      %v1220 = vpop.xlane.xlu0 %1219
      %1221 = vadd.xlane.f32.xlu0 %v1189
      %v1222 = vpop.xlane.xlu0 %1221
      %1223 = vadd.xlane.f32.xlu0 %v1191
      %v1224 = vpop.xlane.xlu0 %1223
      %1225 = vadd.xlane.f32.xlu0 %v1193
      %v1226 = vpop.xlane.xlu0 %1225
      %1227 = vadd.xlane.f32.xlu0 %v1195
      %v1228 = vpop.xlane.xlu0 %1227
      %1229 = vadd.xlane.f32.xlu0 %v1197
      %v1230 = vpop.xlane.xlu0 %1229
      %1231 = vadd.xlane.f32.xlu0 %v1199
      %v1232 = vpop.xlane.xlu0 %1231
      %1233 = vadd.xlane.f32.xlu0 %v1201
      %v1234 = vpop.xlane.xlu0 %1233
      %v1235 = vadd.f32 %v1211, %v1220
      %v1236 = vadd.f32 %v1212, %v1222
      %v1237 = vadd.f32 %v1213, %v1224
      %v1238 = vadd.f32 %v1214, %v1226
      %v1239 = vadd.f32 %v1215, %v1228
      %v1240 = vadd.f32 %v1216, %v1230
      %v1241 = vadd.f32 %v1217, %v1232
      %v1242 = vadd.f32 %v1218, %v1234
      %1243 = vst.msk [vmem:[%s1202] sm:$0xff] %vm806, %v1235
      %1244 = vst.msk [vmem:[%s1202 + $0x8] sm:$0xff] %vm806, %v1236
      %1245 = vst.msk [vmem:[%s1202 + $0x10] sm:$0xff] %vm806, %v1237
      %1246 = vst.msk [vmem:[%s1202 + $0x18] sm:$0xff] %vm806, %v1238
      %1247 = vst.msk [vmem:[%s1202 + $0x20] sm:$0xff] %vm806, %v1239
      %1248 = vst.msk [vmem:[%s1202 + $0x28] sm:$0xff] %vm806, %v1240
      %1249 = vst.msk [vmem:[%s1202 + $0x30] sm:$0xff] %vm806, %v1241
      %1250 = vst.msk [vmem:[%s1202 + $0x38] sm:$0xff] %vm806, %v1242
      %s1251 = scalar_lea.vmem [#allocation4], 64
      %v1252 = vld [vmem:[%s1251] sm:$0xff]
      %v1253 = vld [vmem:[%s1251 + $0x8] sm:$0xff]
      %v1254 = vld [vmem:[%s1251 + $0x10] sm:$0xff]
      %v1255 = vld [vmem:[%s1251 + $0x18] sm:$0xff]
      %v1256 = vld [vmem:[%s1251 + $0x20] sm:$0xff]
      %v1257 = vld [vmem:[%s1251 + $0x28] sm:$0xff]
      %v1258 = vld [vmem:[%s1251 + $0x30] sm:$0xff]
      %v1259 = vld [vmem:[%s1251 + $0x38] sm:$0xff]
      %1261 = vset.pattern.permute.xlu0 0
      %1262 = vperm.xlu0 %1261, %v1123
      %v1263 = vpop.permute.xlu0 %1262
      %1266 = vset.pattern.permute.xlu0 0
      %1267 = vperm.xlu0 %1266, %v1125
      %v1268 = vpop.permute.xlu0 %1267
      %1271 = vset.pattern.permute.xlu0 0
      %1272 = vperm.xlu0 %1271, %v1127
      %v1273 = vpop.permute.xlu0 %1272
      %1276 = vset.pattern.permute.xlu0 0
      %1277 = vperm.xlu0 %1276, %v1129
      %v1278 = vpop.permute.xlu0 %1277
      %1281 = vset.pattern.permute.xlu0 0
      %1282 = vperm.xlu0 %1281, %v1131
      %v1283 = vpop.permute.xlu0 %1282
      %1286 = vset.pattern.permute.xlu0 0
      %1287 = vperm.xlu0 %1286, %v1133
      %v1288 = vpop.permute.xlu0 %1287
      %1291 = vset.pattern.permute.xlu0 0
      %1292 = vperm.xlu0 %1291, %v1135
      %v1293 = vpop.permute.xlu0 %1292
      %1296 = vset.pattern.permute.xlu0 0
      %1297 = vperm.xlu0 %1296, %v1137
      %v1298 = vpop.permute.xlu0 %1297
      %v1300 = vmul.f32 %v1263, %v1252
      %v1301 = vmul.f32 %v1268, %v1253
      %v1302 = vmul.f32 %v1273, %v1254
      %v1303 = vmul.f32 %v1278, %v1255
      %v1304 = vmul.f32 %v1283, %v1256
      %v1305 = vmul.f32 %v1288, %v1257
      %v1306 = vmul.f32 %v1293, %v1258
      %v1307 = vmul.f32 %v1298, %v1259
      %v1308 = vpack.c.bf16 %v1189, %v1187
      %v1309 = vpack.c.bf16 %v1193, %v1191
      %v1310 = vpack.c.bf16 %v1197, %v1195
      %v1311 = vpack.c.bf16 %v1201, %v1199
      %1312 = vrot.lane.b32.xlu0 %v907, 112
      %v1313 = vpop.permute.xlu0 %1312
      %1314 = vrot.lane.b32.xlu0 %v908, 112
      %v1315 = vpop.permute.xlu0 %1314
      %1316 = vrot.lane.b32.xlu0 %v909, 112
      %v1317 = vpop.permute.xlu0 %1316
      %1318 = vrot.lane.b32.xlu0 %v910, 112
      %v1319 = vpop.permute.xlu0 %1318
      %1320 = vrot.lane.b32.xlu0 %v911, 112
      %v1321 = vpop.permute.xlu0 %1320
      %1322 = vrot.lane.b32.xlu0 %v912, 112
      %v1323 = vpop.permute.xlu0 %1322
      %1324 = vrot.lane.b32.xlu0 %v913, 112
      %v1325 = vpop.permute.xlu0 %1324
      %1326 = vrot.lane.b32.xlu0 %v914, 112
      %v1327 = vpop.permute.xlu0 %1326
      %1336 = vmatpush.bf16.msra.mxu0 %v1327
      %1337 = vmatpush.bf16.msra.mxu0 %v1325
      %1338 = vmatpush.bf16.msra.mxu0 %v1323
      %1339 = vmatpush.bf16.msra.mxu0 %v1321
      %1340 = vmatpush.bf16.msra.mxu0 %v1319
      %1341 = vmatpush.bf16.msra.mxu0 %v1317
      %1342 = vmatpush.bf16.msra.mxu0 %v1315
      %1343 = vmatpush.bf16.msra.mxu0 %v1313
      %1344 = vmatmul.bf16.gmra.mxu0 %v1308
      %v1345 = vpop.f32.mrf.mxu0
      %v1346 = vadd.f32 0.0, %v1345
      %v1347 = vpop.f32.mrf.mxu0
      %v1348 = vadd.f32 0.0, %v1347
      %1349 = vmatmul.bf16.gmra.mxu0 %v1309
      %v1350 = vpop.f32.mrf.mxu0
      %v1351 = vadd.f32 0.0, %v1350
      %v1352 = vpop.f32.mrf.mxu0
      %v1353 = vadd.f32 0.0, %v1352
      %1354 = vmatmul.bf16.gmra.mxu0 %v1310
      %v1355 = vpop.f32.mrf.mxu0
      %v1356 = vadd.f32 0.0, %v1355
      %v1357 = vpop.f32.mrf.mxu0
      %v1358 = vadd.f32 0.0, %v1357
      %1359 = vmatmul.bf16.gmra.mxu0 %v1311
      %v1360 = vpop.f32.mrf.mxu0
      %v1361 = vadd.f32 0.0, %v1360
      %v1362 = vpop.f32.mrf.mxu0
      %v1363 = vadd.f32 0.0, %v1362
      %1364 = vdwg.mxu0
      %v1365 = vadd.f32 %v1300, %v1346
      %v1366 = vadd.f32 %v1301, %v1348
      %v1367 = vadd.f32 %v1302, %v1351
      %v1368 = vadd.f32 %v1303, %v1353
      %v1369 = vadd.f32 %v1304, %v1356
      %v1370 = vadd.f32 %v1305, %v1358
      %v1371 = vadd.f32 %v1306, %v1361
      %v1372 = vadd.f32 %v1307, %v1363
      %1373 = vst.msk [vmem:[%s1251] sm:$0xff] %vm564, %v1365
      %1374 = vst.msk [vmem:[%s1251 + $0x8] sm:$0xff] %vm564, %v1366
      %1375 = vst.msk [vmem:[%s1251 + $0x10] sm:$0xff] %vm564, %v1367
      %1376 = vst.msk [vmem:[%s1251 + $0x18] sm:$0xff] %vm564, %v1368
      %1377 = vst.msk [vmem:[%s1251 + $0x20] sm:$0xff] %vm564, %v1369
      %1378 = vst.msk [vmem:[%s1251 + $0x28] sm:$0xff] %vm564, %v1370
      %1379 = vst.msk [vmem:[%s1251 + $0x30] sm:$0xff] %vm564, %v1371
      %1380 = vst.msk [vmem:[%s1251 + $0x38] sm:$0xff] %vm564, %v1372
      %1381 = vst.msk [vmem:[%s1081] sm:$0xff] %vm806, %v1106
      %1382 = vst.msk [vmem:[%s1081 + $0x8] sm:$0xff] %vm806, %v1107
      %1383 = vst.msk [vmem:[%s1081 + $0x10] sm:$0xff] %vm806, %v1108
      %1384 = vst.msk [vmem:[%s1081 + $0x18] sm:$0xff] %vm806, %v1109
      %1385 = vst.msk [vmem:[%s1081 + $0x20] sm:$0xff] %vm806, %v1110
      %1386 = vst.msk [vmem:[%s1081 + $0x28] sm:$0xff] %vm806, %v1111
      %1387 = vst.msk [vmem:[%s1081 + $0x30] sm:$0xff] %vm806, %v1112
      %1388 = vst.msk [vmem:[%s1081 + $0x38] sm:$0xff] %vm806, %v1113
      %1389 = vrot.lane.b32.xlu0 %v520, 96
      %v1390 = vpop.permute.xlu0 %1389
      %1391 = vrot.lane.b32.xlu0 %v521, 96
      %v1392 = vpop.permute.xlu0 %1391
      %1393 = vrot.lane.b32.xlu0 %v522, 96
      %v1394 = vpop.permute.xlu0 %1393
      %1395 = vrot.lane.b32.xlu0 %v523, 96
      %v1396 = vpop.permute.xlu0 %1395
      %1397 = vrot.lane.b32.xlu0 %v556, 96
      %v1398 = vpop.permute.xlu0 %1397
      %1399 = vrot.lane.b32.xlu0 %v557, 96
      %v1400 = vpop.permute.xlu0 %1399
      %1401 = vrot.lane.b32.xlu0 %v558, 96
      %v1402 = vpop.permute.xlu0 %1401
      %1403 = vrot.lane.b32.xlu0 %v559, 96
      %v1404 = vpop.permute.xlu0 %1403
      %1405 = vrot.lane.b32.xlu0 %v560, 96
      %v1406 = vpop.permute.xlu0 %1405
      %1407 = vrot.lane.b32.xlu0 %v561, 96
      %v1408 = vpop.permute.xlu0 %1407
      %1409 = vrot.lane.b32.xlu0 %v562, 96
      %v1410 = vpop.permute.xlu0 %1409
      %1411 = vrot.lane.b32.xlu0 %v563, 96
      %v1412 = vpop.permute.xlu0 %1411
      %v1414 = vsel %vm564, %v1390, 0
      %v1417 = vsel %vm564, %v1392, 0
      %v1420 = vsel %vm564, %v1394, 0
      %v1423 = vsel %vm564, %v1396, 0
      %v1426 = vsel %vm564, %v1398, 0
      %v1429 = vsel %vm564, %v1400, 0
      %v1432 = vsel %vm564, %v1402, 0
      %v1435 = vsel %vm564, %v1404, 0
      %v1438 = vsel %vm564, %v1406, 0
      %v1441 = vsel %vm564, %v1408, 0
      %v1444 = vsel %vm564, %v1410, 0
      %v1447 = vsel %vm564, %v1412, 0
      %1449 = vmatpush.bf16.xpose.msra.mxu0 %v1447
      %1450 = vmatpush.bf16.xpose.msra.mxu0 %v1444
      %1451 = vmatpush.bf16.xpose.msra.mxu0 %v1441
      %1452 = vmatpush.bf16.xpose.msra.mxu0 %v1438
      %1453 = vmatpush.bf16.xpose.msra.mxu0 %v1435
      %1454 = vmatpush.bf16.xpose.msra.mxu0 %v1432
      %1455 = vmatpush.bf16.xpose.msra.mxu0 %v1429
      %1456 = vmatpush.bf16.xpose.msra.mxu0 %v1426
      %1457 = vmatmul.bf16.gmra.mxu0 %v1414
      %v1458 = vpop.f32.mrf.mxu0
      %v1459 = vadd.f32 0.0, %v1458
      %v1460 = vpop.f32.mrf.mxu0
      %v1461 = vadd.f32 0.0, %v1460
      %1462 = vmatmul.bf16.gmra.mxu0 %v1417
      %v1463 = vpop.f32.mrf.mxu0
      %v1464 = vadd.f32 0.0, %v1463
      %v1465 = vpop.f32.mrf.mxu0
      %v1466 = vadd.f32 0.0, %v1465
      %1467 = vmatmul.bf16.gmra.mxu0 %v1420
      %v1468 = vpop.f32.mrf.mxu0
      %v1469 = vadd.f32 0.0, %v1468
      %v1470 = vpop.f32.mrf.mxu0
      %v1471 = vadd.f32 0.0, %v1470
      %1472 = vmatmul.bf16.gmra.mxu0 %v1423
      %v1473 = vpop.f32.mrf.mxu0
      %v1474 = vadd.f32 0.0, %v1473
      %v1475 = vpop.f32.mrf.mxu0
      %v1476 = vadd.f32 0.0, %v1475
      %1477 = vdwg.mxu0
      %v1478 = vmul.f32 %v1459, 0.25
      %v1479 = vmul.f32 %v1461, 0.25
      %v1480 = vmul.f32 %v1464, 0.25
      %v1481 = vmul.f32 %v1466, 0.25
      %v1482 = vmul.f32 %v1469, 0.25
      %v1483 = vmul.f32 %v1471, 0.25
      %v1484 = vmul.f32 %v1474, 0.25
      %v1485 = vmul.f32 %v1476, 0.25
      %v1486 = vsel %vm456, %v1478, -1e+30
      %v1487 = vsel %vm457, %v1479, -1e+30
      %v1488 = vsel %vm458, %v1480, -1e+30
      %v1489 = vsel %vm459, %v1481, -1e+30
      %v1490 = vsel %vm460, %v1482, -1e+30
      %v1491 = vsel %vm461, %v1483, -1e+30
      %v1492 = vsel %vm462, %v1484, -1e+30
      %v1493 = vsel %vm463, %v1485, -1e+30
      %s1494 = scalar_lea.vmem [#allocation2], 128
      %v1495 = vld [vmem:[%s1494] sm:$0xff]
      %v1496 = vld [vmem:[%s1494 + $0x8] sm:$0xff]
      %v1497 = vld [vmem:[%s1494 + $0x10] sm:$0xff]
      %v1498 = vld [vmem:[%s1494 + $0x18] sm:$0xff]
      %v1499 = vld [vmem:[%s1494 + $0x20] sm:$0xff]
      %v1500 = vld [vmem:[%s1494 + $0x28] sm:$0xff]
      %v1501 = vld [vmem:[%s1494 + $0x30] sm:$0xff]
      %v1502 = vld [vmem:[%s1494 + $0x38] sm:$0xff]
      %1503 = vmax.xlane.f32.xlu0 %v1486
      %v1504 = vpop.xlane.xlu0 %1503
      %1505 = vmax.xlane.f32.xlu0 %v1487
      %v1506 = vpop.xlane.xlu0 %1505
      %1507 = vmax.xlane.f32.xlu0 %v1488
      %v1508 = vpop.xlane.xlu0 %1507
      %1509 = vmax.xlane.f32.xlu0 %v1489
      %v1510 = vpop.xlane.xlu0 %1509
      %1511 = vmax.xlane.f32.xlu0 %v1490
      %v1512 = vpop.xlane.xlu0 %1511
      %1513 = vmax.xlane.f32.xlu0 %v1491
      %v1514 = vpop.xlane.xlu0 %1513
      %1515 = vmax.xlane.f32.xlu0 %v1492
      %v1516 = vpop.xlane.xlu0 %1515
      %1517 = vmax.xlane.f32.xlu0 %v1493
      %v1518 = vpop.xlane.xlu0 %1517
      %v1519 = vmax.f32 %v1495, %v1504
      %v1520 = vmax.f32 %v1496, %v1506
      %v1521 = vmax.f32 %v1497, %v1508
      %v1522 = vmax.f32 %v1498, %v1510
      %v1523 = vmax.f32 %v1499, %v1512
      %v1524 = vmax.f32 %v1500, %v1514
      %v1525 = vmax.f32 %v1501, %v1516
      %v1526 = vmax.f32 %v1502, %v1518
      %v1527 = vsub.f32 %v1495, %v1519
      %v1528 = vsub.f32 %v1496, %v1520
      %v1529 = vsub.f32 %v1497, %v1521
      %v1530 = vsub.f32 %v1498, %v1522
      %v1531 = vsub.f32 %v1499, %v1523
      %v1532 = vsub.f32 %v1500, %v1524
      %v1533 = vsub.f32 %v1501, %v1525
      %v1534 = vsub.f32 %v1502, %v1526
      %v1535 = vmul.f32 %v1527, 1.442695
      %v1536 = vpow.pop %v1535
      %v1537 = vmul.f32 %v1528, 1.442695
      %v1538 = vpow.pop %v1537
      %v1539 = vmul.f32 %v1529, 1.442695
      %v1540 = vpow.pop %v1539
      %v1541 = vmul.f32 %v1530, 1.442695
      %v1542 = vpow.pop %v1541
      %v1543 = vmul.f32 %v1531, 1.442695
      %v1544 = vpow.pop %v1543
      %v1545 = vmul.f32 %v1532, 1.442695
      %v1546 = vpow.pop %v1545
      %v1547 = vmul.f32 %v1533, 1.442695
      %v1548 = vpow.pop %v1547
      %v1549 = vmul.f32 %v1534, 1.442695
      %v1550 = vpow.pop %v1549
      %1552 = vset.pattern.permute.xlu0 0
      %1553 = vperm.xlu0 %1552, %v1519
      %v1554 = vpop.permute.xlu0 %1553
      %1557 = vset.pattern.permute.xlu0 0
      %1558 = vperm.xlu0 %1557, %v1520
      %v1559 = vpop.permute.xlu0 %1558
      %1562 = vset.pattern.permute.xlu0 0
      %1563 = vperm.xlu0 %1562, %v1521
      %v1564 = vpop.permute.xlu0 %1563
      %1567 = vset.pattern.permute.xlu0 0
      %1568 = vperm.xlu0 %1567, %v1522
      %v1569 = vpop.permute.xlu0 %1568
      %1572 = vset.pattern.permute.xlu0 0
      %1573 = vperm.xlu0 %1572, %v1523
      %v1574 = vpop.permute.xlu0 %1573
      %1577 = vset.pattern.permute.xlu0 0
      %1578 = vperm.xlu0 %1577, %v1524
      %v1579 = vpop.permute.xlu0 %1578
      %1582 = vset.pattern.permute.xlu0 0
      %1583 = vperm.xlu0 %1582, %v1525
      %v1584 = vpop.permute.xlu0 %1583
      %1587 = vset.pattern.permute.xlu0 0
      %1588 = vperm.xlu0 %1587, %v1526
      %v1589 = vpop.permute.xlu0 %1588
      %v1591 = vsub.f32 %v1486, %v1554
      %v1592 = vsub.f32 %v1487, %v1559
      %v1593 = vsub.f32 %v1488, %v1564
      %v1594 = vsub.f32 %v1489, %v1569
      %v1595 = vsub.f32 %v1490, %v1574
      %v1596 = vsub.f32 %v1491, %v1579
      %v1597 = vsub.f32 %v1492, %v1584
      %v1598 = vsub.f32 %v1493, %v1589
      %v1599 = vmul.f32 %v1591, 1.442695
      %v1600 = vpow.pop %v1599
      %v1601 = vmul.f32 %v1592, 1.442695
      %v1602 = vpow.pop %v1601
      %v1603 = vmul.f32 %v1593, 1.442695
      %v1604 = vpow.pop %v1603
      %v1605 = vmul.f32 %v1594, 1.442695
      %v1606 = vpow.pop %v1605
      %v1607 = vmul.f32 %v1595, 1.442695
      %v1608 = vpow.pop %v1607
      %v1609 = vmul.f32 %v1596, 1.442695
      %v1610 = vpow.pop %v1609
      %v1611 = vmul.f32 %v1597, 1.442695
      %v1612 = vpow.pop %v1611
      %v1613 = vmul.f32 %v1598, 1.442695
      %v1614 = vpow.pop %v1613
      %s1615 = scalar_lea.vmem [#allocation3], 128
      %v1616 = vld [vmem:[%s1615] sm:$0xff]
      %v1617 = vld [vmem:[%s1615 + $0x8] sm:$0xff]
      %v1618 = vld [vmem:[%s1615 + $0x10] sm:$0xff]
      %v1619 = vld [vmem:[%s1615 + $0x18] sm:$0xff]
      %v1620 = vld [vmem:[%s1615 + $0x20] sm:$0xff]
      %v1621 = vld [vmem:[%s1615 + $0x28] sm:$0xff]
      %v1622 = vld [vmem:[%s1615 + $0x30] sm:$0xff]
      %v1623 = vld [vmem:[%s1615 + $0x38] sm:$0xff]
      %v1624 = vmul.f32 %v1536, %v1616
      %v1625 = vmul.f32 %v1538, %v1617
      %v1626 = vmul.f32 %v1540, %v1618
      %v1627 = vmul.f32 %v1542, %v1619
      %v1628 = vmul.f32 %v1544, %v1620
      %v1629 = vmul.f32 %v1546, %v1621
      %v1630 = vmul.f32 %v1548, %v1622
      %v1631 = vmul.f32 %v1550, %v1623
      %1632 = vadd.xlane.f32.xlu0 %v1600
      %v1633 = vpop.xlane.xlu0 %1632
      %1634 = vadd.xlane.f32.xlu0 %v1602
      %v1635 = vpop.xlane.xlu0 %1634
      %1636 = vadd.xlane.f32.xlu0 %v1604
      %v1637 = vpop.xlane.xlu0 %1636
      %1638 = vadd.xlane.f32.xlu0 %v1606
      %v1639 = vpop.xlane.xlu0 %1638
      %1640 = vadd.xlane.f32.xlu0 %v1608
      %v1641 = vpop.xlane.xlu0 %1640
      %1642 = vadd.xlane.f32.xlu0 %v1610
      %v1643 = vpop.xlane.xlu0 %1642
      %1644 = vadd.xlane.f32.xlu0 %v1612
      %v1645 = vpop.xlane.xlu0 %1644
      %1646 = vadd.xlane.f32.xlu0 %v1614
      %v1647 = vpop.xlane.xlu0 %1646
      %v1648 = vadd.f32 %v1624, %v1633
      %v1649 = vadd.f32 %v1625, %v1635
      %v1650 = vadd.f32 %v1626, %v1637
      %v1651 = vadd.f32 %v1627, %v1639
      %v1652 = vadd.f32 %v1628, %v1641
      %v1653 = vadd.f32 %v1629, %v1643
      %v1654 = vadd.f32 %v1630, %v1645
      %v1655 = vadd.f32 %v1631, %v1647
      %1656 = vst.msk [vmem:[%s1615] sm:$0xff] %vm806, %v1648
      %1657 = vst.msk [vmem:[%s1615 + $0x8] sm:$0xff] %vm806, %v1649
      %1658 = vst.msk [vmem:[%s1615 + $0x10] sm:$0xff] %vm806, %v1650
      %1659 = vst.msk [vmem:[%s1615 + $0x18] sm:$0xff] %vm806, %v1651
      %1660 = vst.msk [vmem:[%s1615 + $0x20] sm:$0xff] %vm806, %v1652
      %1661 = vst.msk [vmem:[%s1615 + $0x28] sm:$0xff] %vm806, %v1653
      %1662 = vst.msk [vmem:[%s1615 + $0x30] sm:$0xff] %vm806, %v1654
      %1663 = vst.msk [vmem:[%s1615 + $0x38] sm:$0xff] %vm806, %v1655
      %s1664 = scalar_lea.vmem [#allocation4], 128
      %v1665 = vld [vmem:[%s1664] sm:$0xff]
      %v1666 = vld [vmem:[%s1664 + $0x8] sm:$0xff]
      %v1667 = vld [vmem:[%s1664 + $0x10] sm:$0xff]
      %v1668 = vld [vmem:[%s1664 + $0x18] sm:$0xff]
      %v1669 = vld [vmem:[%s1664 + $0x20] sm:$0xff]
      %v1670 = vld [vmem:[%s1664 + $0x28] sm:$0xff]
      %v1671 = vld [vmem:[%s1664 + $0x30] sm:$0xff]
      %v1672 = vld [vmem:[%s1664 + $0x38] sm:$0xff]
      %1674 = vset.pattern.permute.xlu0 0
      %1675 = vperm.xlu0 %1674, %v1536
      %v1676 = vpop.permute.xlu0 %1675
      %1679 = vset.pattern.permute.xlu0 0
      %1680 = vperm.xlu0 %1679, %v1538
      %v1681 = vpop.permute.xlu0 %1680
      %1684 = vset.pattern.permute.xlu0 0
      %1685 = vperm.xlu0 %1684, %v1540
      %v1686 = vpop.permute.xlu0 %1685
      %1689 = vset.pattern.permute.xlu0 0
      %1690 = vperm.xlu0 %1689, %v1542
      %v1691 = vpop.permute.xlu0 %1690
      %1694 = vset.pattern.permute.xlu0 0
      %1695 = vperm.xlu0 %1694, %v1544
      %v1696 = vpop.permute.xlu0 %1695
      %1699 = vset.pattern.permute.xlu0 0
      %1700 = vperm.xlu0 %1699, %v1546
      %v1701 = vpop.permute.xlu0 %1700
      %1704 = vset.pattern.permute.xlu0 0
      %1705 = vperm.xlu0 %1704, %v1548
      %v1706 = vpop.permute.xlu0 %1705
      %1709 = vset.pattern.permute.xlu0 0
      %1710 = vperm.xlu0 %1709, %v1550
      %v1711 = vpop.permute.xlu0 %1710
      %v1713 = vmul.f32 %v1676, %v1665
      %v1714 = vmul.f32 %v1681, %v1666
      %v1715 = vmul.f32 %v1686, %v1667
      %v1716 = vmul.f32 %v1691, %v1668
      %v1717 = vmul.f32 %v1696, %v1669
      %v1718 = vmul.f32 %v1701, %v1670
      %v1719 = vmul.f32 %v1706, %v1671
      %v1720 = vmul.f32 %v1711, %v1672
      %v1721 = vpack.c.bf16 %v1602, %v1600
      %v1722 = vpack.c.bf16 %v1606, %v1604
      %v1723 = vpack.c.bf16 %v1610, %v1608
      %v1724 = vpack.c.bf16 %v1614, %v1612
      %1725 = vrot.lane.b32.xlu0 %v907, 96
      %v1726 = vpop.permute.xlu0 %1725
      %1727 = vrot.lane.b32.xlu0 %v908, 96
      %v1728 = vpop.permute.xlu0 %1727
      %1729 = vrot.lane.b32.xlu0 %v909, 96
      %v1730 = vpop.permute.xlu0 %1729
      %1731 = vrot.lane.b32.xlu0 %v910, 96
      %v1732 = vpop.permute.xlu0 %1731
      %1733 = vrot.lane.b32.xlu0 %v911, 96
      %v1734 = vpop.permute.xlu0 %1733
      %1735 = vrot.lane.b32.xlu0 %v912, 96
      %v1736 = vpop.permute.xlu0 %1735
      %1737 = vrot.lane.b32.xlu0 %v913, 96
      %v1738 = vpop.permute.xlu0 %1737
      %1739 = vrot.lane.b32.xlu0 %v914, 96
      %v1740 = vpop.permute.xlu0 %1739
      %1749 = vmatpush.bf16.msra.mxu0 %v1740
      %1750 = vmatpush.bf16.msra.mxu0 %v1738
      %1751 = vmatpush.bf16.msra.mxu0 %v1736
      %1752 = vmatpush.bf16.msra.mxu0 %v1734
      %1753 = vmatpush.bf16.msra.mxu0 %v1732
      %1754 = vmatpush.bf16.msra.mxu0 %v1730
      %1755 = vmatpush.bf16.msra.mxu0 %v1728
      %1756 = vmatpush.bf16.msra.mxu0 %v1726
      %1757 = vmatmul.bf16.gmra.mxu0 %v1721
      %v1758 = vpop.f32.mrf.mxu0
      %v1759 = vadd.f32 0.0, %v1758
      %v1760 = vpop.f32.mrf.mxu0
      %v1761 = vadd.f32 0.0, %v1760
      %1762 = vmatmul.bf16.gmra.mxu0 %v1722
      %v1763 = vpop.f32.mrf.mxu0
      %v1764 = vadd.f32 0.0, %v1763
      %v1765 = vpop.f32.mrf.mxu0
      %v1766 = vadd.f32 0.0, %v1765
      %1767 = vmatmul.bf16.gmra.mxu0 %v1723
      %v1768 = vpop.f32.mrf.mxu0
      %v1769 = vadd.f32 0.0, %v1768
      %v1770 = vpop.f32.mrf.mxu0
      %v1771 = vadd.f32 0.0, %v1770
      %1772 = vmatmul.bf16.gmra.mxu0 %v1724
      %v1773 = vpop.f32.mrf.mxu0
      %v1774 = vadd.f32 0.0, %v1773
      %v1775 = vpop.f32.mrf.mxu0
      %v1776 = vadd.f32 0.0, %v1775
      %1777 = vdwg.mxu0
      %v1778 = vadd.f32 %v1713, %v1759
      %v1779 = vadd.f32 %v1714, %v1761
      %v1780 = vadd.f32 %v1715, %v1764
      %v1781 = vadd.f32 %v1716, %v1766
      %v1782 = vadd.f32 %v1717, %v1769
      %v1783 = vadd.f32 %v1718, %v1771
      %v1784 = vadd.f32 %v1719, %v1774
      %v1785 = vadd.f32 %v1720, %v1776
      %1786 = vst.msk [vmem:[%s1664] sm:$0xff] %vm564, %v1778
      %1787 = vst.msk [vmem:[%s1664 + $0x8] sm:$0xff] %vm564, %v1779
      %1788 = vst.msk [vmem:[%s1664 + $0x10] sm:$0xff] %vm564, %v1780
      %1789 = vst.msk [vmem:[%s1664 + $0x18] sm:$0xff] %vm564, %v1781
      %1790 = vst.msk [vmem:[%s1664 + $0x20] sm:$0xff] %vm564, %v1782
      %1791 = vst.msk [vmem:[%s1664 + $0x28] sm:$0xff] %vm564, %v1783
      %1792 = vst.msk [vmem:[%s1664 + $0x30] sm:$0xff] %vm564, %v1784
      %1793 = vst.msk [vmem:[%s1664 + $0x38] sm:$0xff] %vm564, %v1785
      %1794 = vst.msk [vmem:[%s1494] sm:$0xff] %vm806, %v1519
      %1795 = vst.msk [vmem:[%s1494 + $0x8] sm:$0xff] %vm806, %v1520
      %1796 = vst.msk [vmem:[%s1494 + $0x10] sm:$0xff] %vm806, %v1521
      %1797 = vst.msk [vmem:[%s1494 + $0x18] sm:$0xff] %vm806, %v1522
      %1798 = vst.msk [vmem:[%s1494 + $0x20] sm:$0xff] %vm806, %v1523
      %1799 = vst.msk [vmem:[%s1494 + $0x28] sm:$0xff] %vm806, %v1524
      %1800 = vst.msk [vmem:[%s1494 + $0x30] sm:$0xff] %vm806, %v1525
      %1801 = vst.msk [vmem:[%s1494 + $0x38] sm:$0xff] %vm806, %v1526
      %1802 = vrot.lane.b32.xlu0 %v520, 80
      %v1803 = vpop.permute.xlu0 %1802
      %1804 = vrot.lane.b32.xlu0 %v521, 80
      %v1805 = vpop.permute.xlu0 %1804
      %1806 = vrot.lane.b32.xlu0 %v522, 80
      %v1807 = vpop.permute.xlu0 %1806
      %1808 = vrot.lane.b32.xlu0 %v523, 80
      %v1809 = vpop.permute.xlu0 %1808
      %1810 = vrot.lane.b32.xlu0 %v556, 80
      %v1811 = vpop.permute.xlu0 %1810
      %1812 = vrot.lane.b32.xlu0 %v557, 80
      %v1813 = vpop.permute.xlu0 %1812
      %1814 = vrot.lane.b32.xlu0 %v558, 80
      %v1815 = vpop.permute.xlu0 %1814
      %1816 = vrot.lane.b32.xlu0 %v559, 80
      %v1817 = vpop.permute.xlu0 %1816
      %1818 = vrot.lane.b32.xlu0 %v560, 80
      %v1819 = vpop.permute.xlu0 %1818
      %1820 = vrot.lane.b32.xlu0 %v561, 80
      %v1821 = vpop.permute.xlu0 %1820
      %1822 = vrot.lane.b32.xlu0 %v562, 80
      %v1823 = vpop.permute.xlu0 %1822
      %1824 = vrot.lane.b32.xlu0 %v563, 80
      %v1825 = vpop.permute.xlu0 %1824
      %v1827 = vsel %vm564, %v1803, 0
      %v1830 = vsel %vm564, %v1805, 0
      %v1833 = vsel %vm564, %v1807, 0
      %v1836 = vsel %vm564, %v1809, 0
      %v1839 = vsel %vm564, %v1811, 0
      %v1842 = vsel %vm564, %v1813, 0
      %v1845 = vsel %vm564, %v1815, 0
      %v1848 = vsel %vm564, %v1817, 0
      %v1851 = vsel %vm564, %v1819, 0
      %v1854 = vsel %vm564, %v1821, 0
      %v1857 = vsel %vm564, %v1823, 0
      %v1860 = vsel %vm564, %v1825, 0
      %1862 = vmatpush.bf16.xpose.msra.mxu0 %v1860
      %1863 = vmatpush.bf16.xpose.msra.mxu0 %v1857
      %1864 = vmatpush.bf16.xpose.msra.mxu0 %v1854
      %1865 = vmatpush.bf16.xpose.msra.mxu0 %v1851
      %1866 = vmatpush.bf16.xpose.msra.mxu0 %v1848
      %1867 = vmatpush.bf16.xpose.msra.mxu0 %v1845
      %1868 = vmatpush.bf16.xpose.msra.mxu0 %v1842
      %1869 = vmatpush.bf16.xpose.msra.mxu0 %v1839
      %1870 = vmatmul.bf16.gmra.mxu0 %v1827
      %v1871 = vpop.f32.mrf.mxu0
      %v1872 = vadd.f32 0.0, %v1871
      %v1873 = vpop.f32.mrf.mxu0
      %v1874 = vadd.f32 0.0, %v1873
      %1875 = vmatmul.bf16.gmra.mxu0 %v1830
      %v1876 = vpop.f32.mrf.mxu0
      %v1877 = vadd.f32 0.0, %v1876
      %v1878 = vpop.f32.mrf.mxu0
      %v1879 = vadd.f32 0.0, %v1878
      %1880 = vmatmul.bf16.gmra.mxu0 %v1833
      %v1881 = vpop.f32.mrf.mxu0
      %v1882 = vadd.f32 0.0, %v1881
      %v1883 = vpop.f32.mrf.mxu0
      %v1884 = vadd.f32 0.0, %v1883
      %1885 = vmatmul.bf16.gmra.mxu0 %v1836
      %v1886 = vpop.f32.mrf.mxu0
      %v1887 = vadd.f32 0.0, %v1886
      %v1888 = vpop.f32.mrf.mxu0
      %v1889 = vadd.f32 0.0, %v1888
      %1890 = vdwg.mxu0
      %v1891 = vmul.f32 %v1872, 0.25
      %v1892 = vmul.f32 %v1874, 0.25
      %v1893 = vmul.f32 %v1877, 0.25
      %v1894 = vmul.f32 %v1879, 0.25
      %v1895 = vmul.f32 %v1882, 0.25
      %v1896 = vmul.f32 %v1884, 0.25
      %v1897 = vmul.f32 %v1887, 0.25
      %v1898 = vmul.f32 %v1889, 0.25
      %v1899 = vsel %vm456, %v1891, -1e+30
      %v1900 = vsel %vm457, %v1892, -1e+30
      %v1901 = vsel %vm458, %v1893, -1e+30
      %v1902 = vsel %vm459, %v1894, -1e+30
      %v1903 = vsel %vm460, %v1895, -1e+30
      %v1904 = vsel %vm461, %v1896, -1e+30
      %v1905 = vsel %vm462, %v1897, -1e+30
      %v1906 = vsel %vm463, %v1898, -1e+30
      %s1907 = scalar_lea.vmem [#allocation2], 192
      %v1908 = vld [vmem:[%s1907] sm:$0xff]
      %v1909 = vld [vmem:[%s1907 + $0x8] sm:$0xff]
      %v1910 = vld [vmem:[%s1907 + $0x10] sm:$0xff]
      %v1911 = vld [vmem:[%s1907 + $0x18] sm:$0xff]
      %v1912 = vld [vmem:[%s1907 + $0x20] sm:$0xff]
      %v1913 = vld [vmem:[%s1907 + $0x28] sm:$0xff]
      %v1914 = vld [vmem:[%s1907 + $0x30] sm:$0xff]
      %v1915 = vld [vmem:[%s1907 + $0x38] sm:$0xff]
      %1916 = vmax.xlane.f32.xlu0 %v1899
      %v1917 = vpop.xlane.xlu0 %1916
      %1918 = vmax.xlane.f32.xlu0 %v1900
      %v1919 = vpop.xlane.xlu0 %1918
      %1920 = vmax.xlane.f32.xlu0 %v1901
      %v1921 = vpop.xlane.xlu0 %1920
      %1922 = vmax.xlane.f32.xlu0 %v1902
      %v1923 = vpop.xlane.xlu0 %1922
      %1924 = vmax.xlane.f32.xlu0 %v1903
      %v1925 = vpop.xlane.xlu0 %1924
      %1926 = vmax.xlane.f32.xlu0 %v1904
      %v1927 = vpop.xlane.xlu0 %1926
      %1928 = vmax.xlane.f32.xlu0 %v1905
      %v1929 = vpop.xlane.xlu0 %1928
      %1930 = vmax.xlane.f32.xlu0 %v1906
      %v1931 = vpop.xlane.xlu0 %1930
      %v1932 = vmax.f32 %v1908, %v1917
      %v1933 = vmax.f32 %v1909, %v1919
      %v1934 = vmax.f32 %v1910, %v1921
      %v1935 = vmax.f32 %v1911, %v1923
      %v1936 = vmax.f32 %v1912, %v1925
      %v1937 = vmax.f32 %v1913, %v1927
      %v1938 = vmax.f32 %v1914, %v1929
      %v1939 = vmax.f32 %v1915, %v1931
      %v1940 = vsub.f32 %v1908, %v1932
      %v1941 = vsub.f32 %v1909, %v1933
      %v1942 = vsub.f32 %v1910, %v1934
      %v1943 = vsub.f32 %v1911, %v1935
      %v1944 = vsub.f32 %v1912, %v1936
      %v1945 = vsub.f32 %v1913, %v1937
      %v1946 = vsub.f32 %v1914, %v1938
      %v1947 = vsub.f32 %v1915, %v1939
      %v1948 = vmul.f32 %v1940, 1.442695
      %v1949 = vpow.pop %v1948
      %v1950 = vmul.f32 %v1941, 1.442695
      %v1951 = vpow.pop %v1950
      %v1952 = vmul.f32 %v1942, 1.442695
      %v1953 = vpow.pop %v1952
      %v1954 = vmul.f32 %v1943, 1.442695
      %v1955 = vpow.pop %v1954
      %v1956 = vmul.f32 %v1944, 1.442695
      %v1957 = vpow.pop %v1956
      %v1958 = vmul.f32 %v1945, 1.442695
      %v1959 = vpow.pop %v1958
      %v1960 = vmul.f32 %v1946, 1.442695
      %v1961 = vpow.pop %v1960
      %v1962 = vmul.f32 %v1947, 1.442695
      %v1963 = vpow.pop %v1962
      %1965 = vset.pattern.permute.xlu0 0
      %1966 = vperm.xlu0 %1965, %v1932
      %v1967 = vpop.permute.xlu0 %1966
      %1970 = vset.pattern.permute.xlu0 0
      %1971 = vperm.xlu0 %1970, %v1933
      %v1972 = vpop.permute.xlu0 %1971
      %1975 = vset.pattern.permute.xlu0 0
      %1976 = vperm.xlu0 %1975, %v1934
      %v1977 = vpop.permute.xlu0 %1976
      %1980 = vset.pattern.permute.xlu0 0
      %1981 = vperm.xlu0 %1980, %v1935
      %v1982 = vpop.permute.xlu0 %1981
      %1985 = vset.pattern.permute.xlu0 0
      %1986 = vperm.xlu0 %1985, %v1936
      %v1987 = vpop.permute.xlu0 %1986
      %1990 = vset.pattern.permute.xlu0 0
      %1991 = vperm.xlu0 %1990, %v1937
      %v1992 = vpop.permute.xlu0 %1991
      %1995 = vset.pattern.permute.xlu0 0
      %1996 = vperm.xlu0 %1995, %v1938
      %v1997 = vpop.permute.xlu0 %1996
      %2000 = vset.pattern.permute.xlu0 0
      %2001 = vperm.xlu0 %2000, %v1939
      %v2002 = vpop.permute.xlu0 %2001
      %v2004 = vsub.f32 %v1899, %v1967
      %v2005 = vsub.f32 %v1900, %v1972
      %v2006 = vsub.f32 %v1901, %v1977
      %v2007 = vsub.f32 %v1902, %v1982
      %v2008 = vsub.f32 %v1903, %v1987
      %v2009 = vsub.f32 %v1904, %v1992
      %v2010 = vsub.f32 %v1905, %v1997
      %v2011 = vsub.f32 %v1906, %v2002
      %v2012 = vmul.f32 %v2004, 1.442695
      %v2013 = vpow.pop %v2012
      %v2014 = vmul.f32 %v2005, 1.442695
      %v2015 = vpow.pop %v2014
      %v2016 = vmul.f32 %v2006, 1.442695
      %v2017 = vpow.pop %v2016
      %v2018 = vmul.f32 %v2007, 1.442695
      %v2019 = vpow.pop %v2018
      %v2020 = vmul.f32 %v2008, 1.442695
      %v2021 = vpow.pop %v2020
      %v2022 = vmul.f32 %v2009, 1.442695
      %v2023 = vpow.pop %v2022
      %v2024 = vmul.f32 %v2010, 1.442695
      %v2025 = vpow.pop %v2024
      %v2026 = vmul.f32 %v2011, 1.442695
      %v2027 = vpow.pop %v2026
      %s2028 = scalar_lea.vmem [#allocation3], 192
      %v2029 = vld [vmem:[%s2028] sm:$0xff]
      %v2030 = vld [vmem:[%s2028 + $0x8] sm:$0xff]
      %v2031 = vld [vmem:[%s2028 + $0x10] sm:$0xff]
      %v2032 = vld [vmem:[%s2028 + $0x18] sm:$0xff]
      %v2033 = vld [vmem:[%s2028 + $0x20] sm:$0xff]
      %v2034 = vld [vmem:[%s2028 + $0x28] sm:$0xff]
      %v2035 = vld [vmem:[%s2028 + $0x30] sm:$0xff]
      %v2036 = vld [vmem:[%s2028 + $0x38] sm:$0xff]
      %v2037 = vmul.f32 %v1949, %v2029
      %v2038 = vmul.f32 %v1951, %v2030
      %v2039 = vmul.f32 %v1953, %v2031
      %v2040 = vmul.f32 %v1955, %v2032
      %v2041 = vmul.f32 %v1957, %v2033
      %v2042 = vmul.f32 %v1959, %v2034
      %v2043 = vmul.f32 %v1961, %v2035
      %v2044 = vmul.f32 %v1963, %v2036
      %2045 = vadd.xlane.f32.xlu0 %v2013
      %v2046 = vpop.xlane.xlu0 %2045
      %2047 = vadd.xlane.f32.xlu0 %v2015
      %v2048 = vpop.xlane.xlu0 %2047
      %2049 = vadd.xlane.f32.xlu0 %v2017
      %v2050 = vpop.xlane.xlu0 %2049
      %2051 = vadd.xlane.f32.xlu0 %v2019
      %v2052 = vpop.xlane.xlu0 %2051
      %2053 = vadd.xlane.f32.xlu0 %v2021
      %v2054 = vpop.xlane.xlu0 %2053
      %2055 = vadd.xlane.f32.xlu0 %v2023
      %v2056 = vpop.xlane.xlu0 %2055
      %2057 = vadd.xlane.f32.xlu0 %v2025
      %v2058 = vpop.xlane.xlu0 %2057
      %2059 = vadd.xlane.f32.xlu0 %v2027
      %v2060 = vpop.xlane.xlu0 %2059
      %v2061 = vadd.f32 %v2037, %v2046
      %v2062 = vadd.f32 %v2038, %v2048
      %v2063 = vadd.f32 %v2039, %v2050
      %v2064 = vadd.f32 %v2040, %v2052
      %v2065 = vadd.f32 %v2041, %v2054
      %v2066 = vadd.f32 %v2042, %v2056
      %v2067 = vadd.f32 %v2043, %v2058
      %v2068 = vadd.f32 %v2044, %v2060
      %2069 = vst.msk [vmem:[%s2028] sm:$0xff] %vm806, %v2061
      %2070 = vst.msk [vmem:[%s2028 + $0x8] sm:$0xff] %vm806, %v2062
      %2071 = vst.msk [vmem:[%s2028 + $0x10] sm:$0xff] %vm806, %v2063
      %2072 = vst.msk [vmem:[%s2028 + $0x18] sm:$0xff] %vm806, %v2064
      %2073 = vst.msk [vmem:[%s2028 + $0x20] sm:$0xff] %vm806, %v2065
      %2074 = vst.msk [vmem:[%s2028 + $0x28] sm:$0xff] %vm806, %v2066
      %2075 = vst.msk [vmem:[%s2028 + $0x30] sm:$0xff] %vm806, %v2067
      %2076 = vst.msk [vmem:[%s2028 + $0x38] sm:$0xff] %vm806, %v2068
      %s2077 = scalar_lea.vmem [#allocation4], 192
      %v2078 = vld [vmem:[%s2077] sm:$0xff]
      %v2079 = vld [vmem:[%s2077 + $0x8] sm:$0xff]
      %v2080 = vld [vmem:[%s2077 + $0x10] sm:$0xff]
      %v2081 = vld [vmem:[%s2077 + $0x18] sm:$0xff]
      %v2082 = vld [vmem:[%s2077 + $0x20] sm:$0xff]
      %v2083 = vld [vmem:[%s2077 + $0x28] sm:$0xff]
      %v2084 = vld [vmem:[%s2077 + $0x30] sm:$0xff]
      %v2085 = vld [vmem:[%s2077 + $0x38] sm:$0xff]
      %2087 = vset.pattern.permute.xlu0 0
      %2088 = vperm.xlu0 %2087, %v1949
      %v2089 = vpop.permute.xlu0 %2088
      %2092 = vset.pattern.permute.xlu0 0
      %2093 = vperm.xlu0 %2092, %v1951
      %v2094 = vpop.permute.xlu0 %2093
      %2097 = vset.pattern.permute.xlu0 0
      %2098 = vperm.xlu0 %2097, %v1953
      %v2099 = vpop.permute.xlu0 %2098
      %2102 = vset.pattern.permute.xlu0 0
      %2103 = vperm.xlu0 %2102, %v1955
      %v2104 = vpop.permute.xlu0 %2103
      %2107 = vset.pattern.permute.xlu0 0
      %2108 = vperm.xlu0 %2107, %v1957
      %v2109 = vpop.permute.xlu0 %2108
      %2112 = vset.pattern.permute.xlu0 0
      %2113 = vperm.xlu0 %2112, %v1959
      %v2114 = vpop.permute.xlu0 %2113
      %2117 = vset.pattern.permute.xlu0 0
      %2118 = vperm.xlu0 %2117, %v1961
      %v2119 = vpop.permute.xlu0 %2118
      %2122 = vset.pattern.permute.xlu0 0
      %2123 = vperm.xlu0 %2122, %v1963
      %v2124 = vpop.permute.xlu0 %2123
      %v2126 = vmul.f32 %v2089, %v2078
      %v2127 = vmul.f32 %v2094, %v2079
      %v2128 = vmul.f32 %v2099, %v2080
      %v2129 = vmul.f32 %v2104, %v2081
      %v2130 = vmul.f32 %v2109, %v2082
      %v2131 = vmul.f32 %v2114, %v2083
      %v2132 = vmul.f32 %v2119, %v2084
      %v2133 = vmul.f32 %v2124, %v2085
      %v2134 = vpack.c.bf16 %v2015, %v2013
      %v2135 = vpack.c.bf16 %v2019, %v2017
      %v2136 = vpack.c.bf16 %v2023, %v2021
      %v2137 = vpack.c.bf16 %v2027, %v2025
      %2138 = vrot.lane.b32.xlu0 %v907, 80
      %v2139 = vpop.permute.xlu0 %2138
      %2140 = vrot.lane.b32.xlu0 %v908, 80
      %v2141 = vpop.permute.xlu0 %2140
      %2142 = vrot.lane.b32.xlu0 %v909, 80
      %v2143 = vpop.permute.xlu0 %2142
      %2144 = vrot.lane.b32.xlu0 %v910, 80
      %v2145 = vpop.permute.xlu0 %2144
      %2146 = vrot.lane.b32.xlu0 %v911, 80
      %v2147 = vpop.permute.xlu0 %2146
      %2148 = vrot.lane.b32.xlu0 %v912, 80
      %v2149 = vpop.permute.xlu0 %2148
      %2150 = vrot.lane.b32.xlu0 %v913, 80
      %v2151 = vpop.permute.xlu0 %2150
      %2152 = vrot.lane.b32.xlu0 %v914, 80
      %v2153 = vpop.permute.xlu0 %2152
      %2162 = vmatpush.bf16.msra.mxu0 %v2153
      %2163 = vmatpush.bf16.msra.mxu0 %v2151
      %2164 = vmatpush.bf16.msra.mxu0 %v2149
      %2165 = vmatpush.bf16.msra.mxu0 %v2147
      %2166 = vmatpush.bf16.msra.mxu0 %v2145
      %2167 = vmatpush.bf16.msra.mxu0 %v2143
      %2168 = vmatpush.bf16.msra.mxu0 %v2141
      %2169 = vmatpush.bf16.msra.mxu0 %v2139
      %2170 = vmatmul.bf16.gmra.mxu0 %v2134
      %v2171 = vpop.f32.mrf.mxu0
      %v2172 = vadd.f32 0.0, %v2171
      %v2173 = vpop.f32.mrf.mxu0
      %v2174 = vadd.f32 0.0, %v2173
      %2175 = vmatmul.bf16.gmra.mxu0 %v2135
      %v2176 = vpop.f32.mrf.mxu0
      %v2177 = vadd.f32 0.0, %v2176
      %v2178 = vpop.f32.mrf.mxu0
      %v2179 = vadd.f32 0.0, %v2178
      %2180 = vmatmul.bf16.gmra.mxu0 %v2136
      %v2181 = vpop.f32.mrf.mxu0
      %v2182 = vadd.f32 0.0, %v2181
      %v2183 = vpop.f32.mrf.mxu0
      %v2184 = vadd.f32 0.0, %v2183
      %2185 = vmatmul.bf16.gmra.mxu0 %v2137
      %v2186 = vpop.f32.mrf.mxu0
      %v2187 = vadd.f32 0.0, %v2186
      %v2188 = vpop.f32.mrf.mxu0
      %v2189 = vadd.f32 0.0, %v2188
      %2190 = vdwg.mxu0
      %v2191 = vadd.f32 %v2126, %v2172
      %v2192 = vadd.f32 %v2127, %v2174
      %v2193 = vadd.f32 %v2128, %v2177
      %v2194 = vadd.f32 %v2129, %v2179
      %v2195 = vadd.f32 %v2130, %v2182
      %v2196 = vadd.f32 %v2131, %v2184
      %v2197 = vadd.f32 %v2132, %v2187
      %v2198 = vadd.f32 %v2133, %v2189
      %2199 = vst.msk [vmem:[%s2077] sm:$0xff] %vm564, %v2191
      %2200 = vst.msk [vmem:[%s2077 + $0x8] sm:$0xff] %vm564, %v2192
      %2201 = vst.msk [vmem:[%s2077 + $0x10] sm:$0xff] %vm564, %v2193
      %2202 = vst.msk [vmem:[%s2077 + $0x18] sm:$0xff] %vm564, %v2194
      %2203 = vst.msk [vmem:[%s2077 + $0x20] sm:$0xff] %vm564, %v2195
      %2204 = vst.msk [vmem:[%s2077 + $0x28] sm:$0xff] %vm564, %v2196
      %2205 = vst.msk [vmem:[%s2077 + $0x30] sm:$0xff] %vm564, %v2197
      %2206 = vst.msk [vmem:[%s2077 + $0x38] sm:$0xff] %vm564, %v2198
      %2207 = vst.msk [vmem:[%s1907] sm:$0xff] %vm806, %v1932
      %2208 = vst.msk [vmem:[%s1907 + $0x8] sm:$0xff] %vm806, %v1933
      %2209 = vst.msk [vmem:[%s1907 + $0x10] sm:$0xff] %vm806, %v1934
      %2210 = vst.msk [vmem:[%s1907 + $0x18] sm:$0xff] %vm806, %v1935
      %2211 = vst.msk [vmem:[%s1907 + $0x20] sm:$0xff] %vm806, %v1936
      %2212 = vst.msk [vmem:[%s1907 + $0x28] sm:$0xff] %vm806, %v1937
      %2213 = vst.msk [vmem:[%s1907 + $0x30] sm:$0xff] %vm806, %v1938
      %2214 = vst.msk [vmem:[%s1907 + $0x38] sm:$0xff] %vm806, %v1939
      // Predicated region
      $region45: #{core_forward.11} parent=39 // pred_check
        %p2215 = pneg %p320
      $region46: #{core_forward.11} parent=39 // pred_check_branch
        %2217 = sbr.rel (%p2215) target = $region48
      $region47: #{core_forward.11} parent=39 // pred_region
        %v2218 = vld [vmem:[#allocation4] sm:$0xff]
        %v2219 = vld [vmem:[#allocation4 + $0x8] sm:$0xff]
        %v2220 = vld [vmem:[#allocation4 + $0x10] sm:$0xff]
        %v2221 = vld [vmem:[#allocation4 + $0x18] sm:$0xff]
        %v2222 = vld [vmem:[#allocation4 + $0x20] sm:$0xff]
        %v2223 = vld [vmem:[#allocation4 + $0x28] sm:$0xff]
        %v2224 = vld [vmem:[#allocation4 + $0x30] sm:$0xff]
        %v2225 = vld [vmem:[#allocation4 + $0x38] sm:$0xff]
        %v2226 = vld [vmem:[#allocation3] sm:$0xff]
        %v2227 = vld [vmem:[#allocation3 + $0x8] sm:$0xff]
        %v2228 = vld [vmem:[#allocation3 + $0x10] sm:$0xff]
        %v2229 = vld [vmem:[#allocation3 + $0x18] sm:$0xff]
        %v2230 = vld [vmem:[#allocation3 + $0x20] sm:$0xff]
        %v2231 = vld [vmem:[#allocation3 + $0x28] sm:$0xff]
        %v2232 = vld [vmem:[#allocation3 + $0x30] sm:$0xff]
        %v2233 = vld [vmem:[#allocation3 + $0x38] sm:$0xff]
        %v2234 = vrcp.pop %v2226
        %v2235 = vrcp.pop %v2227
        %v2236 = vrcp.pop %v2228
        %v2237 = vrcp.pop %v2229
        %v2238 = vrcp.pop %v2230
        %v2239 = vrcp.pop %v2231
        %v2240 = vrcp.pop %v2232
        %v2241 = vrcp.pop %v2233
        %2243 = vset.pattern.permute.xlu0 0
        %2244 = vperm.xlu0 %2243, %v2234
        %v2245 = vpop.permute.xlu0 %2244
        %2248 = vset.pattern.permute.xlu0 0
        %2249 = vperm.xlu0 %2248, %v2235
        %v2250 = vpop.permute.xlu0 %2249
        %2253 = vset.pattern.permute.xlu0 0
        %2254 = vperm.xlu0 %2253, %v2236
        %v2255 = vpop.permute.xlu0 %2254
        %2258 = vset.pattern.permute.xlu0 0
        %2259 = vperm.xlu0 %2258, %v2237
        %v2260 = vpop.permute.xlu0 %2259
        %2263 = vset.pattern.permute.xlu0 0
        %2264 = vperm.xlu0 %2263, %v2238
        %v2265 = vpop.permute.xlu0 %2264
        %2268 = vset.pattern.permute.xlu0 0
        %2269 = vperm.xlu0 %2268, %v2239
        %v2270 = vpop.permute.xlu0 %2269
        %2273 = vset.pattern.permute.xlu0 0
        %2274 = vperm.xlu0 %2273, %v2240
        %v2275 = vpop.permute.xlu0 %2274
        %2278 = vset.pattern.permute.xlu0 0
        %2279 = vperm.xlu0 %2278, %v2241
        %v2280 = vpop.permute.xlu0 %2279
        %v2282 = vmul.f32 %v2218, %v2245
        %v2283 = vmul.f32 %v2219, %v2250
        %v2284 = vmul.f32 %v2220, %v2255
        %v2285 = vmul.f32 %v2221, %v2260
        %v2286 = vmul.f32 %v2222, %v2265
        %v2287 = vmul.f32 %v2223, %v2270
        %v2288 = vmul.f32 %v2224, %v2275
        %v2289 = vmul.f32 %v2225, %v2280
        %v2290 = vpack.c.bf16 %v2282, %v2282
        %v2291 = vpack.c.bf16 %v2283, %v2283
        %v2292 = vpack.c.bf16 %v2284, %v2284
        %v2293 = vpack.c.bf16 %v2285, %v2285
        %v2294 = vpack.c.bf16 %v2286, %v2286
        %v2295 = vpack.c.bf16 %v2287, %v2287
        %v2296 = vpack.c.bf16 %v2288, %v2288
        %v2297 = vpack.c.bf16 %v2289, %v2289
        %vm2298 = vcmask 125952
        %2299 = vst.msk [vmem:[%s318] sm:$0xf] %vm2298, %v2290
        %2300 = vst.msk [vmem:[%s318 + $0x4] sm:$0xf] %vm2298, %v2291
        %2301 = vst.msk [vmem:[%s318 + $0x8] sm:$0xf] %vm2298, %v2292
        %2302 = vst.msk [vmem:[%s318 + $0xc] sm:$0xf] %vm2298, %v2293
        %2303 = vst.msk [vmem:[%s318 + $0x10] sm:$0xf] %vm2298, %v2294
        %2304 = vst.msk [vmem:[%s318 + $0x14] sm:$0xf] %vm2298, %v2295
        %2305 = vst.msk [vmem:[%s318 + $0x18] sm:$0xf] %vm2298, %v2296
        %2306 = vst.msk [vmem:[%s318 + $0x1c] sm:$0xf] %vm2298, %v2297
        %v2307 = vld [vmem:[%s1251] sm:$0xff]
        %v2308 = vld [vmem:[%s1251 + $0x8] sm:$0xff]
        %v2309 = vld [vmem:[%s1251 + $0x10] sm:$0xff]
        %v2310 = vld [vmem:[%s1251 + $0x18] sm:$0xff]
        %v2311 = vld [vmem:[%s1251 + $0x20] sm:$0xff]
        %v2312 = vld [vmem:[%s1251 + $0x28] sm:$0xff]
        %v2313 = vld [vmem:[%s1251 + $0x30] sm:$0xff]
        %v2314 = vld [vmem:[%s1251 + $0x38] sm:$0xff]
        %v2315 = vld [vmem:[%s1202] sm:$0xff]
        %v2316 = vld [vmem:[%s1202 + $0x8] sm:$0xff]
        %v2317 = vld [vmem:[%s1202 + $0x10] sm:$0xff]
        %v2318 = vld [vmem:[%s1202 + $0x18] sm:$0xff]
        %v2319 = vld [vmem:[%s1202 + $0x20] sm:$0xff]
        %v2320 = vld [vmem:[%s1202 + $0x28] sm:$0xff]
        %v2321 = vld [vmem:[%s1202 + $0x30] sm:$0xff]
        %v2322 = vld [vmem:[%s1202 + $0x38] sm:$0xff]
        %v2323 = vrcp.pop %v2315
        %v2324 = vrcp.pop %v2316
        %v2325 = vrcp.pop %v2317
        %v2326 = vrcp.pop %v2318
        %v2327 = vrcp.pop %v2319
        %v2328 = vrcp.pop %v2320
        %v2329 = vrcp.pop %v2321
        %v2330 = vrcp.pop %v2322
        %2332 = vset.pattern.permute.xlu0 0
        %2333 = vperm.xlu0 %2332, %v2323
        %v2334 = vpop.permute.xlu0 %2333
        %2337 = vset.pattern.permute.xlu0 0
        %2338 = vperm.xlu0 %2337, %v2324
        %v2339 = vpop.permute.xlu0 %2338
        %2342 = vset.pattern.permute.xlu0 0
        %2343 = vperm.xlu0 %2342, %v2325
        %v2344 = vpop.permute.xlu0 %2343
        %2347 = vset.pattern.permute.xlu0 0
        %2348 = vperm.xlu0 %2347, %v2326
        %v2349 = vpop.permute.xlu0 %2348
        %2352 = vset.pattern.permute.xlu0 0
        %2353 = vperm.xlu0 %2352, %v2327
        %v2354 = vpop.permute.xlu0 %2353
        %2357 = vset.pattern.permute.xlu0 0
        %2358 = vperm.xlu0 %2357, %v2328
        %v2359 = vpop.permute.xlu0 %2358
        %2362 = vset.pattern.permute.xlu0 0
        %2363 = vperm.xlu0 %2362, %v2329
        %v2364 = vpop.permute.xlu0 %2363
        %2367 = vset.pattern.permute.xlu0 0
        %2368 = vperm.xlu0 %2367, %v2330
        %v2369 = vpop.permute.xlu0 %2368
        %v2371 = vmul.f32 %v2307, %v2334
        %v2372 = vmul.f32 %v2308, %v2339
        %v2373 = vmul.f32 %v2309, %v2344
        %v2374 = vmul.f32 %v2310, %v2349
        %v2375 = vmul.f32 %v2311, %v2354
        %v2376 = vmul.f32 %v2312, %v2359
        %v2377 = vmul.f32 %v2313, %v2364
        %v2378 = vmul.f32 %v2314, %v2369
        %v2379 = vpack.c.bf16 %v2371, %v2371
        %v2380 = vpack.c.bf16 %v2372, %v2372
        %v2381 = vpack.c.bf16 %v2373, %v2373
        %v2382 = vpack.c.bf16 %v2374, %v2374
        %v2383 = vpack.c.bf16 %v2375, %v2375
        %v2384 = vpack.c.bf16 %v2376, %v2376
        %v2385 = vpack.c.bf16 %v2377, %v2377
        %v2386 = vpack.c.bf16 %v2378, %v2378
        %2395 = vrot.lane.b32.xlu0 %v2379, 16
        %v2396 = vpop.permute.xlu0 %2395
        %2397 = vrot.lane.b32.xlu0 %v2380, 16
        %v2398 = vpop.permute.xlu0 %2397
        %2399 = vrot.lane.b32.xlu0 %v2381, 16
        %v2400 = vpop.permute.xlu0 %2399
        %2401 = vrot.lane.b32.xlu0 %v2382, 16
        %v2402 = vpop.permute.xlu0 %2401
        %2403 = vrot.lane.b32.xlu0 %v2383, 16
        %v2404 = vpop.permute.xlu0 %2403
        %2405 = vrot.lane.b32.xlu0 %v2384, 16
        %v2406 = vpop.permute.xlu0 %2405
        %2407 = vrot.lane.b32.xlu0 %v2385, 16
        %v2408 = vpop.permute.xlu0 %2407
        %2409 = vrot.lane.b32.xlu0 %v2386, 16
        %v2410 = vpop.permute.xlu0 %2409
        %vm2419 = vcmask 257152
        %2420 = vst.msk [vmem:[%s318] sm:$0xf] %vm2419, %v2396
        %2421 = vst.msk [vmem:[%s318 + $0x4] sm:$0xf] %vm2419, %v2398
        %2422 = vst.msk [vmem:[%s318 + $0x8] sm:$0xf] %vm2419, %v2400
        %2423 = vst.msk [vmem:[%s318 + $0xc] sm:$0xf] %vm2419, %v2402
        %2424 = vst.msk [vmem:[%s318 + $0x10] sm:$0xf] %vm2419, %v2404
        %2425 = vst.msk [vmem:[%s318 + $0x14] sm:$0xf] %vm2419, %v2406
        %2426 = vst.msk [vmem:[%s318 + $0x18] sm:$0xf] %vm2419, %v2408
        %2427 = vst.msk [vmem:[%s318 + $0x1c] sm:$0xf] %vm2419, %v2410
        %v2428 = vld [vmem:[%s1664] sm:$0xff]
        %v2429 = vld [vmem:[%s1664 + $0x8] sm:$0xff]
        %v2430 = vld [vmem:[%s1664 + $0x10] sm:$0xff]
        %v2431 = vld [vmem:[%s1664 + $0x18] sm:$0xff]
        %v2432 = vld [vmem:[%s1664 + $0x20] sm:$0xff]
        %v2433 = vld [vmem:[%s1664 + $0x28] sm:$0xff]
        %v2434 = vld [vmem:[%s1664 + $0x30] sm:$0xff]
        %v2435 = vld [vmem:[%s1664 + $0x38] sm:$0xff]
        %v2436 = vld [vmem:[%s1615] sm:$0xff]
        %v2437 = vld [vmem:[%s1615 + $0x8] sm:$0xff]
        %v2438 = vld [vmem:[%s1615 + $0x10] sm:$0xff]
        %v2439 = vld [vmem:[%s1615 + $0x18] sm:$0xff]
        %v2440 = vld [vmem:[%s1615 + $0x20] sm:$0xff]
        %v2441 = vld [vmem:[%s1615 + $0x28] sm:$0xff]
        %v2442 = vld [vmem:[%s1615 + $0x30] sm:$0xff]
        %v2443 = vld [vmem:[%s1615 + $0x38] sm:$0xff]
        %v2444 = vrcp.pop %v2436
        %v2445 = vrcp.pop %v2437
        %v2446 = vrcp.pop %v2438
        %v2447 = vrcp.pop %v2439
        %v2448 = vrcp.pop %v2440
        %v2449 = vrcp.pop %v2441
        %v2450 = vrcp.pop %v2442
        %v2451 = vrcp.pop %v2443
        %2453 = vset.pattern.permute.xlu0 0
        %2454 = vperm.xlu0 %2453, %v2444
        %v2455 = vpop.permute.xlu0 %2454
        %2458 = vset.pattern.permute.xlu0 0
        %2459 = vperm.xlu0 %2458, %v2445
        %v2460 = vpop.permute.xlu0 %2459
        %2463 = vset.pattern.permute.xlu0 0
        %2464 = vperm.xlu0 %2463, %v2446
        %v2465 = vpop.permute.xlu0 %2464
        %2468 = vset.pattern.permute.xlu0 0
        %2469 = vperm.xlu0 %2468, %v2447
        %v2470 = vpop.permute.xlu0 %2469
        %2473 = vset.pattern.permute.xlu0 0
        %2474 = vperm.xlu0 %2473, %v2448
        %v2475 = vpop.permute.xlu0 %2474
        %2478 = vset.pattern.permute.xlu0 0
        %2479 = vperm.xlu0 %2478, %v2449
        %v2480 = vpop.permute.xlu0 %2479
        %2483 = vset.pattern.permute.xlu0 0
        %2484 = vperm.xlu0 %2483, %v2450
        %v2485 = vpop.permute.xlu0 %2484
        %2488 = vset.pattern.permute.xlu0 0
        %2489 = vperm.xlu0 %2488, %v2451
        %v2490 = vpop.permute.xlu0 %2489
        %v2492 = vmul.f32 %v2428, %v2455
        %v2493 = vmul.f32 %v2429, %v2460
        %v2494 = vmul.f32 %v2430, %v2465
        %v2495 = vmul.f32 %v2431, %v2470
        %v2496 = vmul.f32 %v2432, %v2475
        %v2497 = vmul.f32 %v2433, %v2480
        %v2498 = vmul.f32 %v2434, %v2485
        %v2499 = vmul.f32 %v2435, %v2490
        %v2500 = vpack.c.bf16 %v2492, %v2492
        %v2501 = vpack.c.bf16 %v2493, %v2493
        %v2502 = vpack.c.bf16 %v2494, %v2494
        %v2503 = vpack.c.bf16 %v2495, %v2495
        %v2504 = vpack.c.bf16 %v2496, %v2496
        %v2505 = vpack.c.bf16 %v2497, %v2497
        %v2506 = vpack.c.bf16 %v2498, %v2498
        %v2507 = vpack.c.bf16 %v2499, %v2499
        %2516 = vrot.lane.b32.xlu0 %v2500, 32
        %v2517 = vpop.permute.xlu0 %2516
        %2518 = vrot.lane.b32.xlu0 %v2501, 32
        %v2519 = vpop.permute.xlu0 %2518
        %2520 = vrot.lane.b32.xlu0 %v2502, 32
        %v2521 = vpop.permute.xlu0 %2520
        %2522 = vrot.lane.b32.xlu0 %v2503, 32
        %v2523 = vpop.permute.xlu0 %2522
        %2524 = vrot.lane.b32.xlu0 %v2504, 32
        %v2525 = vpop.permute.xlu0 %2524
        %2526 = vrot.lane.b32.xlu0 %v2505, 32
        %v2527 = vpop.permute.xlu0 %2526
        %2528 = vrot.lane.b32.xlu0 %v2506, 32
        %v2529 = vpop.permute.xlu0 %2528
        %2530 = vrot.lane.b32.xlu0 %v2507, 32
        %v2531 = vpop.permute.xlu0 %2530
        %vm2540 = vcmask 388352
        %2541 = vst.msk [vmem:[%s318] sm:$0xf] %vm2540, %v2517
        %2542 = vst.msk [vmem:[%s318 + $0x4] sm:$0xf] %vm2540, %v2519
        %2543 = vst.msk [vmem:[%s318 + $0x8] sm:$0xf] %vm2540, %v2521
        %2544 = vst.msk [vmem:[%s318 + $0xc] sm:$0xf] %vm2540, %v2523
        %2545 = vst.msk [vmem:[%s318 + $0x10] sm:$0xf] %vm2540, %v2525
        %2546 = vst.msk [vmem:[%s318 + $0x14] sm:$0xf] %vm2540, %v2527
        %2547 = vst.msk [vmem:[%s318 + $0x18] sm:$0xf] %vm2540, %v2529
        %2548 = vst.msk [vmem:[%s318 + $0x1c] sm:$0xf] %vm2540, %v2531
        %v2549 = vld [vmem:[%s2077] sm:$0xff]
        %v2550 = vld [vmem:[%s2077 + $0x8] sm:$0xff]
        %v2551 = vld [vmem:[%s2077 + $0x10] sm:$0xff]
        %v2552 = vld [vmem:[%s2077 + $0x18] sm:$0xff]
        %v2553 = vld [vmem:[%s2077 + $0x20] sm:$0xff]
        %v2554 = vld [vmem:[%s2077 + $0x28] sm:$0xff]
        %v2555 = vld [vmem:[%s2077 + $0x30] sm:$0xff]
        %v2556 = vld [vmem:[%s2077 + $0x38] sm:$0xff]
        %v2557 = vld [vmem:[%s2028] sm:$0xff]
        %v2558 = vld [vmem:[%s2028 + $0x8] sm:$0xff]
        %v2559 = vld [vmem:[%s2028 + $0x10] sm:$0xff]
        %v2560 = vld [vmem:[%s2028 + $0x18] sm:$0xff]
        %v2561 = vld [vmem:[%s2028 + $0x20] sm:$0xff]
        %v2562 = vld [vmem:[%s2028 + $0x28] sm:$0xff]
        %v2563 = vld [vmem:[%s2028 + $0x30] sm:$0xff]
        %v2564 = vld [vmem:[%s2028 + $0x38] sm:$0xff]
        %v2565 = vrcp.pop %v2557
        %v2566 = vrcp.pop %v2558
        %v2567 = vrcp.pop %v2559
        %v2568 = vrcp.pop %v2560
        %v2569 = vrcp.pop %v2561
        %v2570 = vrcp.pop %v2562
        %v2571 = vrcp.pop %v2563
        %v2572 = vrcp.pop %v2564
        %2574 = vset.pattern.permute.xlu0 0
        %2575 = vperm.xlu0 %2574, %v2565
        %v2576 = vpop.permute.xlu0 %2575
        %2579 = vset.pattern.permute.xlu0 0
        %2580 = vperm.xlu0 %2579, %v2566
        %v2581 = vpop.permute.xlu0 %2580
        %2584 = vset.pattern.permute.xlu0 0
        %2585 = vperm.xlu0 %2584, %v2567
        %v2586 = vpop.permute.xlu0 %2585
        %2589 = vset.pattern.permute.xlu0 0
        %2590 = vperm.xlu0 %2589, %v2568
        %v2591 = vpop.permute.xlu0 %2590
        %2594 = vset.pattern.permute.xlu0 0
        %2595 = vperm.xlu0 %2594, %v2569
        %v2596 = vpop.permute.xlu0 %2595
        %2599 = vset.pattern.permute.xlu0 0
        %2600 = vperm.xlu0 %2599, %v2570
        %v2601 = vpop.permute.xlu0 %2600
        %2604 = vset.pattern.permute.xlu0 0
        %2605 = vperm.xlu0 %2604, %v2571
        %v2606 = vpop.permute.xlu0 %2605
        %2609 = vset.pattern.permute.xlu0 0
        %2610 = vperm.xlu0 %2609, %v2572
        %v2611 = vpop.permute.xlu0 %2610
        %v2613 = vmul.f32 %v2549, %v2576
        %v2614 = vmul.f32 %v2550, %v2581
        %v2615 = vmul.f32 %v2551, %v2586
        %v2616 = vmul.f32 %v2552, %v2591
        %v2617 = vmul.f32 %v2553, %v2596
        %v2618 = vmul.f32 %v2554, %v2601
        %v2619 = vmul.f32 %v2555, %v2606
        %v2620 = vmul.f32 %v2556, %v2611
        %v2621 = vpack.c.bf16 %v2613, %v2613
        %v2622 = vpack.c.bf16 %v2614, %v2614
        %v2623 = vpack.c.bf16 %v2615, %v2615
        %v2624 = vpack.c.bf16 %v2616, %v2616
        %v2625 = vpack.c.bf16 %v2617, %v2617
        %v2626 = vpack.c.bf16 %v2618, %v2618
        %v2627 = vpack.c.bf16 %v2619, %v2619
        %v2628 = vpack.c.bf16 %v2620, %v2620
        %2637 = vrot.lane.b32.xlu0 %v2621, 48
        %v2638 = vpop.permute.xlu0 %2637
        %2639 = vrot.lane.b32.xlu0 %v2622, 48
        %v2640 = vpop.permute.xlu0 %2639
        %2641 = vrot.lane.b32.xlu0 %v2623, 48
        %v2642 = vpop.permute.xlu0 %2641
        %2643 = vrot.lane.b32.xlu0 %v2624, 48
        %v2644 = vpop.permute.xlu0 %2643
        %2645 = vrot.lane.b32.xlu0 %v2625, 48
        %v2646 = vpop.permute.xlu0 %2645
        %2647 = vrot.lane.b32.xlu0 %v2626, 48
        %v2648 = vpop.permute.xlu0 %2647
        %2649 = vrot.lane.b32.xlu0 %v2627, 48
        %v2650 = vpop.permute.xlu0 %2649
        %2651 = vrot.lane.b32.xlu0 %v2628, 48
        %v2652 = vpop.permute.xlu0 %2651
        %vm2661 = vcmask 519552
        %2662 = vst.msk [vmem:[%s318] sm:$0xf] %vm2661, %v2638
        %2663 = vst.msk [vmem:[%s318 + $0x4] sm:$0xf] %vm2661, %v2640
        %2664 = vst.msk [vmem:[%s318 + $0x8] sm:$0xf] %vm2661, %v2642
        %2665 = vst.msk [vmem:[%s318 + $0xc] sm:$0xf] %vm2661, %v2644
        %2666 = vst.msk [vmem:[%s318 + $0x10] sm:$0xf] %vm2661, %v2646
        %2667 = vst.msk [vmem:[%s318 + $0x14] sm:$0xf] %vm2661, %v2648
        %2668 = vst.msk [vmem:[%s318 + $0x18] sm:$0xf] %vm2661, %v2650
        %2669 = vst.msk [vmem:[%s318 + $0x1c] sm:$0xf] %vm2661, %v2652
      $region48: #{core_forward.11} parent=39 // pred_fallthru
        _
      %s2670 = smul.u32 8, %s20
      %p2671 = scmp.lt.s32.totalorder %s2670, 15
      %s2672 = scalar_select %p2671, %s2670, 15
      %s2673 = smul.addr %s2672, 4
      %s2674 = scalar_lea.vmem %s5, %s2673
      // Predicated region
      $region49: #{core_forward.11} parent=39 // pred_check
        %p2675 = pneg %p176
      $region50: #{core_forward.11} parent=39 // pred_check_branch
        %2677 = sbr.rel (%p2675) target = $region52
      $region51: #{core_forward.11} parent=39 // pred_region
        %s2678 = smul.u32 8, %s20
      $region52: #{core_forward.11} parent=39 // pred_fallthru
        _
    $region40: #{core_forward.11} parent=5 // pred_fallthru
      _
    %p2679 = scmp.le.s32.totalorder 2, %s11
    // Predicated region
    $region53: #{core_forward.11} parent=5 // pred_check
      %p2680 = pneg %p2679
    $region54: #{core_forward.11} parent=5 // pred_check_branch
      %2682 = sbr.rel (%p2680) target = $region56
    $region55: #{core_forward.11} parent=5 // pred_region
      %s2683 = ssub.s32 %s11, 2
      // Predicated region
      $region57: #{core_forward.11} parent=55 // pred_check
        %p2684 = pneg %p182
      $region58: #{core_forward.11} parent=55 // pred_check_branch
        %2686 = sbr.rel (%p2684) target = $region60
      $region59: #{core_forward.11} parent=55 // pred_region
        %s2687 = smul.u32 8, %s22
        %p2688 = scmp.lt.s32.totalorder %s2687, 15
        %s2689 = scalar_select %p2688, %s2687, 15
        %s2690 = smul.addr %s2689, 4
        %s2691 = scalar_lea.vmem %s5, %s2690
      $region60: #{core_forward.11} parent=55 // pred_fallthru
        _
    $region56: #{core_forward.11} parent=5 // pred_fallthru
      _
  $region6: #{core_forward.11} parent=0 // loop_footer
    %s15 = sadd.s32 1, %s11
  $region7: #{core_forward.11} parent=0 // loop_footer_branch
    %10 = sbr.rel target = $region3
  $region8: #{core_forward.11} parent=0 // loop_exit
    _

</llo_original>
